<compile_context>
chip_gen: v5e
topology: v5e:2x2
jax: 0.10.0
libtpu: 0.0.40
codegen_flags: <defaults>
</compile_context>

<pallas_src>
import functools

import jax
import jax.numpy as jnp
from jax.experimental import pallas as pl
from jax.experimental.pallas import tpu as pltpu


def _silu(x):
    return x * jax.nn.sigmoid(x)


def _round_up(n, m):
    return ((n + m - 1) // m) * m


def _elementwise_dtype():
    """bf16 SiLU on chips with a bf16 VPU/EUP (v6e/v7x); f32 elsewhere (v5e-)."""
    try:
        kind = jax.devices()[0].device_kind.lower()
    except Exception:
        return jnp.float32
    if "v6" in kind or "v7" in kind:
        return jnp.bfloat16
    return jnp.float32


# ----------------------------------------------------------------------------
# Kernel: 4 bf16 matmuls (f32 accumulate) + 3 SiLUs.  BN affines/biases are
# pre-folded into (w*, b*) by the wrapper.  Bias-adds are f32; SiLU runs in
# `act_dtype` (bf16 on v6e/v7x, f32 on v5e).
# ----------------------------------------------------------------------------
def mlpnet_kernel(
    x_ref,
    w1_ref, b1_ref,
    w2_ref, b2_ref,
    w3_ref, b3_ref,
    w4_ref, b4_ref,
    out_ref,
    *, act_dtype,
):
    bf16 = jnp.bfloat16

    # Linear(D_in,512) (+ folded bn0) + SiLU
    h = jnp.dot(x_ref[...], w1_ref[...],
                preferred_element_type=jnp.float32) + b1_ref[...]
    h = _silu(h.astype(act_dtype)).astype(bf16)

    # Linear(512,1024) (+ folded bn1) + SiLU   (Dropout == identity in eval)
    h = jnp.dot(h, w2_ref[...],
                preferred_element_type=jnp.float32) + b2_ref[...]
    h = _silu(h.astype(act_dtype)).astype(bf16)

    # Linear(1024,512) (+ folded bn2) + SiLU   (Dropout == identity in eval)
    h = jnp.dot(h, w3_ref[...],
                preferred_element_type=jnp.float32) + b3_ref[...]
    h = _silu(h.astype(act_dtype)).astype(bf16)

    # fc2: Linear(512, D_out_padded)
    h = jnp.dot(h, w4_ref[...],
                preferred_element_type=jnp.float32) + b4_ref[...]

    out_ref[...] = h.astype(out_ref.dtype)


# ----------------------------------------------------------------------------
# Wrapper: fold BN into weights, pad to lane-dense shapes, tile the batch.
# ----------------------------------------------------------------------------
def _fold_and_pad_params(p, d_in, d_out):
    f32 = jnp.float32
    bf16 = jnp.bfloat16

    # bn0 (pre-affine): (x*s0 + t0) @ W1 + b1 == x @ (diag(s0) @ W1) + (t0 @ W1 + b1)
    w1 = p["w1"] * p["bn0_s"].reshape(-1, 1)          # scale rows of (D_in, 512)
    b1 = p["b1"] + p["bn0_b"] @ p["w1"]               # uses the *unscaled* W1

    # bn1 (post-affine): (h @ W2 + b2)*s1 + t1 == h @ (W2*s1) + (b2*s1 + t1)
    w2 = p["w2"] * p["bn1_s"]                         # scale columns of (512, 1024)
    b2 = p["b2"] * p["bn1_s"] + p["bn1_b"]

    # bn2 (post-affine)
    w3 = p["w3"] * p["bn2_s"]
    b3 = p["b3"] * p["bn2_s"] + p["bn2_b"]

    w4 = p["w4"]
    b4 = p["b4"]

    # Pad input / output feature dims to a lane width (128) with zeros.
    d_in_pad = _round_up(d_in, 128)
    d_out_pad = _round_up(d_out, 128)
    w1 = jnp.pad(w1, ((0, d_in_pad - d_in), (0, 0)))
    w4 = jnp.pad(w4, ((0, 0), (0, d_out_pad - d_out)))
    b4 = jnp.pad(b4, ((0, 0), (0, d_out_pad - d_out)))

    folded = dict(
        w1=w1.astype(bf16), b1=b1.astype(f32),
        w2=w2.astype(bf16), b2=b2.astype(f32),
        w3=w3.astype(bf16), b3=b3.astype(f32),
        w4=w4.astype(bf16), b4=b4.astype(f32),
    )
    return folded, d_in_pad, d_out_pad


def mlpnet_forward(x, params, *, block_m=512):
    B, D_in = x.shape
    D_out = params["w4"].shape[1]

    fp, d_in_pad, d_out_pad = _fold_and_pad_params(params, D_in, D_out)

    # Batch tile: 512 (pass-aligned for the MXU) for large batches, clamped to
    # the 8-aligned batch otherwise.  ~10 MiB of VMEM/step at bm=512.
    # NOTE (v7x): with "parallel" semantics the grid shards across both TCs;
    # for mid-size batches avoid growing bm so far that each TC gets < a few
    # steps, or the duplicated weight fetch dominates.
    bm = max(8, min(block_m, _round_up(B, 8)))
    B_pad = _round_up(B, bm)

    # bf16 input: halves the per-step input DMA bytes; numerically identical
    # since the MXU operand would be rounded to bf16 in-kernel anyway.
    x_pad = x.astype(jnp.bfloat16)
    if B_pad != B or d_in_pad != D_in:
        x_pad = jnp.pad(x_pad, ((0, B_pad - B), (0, d_in_pad - D_in)))

    param_list = [
        fp["w1"], fp["b1"],
        fp["w2"], fp["b2"],
        fp["w3"], fp["b3"],
        fp["w4"], fp["b4"],
    ]

    act_dtype = _elementwise_dtype()
    kernel = functools.partial(mlpnet_kernel, act_dtype=act_dtype)

    # Advisory cost estimate for the XLA scheduler.
    flops = 2 * B_pad * (d_in_pad * 512 + 512 * 1024 + 1024 * 512 + 512 * d_out_pad)
    transcendentals = B_pad * (512 + 1024 + 512)          # one sigmoid per SiLU elem
    bytes_accessed = (
        int(x_pad.size) * x_pad.dtype.itemsize
        + sum(int(p.size) * p.dtype.itemsize for p in param_list)
        + B_pad * d_out_pad * 4
    )

    grid = (B_pad // bm,)

    def build(single_buffer_weights):
        def weight_spec(arr):
            nd = arr.ndim
            index_map = lambda i, _nd=nd: (0,) * _nd     # grid-invariant block
            if single_buffer_weights:
                # Weights never change across grid steps -> single-buffer them
                # to reclaim the duplicated double-buffer VMEM.
                return pl.BlockSpec(arr.shape, index_map,
                                    pipeline_mode=pl.Buffered(1))
            return pl.BlockSpec(arr.shape, index_map)

        in_specs = [pl.BlockSpec((bm, d_in_pad), lambda i: (i, 0))] + [
            weight_spec(p) for p in param_list
        ]
        out_spec = pl.BlockSpec((bm, d_out_pad), lambda i: (i, 0))

        return pl.pallas_call(
            kernel,
            out_shape=jax.ShapeDtypeStruct((B_pad, d_out_pad), jnp.float32),
            grid_spec=pltpu.PrefetchScalarGridSpec(
                num_scalar_prefetch=0,
                grid=grid,
                in_specs=in_specs,
                out_specs=out_spec,
            ),
            compiler_params=pltpu.CompilerParams(
                dimension_semantics=("parallel",),
                vmem_limit_bytes=32 * 1024 * 1024,
            ),
            cost_estimate=pl.CostEstimate(
                flops=flops,
                transcendentals=transcendentals,
                bytes_accessed=bytes_accessed,
            ),
        )

    single_buffer = hasattr(pl, "Buffered")
    try:
        out = build(single_buffer)(x_pad, *param_list)
    except Exception:
        # Fallback: default (double-buffered) weight BlockSpecs.
        out = build(False)(x_pad, *param_list)

    return out[:B, :D_out]


# ----------------------------------------------------------------------------
# Deterministic synthetic parameters (no checkpoint loading) + f32 reference.
# ----------------------------------------------------------------------------
def make_params(key, input_size, output_size):
    ks = jax.random.split(key, 24)
    eps = 1e-5

    def linear(kw, kb, fan_in, fan_out):
        w = jax.random.normal(kw, (fan_in, fan_out), jnp.float32) * 0.05
        b = jax.random.normal(kb, (1, fan_out), jnp.float32) * 0.01
        return w, b

    def bn(kg, kb, km, kv, dim):
        gamma = 1.0 + 0.1 * jax.random.normal(kg, (1, dim), jnp.float32)
        beta = 0.05 * jax.random.normal(kb, (1, dim), jnp.float32)
        mean = 0.1 * jax.random.normal(km, (1, dim), jnp.float32)
        var = 1.0 + 0.1 * jax.random.uniform(kv, (1, dim), jnp.float32)
        scale = gamma / jnp.sqrt(var + eps)
        shift = beta - mean * scale
        return scale, shift

    bn0_s, bn0_b = bn(ks[0], ks[1], ks[2], ks[3], input_size)
    w1, b1 = linear(ks[4], ks[5], input_size, 512)
    w2, b2 = linear(ks[6], ks[7], 512, 1024)
    bn1_s, bn1_b = bn(ks[8], ks[9], ks[10], ks[11], 1024)
    w3, b3 = linear(ks[12], ks[13], 1024, 512)
    bn2_s, bn2_b = bn(ks[14], ks[15], ks[16], ks[17], 512)
    w4, b4 = linear(ks[18], ks[19], 512, output_size)

    return dict(
        bn0_s=bn0_s, bn0_b=bn0_b,
        w1=w1, b1=b1,
        w2=w2, b2=b2,
        bn1_s=bn1_s, bn1_b=bn1_b,
        w3=w3, b3=b3,
        bn2_s=bn2_s, bn2_b=bn2_b,
        w4=w4, b4=b4,
    )


def reference_forward(x, p):
    """Pure-JAX f32 reference of the same eval-mode forward (unfused BN)."""
    h = x * p["bn0_s"] + p["bn0_b"]
    h = h @ p["w1"] + p["b1"]
    h = _silu(h)
    h = h @ p["w2"] + p["b2"]
    h = h * p["bn1_s"] + p["bn1_b"]
    h = _silu(h)
    h = h @ p["w3"] + p["b3"]
    h = h * p["bn2_s"] + p["bn2_b"]
    h = _silu(h)
    return h @ p["w4"] + p["b4"]


if __name__ == "__main__":
    input_size = 32
    output_size = 8
    batch = 16

    key = jax.random.PRNGKey(0)
    kx, kp = jax.random.split(key)
    x = jax.random.normal(kx, (batch, input_size), jnp.float32)
    params = make_params(kp, input_size, output_size)

    out = mlpnet_forward(x, params)
    out = jax.block_until_ready(out)

    ref = reference_forward(x, params)
    assert out.shape == (batch, output_size)
    # bf16 matmul operands (f32 accumulate) + bf16 SiLU (on v6e/v7x) perturb
    # results at the ~1e-3..1e-2 level.
    assert jnp.allclose(out, ref, atol=3e-2, rtol=3e-2), "mismatch vs reference"

    print("KERNEL_OK")
</pallas_src>

<mosaic_0001>
module attributes {stable_mosaic.version = 11 : i64} {
  func.func @mlpnet_kernel(%arg0: i32, %arg1: memref<16x128xbf16, #tpu.memory_space<vmem>>, %arg2: memref<128x512xbf16, #tpu.memory_space<vmem>>, %arg3: memref<1x512xf32, #tpu.memory_space<vmem>>, %arg4: memref<512x1024xbf16, #tpu.memory_space<vmem>>, %arg5: memref<1x1024xf32, #tpu.memory_space<vmem>>, %arg6: memref<1024x512xbf16, #tpu.memory_space<vmem>>, %arg7: memref<1x512xf32, #tpu.memory_space<vmem>>, %arg8: memref<512x128xbf16, #tpu.memory_space<vmem>>, %arg9: memref<1x128xf32, #tpu.memory_space<vmem>>, %arg10: memref<16x128xf32, #tpu.memory_space<vmem>>) attributes {dimension_semantics = [#tpu.dimension_semantics<parallel>], iteration_bounds = array<i64: 1>, scalar_prefetch = 0 : i64, scratch_operands = 0 : i64, tpu.core_type = #tpu.core_type<tc>, window_params = [{transform_indices = @transform_0, window_bounds = array<i64: 16, 128>}, {pipeline_mode = #tpu.pipeline_mode<synchronous>, transform_indices = @transform_1, window_bounds = array<i64: 128, 512>}, {pipeline_mode = #tpu.pipeline_mode<synchronous>, transform_indices = @transform_2, window_bounds = array<i64: 1, 512>}, {pipeline_mode = #tpu.pipeline_mode<synchronous>, transform_indices = @transform_3, window_bounds = array<i64: 512, 1024>}, {pipeline_mode = #tpu.pipeline_mode<synchronous>, transform_indices = @transform_4, window_bounds = array<i64: 1, 1024>}, {pipeline_mode = #tpu.pipeline_mode<synchronous>, transform_indices = @transform_5, window_bounds = array<i64: 1024, 512>}, {pipeline_mode = #tpu.pipeline_mode<synchronous>, transform_indices = @transform_6, window_bounds = array<i64: 1, 512>}, {pipeline_mode = #tpu.pipeline_mode<synchronous>, transform_indices = @transform_7, window_bounds = array<i64: 512, 128>}, {pipeline_mode = #tpu.pipeline_mode<synchronous>, transform_indices = @transform_8, window_bounds = array<i64: 1, 128>}, {transform_indices = @transform_9, window_bounds = array<i64: 16, 128>}]} {
    %c0 = arith.constant 0 : index
    %c0_0 = arith.constant 0 : index
    %0 = vector.load %arg1[%c0, %c0_0] : memref<16x128xbf16, #tpu.memory_space<vmem>>, vector<16x128xbf16>
    %c0_1 = arith.constant 0 : index
    %c0_2 = arith.constant 0 : index
    %1 = vector.load %arg2[%c0_1, %c0_2] : memref<128x512xbf16, #tpu.memory_space<vmem>>, vector<128x512xbf16>
    %cst = arith.constant dense<0.000000e+00> : vector<16x512xf32>
    %2 = tpu.matmul %0, %1, %cst {dimension_numbers = #tpu.dot_dimension_numbers<[1], [0], [0], [1], [0, 0, 1, 1], [], []>} : vector<16x128xbf16>, vector<128x512xbf16>, vector<16x512xf32> -> vector<16x512xf32>
    %c0_3 = arith.constant 0 : index
    %c0_4 = arith.constant 0 : index
    %3 = vector.load %arg3[%c0_3, %c0_4] : memref<1x512xf32, #tpu.memory_space<vmem>>, vector<1x512xf32>
    %4 = vector.broadcast %3 : vector<1x512xf32> to vector<16x512xf32>
    %5 = arith.addf %2, %4 : vector<16x512xf32>
    %6 = arith.negf %5 : vector<16x512xf32>
    %7 = math.exp %6 : vector<16x512xf32>
    %cst_5 = arith.constant 1.000000e+00 : f32
    %8 = vector.broadcast %cst_5 : f32 to vector<16x512xf32>
    %9 = arith.addf %8, %7 : vector<16x512xf32>
    %10 = arith.divf %8, %9 : vector<16x512xf32>
    %11 = arith.mulf %5, %10 : vector<16x512xf32>
    %12 = arith.truncf %11 : vector<16x512xf32> to vector<16x512xbf16>
    %c0_6 = arith.constant 0 : index
    %c0_7 = arith.constant 0 : index
    %13 = vector.load %arg4[%c0_6, %c0_7] : memref<512x1024xbf16, #tpu.memory_space<vmem>>, vector<512x1024xbf16>
    %cst_8 = arith.constant dense<0.000000e+00> : vector<16x1024xf32>
    %14 = tpu.matmul %12, %13, %cst_8 {dimension_numbers = #tpu.dot_dimension_numbers<[1], [0], [0], [1], [0, 0, 1, 1], [], []>} : vector<16x512xbf16>, vector<512x1024xbf16>, vector<16x1024xf32> -> vector<16x1024xf32>
    %c0_9 = arith.constant 0 : index
    %c0_10 = arith.constant 0 : index
    %15 = vector.load %arg5[%c0_9, %c0_10] : memref<1x1024xf32, #tpu.memory_space<vmem>>, vector<1x1024xf32>
    %16 = vector.broadcast %15 : vector<1x1024xf32> to vector<16x1024xf32>
    %17 = arith.addf %14, %16 : vector<16x1024xf32>
    %18 = arith.negf %17 : vector<16x1024xf32>
    %19 = math.exp %18 : vector<16x1024xf32>
    %cst_11 = arith.constant 1.000000e+00 : f32
    %20 = vector.broadcast %cst_11 : f32 to vector<16x1024xf32>
    %21 = arith.addf %20, %19 : vector<16x1024xf32>
    %22 = arith.divf %20, %21 : vector<16x1024xf32>
    %23 = arith.mulf %17, %22 : vector<16x1024xf32>
    %24 = arith.truncf %23 : vector<16x1024xf32> to vector<16x1024xbf16>
    %c0_12 = arith.constant 0 : index
    %c0_13 = arith.constant 0 : index
    %25 = vector.load %arg6[%c0_12, %c0_13] : memref<1024x512xbf16, #tpu.memory_space<vmem>>, vector<1024x512xbf16>
    %cst_14 = arith.constant dense<0.000000e+00> : vector<16x512xf32>
    %26 = tpu.matmul %24, %25, %cst_14 {dimension_numbers = #tpu.dot_dimension_numbers<[1], [0], [0], [1], [0, 0, 1, 1], [], []>} : vector<16x1024xbf16>, vector<1024x512xbf16>, vector<16x512xf32> -> vector<16x512xf32>
    %c0_15 = arith.constant 0 : index
    %c0_16 = arith.constant 0 : index
    %27 = vector.load %arg7[%c0_15, %c0_16] : memref<1x512xf32, #tpu.memory_space<vmem>>, vector<1x512xf32>
    %28 = vector.broadcast %27 : vector<1x512xf32> to vector<16x512xf32>
    %29 = arith.addf %26, %28 : vector<16x512xf32>
    %30 = arith.negf %29 : vector<16x512xf32>
    %31 = math.exp %30 : vector<16x512xf32>
    %cst_17 = arith.constant 1.000000e+00 : f32
    %32 = vector.broadcast %cst_17 : f32 to vector<16x512xf32>
    %33 = arith.addf %32, %31 : vector<16x512xf32>
    %34 = arith.divf %32, %33 : vector<16x512xf32>
    %35 = arith.mulf %29, %34 : vector<16x512xf32>
    %36 = arith.truncf %35 : vector<16x512xf32> to vector<16x512xbf16>
    %c0_18 = arith.constant 0 : index
    %c0_19 = arith.constant 0 : index
    %37 = vector.load %arg8[%c0_18, %c0_19] : memref<512x128xbf16, #tpu.memory_space<vmem>>, vector<512x128xbf16>
    %cst_20 = arith.constant dense<0.000000e+00> : vector<16x128xf32>
    %38 = tpu.matmul %36, %37, %cst_20 {dimension_numbers = #tpu.dot_dimension_numbers<[1], [0], [0], [1], [0, 0, 1, 1], [], []>} : vector<16x512xbf16>, vector<512x128xbf16>, vector<16x128xf32> -> vector<16x128xf32>
    %c0_21 = arith.constant 0 : index
    %c0_22 = arith.constant 0 : index
    %39 = vector.load %arg9[%c0_21, %c0_22] : memref<1x128xf32, #tpu.memory_space<vmem>>, vector<1x128xf32>
    %40 = vector.broadcast %39 : vector<1x128xf32> to vector<16x128xf32>
    %41 = arith.addf %38, %40 : vector<16x128xf32>
    %c0_23 = arith.constant 0 : index
    %c0_24 = arith.constant 0 : index
    %42 = vector.load %arg10[%c0_23, %c0_24] : memref<16x128xf32, #tpu.memory_space<vmem>>, vector<16x128xf32>
    tpu.vector_store %arg10[%c0_23, %c0_24], %41 {strides = array<i32>} : memref<16x128xf32, #tpu.memory_space<vmem>>, vector<16x128xf32>,
    return
  }
  func.func @transform_0(%arg0: i32) -> (i32, i32) {
    %c0_i32 = arith.constant 0 : i32
    %c0_i32_0 = arith.constant 0 : i32
    return %arg0, %c0_i32 : i32, i32
  }
  func.func @transform_1(%arg0: i32) -> (i32, i32) {
    %c0_i32 = arith.constant 0 : i32
    %c0_i32_0 = arith.constant 0 : i32
    %c0_i32_1 = arith.constant 0 : i32
    return %c0_i32, %c0_i32_0 : i32, i32
  }
  func.func @transform_2(%arg0: i32) -> (i32, i32) {
    %c0_i32 = arith.constant 0 : i32
    %c0_i32_0 = arith.constant 0 : i32
    %c0_i32_1 = arith.constant 0 : i32
    return %c0_i32, %c0_i32_0 : i32, i32
  }
  func.func @transform_3(%arg0: i32) -> (i32, i32) {
    %c0_i32 = arith.constant 0 : i32
    %c0_i32_0 = arith.constant 0 : i32
    %c0_i32_1 = arith.constant 0 : i32
    return %c0_i32, %c0_i32_0 : i32, i32
  }
  func.func @transform_4(%arg0: i32) -> (i32, i32) {
    %c0_i32 = arith.constant 0 : i32
    %c0_i32_0 = arith.constant 0 : i32
    %c0_i32_1 = arith.constant 0 : i32
    return %c0_i32, %c0_i32_0 : i32, i32
  }
  func.func @transform_5(%arg0: i32) -> (i32, i32) {
    %c0_i32 = arith.constant 0 : i32
    %c0_i32_0 = arith.constant 0 : i32
    %c0_i32_1 = arith.constant 0 : i32
    return %c0_i32, %c0_i32_0 : i32, i32
  }
  func.func @transform_6(%arg0: i32) -> (i32, i32) {
    %c0_i32 = arith.constant 0 : i32
    %c0_i32_0 = arith.constant 0 : i32
    %c0_i32_1 = arith.constant 0 : i32
    return %c0_i32, %c0_i32_0 : i32, i32
  }
  func.func @transform_7(%arg0: i32) -> (i32, i32) {
    %c0_i32 = arith.constant 0 : i32
    %c0_i32_0 = arith.constant 0 : i32
    %c0_i32_1 = arith.constant 0 : i32
    return %c0_i32, %c0_i32_0 : i32, i32
  }
  func.func @transform_8(%arg0: i32) -> (i32, i32) {
    %c0_i32 = arith.constant 0 : i32
    %c0_i32_0 = arith.constant 0 : i32
    %c0_i32_1 = arith.constant 0 : i32
    return %c0_i32, %c0_i32_0 : i32, i32
  }
  func.func @transform_9(%arg0: i32) -> (i32, i32) {
    %c0_i32 = arith.constant 0 : i32
    %c0_i32_0 = arith.constant 0 : i32
    return %arg0, %c0_i32 : i32, i32
  }
}

module attributes {stable_mosaic.version = 11 : i64} {
  func.func @mlpnet_kernel(%arg0: i32, %arg1: memref<16x128xbf16, #tpu.memory_space<vmem>>, %arg2: memref<128x512xbf16, #tpu.memory_space<vmem>>, %arg3: memref<1x512xf32, #tpu.memory_space<vmem>>, %arg4: memref<512x1024xbf16, #tpu.memory_space<vmem>>, %arg5: memref<1x1024xf32, #tpu.memory_space<vmem>>, %arg6: memref<1024x512xbf16, #tpu.memory_space<vmem>>, %arg7: memref<1x512xf32, #tpu.memory_space<vmem>>, %arg8: memref<512x128xbf16, #tpu.memory_space<vmem>>, %arg9: memref<1x128xf32, #tpu.memory_space<vmem>>, %arg10: memref<16x128xf32, #tpu.memory_space<vmem>>) attributes {dimension_semantics = [#tpu.dimension_semantics<parallel>], iteration_bounds = array<i64: 1>, scalar_prefetch = 0 : i64, scratch_operands = 0 : i64, tpu.core_type = #tpu.core_type<tc>, window_params = [{transform_indices = @transform_0, window_bounds = array<i64: 16, 128>}, {pipeline_mode = #tpu.pipeline_mode<synchronous>, transform_indices = @transform_1, window_bounds = array<i64: 128, 512>}, {pipeline_mode = #tpu.pipeline_mode<synchronous>, transform_indices = @transform_2, window_bounds = array<i64: 1, 512>}, {pipeline_mode = #tpu.pipeline_mode<synchronous>, transform_indices = @transform_3, window_bounds = array<i64: 512, 1024>}, {pipeline_mode = #tpu.pipeline_mode<synchronous>, transform_indices = @transform_4, window_bounds = array<i64: 1, 1024>}, {pipeline_mode = #tpu.pipeline_mode<synchronous>, transform_indices = @transform_5, window_bounds = array<i64: 1024, 512>}, {pipeline_mode = #tpu.pipeline_mode<synchronous>, transform_indices = @transform_6, window_bounds = array<i64: 1, 512>}, {pipeline_mode = #tpu.pipeline_mode<synchronous>, transform_indices = @transform_7, window_bounds = array<i64: 512, 128>}, {pipeline_mode = #tpu.pipeline_mode<synchronous>, transform_indices = @transform_8, window_bounds = array<i64: 1, 128>}, {transform_indices = @transform_9, window_bounds = array<i64: 16, 128>}]} {
    %c0 = arith.constant 0 : index
    %c0_0 = arith.constant 0 : index
    %0 = vector.load %arg1[%c0, %c0_0] : memref<16x128xbf16, #tpu.memory_space<vmem>>, vector<16x128xbf16>
    %c0_1 = arith.constant 0 : index
    %c0_2 = arith.constant 0 : index
    %1 = vector.load %arg2[%c0_1, %c0_2] : memref<128x512xbf16, #tpu.memory_space<vmem>>, vector<128x512xbf16>
    %cst = arith.constant dense<0.000000e+00> : vector<16x512xf32>
    %2 = tpu.matmul %0, %1, %cst {dimension_numbers = #tpu.dot_dimension_numbers<[1], [0], [0], [1], [0, 0, 1, 1], [], []>} : vector<16x128xbf16>, vector<128x512xbf16>, vector<16x512xf32> -> vector<16x512xf32>
    %c0_3 = arith.constant 0 : index
    %c0_4 = arith.constant 0 : index
    %3 = vector.load %arg3[%c0_3, %c0_4] : memref<1x512xf32, #tpu.memory_space<vmem>>, vector<1x512xf32>
    %4 = vector.broadcast %3 : vector<1x512xf32> to vector<16x512xf32>
    %5 = arith.addf %2, %4 : vector<16x512xf32>
    %6 = arith.negf %5 : vector<16x512xf32>
    %7 = math.exp %6 : vector<16x512xf32>
    %cst_5 = arith.constant 1.000000e+00 : f32
    %8 = vector.broadcast %cst_5 : f32 to vector<16x512xf32>
    %9 = arith.addf %8, %7 : vector<16x512xf32>
    %10 = arith.divf %8, %9 : vector<16x512xf32>
    %11 = arith.mulf %5, %10 : vector<16x512xf32>
    %12 = arith.truncf %11 : vector<16x512xf32> to vector<16x512xbf16>
    %c0_6 = arith.constant 0 : index
    %c0_7 = arith.constant 0 : index
    %13 = vector.load %arg4[%c0_6, %c0_7] : memref<512x1024xbf16, #tpu.memory_space<vmem>>, vector<512x1024xbf16>
    %cst_8 = arith.constant dense<0.000000e+00> : vector<16x1024xf32>
    %14 = tpu.matmul %12, %13, %cst_8 {dimension_numbers = #tpu.dot_dimension_numbers<[1], [0], [0], [1], [0, 0, 1, 1], [], []>} : vector<16x512xbf16>, vector<512x1024xbf16>, vector<16x1024xf32> -> vector<16x1024xf32>
    %c0_9 = arith.constant 0 : index
    %c0_10 = arith.constant 0 : index
    %15 = vector.load %arg5[%c0_9, %c0_10] : memref<1x1024xf32, #tpu.memory_space<vmem>>, vector<1x1024xf32>
    %16 = vector.broadcast %15 : vector<1x1024xf32> to vector<16x1024xf32>
    %17 = arith.addf %14, %16 : vector<16x1024xf32>
    %18 = arith.negf %17 : vector<16x1024xf32>
    %19 = math.exp %18 : vector<16x1024xf32>
    %cst_11 = arith.constant 1.000000e+00 : f32
    %20 = vector.broadcast %cst_11 : f32 to vector<16x1024xf32>
    %21 = arith.addf %20, %19 : vector<16x1024xf32>
    %22 = arith.divf %20, %21 : vector<16x1024xf32>
    %23 = arith.mulf %17, %22 : vector<16x1024xf32>
    %24 = arith.truncf %23 : vector<16x1024xf32> to vector<16x1024xbf16>
    %c0_12 = arith.constant 0 : index
    %c0_13 = arith.constant 0 : index
    %25 = vector.load %arg6[%c0_12, %c0_13] : memref<1024x512xbf16, #tpu.memory_space<vmem>>, vector<1024x512xbf16>
    %cst_14 = arith.constant dense<0.000000e+00> : vector<16x512xf32>
    %26 = tpu.matmul %24, %25, %cst_14 {dimension_numbers = #tpu.dot_dimension_numbers<[1], [0], [0], [1], [0, 0, 1, 1], [], []>} : vector<16x1024xbf16>, vector<1024x512xbf16>, vector<16x512xf32> -> vector<16x512xf32>
    %c0_15 = arith.constant 0 : index
    %c0_16 = arith.constant 0 : index
    %27 = vector.load %arg7[%c0_15, %c0_16] : memref<1x512xf32, #tpu.memory_space<vmem>>, vector<1x512xf32>
    %28 = vector.broadcast %27 : vector<1x512xf32> to vector<16x512xf32>
    %29 = arith.addf %26, %28 : vector<16x512xf32>
    %30 = arith.negf %29 : vector<16x512xf32>
    %31 = math.exp %30 : vector<16x512xf32>
    %cst_17 = arith.constant 1.000000e+00 : f32
    %32 = vector.broadcast %cst_17 : f32 to vector<16x512xf32>
    %33 = arith.addf %32, %31 : vector<16x512xf32>
    %34 = arith.divf %32, %33 : vector<16x512xf32>
    %35 = arith.mulf %29, %34 : vector<16x512xf32>
    %36 = arith.truncf %35 : vector<16x512xf32> to vector<16x512xbf16>
    %c0_18 = arith.constant 0 : index
    %c0_19 = arith.constant 0 : index
    %37 = vector.load %arg8[%c0_18, %c0_19] : memref<512x128xbf16, #tpu.memory_space<vmem>>, vector<512x128xbf16>
    %cst_20 = arith.constant dense<0.000000e+00> : vector<16x128xf32>
    %38 = tpu.matmul %36, %37, %cst_20 {dimension_numbers = #tpu.dot_dimension_numbers<[1], [0], [0], [1], [0, 0, 1, 1], [], []>} : vector<16x512xbf16>, vector<512x128xbf16>, vector<16x128xf32> -> vector<16x128xf32>
    %c0_21 = arith.constant 0 : index
    %c0_22 = arith.constant 0 : index
    %39 = vector.load %arg9[%c0_21, %c0_22] : memref<1x128xf32, #tpu.memory_space<vmem>>, vector<1x128xf32>
    %40 = vector.broadcast %39 : vector<1x128xf32> to vector<16x128xf32>
    %41 = arith.addf %38, %40 : vector<16x128xf32>
    %c0_23 = arith.constant 0 : index
    %c0_24 = arith.constant 0 : index
    %42 = vector.load %arg10[%c0_23, %c0_24] : memref<16x128xf32, #tpu.memory_space<vmem>>, vector<16x128xf32>
    tpu.vector_store %arg10[%c0_23, %c0_24], %41 {strides = array<i32>} : memref<16x128xf32, #tpu.memory_space<vmem>>, vector<16x128xf32>,
    return
  }
  func.func @transform_0(%arg0: i32) -> (i32, i32) {
    %c0_i32 = arith.constant 0 : i32
    %c0_i32_0 = arith.constant 0 : i32
    return %arg0, %c0_i32 : i32, i32
  }
  func.func @transform_1(%arg0: i32) -> (i32, i32) {
    %c0_i32 = arith.constant 0 : i32
    %c0_i32_0 = arith.constant 0 : i32
    %c0_i32_1 = arith.constant 0 : i32
    return %c0_i32, %c0_i32_0 : i32, i32
  }
  func.func @transform_2(%arg0: i32) -> (i32, i32) {
    %c0_i32 = arith.constant 0 : i32
    %c0_i32_0 = arith.constant 0 : i32
    %c0_i32_1 = arith.constant 0 : i32
    return %c0_i32, %c0_i32_0 : i32, i32
  }
  func.func @transform_3(%arg0: i32) -> (i32, i32) {
    %c0_i32 = arith.constant 0 : i32
    %c0_i32_0 = arith.constant 0 : i32
    %c0_i32_1 = arith.constant 0 : i32
    return %c0_i32, %c0_i32_0 : i32, i32
  }
  func.func @transform_4(%arg0: i32) -> (i32, i32) {
    %c0_i32 = arith.constant 0 : i32
    %c0_i32_0 = arith.constant 0 : i32
    %c0_i32_1 = arith.constant 0 : i32
    return %c0_i32, %c0_i32_0 : i32, i32
  }
  func.func @transform_5(%arg0: i32) -> (i32, i32) {
    %c0_i32 = arith.constant 0 : i32
    %c0_i32_0 = arith.constant 0 : i32
    %c0_i32_1 = arith.constant 0 : i32
    return %c0_i32, %c0_i32_0 : i32, i32
  }
  func.func @transform_6(%arg0: i32) -> (i32, i32) {
    %c0_i32 = arith.constant 0 : i32
    %c0_i32_0 = arith.constant 0 : i32
    %c0_i32_1 = arith.constant 0 : i32
    return %c0_i32, %c0_i32_0 : i32, i32
  }
  func.func @transform_7(%arg0: i32) -> (i32, i32) {
    %c0_i32 = arith.constant 0 : i32
    %c0_i32_0 = arith.constant 0 : i32
    %c0_i32_1 = arith.constant 0 : i32
    return %c0_i32, %c0_i32_0 : i32, i32
  }
  func.func @transform_8(%arg0: i32) -> (i32, i32) {
    %c0_i32 = arith.constant 0 : i32
    %c0_i32_0 = arith.constant 0 : i32
    %c0_i32_1 = arith.constant 0 : i32
    return %c0_i32, %c0_i32_0 : i32, i32
  }
  func.func @transform_9(%arg0: i32) -> (i32, i32) {
    %c0_i32 = arith.constant 0 : i32
    %c0_i32_0 = arith.constant 0 : i32
    return %arg0, %c0_i32 : i32, i32
  }
}

</mosaic_0001>

<llo_original>
// kernel: tpu_custom_call.1
$region0: #{tpu_custom_call.1}
  #allocation0 [shape = 'u32[]', space=smem, size = 0x4, offset = 0x4, fixed_abs, tag = 'smem constant byte address 0x4 - core index']
  #allocation1 [shape = 'u32[72,128]{1,0:T(1,128)}', space=vmem, size = 0x9000, scoped, tag = 'internal scratch']
  %s0 = inlined_call_operand.hbm [shape: bf16[16,128], index: 0, kind: input, shape index: {}]
  %s1 = inlined_call_operand.hbm [shape: bf16[128,512], index: 1, kind: input, shape index: {}]
  %s2 = inlined_call_operand.hbm [shape: f32[1,512], index: 2, kind: input, shape index: {}]
  %s3 = inlined_call_operand.hbm [shape: bf16[512,1024], index: 3, kind: input, shape index: {}]
  %s4 = inlined_call_operand.hbm [shape: f32[1,1024], index: 4, kind: input, shape index: {}]
  %s5 = inlined_call_operand.hbm [shape: bf16[1024,512], index: 5, kind: input, shape index: {}]
  %s6 = inlined_call_operand.vmem [shape: f32[1,512], index: 6, kind: input, shape index: {}]
  %s7 = inlined_call_operand.hbm [shape: bf16[512,128], index: 7, kind: input, shape index: {}]
  %s8 = inlined_call_operand.vmem [shape: f32[1,128], index: 8, kind: input, shape index: {}]
  %s9 = inlined_call_operand.hbm [shape: f32[16,128], index: 9, kind: output, shape index: {}]
  %s10 = sld [smem:[#allocation0]]
  $region74: #{tpu_custom_call.1} parent=0
    _
  %s12 = ssub.s32 1, %s10
  %s13 = scalar_select 0, %s12, %s10
  $region1: #{tpu_custom_call.1} parent=0
    #allocation2 [shape = 'u8[4096]{0}', space=vmem, size = 0x1000, scoped, tag = 'input window, operand 0, single buffered']
    #allocation3 [shape = 's32[1]{0}', space=sflag, size = 0x4, scoped, tag = 'scoped memory for tpu_custom_call.1']
    #allocation4 [shape = 's32[1]{0}', space=sflag, size = 0x4, scoped, tag = 'scoped memory for tpu_custom_call.1']
    #allocation5 [shape = 'u8[131072]{0}', space=vmem, size = 0x20000, scoped, tag = 'input window, operand 1, single buffered']
    #allocation6 [shape = 's32[1]{0}', space=sflag, size = 0x4, scoped, tag = 'scoped memory for tpu_custom_call.1']
    #allocation7 [shape = 'u8[2048]{0}', space=vmem, size = 0x800, scoped, tag = 'input window, operand 2, single buffered']
    #allocation8 [shape = 'u8[1048576]{0}', space=vmem, size = 0x100000, scoped, tag = 'input window, operand 3, single buffered']
    #allocation9 [shape = 's32[1]{0}', space=sflag, size = 0x4, scoped, tag = 'scoped memory for tpu_custom_call.1']
    #allocation10 [shape = 'u8[4096]{0}', space=vmem, size = 0x1000, scoped, tag = 'input window, operand 4, single buffered']
    #allocation11 [shape = 'u8[1048576]{0}', space=vmem, size = 0x100000, scoped, tag = 'input window, operand 5, single buffered']
    #allocation12 [shape = 's32[1]{0}', space=sflag, size = 0x4, scoped, tag = 'scoped memory for tpu_custom_call.1']
    #allocation13 [shape = 'u8[131072]{0}', space=vmem, size = 0x20000, scoped, tag = 'input window, operand 7, single buffered']
    #allocation14 [shape = 'u8[8192]{0}', space=vmem, size = 0x2000, scoped, tag = 'output window, operand 0, single buffered']
    %14 = vsyncpa [#allocation3], 0
    %15 = vsyncpa [#allocation6], 0
    %16 = vsyncpa [#allocation9], 0
    %17 = vsyncpa [#allocation12], 0
    %18 = vsyncpa [#allocation4], 0
    // Predicated region
    $region2: #{tpu_custom_call.1} parent=1 // pred_check
      _
    $region3: #{tpu_custom_call.1} parent=1 // pred_check_branch
      %20 = sbr.rel (0) target = $region5
    $region4: #{tpu_custom_call.1} parent=1 // pred_region
      %22 = vsyncadd [#allocation3], 0
      %s23 = sshll.u32 %s0, 4
      %s24 = int_to_ptr.hbm [resolvable:$true] %s23
      %s25 = sshll.u32 [#allocation2], 4
      %s26 = int_to_ptr.vmem [resolvable:$true] %s25
      %31 = dma.hbm_to_vmem [thread:$0]  %s24, 128, %s26, [#allocation3], 64, 64, 4
    $region5: #{tpu_custom_call.1} parent=1 // pred_fallthru
      _
    // Predicated region
    $region6: #{tpu_custom_call.1} parent=1 // pred_check
      _
    $region7: #{tpu_custom_call.1} parent=1 // pred_check_branch
      %33 = sbr.rel (0) target = $region9
    $region8: #{tpu_custom_call.1} parent=1 // pred_region
      %35 = vsyncadd [#allocation6], 0
      %s36 = sshll.u32 %s1, 4
      %s37 = int_to_ptr.hbm [resolvable:$true] %s36
      %s38 = sshll.u32 [#allocation5], 4
      %s39 = int_to_ptr.vmem [resolvable:$true] %s38
      %44 = dma.hbm_to_vmem [thread:$0]  %s37, 4096, %s39, [#allocation6], 256, 256, 16
    $region9: #{tpu_custom_call.1} parent=1 // pred_fallthru
      _
    // Predicated region
    $region10: #{tpu_custom_call.1} parent=1 // pred_check
      _
    $region11: #{tpu_custom_call.1} parent=1 // pred_check_branch
      %46 = sbr.rel (0) target = $region13
    $region12: #{tpu_custom_call.1} parent=1 // pred_region
      %48 = vsyncadd [#allocation6], 0
      %s50 = sshll.u32 %s2, 4
      %s51 = int_to_ptr.hbm [resolvable:$true] %s50
      %s52 = sshll.u32 [#allocation7], 4
      %s53 = int_to_ptr.vmem [resolvable:$true] %s52
      %55 = dma.hbm_to_vmem [thread:$0]  %s51, 64, %s53, [#allocation6]
    $region13: #{tpu_custom_call.1} parent=1 // pred_fallthru
      _
    // Predicated region
    $region14: #{tpu_custom_call.1} parent=1 // pred_check
      _
    $region15: #{tpu_custom_call.1} parent=1 // pred_check_branch
      %57 = sbr.rel (0) target = $region17
    $region16: #{tpu_custom_call.1} parent=1 // pred_region
      %59 = vsyncadd [#allocation9], 0
      %s60 = sshll.u32 %s3, 4
      %s61 = int_to_ptr.hbm [resolvable:$true] %s60
      %s62 = sshll.u32 [#allocation8], 4
      %s63 = int_to_ptr.vmem [resolvable:$true] %s62
      %68 = dma.hbm_to_vmem [thread:$0]  %s61, 32768, %s63, [#allocation9], 512, 512, 32
    $region17: #{tpu_custom_call.1} parent=1 // pred_fallthru
      _
    // Predicated region
    $region18: #{tpu_custom_call.1} parent=1 // pred_check
      _
    $region19: #{tpu_custom_call.1} parent=1 // pred_check_branch
      %70 = sbr.rel (0) target = $region21
    $region20: #{tpu_custom_call.1} parent=1 // pred_region
      %72 = vsyncadd [#allocation9], 0
      %s74 = sshll.u32 %s4, 4
      %s75 = int_to_ptr.hbm [resolvable:$true] %s74
      %s76 = sshll.u32 [#allocation10], 4
      %s77 = int_to_ptr.vmem [resolvable:$true] %s76
      %79 = dma.hbm_to_vmem [thread:$0]  %s75, 128, %s77, [#allocation9]
    $region21: #{tpu_custom_call.1} parent=1 // pred_fallthru
      _
    // Predicated region
    $region22: #{tpu_custom_call.1} parent=1 // pred_check
      _
    $region23: #{tpu_custom_call.1} parent=1 // pred_check_branch
      %81 = sbr.rel (0) target = $region25
    $region24: #{tpu_custom_call.1} parent=1 // pred_region
      %83 = vsyncadd [#allocation12], 0
      %s84 = sshll.u32 %s5, 4
      %s85 = int_to_ptr.hbm [resolvable:$true] %s84
      %s86 = sshll.u32 [#allocation11], 4
      %s87 = int_to_ptr.vmem [resolvable:$true] %s86
      %92 = dma.hbm_to_vmem [thread:$0]  %s85, 32768, %s87, [#allocation12], 256, 256, 16
    $region25: #{tpu_custom_call.1} parent=1 // pred_fallthru
      _
    // Predicated region
    $region26: #{tpu_custom_call.1} parent=1 // pred_check
      _
    $region27: #{tpu_custom_call.1} parent=1 // pred_check_branch
      %94 = sbr.rel (0) target = $region29
    $region28: #{tpu_custom_call.1} parent=1 // pred_region
      _
    $region29: #{tpu_custom_call.1} parent=1 // pred_fallthru
      _
    // Predicated region
    $region30: #{tpu_custom_call.1} parent=1 // pred_check
      _
    $region31: #{tpu_custom_call.1} parent=1 // pred_check_branch
      %96 = sbr.rel (0) target = $region33
    $region32: #{tpu_custom_call.1} parent=1 // pred_region
      %98 = vsyncadd [#allocation12], 0
      %s99 = sshll.u32 %s7, 4
      %s100 = int_to_ptr.hbm [resolvable:$true] %s99
      %s101 = sshll.u32 [#allocation13], 4
      %s102 = int_to_ptr.vmem [resolvable:$true] %s101
      %107 = dma.hbm_to_vmem [thread:$0]  %s100, 4096, %s102, [#allocation12], 64, 64, 4
    $region33: #{tpu_custom_call.1} parent=1 // pred_fallthru
      _
    // Predicated region
    $region34: #{tpu_custom_call.1} parent=1 // pred_check
      _
    $region35: #{tpu_custom_call.1} parent=1 // pred_check_branch
      %109 = sbr.rel (0) target = $region37
    $region36: #{tpu_custom_call.1} parent=1 // pred_region
      _
    $region37: #{tpu_custom_call.1} parent=1 // pred_fallthru
      _
    // Predicated region
    $region38: #{tpu_custom_call.1} parent=1 // pred_check
      _
    $region39: #{tpu_custom_call.1} parent=1 // pred_check_branch
      %111 = sbr.rel (0) target = $region41
    $region40: #{tpu_custom_call.1} parent=1 // pred_region
      %113 = dma.done [#allocation3], 128
    $region41: #{tpu_custom_call.1} parent=1 // pred_fallthru
      _
    // Predicated region
    $region42: #{tpu_custom_call.1} parent=1 // pred_check
      _
    $region43: #{tpu_custom_call.1} parent=1 // pred_check_branch
      %115 = sbr.rel (0) target = $region45
    $region44: #{tpu_custom_call.1} parent=1 // pred_region
      %117 = dma.done [#allocation6], 4096
    $region45: #{tpu_custom_call.1} parent=1 // pred_fallthru
      _
    // Predicated region
    $region46: #{tpu_custom_call.1} parent=1 // pred_check
      _
    $region47: #{tpu_custom_call.1} parent=1 // pred_check_branch
      %119 = sbr.rel (0) target = $region49
    $region48: #{tpu_custom_call.1} parent=1 // pred_region
      %121 = dma.done [#allocation6], 64
    $region49: #{tpu_custom_call.1} parent=1 // pred_fallthru
      _
    // Predicated region
    $region50: #{tpu_custom_call.1} parent=1 // pred_check
      _
    $region51: #{tpu_custom_call.1} parent=1 // pred_check_branch
      %123 = sbr.rel (0) target = $region53
    $region52: #{tpu_custom_call.1} parent=1 // pred_region
      %125 = dma.done [#allocation9], 32768
    $region53: #{tpu_custom_call.1} parent=1 // pred_fallthru
      _
    // Predicated region
    $region54: #{tpu_custom_call.1} parent=1 // pred_check
      _
    $region55: #{tpu_custom_call.1} parent=1 // pred_check_branch
      %127 = sbr.rel (0) target = $region57
    $region56: #{tpu_custom_call.1} parent=1 // pred_region
      %129 = dma.done [#allocation9], 128
    $region57: #{tpu_custom_call.1} parent=1 // pred_fallthru
      _
    // Predicated region
    $region58: #{tpu_custom_call.1} parent=1 // pred_check
      _
    $region59: #{tpu_custom_call.1} parent=1 // pred_check_branch
      %131 = sbr.rel (0) target = $region61
    $region60: #{tpu_custom_call.1} parent=1 // pred_region
      %133 = dma.done [#allocation12], 32768
    $region61: #{tpu_custom_call.1} parent=1 // pred_fallthru
      _
    // Predicated region
    $region62: #{tpu_custom_call.1} parent=1 // pred_check
      _
    $region63: #{tpu_custom_call.1} parent=1 // pred_check_branch
      %135 = sbr.rel (0) target = $region65
    $region64: #{tpu_custom_call.1} parent=1 // pred_region
      %137 = dma.done [#allocation12], 4096
    $region65: #{tpu_custom_call.1} parent=1 // pred_fallthru
      _
    %v138 = vld [vmem:[#allocation2] sm:$0xf]
    %v139 = vld [vmem:[#allocation2 + $0x4] sm:$0xf]
    %v140 = vld [vmem:[#allocation5] sm:$0xff]
    %v141 = vld [vmem:[#allocation5 + $0x8] sm:$0xff]
    %v142 = vld [vmem:[#allocation5 + $0x10] sm:$0xff]
    %v143 = vld [vmem:[#allocation5 + $0x18] sm:$0xff]
    %v144 = vld [vmem:[#allocation5 + $0x20] sm:$0xff]
    %v145 = vld [vmem:[#allocation5 + $0x28] sm:$0xff]
    %v146 = vld [vmem:[#allocation5 + $0x30] sm:$0xff]
    %v147 = vld [vmem:[#allocation5 + $0x38] sm:$0xff]
    %v148 = vld [vmem:[#allocation5 + $0x40] sm:$0xff]
    %v149 = vld [vmem:[#allocation5 + $0x48] sm:$0xff]
    %v150 = vld [vmem:[#allocation5 + $0x50] sm:$0xff]
    %v151 = vld [vmem:[#allocation5 + $0x58] sm:$0xff]
    %v152 = vld [vmem:[#allocation5 + $0x60] sm:$0xff]
    %v153 = vld [vmem:[#allocation5 + $0x68] sm:$0xff]
    %v154 = vld [vmem:[#allocation5 + $0x70] sm:$0xff]
    %v155 = vld [vmem:[#allocation5 + $0x78] sm:$0xff]
    %v156 = vld [vmem:[#allocation5 + $0x80] sm:$0xff]
    %v157 = vld [vmem:[#allocation5 + $0x88] sm:$0xff]
    %v158 = vld [vmem:[#allocation5 + $0x90] sm:$0xff]
    %v159 = vld [vmem:[#allocation5 + $0x98] sm:$0xff]
    %v160 = vld [vmem:[#allocation5 + $0xa0] sm:$0xff]
    %v161 = vld [vmem:[#allocation5 + $0xa8] sm:$0xff]
    %v162 = vld [vmem:[#allocation5 + $0xb0] sm:$0xff]
    %v163 = vld [vmem:[#allocation5 + $0xb8] sm:$0xff]
    %v164 = vld [vmem:[#allocation5 + $0xc0] sm:$0xff]
    %v165 = vld [vmem:[#allocation5 + $0xc8] sm:$0xff]
    %v166 = vld [vmem:[#allocation5 + $0xd0] sm:$0xff]
    %v167 = vld [vmem:[#allocation5 + $0xd8] sm:$0xff]
    %v168 = vld [vmem:[#allocation5 + $0xe0] sm:$0xff]
    %v169 = vld [vmem:[#allocation5 + $0xe8] sm:$0xff]
    %v170 = vld [vmem:[#allocation5 + $0xf0] sm:$0xff]
    %v171 = vld [vmem:[#allocation5 + $0xf8] sm:$0xff]
    %v172 = vld [vmem:[#allocation7] sm:$0xf]
    %v174 = vperm.slane %v172, 0
    %v175 = vperm.slane %v172, 1
    %v176 = vperm.slane %v172, 2
    %v177 = vperm.slane %v172, 3
    %v184 = vunpack.c.l.b16 %v138
    %v185 = vunpack.c.l.b16 %v139
    %v186 = vpack.c.b16 %v185, %v184
    %v220 = vunpack.c.l.b16 %v140
    %v221 = vunpack.c.h.b16 %v140
    %v222 = vunpack.c.l.b16 %v141
    %v223 = vunpack.c.h.b16 %v141
    %v224 = vunpack.c.l.b16 %v142
    %v225 = vunpack.c.h.b16 %v142
    %v226 = vunpack.c.l.b16 %v143
    %v227 = vunpack.c.h.b16 %v143
    %v228 = vunpack.c.l.b16 %v144
    %v229 = vunpack.c.h.b16 %v144
    %v230 = vunpack.c.l.b16 %v145
    %v231 = vunpack.c.h.b16 %v145
    %v232 = vunpack.c.l.b16 %v146
    %v233 = vunpack.c.h.b16 %v146
    %v234 = vunpack.c.l.b16 %v147
    %v235 = vunpack.c.h.b16 %v147
    %v236 = vunpack.c.l.b16 %v148
    %v237 = vunpack.c.h.b16 %v148
    %v238 = vunpack.c.l.b16 %v149
    %v239 = vunpack.c.h.b16 %v149
    %v240 = vunpack.c.l.b16 %v150
    %v241 = vunpack.c.h.b16 %v150
    %v242 = vunpack.c.l.b16 %v151
    %v243 = vunpack.c.h.b16 %v151
    %v244 = vunpack.c.l.b16 %v152
    %v245 = vunpack.c.h.b16 %v152
    %v246 = vunpack.c.l.b16 %v153
    %v247 = vunpack.c.h.b16 %v153
    %v248 = vunpack.c.l.b16 %v154
    %v249 = vunpack.c.h.b16 %v154
    %v250 = vunpack.c.l.b16 %v155
    %v251 = vunpack.c.h.b16 %v155
    %v252 = vunpack.c.l.b16 %v156
    %v253 = vunpack.c.h.b16 %v156
    %v254 = vunpack.c.l.b16 %v157
    %v255 = vunpack.c.h.b16 %v157
    %v256 = vunpack.c.l.b16 %v158
    %v257 = vunpack.c.h.b16 %v158
    %v258 = vunpack.c.l.b16 %v159
    %v259 = vunpack.c.h.b16 %v159
    %v260 = vunpack.c.l.b16 %v160
    %v261 = vunpack.c.h.b16 %v160
    %v262 = vunpack.c.l.b16 %v161
    %v263 = vunpack.c.h.b16 %v161
    %v264 = vunpack.c.l.b16 %v162
    %v265 = vunpack.c.h.b16 %v162
    %v266 = vunpack.c.l.b16 %v163
    %v267 = vunpack.c.h.b16 %v163
    %v268 = vunpack.c.l.b16 %v164
    %v269 = vunpack.c.h.b16 %v164
    %v270 = vunpack.c.l.b16 %v165
    %v271 = vunpack.c.h.b16 %v165
    %v272 = vunpack.c.l.b16 %v166
    %v273 = vunpack.c.h.b16 %v166
    %v274 = vunpack.c.l.b16 %v167
    %v275 = vunpack.c.h.b16 %v167
    %v276 = vunpack.c.l.b16 %v168
    %v277 = vunpack.c.h.b16 %v168
    %v278 = vunpack.c.l.b16 %v169
    %v279 = vunpack.c.h.b16 %v169
    %v280 = vunpack.c.l.b16 %v170
    %v281 = vunpack.c.h.b16 %v170
    %v282 = vunpack.c.l.b16 %v171
    %v283 = vunpack.c.h.b16 %v171
    %v284 = vpack.c.b16 %v224, %v220
    %v285 = vpack.c.b16 %v225, %v221
    %v286 = vpack.c.b16 %v226, %v222
    %v287 = vpack.c.b16 %v227, %v223
    %v288 = vpack.c.b16 %v232, %v228
    %v289 = vpack.c.b16 %v233, %v229
    %v290 = vpack.c.b16 %v234, %v230
    %v291 = vpack.c.b16 %v235, %v231
    %v292 = vpack.c.b16 %v240, %v236
    %v293 = vpack.c.b16 %v241, %v237
    %v294 = vpack.c.b16 %v242, %v238
    %v295 = vpack.c.b16 %v243, %v239
    %v296 = vpack.c.b16 %v248, %v244
    %v297 = vpack.c.b16 %v249, %v245
    %v298 = vpack.c.b16 %v250, %v246
    %v299 = vpack.c.b16 %v251, %v247
    %v300 = vpack.c.b16 %v256, %v252
    %v301 = vpack.c.b16 %v257, %v253
    %v302 = vpack.c.b16 %v258, %v254
    %v303 = vpack.c.b16 %v259, %v255
    %v304 = vpack.c.b16 %v264, %v260
    %v305 = vpack.c.b16 %v265, %v261
    %v306 = vpack.c.b16 %v266, %v262
    %v307 = vpack.c.b16 %v267, %v263
    %v308 = vpack.c.b16 %v272, %v268
    %v309 = vpack.c.b16 %v273, %v269
    %v310 = vpack.c.b16 %v274, %v270
    %v311 = vpack.c.b16 %v275, %v271
    %v312 = vpack.c.b16 %v280, %v276
    %v313 = vpack.c.b16 %v281, %v277
    %v314 = vpack.c.b16 %v282, %v278
    %v315 = vpack.c.b16 %v283, %v279
    %348 = vmatpush.bf16.msra.mxu0 %v312
    %349 = vmatpush.bf16.msra.mxu0 %v308
    %350 = vmatpush.bf16.msra.mxu0 %v304
    %351 = vmatpush.bf16.msra.mxu0 %v300
    %352 = vmatpush.bf16.msra.mxu0 %v296
    %353 = vmatpush.bf16.msra.mxu0 %v292
    %354 = vmatpush.bf16.msra.mxu0 %v288
    %355 = vmatpush.bf16.msra.mxu0 %v284
    %356 = vmatmul.bf16.gmra.mxu0 %v186
    %v357 = vpop.f32.mrf.mxu0
    %v358 = vadd.f32 %v174, %v357
    %v359 = vpop.f32.mrf.mxu0
    %v360 = vadd.f32 %v174, %v359
    %361 = vdwg.mxu0
    %362 = vmatpush.bf16.msra.mxu0 %v313
    %363 = vmatpush.bf16.msra.mxu0 %v309
    %364 = vmatpush.bf16.msra.mxu0 %v305
    %365 = vmatpush.bf16.msra.mxu0 %v301
    %366 = vmatpush.bf16.msra.mxu0 %v297
    %367 = vmatpush.bf16.msra.mxu0 %v293
    %368 = vmatpush.bf16.msra.mxu0 %v289
    %369 = vmatpush.bf16.msra.mxu0 %v285
    %370 = vmatmul.bf16.gmra.mxu0 %v186
    %v371 = vpop.f32.mrf.mxu0
    %v372 = vadd.f32 %v175, %v371
    %v373 = vpop.f32.mrf.mxu0
    %v374 = vadd.f32 %v175, %v373
    %375 = vdwg.mxu0
    %376 = vmatpush.bf16.msra.mxu0 %v314
    %377 = vmatpush.bf16.msra.mxu0 %v310
    %378 = vmatpush.bf16.msra.mxu0 %v306
    %379 = vmatpush.bf16.msra.mxu0 %v302
    %380 = vmatpush.bf16.msra.mxu0 %v298
    %381 = vmatpush.bf16.msra.mxu0 %v294
    %382 = vmatpush.bf16.msra.mxu0 %v290
    %383 = vmatpush.bf16.msra.mxu0 %v286
    %384 = vmatmul.bf16.gmra.mxu0 %v186
    %v385 = vpop.f32.mrf.mxu0
    %v386 = vadd.f32 %v176, %v385
    %v387 = vpop.f32.mrf.mxu0
    %v388 = vadd.f32 %v176, %v387
    %389 = vdwg.mxu0
    %390 = vmatpush.bf16.msra.mxu0 %v315
    %391 = vmatpush.bf16.msra.mxu0 %v311
    %392 = vmatpush.bf16.msra.mxu0 %v307
    %393 = vmatpush.bf16.msra.mxu0 %v303
    %394 = vmatpush.bf16.msra.mxu0 %v299
    %395 = vmatpush.bf16.msra.mxu0 %v295
    %396 = vmatpush.bf16.msra.mxu0 %v291
    %397 = vmatpush.bf16.msra.mxu0 %v287
    %398 = vmatmul.bf16.gmra.mxu0 %v186
    %v399 = vpop.f32.mrf.mxu0
    %v400 = vadd.f32 %v177, %v399
    %v401 = vpop.f32.mrf.mxu0
    %v402 = vadd.f32 %v177, %v401
    %403 = vdwg.mxu0
    %v404 = vxor.u32 %v358, 2147483648
    %v405 = vxor.u32 %v372, 2147483648
    %v406 = vxor.u32 %v386, 2147483648
    %v407 = vxor.u32 %v400, 2147483648
    %v408 = vxor.u32 %v360, 2147483648
    %v409 = vxor.u32 %v374, 2147483648
    %v410 = vxor.u32 %v388, 2147483648
    %v411 = vxor.u32 %v402, 2147483648
    %v412 = vmul.f32 %v404, 1.442695
    %v413 = vpow.pop %v412
    %v414 = vmul.f32 %v405, 1.442695
    %v415 = vpow.pop %v414
    %v416 = vmul.f32 %v406, 1.442695
    %v417 = vpow.pop %v416
    %v418 = vmul.f32 %v407, 1.442695
    %v419 = vpow.pop %v418
    %v420 = vmul.f32 %v408, 1.442695
    %v421 = vpow.pop %v420
    %v422 = vmul.f32 %v409, 1.442695
    %v423 = vpow.pop %v422
    %v424 = vmul.f32 %v410, 1.442695
    %v425 = vpow.pop %v424
    %v426 = vmul.f32 %v411, 1.442695
    %v427 = vpow.pop %v426
    %v428 = vadd.f32 %v413, 1.0
    %v429 = vadd.f32 %v415, 1.0
    %v430 = vadd.f32 %v417, 1.0
    %v431 = vadd.f32 %v419, 1.0
    %v432 = vadd.f32 %v421, 1.0
    %v433 = vadd.f32 %v423, 1.0
    %v434 = vadd.f32 %v425, 1.0
    %v435 = vadd.f32 %v427, 1.0
    %v436 = vrcp.pop %v428
    %v437 = vmul.f32 %v428, %v436
    %v438 = vsub.f32 1.0, %v437
    %v439 = vmul.f32 %v436, %v438
    %v440 = vadd.f32 %v436, %v439
    %vm441 = vweird.f32 %v428
    %vm442 = vweird.f32 %v436
    %vm443 = vmor %vm441, %vm442
    %v444 = vsel %vm443, %v436, %v440
    %v445 = vand.u32 2147483647, %v428
    %vm446 = vcmp.eq.f32.partialorder %v445, 8.507059e+37
    %v447 = vand.u32 %v428, 2147483648
    %v448 = vor.u32 1.1754944e-38, %v447
    %v449 = vsel %vm446, %v448, %v444
    %v450 = vmul.f32 1.0, %v449
    %v451 = vrcp.pop %v429
    %v452 = vmul.f32 %v429, %v451
    %v453 = vsub.f32 1.0, %v452
    %v454 = vmul.f32 %v451, %v453
    %v455 = vadd.f32 %v451, %v454
    %vm456 = vweird.f32 %v429
    %vm457 = vweird.f32 %v451
    %vm458 = vmor %vm456, %vm457
    %v459 = vsel %vm458, %v451, %v455
    %v460 = vand.u32 2147483647, %v429
    %vm461 = vcmp.eq.f32.partialorder %v460, 8.507059e+37
    %v462 = vand.u32 %v429, 2147483648
    %v463 = vor.u32 1.1754944e-38, %v462
    %v464 = vsel %vm461, %v463, %v459
    %v465 = vmul.f32 1.0, %v464
    %v466 = vrcp.pop %v430
    %v467 = vmul.f32 %v430, %v466
    %v468 = vsub.f32 1.0, %v467
    %v469 = vmul.f32 %v466, %v468
    %v470 = vadd.f32 %v466, %v469
    %vm471 = vweird.f32 %v430
    %vm472 = vweird.f32 %v466
    %vm473 = vmor %vm471, %vm472
    %v474 = vsel %vm473, %v466, %v470
    %v475 = vand.u32 2147483647, %v430
    %vm476 = vcmp.eq.f32.partialorder %v475, 8.507059e+37
    %v477 = vand.u32 %v430, 2147483648
    %v478 = vor.u32 1.1754944e-38, %v477
    %v479 = vsel %vm476, %v478, %v474
    %v480 = vmul.f32 1.0, %v479
    %v481 = vrcp.pop %v431
    %v482 = vmul.f32 %v431, %v481
    %v483 = vsub.f32 1.0, %v482
    %v484 = vmul.f32 %v481, %v483
    %v485 = vadd.f32 %v481, %v484
    %vm486 = vweird.f32 %v431
    %vm487 = vweird.f32 %v481
    %vm488 = vmor %vm486, %vm487
    %v489 = vsel %vm488, %v481, %v485
    %v490 = vand.u32 2147483647, %v431
    %vm491 = vcmp.eq.f32.partialorder %v490, 8.507059e+37
    %v492 = vand.u32 %v431, 2147483648
    %v493 = vor.u32 1.1754944e-38, %v492
    %v494 = vsel %vm491, %v493, %v489
    %v495 = vmul.f32 1.0, %v494
    %v496 = vrcp.pop %v432
    %v497 = vmul.f32 %v432, %v496
    %v498 = vsub.f32 1.0, %v497
    %v499 = vmul.f32 %v496, %v498
    %v500 = vadd.f32 %v496, %v499
    %vm501 = vweird.f32 %v432
    %vm502 = vweird.f32 %v496
    %vm503 = vmor %vm501, %vm502
    %v504 = vsel %vm503, %v496, %v500
    %v505 = vand.u32 2147483647, %v432
    %vm506 = vcmp.eq.f32.partialorder %v505, 8.507059e+37
    %v507 = vand.u32 %v432, 2147483648
    %v508 = vor.u32 1.1754944e-38, %v507
    %v509 = vsel %vm506, %v508, %v504
    %v510 = vmul.f32 1.0, %v509
    %v511 = vrcp.pop %v433
    %v512 = vmul.f32 %v433, %v511
    %v513 = vsub.f32 1.0, %v512
    %v514 = vmul.f32 %v511, %v513
    %v515 = vadd.f32 %v511, %v514
    %vm516 = vweird.f32 %v433
    %vm517 = vweird.f32 %v511
    %vm518 = vmor %vm516, %vm517
    %v519 = vsel %vm518, %v511, %v515
    %v520 = vand.u32 2147483647, %v433
    %vm521 = vcmp.eq.f32.partialorder %v520, 8.507059e+37
    %v522 = vand.u32 %v433, 2147483648
    %v523 = vor.u32 1.1754944e-38, %v522
    %v524 = vsel %vm521, %v523, %v519
    %v525 = vmul.f32 1.0, %v524
    %v526 = vrcp.pop %v434
    %v527 = vmul.f32 %v434, %v526
    %v528 = vsub.f32 1.0, %v527
    %v529 = vmul.f32 %v526, %v528
    %v530 = vadd.f32 %v526, %v529
    %vm531 = vweird.f32 %v434
    %vm532 = vweird.f32 %v526
    %vm533 = vmor %vm531, %vm532
    %v534 = vsel %vm533, %v526, %v530
    %v535 = vand.u32 2147483647, %v434
    %vm536 = vcmp.eq.f32.partialorder %v535, 8.507059e+37
    %v537 = vand.u32 %v434, 2147483648
    %v538 = vor.u32 1.1754944e-38, %v537
    %v539 = vsel %vm536, %v538, %v534
    %v540 = vmul.f32 1.0, %v539
    %v541 = vrcp.pop %v435
    %v542 = vmul.f32 %v435, %v541
    %v543 = vsub.f32 1.0, %v542
    %v544 = vmul.f32 %v541, %v543
    %v545 = vadd.f32 %v541, %v544
    %vm546 = vweird.f32 %v435
    %vm547 = vweird.f32 %v541
    %vm548 = vmor %vm546, %vm547
    %v549 = vsel %vm548, %v541, %v545
    %v550 = vand.u32 2147483647, %v435
    %vm551 = vcmp.eq.f32.partialorder %v550, 8.507059e+37
    %v552 = vand.u32 %v435, 2147483648
    %v553 = vor.u32 1.1754944e-38, %v552
    %v554 = vsel %vm551, %v553, %v549
    %v555 = vmul.f32 1.0, %v554
    %v556 = vmul.f32 %v358, %v450
    %v557 = vmul.f32 %v372, %v465
    %v558 = vmul.f32 %v386, %v480
    %v559 = vmul.f32 %v400, %v495
    %v560 = vmul.f32 %v360, %v510
    %v561 = vmul.f32 %v374, %v525
    %v562 = vmul.f32 %v388, %v540
    %v563 = vmul.f32 %v402, %v555
    %v564 = vpack.c.bf16 %v560, %v556
    %v565 = vpack.c.bf16 %v561, %v557
    %v566 = vpack.c.bf16 %v562, %v558
    %v567 = vpack.c.bf16 %v563, %v559
    %v568 = vld [vmem:[#allocation8] sm:$0xff]
    %v569 = vld [vmem:[#allocation8 + $0x8] sm:$0xff]
    %v570 = vld [vmem:[#allocation8 + $0x10] sm:$0xff]
    %v571 = vld [vmem:[#allocation8 + $0x18] sm:$0xff]
    %v572 = vld [vmem:[#allocation8 + $0x20] sm:$0xff]
    %v573 = vld [vmem:[#allocation8 + $0x28] sm:$0xff]
    %v574 = vld [vmem:[#allocation8 + $0x30] sm:$0xff]
    %v575 = vld [vmem:[#allocation8 + $0x38] sm:$0xff]
    %v576 = vld [vmem:[#allocation8 + $0x40] sm:$0xff]
    %v577 = vld [vmem:[#allocation8 + $0x48] sm:$0xff]
    %v578 = vld [vmem:[#allocation8 + $0x50] sm:$0xff]
    %v579 = vld [vmem:[#allocation8 + $0x58] sm:$0xff]
    %v580 = vld [vmem:[#allocation8 + $0x60] sm:$0xff]
    %v581 = vld [vmem:[#allocation8 + $0x68] sm:$0xff]
    %v582 = vld [vmem:[#allocation8 + $0x70] sm:$0xff]
    %v583 = vld [vmem:[#allocation8 + $0x78] sm:$0xff]
    %v584 = vld [vmem:[#allocation8 + $0x80] sm:$0xff]
    %v585 = vld [vmem:[#allocation8 + $0x88] sm:$0xff]
    %v586 = vld [vmem:[#allocation8 + $0x90] sm:$0xff]
    %v587 = vld [vmem:[#allocation8 + $0x98] sm:$0xff]
    %v588 = vld [vmem:[#allocation8 + $0xa0] sm:$0xff]
    %v589 = vld [vmem:[#allocation8 + $0xa8] sm:$0xff]
    %v590 = vld [vmem:[#allocation8 + $0xb0] sm:$0xff]
    %v591 = vld [vmem:[#allocation8 + $0xb8] sm:$0xff]
    %v592 = vld [vmem:[#allocation8 + $0xc0] sm:$0xff]
    %v593 = vld [vmem:[#allocation8 + $0xc8] sm:$0xff]
    %v594 = vld [vmem:[#allocation8 + $0xd0] sm:$0xff]
    %v595 = vld [vmem:[#allocation8 + $0xd8] sm:$0xff]
    %v596 = vld [vmem:[#allocation8 + $0xe0] sm:$0xff]
    %v597 = vld [vmem:[#allocation8 + $0xe8] sm:$0xff]
    %v598 = vld [vmem:[#allocation8 + $0xf0] sm:$0xff]
    %v599 = vld [vmem:[#allocation8 + $0xf8] sm:$0xff]
    %v600 = vld [vmem:[#allocation8 + $0x100] sm:$0xff]
    %v601 = vld [vmem:[#allocation8 + $0x108] sm:$0xff]
    %v602 = vld [vmem:[#allocation8 + $0x110] sm:$0xff]
    %v603 = vld [vmem:[#allocation8 + $0x118] sm:$0xff]
    %v604 = vld [vmem:[#allocation8 + $0x120] sm:$0xff]
    %v605 = vld [vmem:[#allocation8 + $0x128] sm:$0xff]
    %v606 = vld [vmem:[#allocation8 + $0x130] sm:$0xff]
    %v607 = vld [vmem:[#allocation8 + $0x138] sm:$0xff]
    %v608 = vld [vmem:[#allocation8 + $0x140] sm:$0xff]
    %v609 = vld [vmem:[#allocation8 + $0x148] sm:$0xff]
    %v610 = vld [vmem:[#allocation8 + $0x150] sm:$0xff]
    %v611 = vld [vmem:[#allocation8 + $0x158] sm:$0xff]
    %v612 = vld [vmem:[#allocation8 + $0x160] sm:$0xff]
    %v613 = vld [vmem:[#allocation8 + $0x168] sm:$0xff]
    %v614 = vld [vmem:[#allocation8 + $0x170] sm:$0xff]
    %v615 = vld [vmem:[#allocation8 + $0x178] sm:$0xff]
    %v616 = vld [vmem:[#allocation8 + $0x180] sm:$0xff]
    %v617 = vld [vmem:[#allocation8 + $0x188] sm:$0xff]
    %v618 = vld [vmem:[#allocation8 + $0x190] sm:$0xff]
    %v619 = vld [vmem:[#allocation8 + $0x198] sm:$0xff]
    %v620 = vld [vmem:[#allocation8 + $0x1a0] sm:$0xff]
    %v621 = vld [vmem:[#allocation8 + $0x1a8] sm:$0xff]
    %v622 = vld [vmem:[#allocation8 + $0x1b0] sm:$0xff]
    %v623 = vld [vmem:[#allocation8 + $0x1b8] sm:$0xff]
    %v624 = vld [vmem:[#allocation8 + $0x1c0] sm:$0xff]
    %v625 = vld [vmem:[#allocation8 + $0x1c8] sm:$0xff]
    %v626 = vld [vmem:[#allocation8 + $0x1d0] sm:$0xff]
    %v627 = vld [vmem:[#allocation8 + $0x1d8] sm:$0xff]
    %v628 = vld [vmem:[#allocation8 + $0x1e0] sm:$0xff]
    %v629 = vld [vmem:[#allocation8 + $0x1e8] sm:$0xff]
    %v630 = vld [vmem:[#allocation8 + $0x1f0] sm:$0xff]
    %v631 = vld [vmem:[#allocation8 + $0x1f8] sm:$0xff]
    %v632 = vld [vmem:[#allocation8 + $0x200] sm:$0xff]
    %v633 = vld [vmem:[#allocation8 + $0x208] sm:$0xff]
    %v634 = vld [vmem:[#allocation8 + $0x210] sm:$0xff]
    %v635 = vld [vmem:[#allocation8 + $0x218] sm:$0xff]
    %v636 = vld [vmem:[#allocation8 + $0x220] sm:$0xff]
    %v637 = vld [vmem:[#allocation8 + $0x228] sm:$0xff]
    %v638 = vld [vmem:[#allocation8 + $0x230] sm:$0xff]
    %v639 = vld [vmem:[#allocation8 + $0x238] sm:$0xff]
    %v640 = vld [vmem:[#allocation8 + $0x240] sm:$0xff]
    %v641 = vld [vmem:[#allocation8 + $0x248] sm:$0xff]
    %v642 = vld [vmem:[#allocation8 + $0x250] sm:$0xff]
    %v643 = vld [vmem:[#allocation8 + $0x258] sm:$0xff]
    %v644 = vld [vmem:[#allocation8 + $0x260] sm:$0xff]
    %v645 = vld [vmem:[#allocation8 + $0x268] sm:$0xff]
    %v646 = vld [vmem:[#allocation8 + $0x270] sm:$0xff]
    %v647 = vld [vmem:[#allocation8 + $0x278] sm:$0xff]
    %v648 = vld [vmem:[#allocation8 + $0x280] sm:$0xff]
    %v649 = vld [vmem:[#allocation8 + $0x288] sm:$0xff]
    %v650 = vld [vmem:[#allocation8 + $0x290] sm:$0xff]
    %v651 = vld [vmem:[#allocation8 + $0x298] sm:$0xff]
    %v652 = vld [vmem:[#allocation8 + $0x2a0] sm:$0xff]
    %v653 = vld [vmem:[#allocation8 + $0x2a8] sm:$0xff]
    %v654 = vld [vmem:[#allocation8 + $0x2b0] sm:$0xff]
    %v655 = vld [vmem:[#allocation8 + $0x2b8] sm:$0xff]
    %v656 = vld [vmem:[#allocation8 + $0x2c0] sm:$0xff]
    %v657 = vld [vmem:[#allocation8 + $0x2c8] sm:$0xff]
    %v658 = vld [vmem:[#allocation8 + $0x2d0] sm:$0xff]
    %v659 = vld [vmem:[#allocation8 + $0x2d8] sm:$0xff]
    %v660 = vld [vmem:[#allocation8 + $0x2e0] sm:$0xff]
    %v661 = vld [vmem:[#allocation8 + $0x2e8] sm:$0xff]
    %v662 = vld [vmem:[#allocation8 + $0x2f0] sm:$0xff]
    %v663 = vld [vmem:[#allocation8 + $0x2f8] sm:$0xff]
    %v664 = vld [vmem:[#allocation8 + $0x300] sm:$0xff]
    %v665 = vld [vmem:[#allocation8 + $0x308] sm:$0xff]
    %v666 = vld [vmem:[#allocation8 + $0x310] sm:$0xff]
    %v667 = vld [vmem:[#allocation8 + $0x318] sm:$0xff]
    %v668 = vld [vmem:[#allocation8 + $0x320] sm:$0xff]
    %v669 = vld [vmem:[#allocation8 + $0x328] sm:$0xff]
    %v670 = vld [vmem:[#allocation8 + $0x330] sm:$0xff]
    %v671 = vld [vmem:[#allocation8 + $0x338] sm:$0xff]
    %v672 = vld [vmem:[#allocation8 + $0x340] sm:$0xff]
    %v673 = vld [vmem:[#allocation8 + $0x348] sm:$0xff]
    %v674 = vld [vmem:[#allocation8 + $0x350] sm:$0xff]
    %v675 = vld [vmem:[#allocation8 + $0x358] sm:$0xff]
    %v676 = vld [vmem:[#allocation8 + $0x360] sm:$0xff]
    %v677 = vld [vmem:[#allocation8 + $0x368] sm:$0xff]
    %v678 = vld [vmem:[#allocation8 + $0x370] sm:$0xff]
    %v679 = vld [vmem:[#allocation8 + $0x378] sm:$0xff]
    %v680 = vld [vmem:[#allocation8 + $0x380] sm:$0xff]
    %v681 = vld [vmem:[#allocation8 + $0x388] sm:$0xff]
    %v682 = vld [vmem:[#allocation8 + $0x390] sm:$0xff]
    %v683 = vld [vmem:[#allocation8 + $0x398] sm:$0xff]
    %v684 = vld [vmem:[#allocation8 + $0x3a0] sm:$0xff]
    %v685 = vld [vmem:[#allocation8 + $0x3a8] sm:$0xff]
    %v686 = vld [vmem:[#allocation8 + $0x3b0] sm:$0xff]
    %v687 = vld [vmem:[#allocation8 + $0x3b8] sm:$0xff]
    %v688 = vld [vmem:[#allocation8 + $0x3c0] sm:$0xff]
    %v689 = vld [vmem:[#allocation8 + $0x3c8] sm:$0xff]
    %v690 = vld [vmem:[#allocation8 + $0x3d0] sm:$0xff]
    %v691 = vld [vmem:[#allocation8 + $0x3d8] sm:$0xff]
    %v692 = vld [vmem:[#allocation8 + $0x3e0] sm:$0xff]
    %v693 = vld [vmem:[#allocation8 + $0x3e8] sm:$0xff]
    %v694 = vld [vmem:[#allocation8 + $0x3f0] sm:$0xff]
    %v695 = vld [vmem:[#allocation8 + $0x3f8] sm:$0xff]
    %v696 = vld [vmem:[#allocation8 + $0x400] sm:$0xff]
    %v697 = vld [vmem:[#allocation8 + $0x408] sm:$0xff]
    %v698 = vld [vmem:[#allocation8 + $0x410] sm:$0xff]
    %v699 = vld [vmem:[#allocation8 + $0x418] sm:$0xff]
    %v700 = vld [vmem:[#allocation8 + $0x420] sm:$0xff]
    %v701 = vld [vmem:[#allocation8 + $0x428] sm:$0xff]
    %v702 = vld [vmem:[#allocation8 + $0x430] sm:$0xff]
    %v703 = vld [vmem:[#allocation8 + $0x438] sm:$0xff]
    %v704 = vld [vmem:[#allocation8 + $0x440] sm:$0xff]
    %v705 = vld [vmem:[#allocation8 + $0x448] sm:$0xff]
    %v706 = vld [vmem:[#allocation8 + $0x450] sm:$0xff]
    %v707 = vld [vmem:[#allocation8 + $0x458] sm:$0xff]
    %v708 = vld [vmem:[#allocation8 + $0x460] sm:$0xff]
    %v709 = vld [vmem:[#allocation8 + $0x468] sm:$0xff]
    %v710 = vld [vmem:[#allocation8 + $0x470] sm:$0xff]
    %v711 = vld [vmem:[#allocation8 + $0x478] sm:$0xff]
    %v712 = vld [vmem:[#allocation8 + $0x480] sm:$0xff]
    %v713 = vld [vmem:[#allocation8 + $0x488] sm:$0xff]
    %v714 = vld [vmem:[#allocation8 + $0x490] sm:$0xff]
    %v715 = vld [vmem:[#allocation8 + $0x498] sm:$0xff]
    %v716 = vld [vmem:[#allocation8 + $0x4a0] sm:$0xff]
    %v717 = vld [vmem:[#allocation8 + $0x4a8] sm:$0xff]
    %v718 = vld [vmem:[#allocation8 + $0x4b0] sm:$0xff]
    %v719 = vld [vmem:[#allocation8 + $0x4b8] sm:$0xff]
    %v720 = vld [vmem:[#allocation8 + $0x4c0] sm:$0xff]
    %v721 = vld [vmem:[#allocation8 + $0x4c8] sm:$0xff]
    %v722 = vld [vmem:[#allocation8 + $0x4d0] sm:$0xff]
    %v723 = vld [vmem:[#allocation8 + $0x4d8] sm:$0xff]
    %v724 = vld [vmem:[#allocation8 + $0x4e0] sm:$0xff]
    %v725 = vld [vmem:[#allocation8 + $0x4e8] sm:$0xff]
    %v726 = vld [vmem:[#allocation8 + $0x4f0] sm:$0xff]
    %v727 = vld [vmem:[#allocation8 + $0x4f8] sm:$0xff]
    %v728 = vld [vmem:[#allocation8 + $0x500] sm:$0xff]
    %v729 = vld [vmem:[#allocation8 + $0x508] sm:$0xff]
    %v730 = vld [vmem:[#allocation8 + $0x510] sm:$0xff]
    %v731 = vld [vmem:[#allocation8 + $0x518] sm:$0xff]
    %v732 = vld [vmem:[#allocation8 + $0x520] sm:$0xff]
    %v733 = vld [vmem:[#allocation8 + $0x528] sm:$0xff]
    %v734 = vld [vmem:[#allocation8 + $0x530] sm:$0xff]
    %v735 = vld [vmem:[#allocation8 + $0x538] sm:$0xff]
    %v736 = vld [vmem:[#allocation8 + $0x540] sm:$0xff]
    %v737 = vld [vmem:[#allocation8 + $0x548] sm:$0xff]
    %v738 = vld [vmem:[#allocation8 + $0x550] sm:$0xff]
    %v739 = vld [vmem:[#allocation8 + $0x558] sm:$0xff]
    %v740 = vld [vmem:[#allocation8 + $0x560] sm:$0xff]
    %v741 = vld [vmem:[#allocation8 + $0x568] sm:$0xff]
    %v742 = vld [vmem:[#allocation8 + $0x570] sm:$0xff]
    %v743 = vld [vmem:[#allocation8 + $0x578] sm:$0xff]
    %v744 = vld [vmem:[#allocation8 + $0x580] sm:$0xff]
    %v745 = vld [vmem:[#allocation8 + $0x588] sm:$0xff]
    %v746 = vld [vmem:[#allocation8 + $0x590] sm:$0xff]
    %v747 = vld [vmem:[#allocation8 + $0x598] sm:$0xff]
    %v748 = vld [vmem:[#allocation8 + $0x5a0] sm:$0xff]
    %v749 = vld [vmem:[#allocation8 + $0x5a8] sm:$0xff]
    %v750 = vld [vmem:[#allocation8 + $0x5b0] sm:$0xff]
    %v751 = vld [vmem:[#allocation8 + $0x5b8] sm:$0xff]
    %v752 = vld [vmem:[#allocation8 + $0x5c0] sm:$0xff]
    %v753 = vld [vmem:[#allocation8 + $0x5c8] sm:$0xff]
    %v754 = vld [vmem:[#allocation8 + $0x5d0] sm:$0xff]
    %v755 = vld [vmem:[#allocation8 + $0x5d8] sm:$0xff]
    %v756 = vld [vmem:[#allocation8 + $0x5e0] sm:$0xff]
    %v757 = vld [vmem:[#allocation8 + $0x5e8] sm:$0xff]
    %v758 = vld [vmem:[#allocation8 + $0x5f0] sm:$0xff]
    %v759 = vld [vmem:[#allocation8 + $0x5f8] sm:$0xff]
    %v760 = vld [vmem:[#allocation8 + $0x600] sm:$0xff]
    %v761 = vld [vmem:[#allocation8 + $0x608] sm:$0xff]
    %v762 = vld [vmem:[#allocation8 + $0x610] sm:$0xff]
    %v763 = vld [vmem:[#allocation8 + $0x618] sm:$0xff]
    %v764 = vld [vmem:[#allocation8 + $0x620] sm:$0xff]
    %v765 = vld [vmem:[#allocation8 + $0x628] sm:$0xff]
    %v766 = vld [vmem:[#allocation8 + $0x630] sm:$0xff]
    %v767 = vld [vmem:[#allocation8 + $0x638] sm:$0xff]
    %v768 = vld [vmem:[#allocation8 + $0x640] sm:$0xff]
    %v769 = vld [vmem:[#allocation8 + $0x648] sm:$0xff]
    %v770 = vld [vmem:[#allocation8 + $0x650] sm:$0xff]
    %v771 = vld [vmem:[#allocation8 + $0x658] sm:$0xff]
    %v772 = vld [vmem:[#allocation8 + $0x660] sm:$0xff]
    %v773 = vld [vmem:[#allocation8 + $0x668] sm:$0xff]
    %v774 = vld [vmem:[#allocation8 + $0x670] sm:$0xff]
    %v775 = vld [vmem:[#allocation8 + $0x678] sm:$0xff]
    %v776 = vld [vmem:[#allocation8 + $0x680] sm:$0xff]
    %v777 = vld [vmem:[#allocation8 + $0x688] sm:$0xff]
    %v778 = vld [vmem:[#allocation8 + $0x690] sm:$0xff]
    %v779 = vld [vmem:[#allocation8 + $0x698] sm:$0xff]
    %v780 = vld [vmem:[#allocation8 + $0x6a0] sm:$0xff]
    %v781 = vld [vmem:[#allocation8 + $0x6a8] sm:$0xff]
    %v782 = vld [vmem:[#allocation8 + $0x6b0] sm:$0xff]
    %v783 = vld [vmem:[#allocation8 + $0x6b8] sm:$0xff]
    %v784 = vld [vmem:[#allocation8 + $0x6c0] sm:$0xff]
    %v785 = vld [vmem:[#allocation8 + $0x6c8] sm:$0xff]
    %v786 = vld [vmem:[#allocation8 + $0x6d0] sm:$0xff]
    %v787 = vld [vmem:[#allocation8 + $0x6d8] sm:$0xff]
    %v788 = vld [vmem:[#allocation8 + $0x6e0] sm:$0xff]
    %v789 = vld [vmem:[#allocation8 + $0x6e8] sm:$0xff]
    %v790 = vld [vmem:[#allocation8 + $0x6f0] sm:$0xff]
    %v791 = vld [vmem:[#allocation8 + $0x6f8] sm:$0xff]
    %v792 = vld [vmem:[#allocation8 + $0x700] sm:$0xff]
    %v793 = vld [vmem:[#allocation8 + $0x708] sm:$0xff]
    %v794 = vld [vmem:[#allocation8 + $0x710] sm:$0xff]
    %v795 = vld [vmem:[#allocation8 + $0x718] sm:$0xff]
    %v796 = vld [vmem:[#allocation8 + $0x720] sm:$0xff]
    %v797 = vld [vmem:[#allocation8 + $0x728] sm:$0xff]
    %v798 = vld [vmem:[#allocation8 + $0x730] sm:$0xff]
    %v799 = vld [vmem:[#allocation8 + $0x738] sm:$0xff]
    %v800 = vld [vmem:[#allocation8 + $0x740] sm:$0xff]
    %v801 = vld [vmem:[#allocation8 + $0x748] sm:$0xff]
    %v802 = vld [vmem:[#allocation8 + $0x750] sm:$0xff]
    %v803 = vld [vmem:[#allocation8 + $0x758] sm:$0xff]
    %v804 = vld [vmem:[#allocation8 + $0x760] sm:$0xff]
    %v805 = vld [vmem:[#allocation8 + $0x768] sm:$0xff]
    %v806 = vld [vmem:[#allocation8 + $0x770] sm:$0xff]
    %v807 = vld [vmem:[#allocation8 + $0x778] sm:$0xff]
    %v808 = vld [vmem:[#allocation8 + $0x780] sm:$0xff]
    %v809 = vld [vmem:[#allocation8 + $0x788] sm:$0xff]
    %v810 = vld [vmem:[#allocation8 + $0x790] sm:$0xff]
    %v811 = vld [vmem:[#allocation8 + $0x798] sm:$0xff]
    %v812 = vld [vmem:[#allocation8 + $0x7a0] sm:$0xff]
    %v813 = vld [vmem:[#allocation8 + $0x7a8] sm:$0xff]
    %v814 = vld [vmem:[#allocation8 + $0x7b0] sm:$0xff]
    %v815 = vld [vmem:[#allocation8 + $0x7b8] sm:$0xff]
    %v816 = vld [vmem:[#allocation8 + $0x7c0] sm:$0xff]
    %v817 = vld [vmem:[#allocation8 + $0x7c8] sm:$0xff]
    %v818 = vld [vmem:[#allocation8 + $0x7d0] sm:$0xff]
    %v819 = vld [vmem:[#allocation8 + $0x7d8] sm:$0xff]
    %v820 = vld [vmem:[#allocation8 + $0x7e0] sm:$0xff]
    %v821 = vld [vmem:[#allocation8 + $0x7e8] sm:$0xff]
    %v822 = vld [vmem:[#allocation8 + $0x7f0] sm:$0xff]
    %v823 = vld [vmem:[#allocation8 + $0x7f8] sm:$0xff]
    %v824 = vld [vmem:[#allocation10] sm:$0xff]
    %v826 = vperm.slane %v824, 0
    %v827 = vperm.slane %v824, 1
    %v828 = vperm.slane %v824, 2
    %v829 = vperm.slane %v824, 3
    %v830 = vperm.slane %v824, 4
    %v831 = vperm.slane %v824, 5
    %v832 = vperm.slane %v824, 6
    %v833 = vperm.slane %v824, 7
    %v1098 = vunpack.c.l.b16 %v568
    %v1099 = vunpack.c.h.b16 %v568
    %v1100 = vunpack.c.l.b16 %v569
    %v1101 = vunpack.c.h.b16 %v569
    %v1102 = vunpack.c.l.b16 %v570
    %v1103 = vunpack.c.h.b16 %v570
    %v1104 = vunpack.c.l.b16 %v571
    %v1105 = vunpack.c.h.b16 %v571
    %v1106 = vunpack.c.l.b16 %v572
    %v1107 = vunpack.c.h.b16 %v572
    %v1108 = vunpack.c.l.b16 %v573
    %v1109 = vunpack.c.h.b16 %v573
    %v1110 = vunpack.c.l.b16 %v574
    %v1111 = vunpack.c.h.b16 %v574
    %v1112 = vunpack.c.l.b16 %v575
    %v1113 = vunpack.c.h.b16 %v575
    %v1114 = vunpack.c.l.b16 %v576
    %v1115 = vunpack.c.h.b16 %v576
    %v1116 = vunpack.c.l.b16 %v577
    %v1117 = vunpack.c.h.b16 %v577
    %v1118 = vunpack.c.l.b16 %v578
    %v1119 = vunpack.c.h.b16 %v578
    %v1120 = vunpack.c.l.b16 %v579
    %v1121 = vunpack.c.h.b16 %v579
    %v1122 = vunpack.c.l.b16 %v580
    %v1123 = vunpack.c.h.b16 %v580
    %v1124 = vunpack.c.l.b16 %v581
    %v1125 = vunpack.c.h.b16 %v581
    %v1126 = vunpack.c.l.b16 %v582
    %v1127 = vunpack.c.h.b16 %v582
    %v1128 = vunpack.c.l.b16 %v583
    %v1129 = vunpack.c.h.b16 %v583
    %v1130 = vunpack.c.l.b16 %v584
    %v1131 = vunpack.c.h.b16 %v584
    %v1132 = vunpack.c.l.b16 %v585
    %v1133 = vunpack.c.h.b16 %v585
    %v1134 = vunpack.c.l.b16 %v586
    %v1135 = vunpack.c.h.b16 %v586
    %v1136 = vunpack.c.l.b16 %v587
    %v1137 = vunpack.c.h.b16 %v587
    %v1138 = vunpack.c.l.b16 %v588
    %v1139 = vunpack.c.h.b16 %v588
    %v1140 = vunpack.c.l.b16 %v589
    %v1141 = vunpack.c.h.b16 %v589
    %v1142 = vunpack.c.l.b16 %v590
    %v1143 = vunpack.c.h.b16 %v590
    %v1144 = vunpack.c.l.b16 %v591
    %v1145 = vunpack.c.h.b16 %v591
    %v1146 = vunpack.c.l.b16 %v592
    %v1147 = vunpack.c.h.b16 %v592
    %v1148 = vunpack.c.l.b16 %v593
    %v1149 = vunpack.c.h.b16 %v593
    %v1150 = vunpack.c.l.b16 %v594
    %v1151 = vunpack.c.h.b16 %v594
    %v1152 = vunpack.c.l.b16 %v595
    %v1153 = vunpack.c.h.b16 %v595
    %v1154 = vunpack.c.l.b16 %v596
    %v1155 = vunpack.c.h.b16 %v596
    %v1156 = vunpack.c.l.b16 %v597
    %v1157 = vunpack.c.h.b16 %v597
    %v1158 = vunpack.c.l.b16 %v598
    %v1159 = vunpack.c.h.b16 %v598
    %v1160 = vunpack.c.l.b16 %v599
    %v1161 = vunpack.c.h.b16 %v599
    %v1162 = vunpack.c.l.b16 %v600
    %v1163 = vunpack.c.h.b16 %v600
    %v1164 = vunpack.c.l.b16 %v601
    %v1165 = vunpack.c.h.b16 %v601
    %v1166 = vunpack.c.l.b16 %v602
    %v1167 = vunpack.c.h.b16 %v602
    %v1168 = vunpack.c.l.b16 %v603
    %v1169 = vunpack.c.h.b16 %v603
    %v1170 = vunpack.c.l.b16 %v604
    %v1171 = vunpack.c.h.b16 %v604
    %v1172 = vunpack.c.l.b16 %v605
    %v1173 = vunpack.c.h.b16 %v605
    %v1174 = vunpack.c.l.b16 %v606
    %v1175 = vunpack.c.h.b16 %v606
    %v1176 = vunpack.c.l.b16 %v607
    %v1177 = vunpack.c.h.b16 %v607
    %v1178 = vunpack.c.l.b16 %v608
    %v1179 = vunpack.c.h.b16 %v608
    %v1180 = vunpack.c.l.b16 %v609
    %v1181 = vunpack.c.h.b16 %v609
    %v1182 = vunpack.c.l.b16 %v610
    %v1183 = vunpack.c.h.b16 %v610
    %v1184 = vunpack.c.l.b16 %v611
    %v1185 = vunpack.c.h.b16 %v611
    %v1186 = vunpack.c.l.b16 %v612
    %v1187 = vunpack.c.h.b16 %v612
    %v1188 = vunpack.c.l.b16 %v613
    %v1189 = vunpack.c.h.b16 %v613
    %v1190 = vunpack.c.l.b16 %v614
    %v1191 = vunpack.c.h.b16 %v614
    %v1192 = vunpack.c.l.b16 %v615
    %v1193 = vunpack.c.h.b16 %v615
    %v1194 = vunpack.c.l.b16 %v616
    %v1195 = vunpack.c.h.b16 %v616
    %v1196 = vunpack.c.l.b16 %v617
    %v1197 = vunpack.c.h.b16 %v617
    %v1198 = vunpack.c.l.b16 %v618
    %v1199 = vunpack.c.h.b16 %v618
    %v1200 = vunpack.c.l.b16 %v619
    %v1201 = vunpack.c.h.b16 %v619
    %v1202 = vunpack.c.l.b16 %v620
    %v1203 = vunpack.c.h.b16 %v620
    %v1204 = vunpack.c.l.b16 %v621
    %v1205 = vunpack.c.h.b16 %v621
    %v1206 = vunpack.c.l.b16 %v622
    %v1207 = vunpack.c.h.b16 %v622
    %v1208 = vunpack.c.l.b16 %v623
    %v1209 = vunpack.c.h.b16 %v623
    %v1210 = vunpack.c.l.b16 %v624
    %v1211 = vunpack.c.h.b16 %v624
    %v1212 = vunpack.c.l.b16 %v625
    %v1213 = vunpack.c.h.b16 %v625
    %v1214 = vunpack.c.l.b16 %v626
    %v1215 = vunpack.c.h.b16 %v626
    %v1216 = vunpack.c.l.b16 %v627
    %v1217 = vunpack.c.h.b16 %v627
    %v1218 = vunpack.c.l.b16 %v628
    %v1219 = vunpack.c.h.b16 %v628
    %v1220 = vunpack.c.l.b16 %v629
    %v1221 = vunpack.c.h.b16 %v629
    %v1222 = vunpack.c.l.b16 %v630
    %v1223 = vunpack.c.h.b16 %v630
    %v1224 = vunpack.c.l.b16 %v631
    %v1225 = vunpack.c.h.b16 %v631
    %v1226 = vunpack.c.l.b16 %v632
    %v1227 = vunpack.c.h.b16 %v632
    %v1228 = vunpack.c.l.b16 %v633
    %v1229 = vunpack.c.h.b16 %v633
    %v1230 = vunpack.c.l.b16 %v634
    %v1231 = vunpack.c.h.b16 %v634
    %v1232 = vunpack.c.l.b16 %v635
    %v1233 = vunpack.c.h.b16 %v635
    %v1234 = vunpack.c.l.b16 %v636
    %v1235 = vunpack.c.h.b16 %v636
    %v1236 = vunpack.c.l.b16 %v637
    %v1237 = vunpack.c.h.b16 %v637
    %v1238 = vunpack.c.l.b16 %v638
    %v1239 = vunpack.c.h.b16 %v638
    %v1240 = vunpack.c.l.b16 %v639
    %v1241 = vunpack.c.h.b16 %v639
    %v1242 = vunpack.c.l.b16 %v640
    %v1243 = vunpack.c.h.b16 %v640
    %v1244 = vunpack.c.l.b16 %v641
    %v1245 = vunpack.c.h.b16 %v641
    %v1246 = vunpack.c.l.b16 %v642
    %v1247 = vunpack.c.h.b16 %v642
    %v1248 = vunpack.c.l.b16 %v643
    %v1249 = vunpack.c.h.b16 %v643
    %v1250 = vunpack.c.l.b16 %v644
    %v1251 = vunpack.c.h.b16 %v644
    %v1252 = vunpack.c.l.b16 %v645
    %v1253 = vunpack.c.h.b16 %v645
    %v1254 = vunpack.c.l.b16 %v646
    %v1255 = vunpack.c.h.b16 %v646
    %v1256 = vunpack.c.l.b16 %v647
    %v1257 = vunpack.c.h.b16 %v647
    %v1258 = vunpack.c.l.b16 %v648
    %v1259 = vunpack.c.h.b16 %v648
    %v1260 = vunpack.c.l.b16 %v649
    %v1261 = vunpack.c.h.b16 %v649
    %v1262 = vunpack.c.l.b16 %v650
    %v1263 = vunpack.c.h.b16 %v650
    %v1264 = vunpack.c.l.b16 %v651
    %v1265 = vunpack.c.h.b16 %v651
    %v1266 = vunpack.c.l.b16 %v652
    %v1267 = vunpack.c.h.b16 %v652
    %v1268 = vunpack.c.l.b16 %v653
    %v1269 = vunpack.c.h.b16 %v653
    %v1270 = vunpack.c.l.b16 %v654
    %v1271 = vunpack.c.h.b16 %v654
    %v1272 = vunpack.c.l.b16 %v655
    %v1273 = vunpack.c.h.b16 %v655
    %v1274 = vunpack.c.l.b16 %v656
    %v1275 = vunpack.c.h.b16 %v656
    %v1276 = vunpack.c.l.b16 %v657
    %v1277 = vunpack.c.h.b16 %v657
    %v1278 = vunpack.c.l.b16 %v658
    %v1279 = vunpack.c.h.b16 %v658
    %v1280 = vunpack.c.l.b16 %v659
    %v1281 = vunpack.c.h.b16 %v659
    %v1282 = vunpack.c.l.b16 %v660
    %v1283 = vunpack.c.h.b16 %v660
    %v1284 = vunpack.c.l.b16 %v661
    %v1285 = vunpack.c.h.b16 %v661
    %v1286 = vunpack.c.l.b16 %v662
    %v1287 = vunpack.c.h.b16 %v662
    %v1288 = vunpack.c.l.b16 %v663
    %v1289 = vunpack.c.h.b16 %v663
    %v1290 = vunpack.c.l.b16 %v664
    %v1291 = vunpack.c.h.b16 %v664
    %v1292 = vunpack.c.l.b16 %v665
    %v1293 = vunpack.c.h.b16 %v665
    %v1294 = vunpack.c.l.b16 %v666
    %v1295 = vunpack.c.h.b16 %v666
    %v1296 = vunpack.c.l.b16 %v667
    %v1297 = vunpack.c.h.b16 %v667
    %v1298 = vunpack.c.l.b16 %v668
    %v1299 = vunpack.c.h.b16 %v668
    %v1300 = vunpack.c.l.b16 %v669
    %v1301 = vunpack.c.h.b16 %v669
    %v1302 = vunpack.c.l.b16 %v670
    %v1303 = vunpack.c.h.b16 %v670
    %v1304 = vunpack.c.l.b16 %v671
    %v1305 = vunpack.c.h.b16 %v671
    %v1306 = vunpack.c.l.b16 %v672
    %v1307 = vunpack.c.h.b16 %v672
    %v1308 = vunpack.c.l.b16 %v673
    %v1309 = vunpack.c.h.b16 %v673
    %v1310 = vunpack.c.l.b16 %v674
    %v1311 = vunpack.c.h.b16 %v674
    %v1312 = vunpack.c.l.b16 %v675
    %v1313 = vunpack.c.h.b16 %v675
    %v1314 = vunpack.c.l.b16 %v676
    %v1315 = vunpack.c.h.b16 %v676
    %v1316 = vunpack.c.l.b16 %v677
    %v1317 = vunpack.c.h.b16 %v677
    %v1318 = vunpack.c.l.b16 %v678
    %v1319 = vunpack.c.h.b16 %v678
    %v1320 = vunpack.c.l.b16 %v679
    %v1321 = vunpack.c.h.b16 %v679
    %v1322 = vunpack.c.l.b16 %v680
    %v1323 = vunpack.c.h.b16 %v680
    %v1324 = vunpack.c.l.b16 %v681
    %v1325 = vunpack.c.h.b16 %v681
    %v1326 = vunpack.c.l.b16 %v682
    %v1327 = vunpack.c.h.b16 %v682
    %v1328 = vunpack.c.l.b16 %v683
    %v1329 = vunpack.c.h.b16 %v683
    %v1330 = vunpack.c.l.b16 %v684
    %v1331 = vunpack.c.h.b16 %v684
    %v1332 = vunpack.c.l.b16 %v685
    %v1333 = vunpack.c.h.b16 %v685
    %v1334 = vunpack.c.l.b16 %v686
    %v1335 = vunpack.c.h.b16 %v686
    %v1336 = vunpack.c.l.b16 %v687
    %v1337 = vunpack.c.h.b16 %v687
    %v1338 = vunpack.c.l.b16 %v688
    %v1339 = vunpack.c.h.b16 %v688
    %v1340 = vunpack.c.l.b16 %v689
    %v1341 = vunpack.c.h.b16 %v689
    %v1342 = vunpack.c.l.b16 %v690
    %v1343 = vunpack.c.h.b16 %v690
    %v1344 = vunpack.c.l.b16 %v691
    %v1345 = vunpack.c.h.b16 %v691
    %v1346 = vunpack.c.l.b16 %v692
    %v1347 = vunpack.c.h.b16 %v692
    %v1348 = vunpack.c.l.b16 %v693
    %v1349 = vunpack.c.h.b16 %v693
    %v1350 = vunpack.c.l.b16 %v694
    %v1351 = vunpack.c.h.b16 %v694
    %v1352 = vunpack.c.l.b16 %v695
    %v1353 = vunpack.c.h.b16 %v695
    %v1354 = vunpack.c.l.b16 %v696
    %v1355 = vunpack.c.h.b16 %v696
    %v1356 = vunpack.c.l.b16 %v697
    %v1357 = vunpack.c.h.b16 %v697
    %v1358 = vunpack.c.l.b16 %v698
    %v1359 = vunpack.c.h.b16 %v698
    %v1360 = vunpack.c.l.b16 %v699
    %v1361 = vunpack.c.h.b16 %v699
    %v1362 = vunpack.c.l.b16 %v700
    %v1363 = vunpack.c.h.b16 %v700
    %v1364 = vunpack.c.l.b16 %v701
    %v1365 = vunpack.c.h.b16 %v701
    %v1366 = vunpack.c.l.b16 %v702
    %v1367 = vunpack.c.h.b16 %v702
    %v1368 = vunpack.c.l.b16 %v703
    %v1369 = vunpack.c.h.b16 %v703
    %v1370 = vunpack.c.l.b16 %v704
    %v1371 = vunpack.c.h.b16 %v704
    %v1372 = vunpack.c.l.b16 %v705
    %v1373 = vunpack.c.h.b16 %v705
    %v1374 = vunpack.c.l.b16 %v706
    %v1375 = vunpack.c.h.b16 %v706
    %v1376 = vunpack.c.l.b16 %v707
    %v1377 = vunpack.c.h.b16 %v707
    %v1378 = vunpack.c.l.b16 %v708
    %v1379 = vunpack.c.h.b16 %v708
    %v1380 = vunpack.c.l.b16 %v709
    %v1381 = vunpack.c.h.b16 %v709
    %v1382 = vunpack.c.l.b16 %v710
    %v1383 = vunpack.c.h.b16 %v710
    %v1384 = vunpack.c.l.b16 %v711
    %v1385 = vunpack.c.h.b16 %v711
    %v1386 = vunpack.c.l.b16 %v712
    %v1387 = vunpack.c.h.b16 %v712
    %v1388 = vunpack.c.l.b16 %v713
    %v1389 = vunpack.c.h.b16 %v713
    %v1390 = vunpack.c.l.b16 %v714
    %v1391 = vunpack.c.h.b16 %v714
    %v1392 = vunpack.c.l.b16 %v715
    %v1393 = vunpack.c.h.b16 %v715
    %v1394 = vunpack.c.l.b16 %v716
    %v1395 = vunpack.c.h.b16 %v716
    %v1396 = vunpack.c.l.b16 %v717
    %v1397 = vunpack.c.h.b16 %v717
    %v1398 = vunpack.c.l.b16 %v718
    %v1399 = vunpack.c.h.b16 %v718
    %v1400 = vunpack.c.l.b16 %v719
    %v1401 = vunpack.c.h.b16 %v719
    %v1402 = vunpack.c.l.b16 %v720
    %v1403 = vunpack.c.h.b16 %v720
    %v1404 = vunpack.c.l.b16 %v721
    %v1405 = vunpack.c.h.b16 %v721
    %v1406 = vunpack.c.l.b16 %v722
    %v1407 = vunpack.c.h.b16 %v722
    %v1408 = vunpack.c.l.b16 %v723
    %v1409 = vunpack.c.h.b16 %v723
    %v1410 = vunpack.c.l.b16 %v724
    %v1411 = vunpack.c.h.b16 %v724
    %v1412 = vunpack.c.l.b16 %v725
    %v1413 = vunpack.c.h.b16 %v725
    %v1414 = vunpack.c.l.b16 %v726
    %v1415 = vunpack.c.h.b16 %v726
    %v1416 = vunpack.c.l.b16 %v727
    %v1417 = vunpack.c.h.b16 %v727
    %v1418 = vunpack.c.l.b16 %v728
    %v1419 = vunpack.c.h.b16 %v728
    %v1420 = vunpack.c.l.b16 %v729
    %v1421 = vunpack.c.h.b16 %v729
    %v1422 = vunpack.c.l.b16 %v730
    %v1423 = vunpack.c.h.b16 %v730
    %v1424 = vunpack.c.l.b16 %v731
    %v1425 = vunpack.c.h.b16 %v731
    %v1426 = vunpack.c.l.b16 %v732
    %v1427 = vunpack.c.h.b16 %v732
    %v1428 = vunpack.c.l.b16 %v733
    %v1429 = vunpack.c.h.b16 %v733
    %v1430 = vunpack.c.l.b16 %v734
    %v1431 = vunpack.c.h.b16 %v734
    %v1432 = vunpack.c.l.b16 %v735
    %v1433 = vunpack.c.h.b16 %v735
    %v1434 = vunpack.c.l.b16 %v736
    %v1435 = vunpack.c.h.b16 %v736
    %v1436 = vunpack.c.l.b16 %v737
    %v1437 = vunpack.c.h.b16 %v737
    %v1438 = vunpack.c.l.b16 %v738
    %v1439 = vunpack.c.h.b16 %v738
    %v1440 = vunpack.c.l.b16 %v739
    %v1441 = vunpack.c.h.b16 %v739
    %v1442 = vunpack.c.l.b16 %v740
    %v1443 = vunpack.c.h.b16 %v740
    %v1444 = vunpack.c.l.b16 %v741
    %v1445 = vunpack.c.h.b16 %v741
    %v1446 = vunpack.c.l.b16 %v742
    %v1447 = vunpack.c.h.b16 %v742
    %v1448 = vunpack.c.l.b16 %v743
    %v1449 = vunpack.c.h.b16 %v743
    %v1450 = vunpack.c.l.b16 %v744
    %v1451 = vunpack.c.h.b16 %v744
    %v1452 = vunpack.c.l.b16 %v745
    %v1453 = vunpack.c.h.b16 %v745
    %v1454 = vunpack.c.l.b16 %v746
    %v1455 = vunpack.c.h.b16 %v746
    %v1456 = vunpack.c.l.b16 %v747
    %v1457 = vunpack.c.h.b16 %v747
    %v1458 = vunpack.c.l.b16 %v748
    %v1459 = vunpack.c.h.b16 %v748
    %v1460 = vunpack.c.l.b16 %v749
    %v1461 = vunpack.c.h.b16 %v749
    %v1462 = vunpack.c.l.b16 %v750
    %v1463 = vunpack.c.h.b16 %v750
    %v1464 = vunpack.c.l.b16 %v751
    %v1465 = vunpack.c.h.b16 %v751
    %v1466 = vunpack.c.l.b16 %v752
    %v1467 = vunpack.c.h.b16 %v752
    %v1468 = vunpack.c.l.b16 %v753
    %v1469 = vunpack.c.h.b16 %v753
    %v1470 = vunpack.c.l.b16 %v754
    %v1471 = vunpack.c.h.b16 %v754
    %v1472 = vunpack.c.l.b16 %v755
    %v1473 = vunpack.c.h.b16 %v755
    %v1474 = vunpack.c.l.b16 %v756
    %v1475 = vunpack.c.h.b16 %v756
    %v1476 = vunpack.c.l.b16 %v757
    %v1477 = vunpack.c.h.b16 %v757
    %v1478 = vunpack.c.l.b16 %v758
    %v1479 = vunpack.c.h.b16 %v758
    %v1480 = vunpack.c.l.b16 %v759
    %v1481 = vunpack.c.h.b16 %v759
    %v1482 = vunpack.c.l.b16 %v760
    %v1483 = vunpack.c.h.b16 %v760
    %v1484 = vunpack.c.l.b16 %v761
    %v1485 = vunpack.c.h.b16 %v761
    %v1486 = vunpack.c.l.b16 %v762
    %v1487 = vunpack.c.h.b16 %v762
    %v1488 = vunpack.c.l.b16 %v763
    %v1489 = vunpack.c.h.b16 %v763
    %v1490 = vunpack.c.l.b16 %v764
    %v1491 = vunpack.c.h.b16 %v764
    %v1492 = vunpack.c.l.b16 %v765
    %v1493 = vunpack.c.h.b16 %v765
    %v1494 = vunpack.c.l.b16 %v766
    %v1495 = vunpack.c.h.b16 %v766
    %v1496 = vunpack.c.l.b16 %v767
    %v1497 = vunpack.c.h.b16 %v767
    %v1498 = vunpack.c.l.b16 %v768
    %v1499 = vunpack.c.h.b16 %v768
    %v1500 = vunpack.c.l.b16 %v769
    %v1501 = vunpack.c.h.b16 %v769
    %v1502 = vunpack.c.l.b16 %v770
    %v1503 = vunpack.c.h.b16 %v770
    %v1504 = vunpack.c.l.b16 %v771
    %v1505 = vunpack.c.h.b16 %v771
    %v1506 = vunpack.c.l.b16 %v772
    %v1507 = vunpack.c.h.b16 %v772
    %v1508 = vunpack.c.l.b16 %v773
    %v1509 = vunpack.c.h.b16 %v773
    %v1510 = vunpack.c.l.b16 %v774
    %v1511 = vunpack.c.h.b16 %v774
    %v1512 = vunpack.c.l.b16 %v775
    %v1513 = vunpack.c.h.b16 %v775
    %v1514 = vunpack.c.l.b16 %v776
    %v1515 = vunpack.c.h.b16 %v776
    %v1516 = vunpack.c.l.b16 %v777
    %v1517 = vunpack.c.h.b16 %v777
    %v1518 = vunpack.c.l.b16 %v778
    %v1519 = vunpack.c.h.b16 %v778
    %v1520 = vunpack.c.l.b16 %v779
    %v1521 = vunpack.c.h.b16 %v779
    %v1522 = vunpack.c.l.b16 %v780
    %v1523 = vunpack.c.h.b16 %v780
    %v1524 = vunpack.c.l.b16 %v781
    %v1525 = vunpack.c.h.b16 %v781
    %v1526 = vunpack.c.l.b16 %v782
    %v1527 = vunpack.c.h.b16 %v782
    %v1528 = vunpack.c.l.b16 %v783
    %v1529 = vunpack.c.h.b16 %v783
    %v1530 = vunpack.c.l.b16 %v784
    %v1531 = vunpack.c.h.b16 %v784
    %v1532 = vunpack.c.l.b16 %v785
    %v1533 = vunpack.c.h.b16 %v785
    %v1534 = vunpack.c.l.b16 %v786
    %v1535 = vunpack.c.h.b16 %v786
    %v1536 = vunpack.c.l.b16 %v787
    %v1537 = vunpack.c.h.b16 %v787
    %v1538 = vunpack.c.l.b16 %v788
    %v1539 = vunpack.c.h.b16 %v788
    %v1540 = vunpack.c.l.b16 %v789
    %v1541 = vunpack.c.h.b16 %v789
    %v1542 = vunpack.c.l.b16 %v790
    %v1543 = vunpack.c.h.b16 %v790
    %v1544 = vunpack.c.l.b16 %v791
    %v1545 = vunpack.c.h.b16 %v791
    %v1546 = vunpack.c.l.b16 %v792
    %v1547 = vunpack.c.h.b16 %v792
    %v1548 = vunpack.c.l.b16 %v793
    %v1549 = vunpack.c.h.b16 %v793
    %v1550 = vunpack.c.l.b16 %v794
    %v1551 = vunpack.c.h.b16 %v794
    %v1552 = vunpack.c.l.b16 %v795
    %v1553 = vunpack.c.h.b16 %v795
    %v1554 = vunpack.c.l.b16 %v796
    %v1555 = vunpack.c.h.b16 %v796
    %v1556 = vunpack.c.l.b16 %v797
    %v1557 = vunpack.c.h.b16 %v797
    %v1558 = vunpack.c.l.b16 %v798
    %v1559 = vunpack.c.h.b16 %v798
    %v1560 = vunpack.c.l.b16 %v799
    %v1561 = vunpack.c.h.b16 %v799
    %v1562 = vunpack.c.l.b16 %v800
    %v1563 = vunpack.c.h.b16 %v800
    %v1564 = vunpack.c.l.b16 %v801
    %v1565 = vunpack.c.h.b16 %v801
    %v1566 = vunpack.c.l.b16 %v802
    %v1567 = vunpack.c.h.b16 %v802
    %v1568 = vunpack.c.l.b16 %v803
    %v1569 = vunpack.c.h.b16 %v803
    %v1570 = vunpack.c.l.b16 %v804
    %v1571 = vunpack.c.h.b16 %v804
    %v1572 = vunpack.c.l.b16 %v805
    %v1573 = vunpack.c.h.b16 %v805
    %v1574 = vunpack.c.l.b16 %v806
    %v1575 = vunpack.c.h.b16 %v806
    %v1576 = vunpack.c.l.b16 %v807
    %v1577 = vunpack.c.h.b16 %v807
    %v1578 = vunpack.c.l.b16 %v808
    %v1579 = vunpack.c.h.b16 %v808
    %v1580 = vunpack.c.l.b16 %v809
    %v1581 = vunpack.c.h.b16 %v809
    %v1582 = vunpack.c.l.b16 %v810
    %v1583 = vunpack.c.h.b16 %v810
    %v1584 = vunpack.c.l.b16 %v811
    %v1585 = vunpack.c.h.b16 %v811
    %v1586 = vunpack.c.l.b16 %v812
    %v1587 = vunpack.c.h.b16 %v812
    %v1588 = vunpack.c.l.b16 %v813
    %v1589 = vunpack.c.h.b16 %v813
    %v1590 = vunpack.c.l.b16 %v814
    %v1591 = vunpack.c.h.b16 %v814
    %v1592 = vunpack.c.l.b16 %v815
    %v1593 = vunpack.c.h.b16 %v815
    %v1594 = vunpack.c.l.b16 %v816
    %v1595 = vunpack.c.h.b16 %v816
    %v1596 = vunpack.c.l.b16 %v817
    %v1597 = vunpack.c.h.b16 %v817
    %v1598 = vunpack.c.l.b16 %v818
    %v1599 = vunpack.c.h.b16 %v818
    %v1600 = vunpack.c.l.b16 %v819
    %v1601 = vunpack.c.h.b16 %v819
    %v1602 = vunpack.c.l.b16 %v820
    %v1603 = vunpack.c.h.b16 %v820
    %v1604 = vunpack.c.l.b16 %v821
    %v1605 = vunpack.c.h.b16 %v821
    %v1606 = vunpack.c.l.b16 %v822
    %v1607 = vunpack.c.h.b16 %v822
    %v1608 = vunpack.c.l.b16 %v823
    %v1609 = vunpack.c.h.b16 %v823
    %v1610 = vpack.c.b16 %v1106, %v1098
    %v1611 = vpack.c.b16 %v1107, %v1099
    %v1612 = vpack.c.b16 %v1108, %v1100
    %v1613 = vpack.c.b16 %v1109, %v1101
    %v1614 = vpack.c.b16 %v1110, %v1102
    %v1615 = vpack.c.b16 %v1111, %v1103
    %v1616 = vpack.c.b16 %v1112, %v1104
    %v1617 = vpack.c.b16 %v1113, %v1105
    %v1618 = vpack.c.b16 %v1122, %v1114
    %v1619 = vpack.c.b16 %v1123, %v1115
    %v1620 = vpack.c.b16 %v1124, %v1116
    %v1621 = vpack.c.b16 %v1125, %v1117
    %v1622 = vpack.c.b16 %v1126, %v1118
    %v1623 = vpack.c.b16 %v1127, %v1119
    %v1624 = vpack.c.b16 %v1128, %v1120
    %v1625 = vpack.c.b16 %v1129, %v1121
    %v1626 = vpack.c.b16 %v1138, %v1130
    %v1627 = vpack.c.b16 %v1139, %v1131
    %v1628 = vpack.c.b16 %v1140, %v1132
    %v1629 = vpack.c.b16 %v1141, %v1133
    %v1630 = vpack.c.b16 %v1142, %v1134
    %v1631 = vpack.c.b16 %v1143, %v1135
    %v1632 = vpack.c.b16 %v1144, %v1136
    %v1633 = vpack.c.b16 %v1145, %v1137
    %v1634 = vpack.c.b16 %v1154, %v1146
    %v1635 = vpack.c.b16 %v1155, %v1147
    %v1636 = vpack.c.b16 %v1156, %v1148
    %v1637 = vpack.c.b16 %v1157, %v1149
    %v1638 = vpack.c.b16 %v1158, %v1150
    %v1639 = vpack.c.b16 %v1159, %v1151
    %v1640 = vpack.c.b16 %v1160, %v1152
    %v1641 = vpack.c.b16 %v1161, %v1153
    %v1642 = vpack.c.b16 %v1170, %v1162
    %v1643 = vpack.c.b16 %v1171, %v1163
    %v1644 = vpack.c.b16 %v1172, %v1164
    %v1645 = vpack.c.b16 %v1173, %v1165
    %v1646 = vpack.c.b16 %v1174, %v1166
    %v1647 = vpack.c.b16 %v1175, %v1167
    %v1648 = vpack.c.b16 %v1176, %v1168
    %v1649 = vpack.c.b16 %v1177, %v1169
    %v1650 = vpack.c.b16 %v1186, %v1178
    %v1651 = vpack.c.b16 %v1187, %v1179
    %v1652 = vpack.c.b16 %v1188, %v1180
    %v1653 = vpack.c.b16 %v1189, %v1181
    %v1654 = vpack.c.b16 %v1190, %v1182
    %v1655 = vpack.c.b16 %v1191, %v1183
    %v1656 = vpack.c.b16 %v1192, %v1184
    %v1657 = vpack.c.b16 %v1193, %v1185
    %v1658 = vpack.c.b16 %v1202, %v1194
    %v1659 = vpack.c.b16 %v1203, %v1195
    %v1660 = vpack.c.b16 %v1204, %v1196
    %v1661 = vpack.c.b16 %v1205, %v1197
    %v1662 = vpack.c.b16 %v1206, %v1198
    %v1663 = vpack.c.b16 %v1207, %v1199
    %v1664 = vpack.c.b16 %v1208, %v1200
    %v1665 = vpack.c.b16 %v1209, %v1201
    %v1666 = vpack.c.b16 %v1218, %v1210
    %v1667 = vpack.c.b16 %v1219, %v1211
    %v1668 = vpack.c.b16 %v1220, %v1212
    %v1669 = vpack.c.b16 %v1221, %v1213
    %v1670 = vpack.c.b16 %v1222, %v1214
    %v1671 = vpack.c.b16 %v1223, %v1215
    %v1672 = vpack.c.b16 %v1224, %v1216
    %v1673 = vpack.c.b16 %v1225, %v1217
    %v1674 = vpack.c.b16 %v1234, %v1226
    %v1675 = vpack.c.b16 %v1235, %v1227
    %v1676 = vpack.c.b16 %v1236, %v1228
    %v1677 = vpack.c.b16 %v1237, %v1229
    %v1678 = vpack.c.b16 %v1238, %v1230
    %v1679 = vpack.c.b16 %v1239, %v1231
    %v1680 = vpack.c.b16 %v1240, %v1232
    %v1681 = vpack.c.b16 %v1241, %v1233
    %v1682 = vpack.c.b16 %v1250, %v1242
    %v1683 = vpack.c.b16 %v1251, %v1243
    %v1684 = vpack.c.b16 %v1252, %v1244
    %v1685 = vpack.c.b16 %v1253, %v1245
    %v1686 = vpack.c.b16 %v1254, %v1246
    %v1687 = vpack.c.b16 %v1255, %v1247
    %v1688 = vpack.c.b16 %v1256, %v1248
    %v1689 = vpack.c.b16 %v1257, %v1249
    %v1690 = vpack.c.b16 %v1266, %v1258
    %v1691 = vpack.c.b16 %v1267, %v1259
    %v1692 = vpack.c.b16 %v1268, %v1260
    %v1693 = vpack.c.b16 %v1269, %v1261
    %v1694 = vpack.c.b16 %v1270, %v1262
    %v1695 = vpack.c.b16 %v1271, %v1263
    %v1696 = vpack.c.b16 %v1272, %v1264
    %v1697 = vpack.c.b16 %v1273, %v1265
    %v1698 = vpack.c.b16 %v1282, %v1274
    %v1699 = vpack.c.b16 %v1283, %v1275
    %v1700 = vpack.c.b16 %v1284, %v1276
    %v1701 = vpack.c.b16 %v1285, %v1277
    %v1702 = vpack.c.b16 %v1286, %v1278
    %v1703 = vpack.c.b16 %v1287, %v1279
    %v1704 = vpack.c.b16 %v1288, %v1280
    %v1705 = vpack.c.b16 %v1289, %v1281
    %v1706 = vpack.c.b16 %v1298, %v1290
    %v1707 = vpack.c.b16 %v1299, %v1291
    %v1708 = vpack.c.b16 %v1300, %v1292
    %v1709 = vpack.c.b16 %v1301, %v1293
    %v1710 = vpack.c.b16 %v1302, %v1294
    %v1711 = vpack.c.b16 %v1303, %v1295
    %v1712 = vpack.c.b16 %v1304, %v1296
    %v1713 = vpack.c.b16 %v1305, %v1297
    %v1714 = vpack.c.b16 %v1314, %v1306
    %v1715 = vpack.c.b16 %v1315, %v1307
    %v1716 = vpack.c.b16 %v1316, %v1308
    %v1717 = vpack.c.b16 %v1317, %v1309
    %v1718 = vpack.c.b16 %v1318, %v1310
    %v1719 = vpack.c.b16 %v1319, %v1311
    %v1720 = vpack.c.b16 %v1320, %v1312
    %v1721 = vpack.c.b16 %v1321, %v1313
    %v1722 = vpack.c.b16 %v1330, %v1322
    %v1723 = vpack.c.b16 %v1331, %v1323
    %v1724 = vpack.c.b16 %v1332, %v1324
    %v1725 = vpack.c.b16 %v1333, %v1325
    %v1726 = vpack.c.b16 %v1334, %v1326
    %v1727 = vpack.c.b16 %v1335, %v1327
    %v1728 = vpack.c.b16 %v1336, %v1328
    %v1729 = vpack.c.b16 %v1337, %v1329
    %v1730 = vpack.c.b16 %v1346, %v1338
    %v1731 = vpack.c.b16 %v1347, %v1339
    %v1732 = vpack.c.b16 %v1348, %v1340
    %v1733 = vpack.c.b16 %v1349, %v1341
    %v1734 = vpack.c.b16 %v1350, %v1342
    %v1735 = vpack.c.b16 %v1351, %v1343
    %v1736 = vpack.c.b16 %v1352, %v1344
    %v1737 = vpack.c.b16 %v1353, %v1345
    %v1738 = vpack.c.b16 %v1362, %v1354
    %v1739 = vpack.c.b16 %v1363, %v1355
    %v1740 = vpack.c.b16 %v1364, %v1356
    %v1741 = vpack.c.b16 %v1365, %v1357
    %v1742 = vpack.c.b16 %v1366, %v1358
    %v1743 = vpack.c.b16 %v1367, %v1359
    %v1744 = vpack.c.b16 %v1368, %v1360
    %v1745 = vpack.c.b16 %v1369, %v1361
    %v1746 = vpack.c.b16 %v1378, %v1370
    %v1747 = vpack.c.b16 %v1379, %v1371
    %v1748 = vpack.c.b16 %v1380, %v1372
    %v1749 = vpack.c.b16 %v1381, %v1373
    %v1750 = vpack.c.b16 %v1382, %v1374
    %v1751 = vpack.c.b16 %v1383, %v1375
    %v1752 = vpack.c.b16 %v1384, %v1376
    %v1753 = vpack.c.b16 %v1385, %v1377
    %v1754 = vpack.c.b16 %v1394, %v1386
    %v1755 = vpack.c.b16 %v1395, %v1387
    %v1756 = vpack.c.b16 %v1396, %v1388
    %v1757 = vpack.c.b16 %v1397, %v1389
    %v1758 = vpack.c.b16 %v1398, %v1390
    %v1759 = vpack.c.b16 %v1399, %v1391
    %v1760 = vpack.c.b16 %v1400, %v1392
    %v1761 = vpack.c.b16 %v1401, %v1393
    %v1762 = vpack.c.b16 %v1410, %v1402
    %v1763 = vpack.c.b16 %v1411, %v1403
    %v1764 = vpack.c.b16 %v1412, %v1404
    %v1765 = vpack.c.b16 %v1413, %v1405
    %v1766 = vpack.c.b16 %v1414, %v1406
    %v1767 = vpack.c.b16 %v1415, %v1407
    %v1768 = vpack.c.b16 %v1416, %v1408
    %v1769 = vpack.c.b16 %v1417, %v1409
    %v1770 = vpack.c.b16 %v1426, %v1418
    %v1771 = vpack.c.b16 %v1427, %v1419
    %v1772 = vpack.c.b16 %v1428, %v1420
    %v1773 = vpack.c.b16 %v1429, %v1421
    %v1774 = vpack.c.b16 %v1430, %v1422
    %v1775 = vpack.c.b16 %v1431, %v1423
    %v1776 = vpack.c.b16 %v1432, %v1424
    %v1777 = vpack.c.b16 %v1433, %v1425
    %v1778 = vpack.c.b16 %v1442, %v1434
    %v1779 = vpack.c.b16 %v1443, %v1435
    %v1780 = vpack.c.b16 %v1444, %v1436
    %v1781 = vpack.c.b16 %v1445, %v1437
    %v1782 = vpack.c.b16 %v1446, %v1438
    %v1783 = vpack.c.b16 %v1447, %v1439
    %v1784 = vpack.c.b16 %v1448, %v1440
    %v1785 = vpack.c.b16 %v1449, %v1441
    %v1786 = vpack.c.b16 %v1458, %v1450
    %v1787 = vpack.c.b16 %v1459, %v1451
    %v1788 = vpack.c.b16 %v1460, %v1452
    %v1789 = vpack.c.b16 %v1461, %v1453
    %v1790 = vpack.c.b16 %v1462, %v1454
    %v1791 = vpack.c.b16 %v1463, %v1455
    %v1792 = vpack.c.b16 %v1464, %v1456
    %v1793 = vpack.c.b16 %v1465, %v1457
    %v1794 = vpack.c.b16 %v1474, %v1466
    %v1795 = vpack.c.b16 %v1475, %v1467
    %v1796 = vpack.c.b16 %v1476, %v1468
    %v1797 = vpack.c.b16 %v1477, %v1469
    %v1798 = vpack.c.b16 %v1478, %v1470
    %v1799 = vpack.c.b16 %v1479, %v1471
    %v1800 = vpack.c.b16 %v1480, %v1472
    %v1801 = vpack.c.b16 %v1481, %v1473
    %v1802 = vpack.c.b16 %v1490, %v1482
    %v1803 = vpack.c.b16 %v1491, %v1483
    %v1804 = vpack.c.b16 %v1492, %v1484
    %v1805 = vpack.c.b16 %v1493, %v1485
    %v1806 = vpack.c.b16 %v1494, %v1486
    %v1807 = vpack.c.b16 %v1495, %v1487
    %v1808 = vpack.c.b16 %v1496, %v1488
    %v1809 = vpack.c.b16 %v1497, %v1489
    %v1810 = vpack.c.b16 %v1506, %v1498
    %v1811 = vpack.c.b16 %v1507, %v1499
    %v1812 = vpack.c.b16 %v1508, %v1500
    %v1813 = vpack.c.b16 %v1509, %v1501
    %v1814 = vpack.c.b16 %v1510, %v1502
    %v1815 = vpack.c.b16 %v1511, %v1503
    %v1816 = vpack.c.b16 %v1512, %v1504
    %v1817 = vpack.c.b16 %v1513, %v1505
    %v1818 = vpack.c.b16 %v1522, %v1514
    %v1819 = vpack.c.b16 %v1523, %v1515
    %v1820 = vpack.c.b16 %v1524, %v1516
    %v1821 = vpack.c.b16 %v1525, %v1517
    %v1822 = vpack.c.b16 %v1526, %v1518
    %v1823 = vpack.c.b16 %v1527, %v1519
    %v1824 = vpack.c.b16 %v1528, %v1520
    %v1825 = vpack.c.b16 %v1529, %v1521
    %v1826 = vpack.c.b16 %v1538, %v1530
    %v1827 = vpack.c.b16 %v1539, %v1531
    %v1828 = vpack.c.b16 %v1540, %v1532
    %v1829 = vpack.c.b16 %v1541, %v1533
    %v1830 = vpack.c.b16 %v1542, %v1534
    %v1831 = vpack.c.b16 %v1543, %v1535
    %v1832 = vpack.c.b16 %v1544, %v1536
    %v1833 = vpack.c.b16 %v1545, %v1537
    %v1834 = vpack.c.b16 %v1554, %v1546
    %v1835 = vpack.c.b16 %v1555, %v1547
    %v1836 = vpack.c.b16 %v1556, %v1548
    %v1837 = vpack.c.b16 %v1557, %v1549
    %v1838 = vpack.c.b16 %v1558, %v1550
    %v1839 = vpack.c.b16 %v1559, %v1551
    %v1840 = vpack.c.b16 %v1560, %v1552
    %v1841 = vpack.c.b16 %v1561, %v1553
    %v1842 = vpack.c.b16 %v1570, %v1562
    %v1843 = vpack.c.b16 %v1571, %v1563
    %v1844 = vpack.c.b16 %v1572, %v1564
    %v1845 = vpack.c.b16 %v1573, %v1565
    %v1846 = vpack.c.b16 %v1574, %v1566
    %v1847 = vpack.c.b16 %v1575, %v1567
    %v1848 = vpack.c.b16 %v1576, %v1568
    %v1849 = vpack.c.b16 %v1577, %v1569
    %v1850 = vpack.c.b16 %v1586, %v1578
    %v1851 = vpack.c.b16 %v1587, %v1579
    %v1852 = vpack.c.b16 %v1588, %v1580
    %v1853 = vpack.c.b16 %v1589, %v1581
    %v1854 = vpack.c.b16 %v1590, %v1582
    %v1855 = vpack.c.b16 %v1591, %v1583
    %v1856 = vpack.c.b16 %v1592, %v1584
    %v1857 = vpack.c.b16 %v1593, %v1585
    %v1858 = vpack.c.b16 %v1602, %v1594
    %v1859 = vpack.c.b16 %v1603, %v1595
    %v1860 = vpack.c.b16 %v1604, %v1596
    %v1861 = vpack.c.b16 %v1605, %v1597
    %v1862 = vpack.c.b16 %v1606, %v1598
    %v1863 = vpack.c.b16 %v1607, %v1599
    %v1864 = vpack.c.b16 %v1608, %v1600
    %v1865 = vpack.c.b16 %v1609, %v1601
    %2122 = vmatpush.bf16.msra.mxu0 %v1666
    %2123 = vmatpush.bf16.msra.mxu0 %v1658
    %2124 = vmatpush.bf16.msra.mxu0 %v1650
    %2125 = vmatpush.bf16.msra.mxu0 %v1642
    %2126 = vmatpush.bf16.msra.mxu0 %v1634
    %2127 = vmatpush.bf16.msra.mxu0 %v1626
    %2128 = vmatpush.bf16.msra.mxu0 %v1618
    %2129 = vmatpush.bf16.msra.mxu0 %v1610
    %2130 = vmatmul.bf16.gmra.mxu0 %v564
    %v2131 = vpop.f32.mrf.mxu0
    %v2132 = vadd.f32 %v826, %v2131
    %v2133 = vpop.f32.mrf.mxu0
    %v2134 = vadd.f32 %v826, %v2133
    %2135 = vdwg.mxu0
    %2136 = vmatpush.bf16.msra.mxu0 %v1730
    %2137 = vmatpush.bf16.msra.mxu0 %v1722
    %2138 = vmatpush.bf16.msra.mxu0 %v1714
    %2139 = vmatpush.bf16.msra.mxu0 %v1706
    %2140 = vmatpush.bf16.msra.mxu0 %v1698
    %2141 = vmatpush.bf16.msra.mxu0 %v1690
    %2142 = vmatpush.bf16.msra.mxu0 %v1682
    %2143 = vmatpush.bf16.msra.mxu0 %v1674
    %2144 = vmatmul.bf16.gmra.mxu0 %v565
    %v2145 = vpop.f32.mrf.mxu0
    %v2146 = vadd.f32 %v2132, %v2145
    %v2147 = vpop.f32.mrf.mxu0
    %v2148 = vadd.f32 %v2134, %v2147
    %2149 = vdwg.mxu0
    %2150 = vmatpush.bf16.msra.mxu0 %v1794
    %2151 = vmatpush.bf16.msra.mxu0 %v1786
    %2152 = vmatpush.bf16.msra.mxu0 %v1778
    %2153 = vmatpush.bf16.msra.mxu0 %v1770
    %2154 = vmatpush.bf16.msra.mxu0 %v1762
    %2155 = vmatpush.bf16.msra.mxu0 %v1754
    %2156 = vmatpush.bf16.msra.mxu0 %v1746
    %2157 = vmatpush.bf16.msra.mxu0 %v1738
    %2158 = vmatmul.bf16.gmra.mxu0 %v566
    %v2159 = vpop.f32.mrf.mxu0
    %v2160 = vadd.f32 %v2146, %v2159
    %v2161 = vpop.f32.mrf.mxu0
    %v2162 = vadd.f32 %v2148, %v2161
    %2163 = vdwg.mxu0
    %2164 = vmatpush.bf16.msra.mxu0 %v1858
    %2165 = vmatpush.bf16.msra.mxu0 %v1850
    %2166 = vmatpush.bf16.msra.mxu0 %v1842
    %2167 = vmatpush.bf16.msra.mxu0 %v1834
    %2168 = vmatpush.bf16.msra.mxu0 %v1826
    %2169 = vmatpush.bf16.msra.mxu0 %v1818
    %2170 = vmatpush.bf16.msra.mxu0 %v1810
    %2171 = vmatpush.bf16.msra.mxu0 %v1802
    %2172 = vmatmul.bf16.gmra.mxu0 %v567
    %v2173 = vpop.f32.mrf.mxu0
    %v2174 = vadd.f32 %v2160, %v2173
    %v2175 = vpop.f32.mrf.mxu0
    %v2176 = vadd.f32 %v2162, %v2175
    %2177 = vdwg.mxu0
    %2178 = vmatpush.bf16.msra.mxu0 %v1667
    %2179 = vmatpush.bf16.msra.mxu0 %v1659
    %2180 = vmatpush.bf16.msra.mxu0 %v1651
    %2181 = vmatpush.bf16.msra.mxu0 %v1643
    %2182 = vmatpush.bf16.msra.mxu0 %v1635
    %2183 = vmatpush.bf16.msra.mxu0 %v1627
    %2184 = vmatpush.bf16.msra.mxu0 %v1619
    %2185 = vmatpush.bf16.msra.mxu0 %v1611
    %2186 = vmatmul.bf16.gmra.mxu0 %v564
    %v2187 = vpop.f32.mrf.mxu0
    %v2188 = vadd.f32 %v827, %v2187
    %v2189 = vpop.f32.mrf.mxu0
    %v2190 = vadd.f32 %v827, %v2189
    %2191 = vdwg.mxu0
    %2192 = vmatpush.bf16.msra.mxu0 %v1731
    %2193 = vmatpush.bf16.msra.mxu0 %v1723
    %2194 = vmatpush.bf16.msra.mxu0 %v1715
    %2195 = vmatpush.bf16.msra.mxu0 %v1707
    %2196 = vmatpush.bf16.msra.mxu0 %v1699
    %2197 = vmatpush.bf16.msra.mxu0 %v1691
    %2198 = vmatpush.bf16.msra.mxu0 %v1683
    %2199 = vmatpush.bf16.msra.mxu0 %v1675
    %2200 = vmatmul.bf16.gmra.mxu0 %v565
    %v2201 = vpop.f32.mrf.mxu0
    %v2202 = vadd.f32 %v2188, %v2201
    %v2203 = vpop.f32.mrf.mxu0
    %v2204 = vadd.f32 %v2190, %v2203
    %2205 = vdwg.mxu0
    %2206 = vmatpush.bf16.msra.mxu0 %v1795
    %2207 = vmatpush.bf16.msra.mxu0 %v1787
    %2208 = vmatpush.bf16.msra.mxu0 %v1779
    %2209 = vmatpush.bf16.msra.mxu0 %v1771
    %2210 = vmatpush.bf16.msra.mxu0 %v1763
    %2211 = vmatpush.bf16.msra.mxu0 %v1755
    %2212 = vmatpush.bf16.msra.mxu0 %v1747
    %2213 = vmatpush.bf16.msra.mxu0 %v1739
    %2214 = vmatmul.bf16.gmra.mxu0 %v566
    %v2215 = vpop.f32.mrf.mxu0
    %v2216 = vadd.f32 %v2202, %v2215
    %v2217 = vpop.f32.mrf.mxu0
    %v2218 = vadd.f32 %v2204, %v2217
    %2219 = vdwg.mxu0
    %2220 = vmatpush.bf16.msra.mxu0 %v1859
    %2221 = vmatpush.bf16.msra.mxu0 %v1851
    %2222 = vmatpush.bf16.msra.mxu0 %v1843
    %2223 = vmatpush.bf16.msra.mxu0 %v1835
    %2224 = vmatpush.bf16.msra.mxu0 %v1827
    %2225 = vmatpush.bf16.msra.mxu0 %v1819
    %2226 = vmatpush.bf16.msra.mxu0 %v1811
    %2227 = vmatpush.bf16.msra.mxu0 %v1803
    %2228 = vmatmul.bf16.gmra.mxu0 %v567
    %v2229 = vpop.f32.mrf.mxu0
    %v2230 = vadd.f32 %v2216, %v2229
    %v2231 = vpop.f32.mrf.mxu0
    %v2232 = vadd.f32 %v2218, %v2231
    %2233 = vdwg.mxu0
    %2234 = vmatpush.bf16.msra.mxu0 %v1668
    %2235 = vmatpush.bf16.msra.mxu0 %v1660
    %2236 = vmatpush.bf16.msra.mxu0 %v1652
    %2237 = vmatpush.bf16.msra.mxu0 %v1644
    %2238 = vmatpush.bf16.msra.mxu0 %v1636
    %2239 = vmatpush.bf16.msra.mxu0 %v1628
    %2240 = vmatpush.bf16.msra.mxu0 %v1620
    %2241 = vmatpush.bf16.msra.mxu0 %v1612
    %2242 = vmatmul.bf16.gmra.mxu0 %v564
    %v2243 = vpop.f32.mrf.mxu0
    %v2244 = vadd.f32 %v828, %v2243
    %v2245 = vpop.f32.mrf.mxu0
    %v2246 = vadd.f32 %v828, %v2245
    %2247 = vdwg.mxu0
    %2248 = vmatpush.bf16.msra.mxu0 %v1732
    %2249 = vmatpush.bf16.msra.mxu0 %v1724
    %2250 = vmatpush.bf16.msra.mxu0 %v1716
    %2251 = vmatpush.bf16.msra.mxu0 %v1708
    %2252 = vmatpush.bf16.msra.mxu0 %v1700
    %2253 = vmatpush.bf16.msra.mxu0 %v1692
    %2254 = vmatpush.bf16.msra.mxu0 %v1684
    %2255 = vmatpush.bf16.msra.mxu0 %v1676
    %2256 = vmatmul.bf16.gmra.mxu0 %v565
    %v2257 = vpop.f32.mrf.mxu0
    %v2258 = vadd.f32 %v2244, %v2257
    %v2259 = vpop.f32.mrf.mxu0
    %v2260 = vadd.f32 %v2246, %v2259
    %2261 = vdwg.mxu0
    %2262 = vmatpush.bf16.msra.mxu0 %v1796
    %2263 = vmatpush.bf16.msra.mxu0 %v1788
    %2264 = vmatpush.bf16.msra.mxu0 %v1780
    %2265 = vmatpush.bf16.msra.mxu0 %v1772
    %2266 = vmatpush.bf16.msra.mxu0 %v1764
    %2267 = vmatpush.bf16.msra.mxu0 %v1756
    %2268 = vmatpush.bf16.msra.mxu0 %v1748
    %2269 = vmatpush.bf16.msra.mxu0 %v1740
    %2270 = vmatmul.bf16.gmra.mxu0 %v566
    %v2271 = vpop.f32.mrf.mxu0
    %v2272 = vadd.f32 %v2258, %v2271
    %v2273 = vpop.f32.mrf.mxu0
    %v2274 = vadd.f32 %v2260, %v2273
    %2275 = vdwg.mxu0
    %2276 = vmatpush.bf16.msra.mxu0 %v1860
    %2277 = vmatpush.bf16.msra.mxu0 %v1852
    %2278 = vmatpush.bf16.msra.mxu0 %v1844
    %2279 = vmatpush.bf16.msra.mxu0 %v1836
    %2280 = vmatpush.bf16.msra.mxu0 %v1828
    %2281 = vmatpush.bf16.msra.mxu0 %v1820
    %2282 = vmatpush.bf16.msra.mxu0 %v1812
    %2283 = vmatpush.bf16.msra.mxu0 %v1804
    %2284 = vmatmul.bf16.gmra.mxu0 %v567
    %v2285 = vpop.f32.mrf.mxu0
    %v2286 = vadd.f32 %v2272, %v2285
    %v2287 = vpop.f32.mrf.mxu0
    %v2288 = vadd.f32 %v2274, %v2287
    %2289 = vdwg.mxu0
    %2290 = vmatpush.bf16.msra.mxu0 %v1669
    %2291 = vmatpush.bf16.msra.mxu0 %v1661
    %2292 = vmatpush.bf16.msra.mxu0 %v1653
    %2293 = vmatpush.bf16.msra.mxu0 %v1645
    %2294 = vmatpush.bf16.msra.mxu0 %v1637
    %2295 = vmatpush.bf16.msra.mxu0 %v1629
    %2296 = vmatpush.bf16.msra.mxu0 %v1621
    %2297 = vmatpush.bf16.msra.mxu0 %v1613
    %2298 = vmatmul.bf16.gmra.mxu0 %v564
    %v2299 = vpop.f32.mrf.mxu0
    %v2300 = vadd.f32 %v829, %v2299
    %v2301 = vpop.f32.mrf.mxu0
    %v2302 = vadd.f32 %v829, %v2301
    %2303 = vdwg.mxu0
    %2304 = vmatpush.bf16.msra.mxu0 %v1733
    %2305 = vmatpush.bf16.msra.mxu0 %v1725
    %2306 = vmatpush.bf16.msra.mxu0 %v1717
    %2307 = vmatpush.bf16.msra.mxu0 %v1709
    %2308 = vmatpush.bf16.msra.mxu0 %v1701
    %2309 = vmatpush.bf16.msra.mxu0 %v1693
    %2310 = vmatpush.bf16.msra.mxu0 %v1685
    %2311 = vmatpush.bf16.msra.mxu0 %v1677
    %2312 = vmatmul.bf16.gmra.mxu0 %v565
    %v2313 = vpop.f32.mrf.mxu0
    %v2314 = vadd.f32 %v2300, %v2313
    %v2315 = vpop.f32.mrf.mxu0
    %v2316 = vadd.f32 %v2302, %v2315
    %2317 = vdwg.mxu0
    %2318 = vmatpush.bf16.msra.mxu0 %v1797
    %2319 = vmatpush.bf16.msra.mxu0 %v1789
    %2320 = vmatpush.bf16.msra.mxu0 %v1781
    %2321 = vmatpush.bf16.msra.mxu0 %v1773
    %2322 = vmatpush.bf16.msra.mxu0 %v1765
    %2323 = vmatpush.bf16.msra.mxu0 %v1757
    %2324 = vmatpush.bf16.msra.mxu0 %v1749
    %2325 = vmatpush.bf16.msra.mxu0 %v1741
    %2326 = vmatmul.bf16.gmra.mxu0 %v566
    %v2327 = vpop.f32.mrf.mxu0
    %v2328 = vadd.f32 %v2314, %v2327
    %v2329 = vpop.f32.mrf.mxu0
    %v2330 = vadd.f32 %v2316, %v2329
    %2331 = vdwg.mxu0
    %2332 = vmatpush.bf16.msra.mxu0 %v1861
    %2333 = vmatpush.bf16.msra.mxu0 %v1853
    %2334 = vmatpush.bf16.msra.mxu0 %v1845
    %2335 = vmatpush.bf16.msra.mxu0 %v1837
    %2336 = vmatpush.bf16.msra.mxu0 %v1829
    %2337 = vmatpush.bf16.msra.mxu0 %v1821
    %2338 = vmatpush.bf16.msra.mxu0 %v1813
    %2339 = vmatpush.bf16.msra.mxu0 %v1805
    %2340 = vmatmul.bf16.gmra.mxu0 %v567
    %v2341 = vpop.f32.mrf.mxu0
    %v2342 = vadd.f32 %v2328, %v2341
    %v2343 = vpop.f32.mrf.mxu0
    %v2344 = vadd.f32 %v2330, %v2343
    %2345 = vdwg.mxu0
    %2346 = vmatpush.bf16.msra.mxu0 %v1670
    %2347 = vmatpush.bf16.msra.mxu0 %v1662
    %2348 = vmatpush.bf16.msra.mxu0 %v1654
    %2349 = vmatpush.bf16.msra.mxu0 %v1646
    %2350 = vmatpush.bf16.msra.mxu0 %v1638
    %2351 = vmatpush.bf16.msra.mxu0 %v1630
    %2352 = vmatpush.bf16.msra.mxu0 %v1622
    %2353 = vmatpush.bf16.msra.mxu0 %v1614
    %2354 = vmatmul.bf16.gmra.mxu0 %v564
    %v2355 = vpop.f32.mrf.mxu0
    %v2356 = vadd.f32 %v830, %v2355
    %v2357 = vpop.f32.mrf.mxu0
    %v2358 = vadd.f32 %v830, %v2357
    %2359 = vdwg.mxu0
    %2360 = vmatpush.bf16.msra.mxu0 %v1734
    %2361 = vmatpush.bf16.msra.mxu0 %v1726
    %2362 = vmatpush.bf16.msra.mxu0 %v1718
    %2363 = vmatpush.bf16.msra.mxu0 %v1710
    %2364 = vmatpush.bf16.msra.mxu0 %v1702
    %2365 = vmatpush.bf16.msra.mxu0 %v1694
    %2366 = vmatpush.bf16.msra.mxu0 %v1686
    %2367 = vmatpush.bf16.msra.mxu0 %v1678
    %2368 = vmatmul.bf16.gmra.mxu0 %v565
    %v2369 = vpop.f32.mrf.mxu0
    %v2370 = vadd.f32 %v2356, %v2369
    %v2371 = vpop.f32.mrf.mxu0
    %v2372 = vadd.f32 %v2358, %v2371
    %2373 = vdwg.mxu0
    %2374 = vmatpush.bf16.msra.mxu0 %v1798
    %2375 = vmatpush.bf16.msra.mxu0 %v1790
    %2376 = vmatpush.bf16.msra.mxu0 %v1782
    %2377 = vmatpush.bf16.msra.mxu0 %v1774
    %2378 = vmatpush.bf16.msra.mxu0 %v1766
    %2379 = vmatpush.bf16.msra.mxu0 %v1758
    %2380 = vmatpush.bf16.msra.mxu0 %v1750
    %2381 = vmatpush.bf16.msra.mxu0 %v1742
    %2382 = vmatmul.bf16.gmra.mxu0 %v566
    %v2383 = vpop.f32.mrf.mxu0
    %v2384 = vadd.f32 %v2370, %v2383
    %v2385 = vpop.f32.mrf.mxu0
    %v2386 = vadd.f32 %v2372, %v2385
    %2387 = vdwg.mxu0
    %2388 = vmatpush.bf16.msra.mxu0 %v1862
    %2389 = vmatpush.bf16.msra.mxu0 %v1854
    %2390 = vmatpush.bf16.msra.mxu0 %v1846
    %2391 = vmatpush.bf16.msra.mxu0 %v1838
    %2392 = vmatpush.bf16.msra.mxu0 %v1830
    %2393 = vmatpush.bf16.msra.mxu0 %v1822
    %2394 = vmatpush.bf16.msra.mxu0 %v1814
    %2395 = vmatpush.bf16.msra.mxu0 %v1806
    %2396 = vmatmul.bf16.gmra.mxu0 %v567
    %v2397 = vpop.f32.mrf.mxu0
    %v2398 = vadd.f32 %v2384, %v2397
    %v2399 = vpop.f32.mrf.mxu0
    %v2400 = vadd.f32 %v2386, %v2399
    %2401 = vdwg.mxu0
    %2402 = vmatpush.bf16.msra.mxu0 %v1671
    %2403 = vmatpush.bf16.msra.mxu0 %v1663
    %2404 = vmatpush.bf16.msra.mxu0 %v1655
    %2405 = vmatpush.bf16.msra.mxu0 %v1647
    %2406 = vmatpush.bf16.msra.mxu0 %v1639
    %2407 = vmatpush.bf16.msra.mxu0 %v1631
    %2408 = vmatpush.bf16.msra.mxu0 %v1623
    %2409 = vmatpush.bf16.msra.mxu0 %v1615
    %2410 = vmatmul.bf16.gmra.mxu0 %v564
    %v2411 = vpop.f32.mrf.mxu0
    %v2412 = vadd.f32 %v831, %v2411
    %v2413 = vpop.f32.mrf.mxu0
    %v2414 = vadd.f32 %v831, %v2413
    %2415 = vdwg.mxu0
    %2416 = vmatpush.bf16.msra.mxu0 %v1735
    %2417 = vmatpush.bf16.msra.mxu0 %v1727
    %2418 = vmatpush.bf16.msra.mxu0 %v1719
    %2419 = vmatpush.bf16.msra.mxu0 %v1711
    %2420 = vmatpush.bf16.msra.mxu0 %v1703
    %2421 = vmatpush.bf16.msra.mxu0 %v1695
    %2422 = vmatpush.bf16.msra.mxu0 %v1687
    %2423 = vmatpush.bf16.msra.mxu0 %v1679
    %2424 = vmatmul.bf16.gmra.mxu0 %v565
    %v2425 = vpop.f32.mrf.mxu0
    %v2426 = vadd.f32 %v2412, %v2425
    %v2427 = vpop.f32.mrf.mxu0
    %v2428 = vadd.f32 %v2414, %v2427
    %2429 = vdwg.mxu0
    %2430 = vmatpush.bf16.msra.mxu0 %v1799
    %2431 = vmatpush.bf16.msra.mxu0 %v1791
    %2432 = vmatpush.bf16.msra.mxu0 %v1783
    %2433 = vmatpush.bf16.msra.mxu0 %v1775
    %2434 = vmatpush.bf16.msra.mxu0 %v1767
    %2435 = vmatpush.bf16.msra.mxu0 %v1759
    %2436 = vmatpush.bf16.msra.mxu0 %v1751
    %2437 = vmatpush.bf16.msra.mxu0 %v1743
    %2438 = vmatmul.bf16.gmra.mxu0 %v566
    %v2439 = vpop.f32.mrf.mxu0
    %v2440 = vadd.f32 %v2426, %v2439
    %v2441 = vpop.f32.mrf.mxu0
    %v2442 = vadd.f32 %v2428, %v2441
    %2443 = vdwg.mxu0
    %2444 = vmatpush.bf16.msra.mxu0 %v1863
    %2445 = vmatpush.bf16.msra.mxu0 %v1855
    %2446 = vmatpush.bf16.msra.mxu0 %v1847
    %2447 = vmatpush.bf16.msra.mxu0 %v1839
    %2448 = vmatpush.bf16.msra.mxu0 %v1831
    %2449 = vmatpush.bf16.msra.mxu0 %v1823
    %2450 = vmatpush.bf16.msra.mxu0 %v1815
    %2451 = vmatpush.bf16.msra.mxu0 %v1807
    %2452 = vmatmul.bf16.gmra.mxu0 %v567
    %v2453 = vpop.f32.mrf.mxu0
    %v2454 = vadd.f32 %v2440, %v2453
    %v2455 = vpop.f32.mrf.mxu0
    %v2456 = vadd.f32 %v2442, %v2455
    %2457 = vdwg.mxu0
    %2458 = vmatpush.bf16.msra.mxu0 %v1672
    %2459 = vmatpush.bf16.msra.mxu0 %v1664
    %2460 = vmatpush.bf16.msra.mxu0 %v1656
    %2461 = vmatpush.bf16.msra.mxu0 %v1648
    %2462 = vmatpush.bf16.msra.mxu0 %v1640
    %2463 = vmatpush.bf16.msra.mxu0 %v1632
    %2464 = vmatpush.bf16.msra.mxu0 %v1624
    %2465 = vmatpush.bf16.msra.mxu0 %v1616
    %2466 = vmatmul.bf16.gmra.mxu0 %v564
    %v2467 = vpop.f32.mrf.mxu0
    %v2468 = vadd.f32 %v832, %v2467
    %v2469 = vpop.f32.mrf.mxu0
    %v2470 = vadd.f32 %v832, %v2469
    %2471 = vdwg.mxu0
    %2472 = vmatpush.bf16.msra.mxu0 %v1736
    %2473 = vmatpush.bf16.msra.mxu0 %v1728
    %2474 = vmatpush.bf16.msra.mxu0 %v1720
    %2475 = vmatpush.bf16.msra.mxu0 %v1712
    %2476 = vmatpush.bf16.msra.mxu0 %v1704
    %2477 = vmatpush.bf16.msra.mxu0 %v1696
    %2478 = vmatpush.bf16.msra.mxu0 %v1688
    %2479 = vmatpush.bf16.msra.mxu0 %v1680
    %2480 = vmatmul.bf16.gmra.mxu0 %v565
    %v2481 = vpop.f32.mrf.mxu0
    %v2482 = vadd.f32 %v2468, %v2481
    %v2483 = vpop.f32.mrf.mxu0
    %v2484 = vadd.f32 %v2470, %v2483
    %2485 = vdwg.mxu0
    %2486 = vmatpush.bf16.msra.mxu0 %v1800
    %2487 = vmatpush.bf16.msra.mxu0 %v1792
    %2488 = vmatpush.bf16.msra.mxu0 %v1784
    %2489 = vmatpush.bf16.msra.mxu0 %v1776
    %2490 = vmatpush.bf16.msra.mxu0 %v1768
    %2491 = vmatpush.bf16.msra.mxu0 %v1760
    %2492 = vmatpush.bf16.msra.mxu0 %v1752
    %2493 = vmatpush.bf16.msra.mxu0 %v1744
    %2494 = vmatmul.bf16.gmra.mxu0 %v566
    %v2495 = vpop.f32.mrf.mxu0
    %v2496 = vadd.f32 %v2482, %v2495
    %v2497 = vpop.f32.mrf.mxu0
    %v2498 = vadd.f32 %v2484, %v2497
    %2499 = vdwg.mxu0
    %2500 = vmatpush.bf16.msra.mxu0 %v1864
    %2501 = vmatpush.bf16.msra.mxu0 %v1856
    %2502 = vmatpush.bf16.msra.mxu0 %v1848
    %2503 = vmatpush.bf16.msra.mxu0 %v1840
    %2504 = vmatpush.bf16.msra.mxu0 %v1832
    %2505 = vmatpush.bf16.msra.mxu0 %v1824
    %2506 = vmatpush.bf16.msra.mxu0 %v1816
    %2507 = vmatpush.bf16.msra.mxu0 %v1808
    %2508 = vmatmul.bf16.gmra.mxu0 %v567
    %v2509 = vpop.f32.mrf.mxu0
    %v2510 = vadd.f32 %v2496, %v2509
    %v2511 = vpop.f32.mrf.mxu0
    %v2512 = vadd.f32 %v2498, %v2511
    %2513 = vdwg.mxu0
    %2514 = vmatpush.bf16.msra.mxu0 %v1673
    %2515 = vmatpush.bf16.msra.mxu0 %v1665
    %2516 = vmatpush.bf16.msra.mxu0 %v1657
    %2517 = vmatpush.bf16.msra.mxu0 %v1649
    %2518 = vmatpush.bf16.msra.mxu0 %v1641
    %2519 = vmatpush.bf16.msra.mxu0 %v1633
    %2520 = vmatpush.bf16.msra.mxu0 %v1625
    %2521 = vmatpush.bf16.msra.mxu0 %v1617
    %2522 = vmatmul.bf16.gmra.mxu0 %v564
    %v2523 = vpop.f32.mrf.mxu0
    %v2524 = vadd.f32 %v833, %v2523
    %v2525 = vpop.f32.mrf.mxu0
    %v2526 = vadd.f32 %v833, %v2525
    %2527 = vdwg.mxu0
    %2528 = vmatpush.bf16.msra.mxu0 %v1737
    %2529 = vmatpush.bf16.msra.mxu0 %v1729
    %2530 = vmatpush.bf16.msra.mxu0 %v1721
    %2531 = vmatpush.bf16.msra.mxu0 %v1713
    %2532 = vmatpush.bf16.msra.mxu0 %v1705
    %2533 = vmatpush.bf16.msra.mxu0 %v1697
    %2534 = vmatpush.bf16.msra.mxu0 %v1689
    %2535 = vmatpush.bf16.msra.mxu0 %v1681
    %2536 = vmatmul.bf16.gmra.mxu0 %v565
    %v2537 = vpop.f32.mrf.mxu0
    %v2538 = vadd.f32 %v2524, %v2537
    %v2539 = vpop.f32.mrf.mxu0
    %v2540 = vadd.f32 %v2526, %v2539
    %2541 = vdwg.mxu0
    %2542 = vmatpush.bf16.msra.mxu0 %v1801
    %2543 = vmatpush.bf16.msra.mxu0 %v1793
    %2544 = vmatpush.bf16.msra.mxu0 %v1785
    %2545 = vmatpush.bf16.msra.mxu0 %v1777
    %2546 = vmatpush.bf16.msra.mxu0 %v1769
    %2547 = vmatpush.bf16.msra.mxu0 %v1761
    %2548 = vmatpush.bf16.msra.mxu0 %v1753
    %2549 = vmatpush.bf16.msra.mxu0 %v1745
    %2550 = vmatmul.bf16.gmra.mxu0 %v566
    %v2551 = vpop.f32.mrf.mxu0
    %v2552 = vadd.f32 %v2538, %v2551
    %v2553 = vpop.f32.mrf.mxu0
    %v2554 = vadd.f32 %v2540, %v2553
    %2555 = vdwg.mxu0
    %2556 = vmatpush.bf16.msra.mxu0 %v1865
    %2557 = vmatpush.bf16.msra.mxu0 %v1857
    %2558 = vmatpush.bf16.msra.mxu0 %v1849
    %2559 = vmatpush.bf16.msra.mxu0 %v1841
    %2560 = vmatpush.bf16.msra.mxu0 %v1833
    %2561 = vmatpush.bf16.msra.mxu0 %v1825
    %2562 = vmatpush.bf16.msra.mxu0 %v1817
    %2563 = vmatpush.bf16.msra.mxu0 %v1809
    %2564 = vmatmul.bf16.gmra.mxu0 %v567
    %v2565 = vpop.f32.mrf.mxu0
    %v2566 = vadd.f32 %v2552, %v2565
    %v2567 = vpop.f32.mrf.mxu0
    %v2568 = vadd.f32 %v2554, %v2567
    %2569 = vdwg.mxu0
    %v2570 = vxor.u32 %v2174, 2147483648
    %v2571 = vxor.u32 %v2230, 2147483648
    %v2572 = vxor.u32 %v2286, 2147483648
    %v2573 = vxor.u32 %v2342, 2147483648
    %v2574 = vxor.u32 %v2398, 2147483648
    %v2575 = vxor.u32 %v2454, 2147483648
    %v2576 = vxor.u32 %v2510, 2147483648
    %v2577 = vxor.u32 %v2566, 2147483648
    %v2578 = vxor.u32 %v2176, 2147483648
    %v2579 = vxor.u32 %v2232, 2147483648
    %v2580 = vxor.u32 %v2288, 2147483648
    %v2581 = vxor.u32 %v2344, 2147483648
    %v2582 = vxor.u32 %v2400, 2147483648
    %v2583 = vxor.u32 %v2456, 2147483648
    %v2584 = vxor.u32 %v2512, 2147483648
    %v2585 = vxor.u32 %v2568, 2147483648
    %v2586 = vmul.f32 %v2570, 1.442695
    %v2587 = vpow.pop %v2586
    %v2588 = vmul.f32 %v2571, 1.442695
    %v2589 = vpow.pop %v2588
    %v2590 = vmul.f32 %v2572, 1.442695
    %v2591 = vpow.pop %v2590
    %v2592 = vmul.f32 %v2573, 1.442695
    %v2593 = vpow.pop %v2592
    %v2594 = vmul.f32 %v2574, 1.442695
    %v2595 = vpow.pop %v2594
    %v2596 = vmul.f32 %v2575, 1.442695
    %v2597 = vpow.pop %v2596
    %v2598 = vmul.f32 %v2576, 1.442695
    %v2599 = vpow.pop %v2598
    %v2600 = vmul.f32 %v2577, 1.442695
    %v2601 = vpow.pop %v2600
    %v2602 = vmul.f32 %v2578, 1.442695
    %v2603 = vpow.pop %v2602
    %v2604 = vmul.f32 %v2579, 1.442695
    %v2605 = vpow.pop %v2604
    %v2606 = vmul.f32 %v2580, 1.442695
    %v2607 = vpow.pop %v2606
    %v2608 = vmul.f32 %v2581, 1.442695
    %v2609 = vpow.pop %v2608
    %v2610 = vmul.f32 %v2582, 1.442695
    %v2611 = vpow.pop %v2610
    %v2612 = vmul.f32 %v2583, 1.442695
    %v2613 = vpow.pop %v2612
    %v2614 = vmul.f32 %v2584, 1.442695
    %v2615 = vpow.pop %v2614
    %v2616 = vmul.f32 %v2585, 1.442695
    %v2617 = vpow.pop %v2616
    %v2618 = vadd.f32 %v2587, 1.0
    %v2619 = vadd.f32 %v2589, 1.0
    %v2620 = vadd.f32 %v2591, 1.0
    %v2621 = vadd.f32 %v2593, 1.0
    %v2622 = vadd.f32 %v2595, 1.0
    %v2623 = vadd.f32 %v2597, 1.0
    %v2624 = vadd.f32 %v2599, 1.0
    %v2625 = vadd.f32 %v2601, 1.0
    %v2626 = vadd.f32 %v2603, 1.0
    %v2627 = vadd.f32 %v2605, 1.0
    %v2628 = vadd.f32 %v2607, 1.0
    %v2629 = vadd.f32 %v2609, 1.0
    %v2630 = vadd.f32 %v2611, 1.0
    %v2631 = vadd.f32 %v2613, 1.0
    %v2632 = vadd.f32 %v2615, 1.0
    %v2633 = vadd.f32 %v2617, 1.0
    %v2634 = vrcp.pop %v2618
    %v2635 = vmul.f32 %v2618, %v2634
    %v2636 = vsub.f32 1.0, %v2635
    %v2637 = vmul.f32 %v2634, %v2636
    %v2638 = vadd.f32 %v2634, %v2637
    %vm2639 = vweird.f32 %v2618
    %vm2640 = vweird.f32 %v2634
    %vm2641 = vmor %vm2639, %vm2640
    %v2642 = vsel %vm2641, %v2634, %v2638
    %v2643 = vand.u32 2147483647, %v2618
    %vm2644 = vcmp.eq.f32.partialorder %v2643, 8.507059e+37
    %v2645 = vand.u32 %v2618, 2147483648
    %v2646 = vor.u32 1.1754944e-38, %v2645
    %v2647 = vsel %vm2644, %v2646, %v2642
    %v2648 = vmul.f32 1.0, %v2647
    %v2649 = vrcp.pop %v2619
    %v2650 = vmul.f32 %v2619, %v2649
    %v2651 = vsub.f32 1.0, %v2650
    %v2652 = vmul.f32 %v2649, %v2651
    %v2653 = vadd.f32 %v2649, %v2652
    %vm2654 = vweird.f32 %v2619
    %vm2655 = vweird.f32 %v2649
    %vm2656 = vmor %vm2654, %vm2655
    %v2657 = vsel %vm2656, %v2649, %v2653
    %v2658 = vand.u32 2147483647, %v2619
    %vm2659 = vcmp.eq.f32.partialorder %v2658, 8.507059e+37
    %v2660 = vand.u32 %v2619, 2147483648
    %v2661 = vor.u32 1.1754944e-38, %v2660
    %v2662 = vsel %vm2659, %v2661, %v2657
    %v2663 = vmul.f32 1.0, %v2662
    %v2664 = vrcp.pop %v2620
    %v2665 = vmul.f32 %v2620, %v2664
    %v2666 = vsub.f32 1.0, %v2665
    %v2667 = vmul.f32 %v2664, %v2666
    %v2668 = vadd.f32 %v2664, %v2667
    %vm2669 = vweird.f32 %v2620
    %vm2670 = vweird.f32 %v2664
    %vm2671 = vmor %vm2669, %vm2670
    %v2672 = vsel %vm2671, %v2664, %v2668
    %v2673 = vand.u32 2147483647, %v2620
    %vm2674 = vcmp.eq.f32.partialorder %v2673, 8.507059e+37
    %v2675 = vand.u32 %v2620, 2147483648
    %v2676 = vor.u32 1.1754944e-38, %v2675
    %v2677 = vsel %vm2674, %v2676, %v2672
    %v2678 = vmul.f32 1.0, %v2677
    %v2679 = vrcp.pop %v2621
    %v2680 = vmul.f32 %v2621, %v2679
    %v2681 = vsub.f32 1.0, %v2680
    %v2682 = vmul.f32 %v2679, %v2681
    %v2683 = vadd.f32 %v2679, %v2682
    %vm2684 = vweird.f32 %v2621
    %vm2685 = vweird.f32 %v2679
    %vm2686 = vmor %vm2684, %vm2685
    %v2687 = vsel %vm2686, %v2679, %v2683
    %v2688 = vand.u32 2147483647, %v2621
    %vm2689 = vcmp.eq.f32.partialorder %v2688, 8.507059e+37
    %v2690 = vand.u32 %v2621, 2147483648
    %v2691 = vor.u32 1.1754944e-38, %v2690
    %v2692 = vsel %vm2689, %v2691, %v2687
    %v2693 = vmul.f32 1.0, %v2692
    %v2694 = vrcp.pop %v2622
    %v2695 = vmul.f32 %v2622, %v2694
    %v2696 = vsub.f32 1.0, %v2695
    %v2697 = vmul.f32 %v2694, %v2696
    %v2698 = vadd.f32 %v2694, %v2697
    %vm2699 = vweird.f32 %v2622
    %vm2700 = vweird.f32 %v2694
    %vm2701 = vmor %vm2699, %vm2700
    %v2702 = vsel %vm2701, %v2694, %v2698
    %v2703 = vand.u32 2147483647, %v2622
    %vm2704 = vcmp.eq.f32.partialorder %v2703, 8.507059e+37
    %v2705 = vand.u32 %v2622, 2147483648
    %v2706 = vor.u32 1.1754944e-38, %v2705
    %v2707 = vsel %vm2704, %v2706, %v2702
    %v2708 = vmul.f32 1.0, %v2707
    %v2709 = vrcp.pop %v2623
    %v2710 = vmul.f32 %v2623, %v2709
    %v2711 = vsub.f32 1.0, %v2710
    %v2712 = vmul.f32 %v2709, %v2711
    %v2713 = vadd.f32 %v2709, %v2712
    %vm2714 = vweird.f32 %v2623
    %vm2715 = vweird.f32 %v2709
    %vm2716 = vmor %vm2714, %vm2715
    %v2717 = vsel %vm2716, %v2709, %v2713
    %v2718 = vand.u32 2147483647, %v2623
    %vm2719 = vcmp.eq.f32.partialorder %v2718, 8.507059e+37
    %v2720 = vand.u32 %v2623, 2147483648
    %v2721 = vor.u32 1.1754944e-38, %v2720
    %v2722 = vsel %vm2719, %v2721, %v2717
    %v2723 = vmul.f32 1.0, %v2722
    %v2724 = vrcp.pop %v2624
    %v2725 = vmul.f32 %v2624, %v2724
    %v2726 = vsub.f32 1.0, %v2725
    %v2727 = vmul.f32 %v2724, %v2726
    %v2728 = vadd.f32 %v2724, %v2727
    %vm2729 = vweird.f32 %v2624
    %vm2730 = vweird.f32 %v2724
    %vm2731 = vmor %vm2729, %vm2730
    %v2732 = vsel %vm2731, %v2724, %v2728
    %v2733 = vand.u32 2147483647, %v2624
    %vm2734 = vcmp.eq.f32.partialorder %v2733, 8.507059e+37
    %v2735 = vand.u32 %v2624, 2147483648
    %v2736 = vor.u32 1.1754944e-38, %v2735
    %v2737 = vsel %vm2734, %v2736, %v2732
    %v2738 = vmul.f32 1.0, %v2737
    %v2739 = vrcp.pop %v2625
    %v2740 = vmul.f32 %v2625, %v2739
    %v2741 = vsub.f32 1.0, %v2740
    %v2742 = vmul.f32 %v2739, %v2741
    %v2743 = vadd.f32 %v2739, %v2742
    %vm2744 = vweird.f32 %v2625
    %vm2745 = vweird.f32 %v2739
    %vm2746 = vmor %vm2744, %vm2745
    %v2747 = vsel %vm2746, %v2739, %v2743
    %v2748 = vand.u32 2147483647, %v2625
    %vm2749 = vcmp.eq.f32.partialorder %v2748, 8.507059e+37
    %v2750 = vand.u32 %v2625, 2147483648
    %v2751 = vor.u32 1.1754944e-38, %v2750
    %v2752 = vsel %vm2749, %v2751, %v2747
    %v2753 = vmul.f32 1.0, %v2752
    %v2754 = vrcp.pop %v2626
    %v2755 = vmul.f32 %v2626, %v2754
    %v2756 = vsub.f32 1.0, %v2755
    %v2757 = vmul.f32 %v2754, %v2756
    %v2758 = vadd.f32 %v2754, %v2757
    %vm2759 = vweird.f32 %v2626
    %vm2760 = vweird.f32 %v2754
    %vm2761 = vmor %vm2759, %vm2760
    %v2762 = vsel %vm2761, %v2754, %v2758
    %v2763 = vand.u32 2147483647, %v2626
    %vm2764 = vcmp.eq.f32.partialorder %v2763, 8.507059e+37
    %v2765 = vand.u32 %v2626, 2147483648
    %v2766 = vor.u32 1.1754944e-38, %v2765
    %v2767 = vsel %vm2764, %v2766, %v2762
    %v2768 = vmul.f32 1.0, %v2767
    %v2769 = vrcp.pop %v2627
    %v2770 = vmul.f32 %v2627, %v2769
    %v2771 = vsub.f32 1.0, %v2770
    %v2772 = vmul.f32 %v2769, %v2771
    %v2773 = vadd.f32 %v2769, %v2772
    %vm2774 = vweird.f32 %v2627
    %vm2775 = vweird.f32 %v2769
    %vm2776 = vmor %vm2774, %vm2775
    %v2777 = vsel %vm2776, %v2769, %v2773
    %v2778 = vand.u32 2147483647, %v2627
    %vm2779 = vcmp.eq.f32.partialorder %v2778, 8.507059e+37
    %v2780 = vand.u32 %v2627, 2147483648
    %v2781 = vor.u32 1.1754944e-38, %v2780
    %v2782 = vsel %vm2779, %v2781, %v2777
    %v2783 = vmul.f32 1.0, %v2782
    %v2784 = vrcp.pop %v2628
    %v2785 = vmul.f32 %v2628, %v2784
    %v2786 = vsub.f32 1.0, %v2785
    %v2787 = vmul.f32 %v2784, %v2786
    %v2788 = vadd.f32 %v2784, %v2787
    %vm2789 = vweird.f32 %v2628
    %vm2790 = vweird.f32 %v2784
    %vm2791 = vmor %vm2789, %vm2790
    %v2792 = vsel %vm2791, %v2784, %v2788
    %v2793 = vand.u32 2147483647, %v2628
    %vm2794 = vcmp.eq.f32.partialorder %v2793, 8.507059e+37
    %v2795 = vand.u32 %v2628, 2147483648
    %v2796 = vor.u32 1.1754944e-38, %v2795
    %v2797 = vsel %vm2794, %v2796, %v2792
    %v2798 = vmul.f32 1.0, %v2797
    %v2799 = vrcp.pop %v2629
    %v2800 = vmul.f32 %v2629, %v2799
    %v2801 = vsub.f32 1.0, %v2800
    %v2802 = vmul.f32 %v2799, %v2801
    %v2803 = vadd.f32 %v2799, %v2802
    %vm2804 = vweird.f32 %v2629
    %vm2805 = vweird.f32 %v2799
    %vm2806 = vmor %vm2804, %vm2805
    %v2807 = vsel %vm2806, %v2799, %v2803
    %v2808 = vand.u32 2147483647, %v2629
    %vm2809 = vcmp.eq.f32.partialorder %v2808, 8.507059e+37
    %v2810 = vand.u32 %v2629, 2147483648
    %v2811 = vor.u32 1.1754944e-38, %v2810
    %v2812 = vsel %vm2809, %v2811, %v2807
    %v2813 = vmul.f32 1.0, %v2812
    %v2814 = vrcp.pop %v2630
    %v2815 = vmul.f32 %v2630, %v2814
    %v2816 = vsub.f32 1.0, %v2815
    %v2817 = vmul.f32 %v2814, %v2816
    %v2818 = vadd.f32 %v2814, %v2817
    %vm2819 = vweird.f32 %v2630
    %vm2820 = vweird.f32 %v2814
    %vm2821 = vmor %vm2819, %vm2820
    %v2822 = vsel %vm2821, %v2814, %v2818
    %v2823 = vand.u32 2147483647, %v2630
    %vm2824 = vcmp.eq.f32.partialorder %v2823, 8.507059e+37
    %v2825 = vand.u32 %v2630, 2147483648
    %v2826 = vor.u32 1.1754944e-38, %v2825
    %v2827 = vsel %vm2824, %v2826, %v2822
    %v2828 = vmul.f32 1.0, %v2827
    %v2829 = vrcp.pop %v2631
    %v2830 = vmul.f32 %v2631, %v2829
    %v2831 = vsub.f32 1.0, %v2830
    %v2832 = vmul.f32 %v2829, %v2831
    %v2833 = vadd.f32 %v2829, %v2832
    %vm2834 = vweird.f32 %v2631
    %vm2835 = vweird.f32 %v2829
    %vm2836 = vmor %vm2834, %vm2835
    %v2837 = vsel %vm2836, %v2829, %v2833
    %v2838 = vand.u32 2147483647, %v2631
    %vm2839 = vcmp.eq.f32.partialorder %v2838, 8.507059e+37
    %v2840 = vand.u32 %v2631, 2147483648
    %v2841 = vor.u32 1.1754944e-38, %v2840
    %v2842 = vsel %vm2839, %v2841, %v2837
    %v2843 = vmul.f32 1.0, %v2842
    %v2844 = vrcp.pop %v2632
    %v2845 = vmul.f32 %v2632, %v2844
    %v2846 = vsub.f32 1.0, %v2845
    %v2847 = vmul.f32 %v2844, %v2846
    %v2848 = vadd.f32 %v2844, %v2847
    %vm2849 = vweird.f32 %v2632
    %vm2850 = vweird.f32 %v2844
    %vm2851 = vmor %vm2849, %vm2850
    %v2852 = vsel %vm2851, %v2844, %v2848
    %v2853 = vand.u32 2147483647, %v2632
    %vm2854 = vcmp.eq.f32.partialorder %v2853, 8.507059e+37
    %v2855 = vand.u32 %v2632, 2147483648
    %v2856 = vor.u32 1.1754944e-38, %v2855
    %v2857 = vsel %vm2854, %v2856, %v2852
    %v2858 = vmul.f32 1.0, %v2857
    %v2859 = vrcp.pop %v2633
    %v2860 = vmul.f32 %v2633, %v2859
    %v2861 = vsub.f32 1.0, %v2860
    %v2862 = vmul.f32 %v2859, %v2861
    %v2863 = vadd.f32 %v2859, %v2862
    %vm2864 = vweird.f32 %v2633
    %vm2865 = vweird.f32 %v2859
    %vm2866 = vmor %vm2864, %vm2865
    %v2867 = vsel %vm2866, %v2859, %v2863
    %v2868 = vand.u32 2147483647, %v2633
    %vm2869 = vcmp.eq.f32.partialorder %v2868, 8.507059e+37
    %v2870 = vand.u32 %v2633, 2147483648
    %v2871 = vor.u32 1.1754944e-38, %v2870
    %v2872 = vsel %vm2869, %v2871, %v2867
    %v2873 = vmul.f32 1.0, %v2872
    %v2874 = vmul.f32 %v2174, %v2648
    %v2875 = vmul.f32 %v2230, %v2663
    %v2876 = vmul.f32 %v2286, %v2678
    %v2877 = vmul.f32 %v2342, %v2693
    %v2878 = vmul.f32 %v2398, %v2708
    %v2879 = vmul.f32 %v2454, %v2723
    %v2880 = vmul.f32 %v2510, %v2738
    %v2881 = vmul.f32 %v2566, %v2753
    %v2882 = vmul.f32 %v2176, %v2768
    %v2883 = vmul.f32 %v2232, %v2783
    %v2884 = vmul.f32 %v2288, %v2798
    %v2885 = vmul.f32 %v2344, %v2813
    %v2886 = vmul.f32 %v2400, %v2828
    %v2887 = vmul.f32 %v2456, %v2843
    %v2888 = vmul.f32 %v2512, %v2858
    %v2889 = vmul.f32 %v2568, %v2873
    %v2890 = vpack.c.bf16 %v2882, %v2874
    %v2891 = vpack.c.bf16 %v2883, %v2875
    %v2892 = vpack.c.bf16 %v2884, %v2876
    %v2893 = vpack.c.bf16 %v2885, %v2877
    %v2894 = vpack.c.bf16 %v2886, %v2878
    %v2895 = vpack.c.bf16 %v2887, %v2879
    %v2896 = vpack.c.bf16 %v2888, %v2880
    %v2897 = vpack.c.bf16 %v2889, %v2881
    %v2898 = vld [vmem:[#allocation11] sm:$0xff]
    %v2899 = vld [vmem:[#allocation11 + $0x8] sm:$0xff]
    %v2900 = vld [vmem:[#allocation11 + $0x10] sm:$0xff]
    %v2901 = vld [vmem:[#allocation11 + $0x18] sm:$0xff]
    %v2902 = vld [vmem:[#allocation11 + $0x20] sm:$0xff]
    %v2903 = vld [vmem:[#allocation11 + $0x28] sm:$0xff]
    %v2904 = vld [vmem:[#allocation11 + $0x30] sm:$0xff]
    %v2905 = vld [vmem:[#allocation11 + $0x38] sm:$0xff]
    %v2906 = vld [vmem:[#allocation11 + $0x40] sm:$0xff]
    %v2907 = vld [vmem:[#allocation11 + $0x48] sm:$0xff]
    %v2908 = vld [vmem:[#allocation11 + $0x50] sm:$0xff]
    %v2909 = vld [vmem:[#allocation11 + $0x58] sm:$0xff]
    %v2910 = vld [vmem:[#allocation11 + $0x60] sm:$0xff]
    %v2911 = vld [vmem:[#allocation11 + $0x68] sm:$0xff]
    %v2912 = vld [vmem:[#allocation11 + $0x70] sm:$0xff]
    %v2913 = vld [vmem:[#allocation11 + $0x78] sm:$0xff]
    %v2914 = vld [vmem:[#allocation11 + $0x80] sm:$0xff]
    %v2915 = vld [vmem:[#allocation11 + $0x88] sm:$0xff]
    %v2916 = vld [vmem:[#allocation11 + $0x90] sm:$0xff]
    %v2917 = vld [vmem:[#allocation11 + $0x98] sm:$0xff]
    %v2918 = vld [vmem:[#allocation11 + $0xa0] sm:$0xff]
    %v2919 = vld [vmem:[#allocation11 + $0xa8] sm:$0xff]
    %v2920 = vld [vmem:[#allocation11 + $0xb0] sm:$0xff]
    %v2921 = vld [vmem:[#allocation11 + $0xb8] sm:$0xff]
    %v2922 = vld [vmem:[#allocation11 + $0xc0] sm:$0xff]
    %v2923 = vld [vmem:[#allocation11 + $0xc8] sm:$0xff]
    %v2924 = vld [vmem:[#allocation11 + $0xd0] sm:$0xff]
    %v2925 = vld [vmem:[#allocation11 + $0xd8] sm:$0xff]
    %v2926 = vld [vmem:[#allocation11 + $0xe0] sm:$0xff]
    %v2927 = vld [vmem:[#allocation11 + $0xe8] sm:$0xff]
    %v2928 = vld [vmem:[#allocation11 + $0xf0] sm:$0xff]
    %v2929 = vld [vmem:[#allocation11 + $0xf8] sm:$0xff]
    %v2930 = vld [vmem:[#allocation11 + $0x100] sm:$0xff]
    %v2931 = vld [vmem:[#allocation11 + $0x108] sm:$0xff]
    %v2932 = vld [vmem:[#allocation11 + $0x110] sm:$0xff]
    %v2933 = vld [vmem:[#allocation11 + $0x118] sm:$0xff]
    %v2934 = vld [vmem:[#allocation11 + $0x120] sm:$0xff]
    %v2935 = vld [vmem:[#allocation11 + $0x128] sm:$0xff]
    %v2936 = vld [vmem:[#allocation11 + $0x130] sm:$0xff]
    %v2937 = vld [vmem:[#allocation11 + $0x138] sm:$0xff]
    %v2938 = vld [vmem:[#allocation11 + $0x140] sm:$0xff]
    %v2939 = vld [vmem:[#allocation11 + $0x148] sm:$0xff]
    %v2940 = vld [vmem:[#allocation11 + $0x150] sm:$0xff]
    %v2941 = vld [vmem:[#allocation11 + $0x158] sm:$0xff]
    %v2942 = vld [vmem:[#allocation11 + $0x160] sm:$0xff]
    %v2943 = vld [vmem:[#allocation11 + $0x168] sm:$0xff]
    %v2944 = vld [vmem:[#allocation11 + $0x170] sm:$0xff]
    %v2945 = vld [vmem:[#allocation11 + $0x178] sm:$0xff]
    %v2946 = vld [vmem:[#allocation11 + $0x180] sm:$0xff]
    %v2947 = vld [vmem:[#allocation11 + $0x188] sm:$0xff]
    %v2948 = vld [vmem:[#allocation11 + $0x190] sm:$0xff]
    %v2949 = vld [vmem:[#allocation11 + $0x198] sm:$0xff]
    %v2950 = vld [vmem:[#allocation11 + $0x1a0] sm:$0xff]
    %v2951 = vld [vmem:[#allocation11 + $0x1a8] sm:$0xff]
    %v2952 = vld [vmem:[#allocation11 + $0x1b0] sm:$0xff]
    %v2953 = vld [vmem:[#allocation11 + $0x1b8] sm:$0xff]
    %v2954 = vld [vmem:[#allocation11 + $0x1c0] sm:$0xff]
    %v2955 = vld [vmem:[#allocation11 + $0x1c8] sm:$0xff]
    %v2956 = vld [vmem:[#allocation11 + $0x1d0] sm:$0xff]
    %v2957 = vld [vmem:[#allocation11 + $0x1d8] sm:$0xff]
    %v2958 = vld [vmem:[#allocation11 + $0x1e0] sm:$0xff]
    %v2959 = vld [vmem:[#allocation11 + $0x1e8] sm:$0xff]
    %v2960 = vld [vmem:[#allocation11 + $0x1f0] sm:$0xff]
    %v2961 = vld [vmem:[#allocation11 + $0x1f8] sm:$0xff]
    %v2962 = vld [vmem:[#allocation11 + $0x200] sm:$0xff]
    %v2963 = vld [vmem:[#allocation11 + $0x208] sm:$0xff]
    %v2964 = vld [vmem:[#allocation11 + $0x210] sm:$0xff]
    %v2965 = vld [vmem:[#allocation11 + $0x218] sm:$0xff]
    %v2966 = vld [vmem:[#allocation11 + $0x220] sm:$0xff]
    %v2967 = vld [vmem:[#allocation11 + $0x228] sm:$0xff]
    %v2968 = vld [vmem:[#allocation11 + $0x230] sm:$0xff]
    %v2969 = vld [vmem:[#allocation11 + $0x238] sm:$0xff]
    %v2970 = vld [vmem:[#allocation11 + $0x240] sm:$0xff]
    %v2971 = vld [vmem:[#allocation11 + $0x248] sm:$0xff]
    %v2972 = vld [vmem:[#allocation11 + $0x250] sm:$0xff]
    %v2973 = vld [vmem:[#allocation11 + $0x258] sm:$0xff]
    %v2974 = vld [vmem:[#allocation11 + $0x260] sm:$0xff]
    %v2975 = vld [vmem:[#allocation11 + $0x268] sm:$0xff]
    %v2976 = vld [vmem:[#allocation11 + $0x270] sm:$0xff]
    %v2977 = vld [vmem:[#allocation11 + $0x278] sm:$0xff]
    %v2978 = vld [vmem:[#allocation11 + $0x280] sm:$0xff]
    %v2979 = vld [vmem:[#allocation11 + $0x288] sm:$0xff]
    %v2980 = vld [vmem:[#allocation11 + $0x290] sm:$0xff]
    %v2981 = vld [vmem:[#allocation11 + $0x298] sm:$0xff]
    %v2982 = vld [vmem:[#allocation11 + $0x2a0] sm:$0xff]
    %v2983 = vld [vmem:[#allocation11 + $0x2a8] sm:$0xff]
    %v2984 = vld [vmem:[#allocation11 + $0x2b0] sm:$0xff]
    %v2985 = vld [vmem:[#allocation11 + $0x2b8] sm:$0xff]
    %v2986 = vld [vmem:[#allocation11 + $0x2c0] sm:$0xff]
    %v2987 = vld [vmem:[#allocation11 + $0x2c8] sm:$0xff]
    %v2988 = vld [vmem:[#allocation11 + $0x2d0] sm:$0xff]
    %v2989 = vld [vmem:[#allocation11 + $0x2d8] sm:$0xff]
    %v2990 = vld [vmem:[#allocation11 + $0x2e0] sm:$0xff]
    %v2991 = vld [vmem:[#allocation11 + $0x2e8] sm:$0xff]
    %v2992 = vld [vmem:[#allocation11 + $0x2f0] sm:$0xff]
    %v2993 = vld [vmem:[#allocation11 + $0x2f8] sm:$0xff]
    %v2994 = vld [vmem:[#allocation11 + $0x300] sm:$0xff]
    %v2995 = vld [vmem:[#allocation11 + $0x308] sm:$0xff]
    %v2996 = vld [vmem:[#allocation11 + $0x310] sm:$0xff]
    %v2997 = vld [vmem:[#allocation11 + $0x318] sm:$0xff]
    %v2998 = vld [vmem:[#allocation11 + $0x320] sm:$0xff]
    %v2999 = vld [vmem:[#allocation11 + $0x328] sm:$0xff]
    %v3000 = vld [vmem:[#allocation11 + $0x330] sm:$0xff]
    %v3001 = vld [vmem:[#allocation11 + $0x338] sm:$0xff]
    %v3002 = vld [vmem:[#allocation11 + $0x340] sm:$0xff]
    %v3003 = vld [vmem:[#allocation11 + $0x348] sm:$0xff]
    %v3004 = vld [vmem:[#allocation11 + $0x350] sm:$0xff]
    %v3005 = vld [vmem:[#allocation11 + $0x358] sm:$0xff]
    %v3006 = vld [vmem:[#allocation11 + $0x360] sm:$0xff]
    %v3007 = vld [vmem:[#allocation11 + $0x368] sm:$0xff]
    %v3008 = vld [vmem:[#allocation11 + $0x370] sm:$0xff]
    %v3009 = vld [vmem:[#allocation11 + $0x378] sm:$0xff]
    %v3010 = vld [vmem:[#allocation11 + $0x380] sm:$0xff]
    %v3011 = vld [vmem:[#allocation11 + $0x388] sm:$0xff]
    %v3012 = vld [vmem:[#allocation11 + $0x390] sm:$0xff]
    %v3013 = vld [vmem:[#allocation11 + $0x398] sm:$0xff]
    %v3014 = vld [vmem:[#allocation11 + $0x3a0] sm:$0xff]
    %v3015 = vld [vmem:[#allocation11 + $0x3a8] sm:$0xff]
    %v3016 = vld [vmem:[#allocation11 + $0x3b0] sm:$0xff]
    %v3017 = vld [vmem:[#allocation11 + $0x3b8] sm:$0xff]
    %v3018 = vld [vmem:[#allocation11 + $0x3c0] sm:$0xff]
    %v3019 = vld [vmem:[#allocation11 + $0x3c8] sm:$0xff]
    %v3020 = vld [vmem:[#allocation11 + $0x3d0] sm:$0xff]
    %v3021 = vld [vmem:[#allocation11 + $0x3d8] sm:$0xff]
    %v3022 = vld [vmem:[#allocation11 + $0x3e0] sm:$0xff]
    %v3023 = vld [vmem:[#allocation11 + $0x3e8] sm:$0xff]
    %v3024 = vld [vmem:[#allocation11 + $0x3f0] sm:$0xff]
    %v3025 = vld [vmem:[#allocation11 + $0x3f8] sm:$0xff]
    %v3026 = vld [vmem:[#allocation11 + $0x400] sm:$0xff]
    %v3027 = vld [vmem:[#allocation11 + $0x408] sm:$0xff]
    %v3028 = vld [vmem:[#allocation11 + $0x410] sm:$0xff]
    %v3029 = vld [vmem:[#allocation11 + $0x418] sm:$0xff]
    %v3030 = vld [vmem:[#allocation11 + $0x420] sm:$0xff]
    %v3031 = vld [vmem:[#allocation11 + $0x428] sm:$0xff]
    %v3032 = vld [vmem:[#allocation11 + $0x430] sm:$0xff]
    %v3033 = vld [vmem:[#allocation11 + $0x438] sm:$0xff]
    %v3034 = vld [vmem:[#allocation11 + $0x440] sm:$0xff]
    %v3035 = vld [vmem:[#allocation11 + $0x448] sm:$0xff]
    %v3036 = vld [vmem:[#allocation11 + $0x450] sm:$0xff]
    %v3037 = vld [vmem:[#allocation11 + $0x458] sm:$0xff]
    %v3038 = vld [vmem:[#allocation11 + $0x460] sm:$0xff]
    %v3039 = vld [vmem:[#allocation11 + $0x468] sm:$0xff]
    %v3040 = vld [vmem:[#allocation11 + $0x470] sm:$0xff]
    %v3041 = vld [vmem:[#allocation11 + $0x478] sm:$0xff]
    %v3042 = vld [vmem:[#allocation11 + $0x480] sm:$0xff]
    %v3043 = vld [vmem:[#allocation11 + $0x488] sm:$0xff]
    %v3044 = vld [vmem:[#allocation11 + $0x490] sm:$0xff]
    %v3045 = vld [vmem:[#allocation11 + $0x498] sm:$0xff]
    %v3046 = vld [vmem:[#allocation11 + $0x4a0] sm:$0xff]
    %v3047 = vld [vmem:[#allocation11 + $0x4a8] sm:$0xff]
    %v3048 = vld [vmem:[#allocation11 + $0x4b0] sm:$0xff]
    %v3049 = vld [vmem:[#allocation11 + $0x4b8] sm:$0xff]
    %v3050 = vld [vmem:[#allocation11 + $0x4c0] sm:$0xff]
    %v3051 = vld [vmem:[#allocation11 + $0x4c8] sm:$0xff]
    %v3052 = vld [vmem:[#allocation11 + $0x4d0] sm:$0xff]
    %v3053 = vld [vmem:[#allocation11 + $0x4d8] sm:$0xff]
    %v3054 = vld [vmem:[#allocation11 + $0x4e0] sm:$0xff]
    %v3055 = vld [vmem:[#allocation11 + $0x4e8] sm:$0xff]
    %v3056 = vld [vmem:[#allocation11 + $0x4f0] sm:$0xff]
    %v3057 = vld [vmem:[#allocation11 + $0x4f8] sm:$0xff]
    %v3058 = vld [vmem:[#allocation11 + $0x500] sm:$0xff]
    %v3059 = vld [vmem:[#allocation11 + $0x508] sm:$0xff]
    %v3060 = vld [vmem:[#allocation11 + $0x510] sm:$0xff]
    %v3061 = vld [vmem:[#allocation11 + $0x518] sm:$0xff]
    %v3062 = vld [vmem:[#allocation11 + $0x520] sm:$0xff]
    %v3063 = vld [vmem:[#allocation11 + $0x528] sm:$0xff]
    %v3064 = vld [vmem:[#allocation11 + $0x530] sm:$0xff]
    %v3065 = vld [vmem:[#allocation11 + $0x538] sm:$0xff]
    %v3066 = vld [vmem:[#allocation11 + $0x540] sm:$0xff]
    %v3067 = vld [vmem:[#allocation11 + $0x548] sm:$0xff]
    %v3068 = vld [vmem:[#allocation11 + $0x550] sm:$0xff]
    %v3069 = vld [vmem:[#allocation11 + $0x558] sm:$0xff]
    %v3070 = vld [vmem:[#allocation11 + $0x560] sm:$0xff]
    %v3071 = vld [vmem:[#allocation11 + $0x568] sm:$0xff]
    %v3072 = vld [vmem:[#allocation11 + $0x570] sm:$0xff]
    %v3073 = vld [vmem:[#allocation11 + $0x578] sm:$0xff]
    %v3074 = vld [vmem:[#allocation11 + $0x580] sm:$0xff]
    %v3075 = vld [vmem:[#allocation11 + $0x588] sm:$0xff]
    %v3076 = vld [vmem:[#allocation11 + $0x590] sm:$0xff]
    %v3077 = vld [vmem:[#allocation11 + $0x598] sm:$0xff]
    %v3078 = vld [vmem:[#allocation11 + $0x5a0] sm:$0xff]
    %v3079 = vld [vmem:[#allocation11 + $0x5a8] sm:$0xff]
    %v3080 = vld [vmem:[#allocation11 + $0x5b0] sm:$0xff]
    %v3081 = vld [vmem:[#allocation11 + $0x5b8] sm:$0xff]
    %v3082 = vld [vmem:[#allocation11 + $0x5c0] sm:$0xff]
    %v3083 = vld [vmem:[#allocation11 + $0x5c8] sm:$0xff]
    %v3084 = vld [vmem:[#allocation11 + $0x5d0] sm:$0xff]
    %v3085 = vld [vmem:[#allocation11 + $0x5d8] sm:$0xff]
    %v3086 = vld [vmem:[#allocation11 + $0x5e0] sm:$0xff]
    %v3087 = vld [vmem:[#allocation11 + $0x5e8] sm:$0xff]
    %v3088 = vld [vmem:[#allocation11 + $0x5f0] sm:$0xff]
    %v3089 = vld [vmem:[#allocation11 + $0x5f8] sm:$0xff]
    %v3090 = vld [vmem:[#allocation11 + $0x600] sm:$0xff]
    %v3091 = vld [vmem:[#allocation11 + $0x608] sm:$0xff]
    %v3092 = vld [vmem:[#allocation11 + $0x610] sm:$0xff]
    %v3093 = vld [vmem:[#allocation11 + $0x618] sm:$0xff]
    %v3094 = vld [vmem:[#allocation11 + $0x620] sm:$0xff]
    %v3095 = vld [vmem:[#allocation11 + $0x628] sm:$0xff]
    %v3096 = vld [vmem:[#allocation11 + $0x630] sm:$0xff]
    %v3097 = vld [vmem:[#allocation11 + $0x638] sm:$0xff]
    %v3098 = vld [vmem:[#allocation11 + $0x640] sm:$0xff]
    %v3099 = vld [vmem:[#allocation11 + $0x648] sm:$0xff]
    %v3100 = vld [vmem:[#allocation11 + $0x650] sm:$0xff]
    %v3101 = vld [vmem:[#allocation11 + $0x658] sm:$0xff]
    %v3102 = vld [vmem:[#allocation11 + $0x660] sm:$0xff]
    %v3103 = vld [vmem:[#allocation11 + $0x668] sm:$0xff]
    %v3104 = vld [vmem:[#allocation11 + $0x670] sm:$0xff]
    %v3105 = vld [vmem:[#allocation11 + $0x678] sm:$0xff]
    %v3106 = vld [vmem:[#allocation11 + $0x680] sm:$0xff]
    %v3107 = vld [vmem:[#allocation11 + $0x688] sm:$0xff]
    %v3108 = vld [vmem:[#allocation11 + $0x690] sm:$0xff]
    %v3109 = vld [vmem:[#allocation11 + $0x698] sm:$0xff]
    %v3110 = vld [vmem:[#allocation11 + $0x6a0] sm:$0xff]
    %v3111 = vld [vmem:[#allocation11 + $0x6a8] sm:$0xff]
    %v3112 = vld [vmem:[#allocation11 + $0x6b0] sm:$0xff]
    %v3113 = vld [vmem:[#allocation11 + $0x6b8] sm:$0xff]
    %v3114 = vld [vmem:[#allocation11 + $0x6c0] sm:$0xff]
    %v3115 = vld [vmem:[#allocation11 + $0x6c8] sm:$0xff]
    %v3116 = vld [vmem:[#allocation11 + $0x6d0] sm:$0xff]
    %v3117 = vld [vmem:[#allocation11 + $0x6d8] sm:$0xff]
    %v3118 = vld [vmem:[#allocation11 + $0x6e0] sm:$0xff]
    %v3119 = vld [vmem:[#allocation11 + $0x6e8] sm:$0xff]
    %v3120 = vld [vmem:[#allocation11 + $0x6f0] sm:$0xff]
    %v3121 = vld [vmem:[#allocation11 + $0x6f8] sm:$0xff]
    %v3122 = vld [vmem:[#allocation11 + $0x700] sm:$0xff]
    %v3123 = vld [vmem:[#allocation11 + $0x708] sm:$0xff]
    %v3124 = vld [vmem:[#allocation11 + $0x710] sm:$0xff]
    %v3125 = vld [vmem:[#allocation11 + $0x718] sm:$0xff]
    %v3126 = vld [vmem:[#allocation11 + $0x720] sm:$0xff]
    %v3127 = vld [vmem:[#allocation11 + $0x728] sm:$0xff]
    %v3128 = vld [vmem:[#allocation11 + $0x730] sm:$0xff]
    %v3129 = vld [vmem:[#allocation11 + $0x738] sm:$0xff]
    %v3130 = vld [vmem:[#allocation11 + $0x740] sm:$0xff]
    %v3131 = vld [vmem:[#allocation11 + $0x748] sm:$0xff]
    %v3132 = vld [vmem:[#allocation11 + $0x750] sm:$0xff]
    %v3133 = vld [vmem:[#allocation11 + $0x758] sm:$0xff]
    %v3134 = vld [vmem:[#allocation11 + $0x760] sm:$0xff]
    %v3135 = vld [vmem:[#allocation11 + $0x768] sm:$0xff]
    %v3136 = vld [vmem:[#allocation11 + $0x770] sm:$0xff]
    %v3137 = vld [vmem:[#allocation11 + $0x778] sm:$0xff]
    %v3138 = vld [vmem:[#allocation11 + $0x780] sm:$0xff]
    %v3139 = vld [vmem:[#allocation11 + $0x788] sm:$0xff]
    %v3140 = vld [vmem:[#allocation11 + $0x790] sm:$0xff]
    %v3141 = vld [vmem:[#allocation11 + $0x798] sm:$0xff]
    %v3142 = vld [vmem:[#allocation11 + $0x7a0] sm:$0xff]
    %v3143 = vld [vmem:[#allocation11 + $0x7a8] sm:$0xff]
    %v3144 = vld [vmem:[#allocation11 + $0x7b0] sm:$0xff]
    %v3145 = vld [vmem:[#allocation11 + $0x7b8] sm:$0xff]
    %v3146 = vld [vmem:[#allocation11 + $0x7c0] sm:$0xff]
    %v3147 = vld [vmem:[#allocation11 + $0x7c8] sm:$0xff]
    %v3148 = vld [vmem:[#allocation11 + $0x7d0] sm:$0xff]
    %v3149 = vld [vmem:[#allocation11 + $0x7d8] sm:$0xff]
    %v3150 = vld [vmem:[#allocation11 + $0x7e0] sm:$0xff]
    %v3151 = vld [vmem:[#allocation11 + $0x7e8] sm:$0xff]
    %v3152 = vld [vmem:[#allocation11 + $0x7f0] sm:$0xff]
    %v3153 = vld [vmem:[#allocation11 + $0x7f8] sm:$0xff]
    %v3154 = vld [vmem:[%s6] sm:$0xf]
    %v3156 = vperm.slane %v3154, 0
    %v3157 = vperm.slane %v3154, 1
    %v3158 = vperm.slane %v3154, 2
    %v3159 = vperm.slane %v3154, 3
    %v3420 = vunpack.c.l.b16 %v2898
    %v3421 = vunpack.c.h.b16 %v2898
    %v3422 = vunpack.c.l.b16 %v2899
    %v3423 = vunpack.c.h.b16 %v2899
    %v3424 = vunpack.c.l.b16 %v2900
    %v3425 = vunpack.c.h.b16 %v2900
    %v3426 = vunpack.c.l.b16 %v2901
    %v3427 = vunpack.c.h.b16 %v2901
    %v3428 = vunpack.c.l.b16 %v2902
    %v3429 = vunpack.c.h.b16 %v2902
    %v3430 = vunpack.c.l.b16 %v2903
    %v3431 = vunpack.c.h.b16 %v2903
    %v3432 = vunpack.c.l.b16 %v2904
    %v3433 = vunpack.c.h.b16 %v2904
    %v3434 = vunpack.c.l.b16 %v2905
    %v3435 = vunpack.c.h.b16 %v2905
    %v3436 = vunpack.c.l.b16 %v2906
    %v3437 = vunpack.c.h.b16 %v2906
    %v3438 = vunpack.c.l.b16 %v2907
    %v3439 = vunpack.c.h.b16 %v2907
    %v3440 = vunpack.c.l.b16 %v2908
    %v3441 = vunpack.c.h.b16 %v2908
    %v3442 = vunpack.c.l.b16 %v2909
    %v3443 = vunpack.c.h.b16 %v2909
    %v3444 = vunpack.c.l.b16 %v2910
    %v3445 = vunpack.c.h.b16 %v2910
    %v3446 = vunpack.c.l.b16 %v2911
    %v3447 = vunpack.c.h.b16 %v2911
    %v3448 = vunpack.c.l.b16 %v2912
    %v3449 = vunpack.c.h.b16 %v2912
    %v3450 = vunpack.c.l.b16 %v2913
    %v3451 = vunpack.c.h.b16 %v2913
    %v3452 = vunpack.c.l.b16 %v2914
    %v3453 = vunpack.c.h.b16 %v2914
    %v3454 = vunpack.c.l.b16 %v2915
    %v3455 = vunpack.c.h.b16 %v2915
    %v3456 = vunpack.c.l.b16 %v2916
    %v3457 = vunpack.c.h.b16 %v2916
    %v3458 = vunpack.c.l.b16 %v2917
    %v3459 = vunpack.c.h.b16 %v2917
    %v3460 = vunpack.c.l.b16 %v2918
    %v3461 = vunpack.c.h.b16 %v2918
    %v3462 = vunpack.c.l.b16 %v2919
    %v3463 = vunpack.c.h.b16 %v2919
    %v3464 = vunpack.c.l.b16 %v2920
    %v3465 = vunpack.c.h.b16 %v2920
    %v3466 = vunpack.c.l.b16 %v2921
    %v3467 = vunpack.c.h.b16 %v2921
    %v3468 = vunpack.c.l.b16 %v2922
    %v3469 = vunpack.c.h.b16 %v2922
    %v3470 = vunpack.c.l.b16 %v2923
    %v3471 = vunpack.c.h.b16 %v2923
    %v3472 = vunpack.c.l.b16 %v2924
    %v3473 = vunpack.c.h.b16 %v2924
    %v3474 = vunpack.c.l.b16 %v2925
    %v3475 = vunpack.c.h.b16 %v2925
    %v3476 = vunpack.c.l.b16 %v2926
    %v3477 = vunpack.c.h.b16 %v2926
    %v3478 = vunpack.c.l.b16 %v2927
    %v3479 = vunpack.c.h.b16 %v2927
    %v3480 = vunpack.c.l.b16 %v2928
    %v3481 = vunpack.c.h.b16 %v2928
    %v3482 = vunpack.c.l.b16 %v2929
    %v3483 = vunpack.c.h.b16 %v2929
    %v3484 = vunpack.c.l.b16 %v2930
    %v3485 = vunpack.c.h.b16 %v2930
    %v3486 = vunpack.c.l.b16 %v2931
    %v3487 = vunpack.c.h.b16 %v2931
    %v3488 = vunpack.c.l.b16 %v2932
    %v3489 = vunpack.c.h.b16 %v2932
    %v3490 = vunpack.c.l.b16 %v2933
    %v3491 = vunpack.c.h.b16 %v2933
    %v3492 = vunpack.c.l.b16 %v2934
    %v3493 = vunpack.c.h.b16 %v2934
    %v3494 = vunpack.c.l.b16 %v2935
    %v3495 = vunpack.c.h.b16 %v2935
    %v3496 = vunpack.c.l.b16 %v2936
    %v3497 = vunpack.c.h.b16 %v2936
    %v3498 = vunpack.c.l.b16 %v2937
    %v3499 = vunpack.c.h.b16 %v2937
    %v3500 = vunpack.c.l.b16 %v2938
    %v3501 = vunpack.c.h.b16 %v2938
    %v3502 = vunpack.c.l.b16 %v2939
    %v3503 = vunpack.c.h.b16 %v2939
    %v3504 = vunpack.c.l.b16 %v2940
    %v3505 = vunpack.c.h.b16 %v2940
    %v3506 = vunpack.c.l.b16 %v2941
    %v3507 = vunpack.c.h.b16 %v2941
    %v3508 = vunpack.c.l.b16 %v2942
    %v3509 = vunpack.c.h.b16 %v2942
    %v3510 = vunpack.c.l.b16 %v2943
    %v3511 = vunpack.c.h.b16 %v2943
    %v3512 = vunpack.c.l.b16 %v2944
    %v3513 = vunpack.c.h.b16 %v2944
    %v3514 = vunpack.c.l.b16 %v2945
    %v3515 = vunpack.c.h.b16 %v2945
    %v3516 = vunpack.c.l.b16 %v2946
    %v3517 = vunpack.c.h.b16 %v2946
    %v3518 = vunpack.c.l.b16 %v2947
    %v3519 = vunpack.c.h.b16 %v2947
    %v3520 = vunpack.c.l.b16 %v2948
    %v3521 = vunpack.c.h.b16 %v2948
    %v3522 = vunpack.c.l.b16 %v2949
    %v3523 = vunpack.c.h.b16 %v2949
    %v3524 = vunpack.c.l.b16 %v2950
    %v3525 = vunpack.c.h.b16 %v2950
    %v3526 = vunpack.c.l.b16 %v2951
    %v3527 = vunpack.c.h.b16 %v2951
    %v3528 = vunpack.c.l.b16 %v2952
    %v3529 = vunpack.c.h.b16 %v2952
    %v3530 = vunpack.c.l.b16 %v2953
    %v3531 = vunpack.c.h.b16 %v2953
    %v3532 = vunpack.c.l.b16 %v2954
    %v3533 = vunpack.c.h.b16 %v2954
    %v3534 = vunpack.c.l.b16 %v2955
    %v3535 = vunpack.c.h.b16 %v2955
    %v3536 = vunpack.c.l.b16 %v2956
    %v3537 = vunpack.c.h.b16 %v2956
    %v3538 = vunpack.c.l.b16 %v2957
    %v3539 = vunpack.c.h.b16 %v2957
    %v3540 = vunpack.c.l.b16 %v2958
    %v3541 = vunpack.c.h.b16 %v2958
    %v3542 = vunpack.c.l.b16 %v2959
    %v3543 = vunpack.c.h.b16 %v2959
    %v3544 = vunpack.c.l.b16 %v2960
    %v3545 = vunpack.c.h.b16 %v2960
    %v3546 = vunpack.c.l.b16 %v2961
    %v3547 = vunpack.c.h.b16 %v2961
    %v3548 = vunpack.c.l.b16 %v2962
    %v3549 = vunpack.c.h.b16 %v2962
    %v3550 = vunpack.c.l.b16 %v2963
    %v3551 = vunpack.c.h.b16 %v2963
    %v3552 = vunpack.c.l.b16 %v2964
    %v3553 = vunpack.c.h.b16 %v2964
    %v3554 = vunpack.c.l.b16 %v2965
    %v3555 = vunpack.c.h.b16 %v2965
    %v3556 = vunpack.c.l.b16 %v2966
    %v3557 = vunpack.c.h.b16 %v2966
    %v3558 = vunpack.c.l.b16 %v2967
    %v3559 = vunpack.c.h.b16 %v2967
    %v3560 = vunpack.c.l.b16 %v2968
    %v3561 = vunpack.c.h.b16 %v2968
    %v3562 = vunpack.c.l.b16 %v2969
    %v3563 = vunpack.c.h.b16 %v2969
    %v3564 = vunpack.c.l.b16 %v2970
    %v3565 = vunpack.c.h.b16 %v2970
    %v3566 = vunpack.c.l.b16 %v2971
    %v3567 = vunpack.c.h.b16 %v2971
    %v3568 = vunpack.c.l.b16 %v2972
    %v3569 = vunpack.c.h.b16 %v2972
    %v3570 = vunpack.c.l.b16 %v2973
    %v3571 = vunpack.c.h.b16 %v2973
    %v3572 = vunpack.c.l.b16 %v2974
    %v3573 = vunpack.c.h.b16 %v2974
    %v3574 = vunpack.c.l.b16 %v2975
    %v3575 = vunpack.c.h.b16 %v2975
    %v3576 = vunpack.c.l.b16 %v2976
    %v3577 = vunpack.c.h.b16 %v2976
    %v3578 = vunpack.c.l.b16 %v2977
    %v3579 = vunpack.c.h.b16 %v2977
    %v3580 = vunpack.c.l.b16 %v2978
    %v3581 = vunpack.c.h.b16 %v2978
    %v3582 = vunpack.c.l.b16 %v2979
    %v3583 = vunpack.c.h.b16 %v2979
    %v3584 = vunpack.c.l.b16 %v2980
    %v3585 = vunpack.c.h.b16 %v2980
    %v3586 = vunpack.c.l.b16 %v2981
    %v3587 = vunpack.c.h.b16 %v2981
    %v3588 = vunpack.c.l.b16 %v2982
    %v3589 = vunpack.c.h.b16 %v2982
    %v3590 = vunpack.c.l.b16 %v2983
    %v3591 = vunpack.c.h.b16 %v2983
    %v3592 = vunpack.c.l.b16 %v2984
    %v3593 = vunpack.c.h.b16 %v2984
    %v3594 = vunpack.c.l.b16 %v2985
    %v3595 = vunpack.c.h.b16 %v2985
    %v3596 = vunpack.c.l.b16 %v2986
    %v3597 = vunpack.c.h.b16 %v2986
    %v3598 = vunpack.c.l.b16 %v2987
    %v3599 = vunpack.c.h.b16 %v2987
    %v3600 = vunpack.c.l.b16 %v2988
    %v3601 = vunpack.c.h.b16 %v2988
    %v3602 = vunpack.c.l.b16 %v2989
    %v3603 = vunpack.c.h.b16 %v2989
    %v3604 = vunpack.c.l.b16 %v2990
    %v3605 = vunpack.c.h.b16 %v2990
    %v3606 = vunpack.c.l.b16 %v2991
    %v3607 = vunpack.c.h.b16 %v2991
    %v3608 = vunpack.c.l.b16 %v2992
    %v3609 = vunpack.c.h.b16 %v2992
    %v3610 = vunpack.c.l.b16 %v2993
    %v3611 = vunpack.c.h.b16 %v2993
    %v3612 = vunpack.c.l.b16 %v2994
    %v3613 = vunpack.c.h.b16 %v2994
    %v3614 = vunpack.c.l.b16 %v2995
    %v3615 = vunpack.c.h.b16 %v2995
    %v3616 = vunpack.c.l.b16 %v2996
    %v3617 = vunpack.c.h.b16 %v2996
    %v3618 = vunpack.c.l.b16 %v2997
    %v3619 = vunpack.c.h.b16 %v2997
    %v3620 = vunpack.c.l.b16 %v2998
    %v3621 = vunpack.c.h.b16 %v2998
    %v3622 = vunpack.c.l.b16 %v2999
    %v3623 = vunpack.c.h.b16 %v2999
    %v3624 = vunpack.c.l.b16 %v3000
    %v3625 = vunpack.c.h.b16 %v3000
    %v3626 = vunpack.c.l.b16 %v3001
    %v3627 = vunpack.c.h.b16 %v3001
    %v3628 = vunpack.c.l.b16 %v3002
    %v3629 = vunpack.c.h.b16 %v3002
    %v3630 = vunpack.c.l.b16 %v3003
    %v3631 = vunpack.c.h.b16 %v3003
    %v3632 = vunpack.c.l.b16 %v3004
    %v3633 = vunpack.c.h.b16 %v3004
    %v3634 = vunpack.c.l.b16 %v3005
    %v3635 = vunpack.c.h.b16 %v3005
    %v3636 = vunpack.c.l.b16 %v3006
    %v3637 = vunpack.c.h.b16 %v3006
    %v3638 = vunpack.c.l.b16 %v3007
    %v3639 = vunpack.c.h.b16 %v3007
    %v3640 = vunpack.c.l.b16 %v3008
    %v3641 = vunpack.c.h.b16 %v3008
    %v3642 = vunpack.c.l.b16 %v3009
    %v3643 = vunpack.c.h.b16 %v3009
    %v3644 = vunpack.c.l.b16 %v3010
    %v3645 = vunpack.c.h.b16 %v3010
    %v3646 = vunpack.c.l.b16 %v3011
    %v3647 = vunpack.c.h.b16 %v3011
    %v3648 = vunpack.c.l.b16 %v3012
    %v3649 = vunpack.c.h.b16 %v3012
    %v3650 = vunpack.c.l.b16 %v3013
    %v3651 = vunpack.c.h.b16 %v3013
    %v3652 = vunpack.c.l.b16 %v3014
    %v3653 = vunpack.c.h.b16 %v3014
    %v3654 = vunpack.c.l.b16 %v3015
    %v3655 = vunpack.c.h.b16 %v3015
    %v3656 = vunpack.c.l.b16 %v3016
    %v3657 = vunpack.c.h.b16 %v3016
    %v3658 = vunpack.c.l.b16 %v3017
    %v3659 = vunpack.c.h.b16 %v3017
    %v3660 = vunpack.c.l.b16 %v3018
    %v3661 = vunpack.c.h.b16 %v3018
    %v3662 = vunpack.c.l.b16 %v3019
    %v3663 = vunpack.c.h.b16 %v3019
    %v3664 = vunpack.c.l.b16 %v3020
    %v3665 = vunpack.c.h.b16 %v3020
    %v3666 = vunpack.c.l.b16 %v3021
    %v3667 = vunpack.c.h.b16 %v3021
    %v3668 = vunpack.c.l.b16 %v3022
    %v3669 = vunpack.c.h.b16 %v3022
    %v3670 = vunpack.c.l.b16 %v3023
    %v3671 = vunpack.c.h.b16 %v3023
    %v3672 = vunpack.c.l.b16 %v3024
    %v3673 = vunpack.c.h.b16 %v3024
    %v3674 = vunpack.c.l.b16 %v3025
    %v3675 = vunpack.c.h.b16 %v3025
    %v3676 = vunpack.c.l.b16 %v3026
    %v3677 = vunpack.c.h.b16 %v3026
    %v3678 = vunpack.c.l.b16 %v3027
    %v3679 = vunpack.c.h.b16 %v3027
    %v3680 = vunpack.c.l.b16 %v3028
    %v3681 = vunpack.c.h.b16 %v3028
    %v3682 = vunpack.c.l.b16 %v3029
    %v3683 = vunpack.c.h.b16 %v3029
    %v3684 = vunpack.c.l.b16 %v3030
    %v3685 = vunpack.c.h.b16 %v3030
    %v3686 = vunpack.c.l.b16 %v3031
    %v3687 = vunpack.c.h.b16 %v3031
    %v3688 = vunpack.c.l.b16 %v3032
    %v3689 = vunpack.c.h.b16 %v3032
    %v3690 = vunpack.c.l.b16 %v3033
    %v3691 = vunpack.c.h.b16 %v3033
    %v3692 = vunpack.c.l.b16 %v3034
    %v3693 = vunpack.c.h.b16 %v3034
    %v3694 = vunpack.c.l.b16 %v3035
    %v3695 = vunpack.c.h.b16 %v3035
    %v3696 = vunpack.c.l.b16 %v3036
    %v3697 = vunpack.c.h.b16 %v3036
    %v3698 = vunpack.c.l.b16 %v3037
    %v3699 = vunpack.c.h.b16 %v3037
    %v3700 = vunpack.c.l.b16 %v3038
    %v3701 = vunpack.c.h.b16 %v3038
    %v3702 = vunpack.c.l.b16 %v3039
    %v3703 = vunpack.c.h.b16 %v3039
    %v3704 = vunpack.c.l.b16 %v3040
    %v3705 = vunpack.c.h.b16 %v3040
    %v3706 = vunpack.c.l.b16 %v3041
    %v3707 = vunpack.c.h.b16 %v3041
    %v3708 = vunpack.c.l.b16 %v3042
    %v3709 = vunpack.c.h.b16 %v3042
    %v3710 = vunpack.c.l.b16 %v3043
    %v3711 = vunpack.c.h.b16 %v3043
    %v3712 = vunpack.c.l.b16 %v3044
    %v3713 = vunpack.c.h.b16 %v3044
    %v3714 = vunpack.c.l.b16 %v3045
    %v3715 = vunpack.c.h.b16 %v3045
    %v3716 = vunpack.c.l.b16 %v3046
    %v3717 = vunpack.c.h.b16 %v3046
    %v3718 = vunpack.c.l.b16 %v3047
    %v3719 = vunpack.c.h.b16 %v3047
    %v3720 = vunpack.c.l.b16 %v3048
    %v3721 = vunpack.c.h.b16 %v3048
    %v3722 = vunpack.c.l.b16 %v3049
    %v3723 = vunpack.c.h.b16 %v3049
    %v3724 = vunpack.c.l.b16 %v3050
    %v3725 = vunpack.c.h.b16 %v3050
    %v3726 = vunpack.c.l.b16 %v3051
    %v3727 = vunpack.c.h.b16 %v3051
    %v3728 = vunpack.c.l.b16 %v3052
    %v3729 = vunpack.c.h.b16 %v3052
    %v3730 = vunpack.c.l.b16 %v3053
    %v3731 = vunpack.c.h.b16 %v3053
    %v3732 = vunpack.c.l.b16 %v3054
    %v3733 = vunpack.c.h.b16 %v3054
    %v3734 = vunpack.c.l.b16 %v3055
    %v3735 = vunpack.c.h.b16 %v3055
    %v3736 = vunpack.c.l.b16 %v3056
    %v3737 = vunpack.c.h.b16 %v3056
    %v3738 = vunpack.c.l.b16 %v3057
    %v3739 = vunpack.c.h.b16 %v3057
    %v3740 = vunpack.c.l.b16 %v3058
    %v3741 = vunpack.c.h.b16 %v3058
    %v3742 = vunpack.c.l.b16 %v3059
    %v3743 = vunpack.c.h.b16 %v3059
    %v3744 = vunpack.c.l.b16 %v3060
    %v3745 = vunpack.c.h.b16 %v3060
    %v3746 = vunpack.c.l.b16 %v3061
    %v3747 = vunpack.c.h.b16 %v3061
    %v3748 = vunpack.c.l.b16 %v3062
    %v3749 = vunpack.c.h.b16 %v3062
    %v3750 = vunpack.c.l.b16 %v3063
    %v3751 = vunpack.c.h.b16 %v3063
    %v3752 = vunpack.c.l.b16 %v3064
    %v3753 = vunpack.c.h.b16 %v3064
    %v3754 = vunpack.c.l.b16 %v3065
    %v3755 = vunpack.c.h.b16 %v3065
    %v3756 = vunpack.c.l.b16 %v3066
    %v3757 = vunpack.c.h.b16 %v3066
    %v3758 = vunpack.c.l.b16 %v3067
    %v3759 = vunpack.c.h.b16 %v3067
    %v3760 = vunpack.c.l.b16 %v3068
    %v3761 = vunpack.c.h.b16 %v3068
    %v3762 = vunpack.c.l.b16 %v3069
    %v3763 = vunpack.c.h.b16 %v3069
    %v3764 = vunpack.c.l.b16 %v3070
    %v3765 = vunpack.c.h.b16 %v3070
    %v3766 = vunpack.c.l.b16 %v3071
    %v3767 = vunpack.c.h.b16 %v3071
    %v3768 = vunpack.c.l.b16 %v3072
    %v3769 = vunpack.c.h.b16 %v3072
    %v3770 = vunpack.c.l.b16 %v3073
    %v3771 = vunpack.c.h.b16 %v3073
    %v3772 = vunpack.c.l.b16 %v3074
    %v3773 = vunpack.c.h.b16 %v3074
    %v3774 = vunpack.c.l.b16 %v3075
    %v3775 = vunpack.c.h.b16 %v3075
    %v3776 = vunpack.c.l.b16 %v3076
    %v3777 = vunpack.c.h.b16 %v3076
    %v3778 = vunpack.c.l.b16 %v3077
    %v3779 = vunpack.c.h.b16 %v3077
    %v3780 = vunpack.c.l.b16 %v3078
    %v3781 = vunpack.c.h.b16 %v3078
    %v3782 = vunpack.c.l.b16 %v3079
    %v3783 = vunpack.c.h.b16 %v3079
    %v3784 = vunpack.c.l.b16 %v3080
    %v3785 = vunpack.c.h.b16 %v3080
    %v3786 = vunpack.c.l.b16 %v3081
    %v3787 = vunpack.c.h.b16 %v3081
    %v3788 = vunpack.c.l.b16 %v3082
    %v3789 = vunpack.c.h.b16 %v3082
    %v3790 = vunpack.c.l.b16 %v3083
    %v3791 = vunpack.c.h.b16 %v3083
    %v3792 = vunpack.c.l.b16 %v3084
    %v3793 = vunpack.c.h.b16 %v3084
    %v3794 = vunpack.c.l.b16 %v3085
    %v3795 = vunpack.c.h.b16 %v3085
    %v3796 = vunpack.c.l.b16 %v3086
    %v3797 = vunpack.c.h.b16 %v3086
    %v3798 = vunpack.c.l.b16 %v3087
    %v3799 = vunpack.c.h.b16 %v3087
    %v3800 = vunpack.c.l.b16 %v3088
    %v3801 = vunpack.c.h.b16 %v3088
    %v3802 = vunpack.c.l.b16 %v3089
    %v3803 = vunpack.c.h.b16 %v3089
    %v3804 = vunpack.c.l.b16 %v3090
    %v3805 = vunpack.c.h.b16 %v3090
    %v3806 = vunpack.c.l.b16 %v3091
    %v3807 = vunpack.c.h.b16 %v3091
    %v3808 = vunpack.c.l.b16 %v3092
    %v3809 = vunpack.c.h.b16 %v3092
    %v3810 = vunpack.c.l.b16 %v3093
    %v3811 = vunpack.c.h.b16 %v3093
    %v3812 = vunpack.c.l.b16 %v3094
    %v3813 = vunpack.c.h.b16 %v3094
    %v3814 = vunpack.c.l.b16 %v3095
    %v3815 = vunpack.c.h.b16 %v3095
    %v3816 = vunpack.c.l.b16 %v3096
    %v3817 = vunpack.c.h.b16 %v3096
    %v3818 = vunpack.c.l.b16 %v3097
    %v3819 = vunpack.c.h.b16 %v3097
    %v3820 = vunpack.c.l.b16 %v3098
    %v3821 = vunpack.c.h.b16 %v3098
    %v3822 = vunpack.c.l.b16 %v3099
    %v3823 = vunpack.c.h.b16 %v3099
    %v3824 = vunpack.c.l.b16 %v3100
    %v3825 = vunpack.c.h.b16 %v3100
    %v3826 = vunpack.c.l.b16 %v3101
    %v3827 = vunpack.c.h.b16 %v3101
    %v3828 = vunpack.c.l.b16 %v3102
    %v3829 = vunpack.c.h.b16 %v3102
    %v3830 = vunpack.c.l.b16 %v3103
    %v3831 = vunpack.c.h.b16 %v3103
    %v3832 = vunpack.c.l.b16 %v3104
    %v3833 = vunpack.c.h.b16 %v3104
    %v3834 = vunpack.c.l.b16 %v3105
    %v3835 = vunpack.c.h.b16 %v3105
    %v3836 = vunpack.c.l.b16 %v3106
    %v3837 = vunpack.c.h.b16 %v3106
    %v3838 = vunpack.c.l.b16 %v3107
    %v3839 = vunpack.c.h.b16 %v3107
    %v3840 = vunpack.c.l.b16 %v3108
    %v3841 = vunpack.c.h.b16 %v3108
    %v3842 = vunpack.c.l.b16 %v3109
    %v3843 = vunpack.c.h.b16 %v3109
    %v3844 = vunpack.c.l.b16 %v3110
    %v3845 = vunpack.c.h.b16 %v3110
    %v3846 = vunpack.c.l.b16 %v3111
    %v3847 = vunpack.c.h.b16 %v3111
    %v3848 = vunpack.c.l.b16 %v3112
    %v3849 = vunpack.c.h.b16 %v3112
    %v3850 = vunpack.c.l.b16 %v3113
    %v3851 = vunpack.c.h.b16 %v3113
    %v3852 = vunpack.c.l.b16 %v3114
    %v3853 = vunpack.c.h.b16 %v3114
    %v3854 = vunpack.c.l.b16 %v3115
    %v3855 = vunpack.c.h.b16 %v3115
    %v3856 = vunpack.c.l.b16 %v3116
    %v3857 = vunpack.c.h.b16 %v3116
    %v3858 = vunpack.c.l.b16 %v3117
    %v3859 = vunpack.c.h.b16 %v3117
    %v3860 = vunpack.c.l.b16 %v3118
    %v3861 = vunpack.c.h.b16 %v3118
    %v3862 = vunpack.c.l.b16 %v3119
    %v3863 = vunpack.c.h.b16 %v3119
    %v3864 = vunpack.c.l.b16 %v3120
    %v3865 = vunpack.c.h.b16 %v3120
    %v3866 = vunpack.c.l.b16 %v3121
    %v3867 = vunpack.c.h.b16 %v3121
    %v3868 = vunpack.c.l.b16 %v3122
    %v3869 = vunpack.c.h.b16 %v3122
    %v3870 = vunpack.c.l.b16 %v3123
    %v3871 = vunpack.c.h.b16 %v3123
    %v3872 = vunpack.c.l.b16 %v3124
    %v3873 = vunpack.c.h.b16 %v3124
    %v3874 = vunpack.c.l.b16 %v3125
    %v3875 = vunpack.c.h.b16 %v3125
    %v3876 = vunpack.c.l.b16 %v3126
    %v3877 = vunpack.c.h.b16 %v3126
    %v3878 = vunpack.c.l.b16 %v3127
    %v3879 = vunpack.c.h.b16 %v3127
    %v3880 = vunpack.c.l.b16 %v3128
    %v3881 = vunpack.c.h.b16 %v3128
    %v3882 = vunpack.c.l.b16 %v3129
    %v3883 = vunpack.c.h.b16 %v3129
    %v3884 = vunpack.c.l.b16 %v3130
    %v3885 = vunpack.c.h.b16 %v3130
    %v3886 = vunpack.c.l.b16 %v3131
    %v3887 = vunpack.c.h.b16 %v3131
    %v3888 = vunpack.c.l.b16 %v3132
    %v3889 = vunpack.c.h.b16 %v3132
    %v3890 = vunpack.c.l.b16 %v3133
    %v3891 = vunpack.c.h.b16 %v3133
    %v3892 = vunpack.c.l.b16 %v3134
    %v3893 = vunpack.c.h.b16 %v3134
    %v3894 = vunpack.c.l.b16 %v3135
    %v3895 = vunpack.c.h.b16 %v3135
    %v3896 = vunpack.c.l.b16 %v3136
    %v3897 = vunpack.c.h.b16 %v3136
    %v3898 = vunpack.c.l.b16 %v3137
    %v3899 = vunpack.c.h.b16 %v3137
    %v3900 = vunpack.c.l.b16 %v3138
    %v3901 = vunpack.c.h.b16 %v3138
    %v3902 = vunpack.c.l.b16 %v3139
    %v3903 = vunpack.c.h.b16 %v3139
    %v3904 = vunpack.c.l.b16 %v3140
    %v3905 = vunpack.c.h.b16 %v3140
    %v3906 = vunpack.c.l.b16 %v3141
    %v3907 = vunpack.c.h.b16 %v3141
    %v3908 = vunpack.c.l.b16 %v3142
    %v3909 = vunpack.c.h.b16 %v3142
    %v3910 = vunpack.c.l.b16 %v3143
    %v3911 = vunpack.c.h.b16 %v3143
    %v3912 = vunpack.c.l.b16 %v3144
    %v3913 = vunpack.c.h.b16 %v3144
    %v3914 = vunpack.c.l.b16 %v3145
    %v3915 = vunpack.c.h.b16 %v3145
    %v3916 = vunpack.c.l.b16 %v3146
    %v3917 = vunpack.c.h.b16 %v3146
    %v3918 = vunpack.c.l.b16 %v3147
    %v3919 = vunpack.c.h.b16 %v3147
    %v3920 = vunpack.c.l.b16 %v3148
    %v3921 = vunpack.c.h.b16 %v3148
    %v3922 = vunpack.c.l.b16 %v3149
    %v3923 = vunpack.c.h.b16 %v3149
    %v3924 = vunpack.c.l.b16 %v3150
    %v3925 = vunpack.c.h.b16 %v3150
    %v3926 = vunpack.c.l.b16 %v3151
    %v3927 = vunpack.c.h.b16 %v3151
    %v3928 = vunpack.c.l.b16 %v3152
    %v3929 = vunpack.c.h.b16 %v3152
    %v3930 = vunpack.c.l.b16 %v3153
    %v3931 = vunpack.c.h.b16 %v3153
    %v3932 = vpack.c.b16 %v3424, %v3420
    %v3933 = vpack.c.b16 %v3425, %v3421
    %v3934 = vpack.c.b16 %v3426, %v3422
    %v3935 = vpack.c.b16 %v3427, %v3423
    %v3936 = vpack.c.b16 %v3432, %v3428
    %v3937 = vpack.c.b16 %v3433, %v3429
    %v3938 = vpack.c.b16 %v3434, %v3430
    %v3939 = vpack.c.b16 %v3435, %v3431
    %v3940 = vpack.c.b16 %v3440, %v3436
    %v3941 = vpack.c.b16 %v3441, %v3437
    %v3942 = vpack.c.b16 %v3442, %v3438
    %v3943 = vpack.c.b16 %v3443, %v3439
    %v3944 = vpack.c.b16 %v3448, %v3444
    %v3945 = vpack.c.b16 %v3449, %v3445
    %v3946 = vpack.c.b16 %v3450, %v3446
    %v3947 = vpack.c.b16 %v3451, %v3447
    %v3948 = vpack.c.b16 %v3456, %v3452
    %v3949 = vpack.c.b16 %v3457, %v3453
    %v3950 = vpack.c.b16 %v3458, %v3454
    %v3951 = vpack.c.b16 %v3459, %v3455
    %v3952 = vpack.c.b16 %v3464, %v3460
    %v3953 = vpack.c.b16 %v3465, %v3461
    %v3954 = vpack.c.b16 %v3466, %v3462
    %v3955 = vpack.c.b16 %v3467, %v3463
    %v3956 = vpack.c.b16 %v3472, %v3468
    %v3957 = vpack.c.b16 %v3473, %v3469
    %v3958 = vpack.c.b16 %v3474, %v3470
    %v3959 = vpack.c.b16 %v3475, %v3471
    %v3960 = vpack.c.b16 %v3480, %v3476
    %v3961 = vpack.c.b16 %v3481, %v3477
    %v3962 = vpack.c.b16 %v3482, %v3478
    %v3963 = vpack.c.b16 %v3483, %v3479
    %v3964 = vpack.c.b16 %v3488, %v3484
    %v3965 = vpack.c.b16 %v3489, %v3485
    %v3966 = vpack.c.b16 %v3490, %v3486
    %v3967 = vpack.c.b16 %v3491, %v3487
    %v3968 = vpack.c.b16 %v3496, %v3492
    %v3969 = vpack.c.b16 %v3497, %v3493
    %v3970 = vpack.c.b16 %v3498, %v3494
    %v3971 = vpack.c.b16 %v3499, %v3495
    %v3972 = vpack.c.b16 %v3504, %v3500
    %v3973 = vpack.c.b16 %v3505, %v3501
    %v3974 = vpack.c.b16 %v3506, %v3502
    %v3975 = vpack.c.b16 %v3507, %v3503
    %v3976 = vpack.c.b16 %v3512, %v3508
    %v3977 = vpack.c.b16 %v3513, %v3509
    %v3978 = vpack.c.b16 %v3514, %v3510
    %v3979 = vpack.c.b16 %v3515, %v3511
    %v3980 = vpack.c.b16 %v3520, %v3516
    %v3981 = vpack.c.b16 %v3521, %v3517
    %v3982 = vpack.c.b16 %v3522, %v3518
    %v3983 = vpack.c.b16 %v3523, %v3519
    %v3984 = vpack.c.b16 %v3528, %v3524
    %v3985 = vpack.c.b16 %v3529, %v3525
    %v3986 = vpack.c.b16 %v3530, %v3526
    %v3987 = vpack.c.b16 %v3531, %v3527
    %v3988 = vpack.c.b16 %v3536, %v3532
    %v3989 = vpack.c.b16 %v3537, %v3533
    %v3990 = vpack.c.b16 %v3538, %v3534
    %v3991 = vpack.c.b16 %v3539, %v3535
    %v3992 = vpack.c.b16 %v3544, %v3540
    %v3993 = vpack.c.b16 %v3545, %v3541
    %v3994 = vpack.c.b16 %v3546, %v3542
    %v3995 = vpack.c.b16 %v3547, %v3543
    %v3996 = vpack.c.b16 %v3552, %v3548
    %v3997 = vpack.c.b16 %v3553, %v3549
    %v3998 = vpack.c.b16 %v3554, %v3550
    %v3999 = vpack.c.b16 %v3555, %v3551
    %v4000 = vpack.c.b16 %v3560, %v3556
    %v4001 = vpack.c.b16 %v3561, %v3557
    %v4002 = vpack.c.b16 %v3562, %v3558
    %v4003 = vpack.c.b16 %v3563, %v3559
    %v4004 = vpack.c.b16 %v3568, %v3564
    %v4005 = vpack.c.b16 %v3569, %v3565
    %v4006 = vpack.c.b16 %v3570, %v3566
    %v4007 = vpack.c.b16 %v3571, %v3567
    %v4008 = vpack.c.b16 %v3576, %v3572
    %v4009 = vpack.c.b16 %v3577, %v3573
    %v4010 = vpack.c.b16 %v3578, %v3574
    %v4011 = vpack.c.b16 %v3579, %v3575
    %v4012 = vpack.c.b16 %v3584, %v3580
    %v4013 = vpack.c.b16 %v3585, %v3581
    %v4014 = vpack.c.b16 %v3586, %v3582
    %v4015 = vpack.c.b16 %v3587, %v3583
    %v4016 = vpack.c.b16 %v3592, %v3588
    %v4017 = vpack.c.b16 %v3593, %v3589
    %v4018 = vpack.c.b16 %v3594, %v3590
    %v4019 = vpack.c.b16 %v3595, %v3591
    %v4020 = vpack.c.b16 %v3600, %v3596
    %v4021 = vpack.c.b16 %v3601, %v3597
    %v4022 = vpack.c.b16 %v3602, %v3598
    %v4023 = vpack.c.b16 %v3603, %v3599
    %v4024 = vpack.c.b16 %v3608, %v3604
    %v4025 = vpack.c.b16 %v3609, %v3605
    %v4026 = vpack.c.b16 %v3610, %v3606
    %v4027 = vpack.c.b16 %v3611, %v3607
    %v4028 = vpack.c.b16 %v3616, %v3612
    %v4029 = vpack.c.b16 %v3617, %v3613
    %v4030 = vpack.c.b16 %v3618, %v3614
    %v4031 = vpack.c.b16 %v3619, %v3615
    %v4032 = vpack.c.b16 %v3624, %v3620
    %v4033 = vpack.c.b16 %v3625, %v3621
    %v4034 = vpack.c.b16 %v3626, %v3622
    %v4035 = vpack.c.b16 %v3627, %v3623
    %v4036 = vpack.c.b16 %v3632, %v3628
    %v4037 = vpack.c.b16 %v3633, %v3629
    %v4038 = vpack.c.b16 %v3634, %v3630
    %v4039 = vpack.c.b16 %v3635, %v3631
    %v4040 = vpack.c.b16 %v3640, %v3636
    %v4041 = vpack.c.b16 %v3641, %v3637
    %v4042 = vpack.c.b16 %v3642, %v3638
    %v4043 = vpack.c.b16 %v3643, %v3639
    %v4044 = vpack.c.b16 %v3648, %v3644
    %v4045 = vpack.c.b16 %v3649, %v3645
    %v4046 = vpack.c.b16 %v3650, %v3646
    %v4047 = vpack.c.b16 %v3651, %v3647
    %v4048 = vpack.c.b16 %v3656, %v3652
    %v4049 = vpack.c.b16 %v3657, %v3653
    %v4050 = vpack.c.b16 %v3658, %v3654
    %v4051 = vpack.c.b16 %v3659, %v3655
    %v4052 = vpack.c.b16 %v3664, %v3660
    %v4053 = vpack.c.b16 %v3665, %v3661
    %v4054 = vpack.c.b16 %v3666, %v3662
    %v4055 = vpack.c.b16 %v3667, %v3663
    %v4056 = vpack.c.b16 %v3672, %v3668
    %v4057 = vpack.c.b16 %v3673, %v3669
    %v4058 = vpack.c.b16 %v3674, %v3670
    %v4059 = vpack.c.b16 %v3675, %v3671
    %v4060 = vpack.c.b16 %v3680, %v3676
    %v4061 = vpack.c.b16 %v3681, %v3677
    %v4062 = vpack.c.b16 %v3682, %v3678
    %v4063 = vpack.c.b16 %v3683, %v3679
    %v4064 = vpack.c.b16 %v3688, %v3684
    %v4065 = vpack.c.b16 %v3689, %v3685
    %v4066 = vpack.c.b16 %v3690, %v3686
    %v4067 = vpack.c.b16 %v3691, %v3687
    %v4068 = vpack.c.b16 %v3696, %v3692
    %v4069 = vpack.c.b16 %v3697, %v3693
    %v4070 = vpack.c.b16 %v3698, %v3694
    %v4071 = vpack.c.b16 %v3699, %v3695
    %v4072 = vpack.c.b16 %v3704, %v3700
    %v4073 = vpack.c.b16 %v3705, %v3701
    %v4074 = vpack.c.b16 %v3706, %v3702
    %v4075 = vpack.c.b16 %v3707, %v3703
    %v4076 = vpack.c.b16 %v3712, %v3708
    %v4077 = vpack.c.b16 %v3713, %v3709
    %v4078 = vpack.c.b16 %v3714, %v3710
    %v4079 = vpack.c.b16 %v3715, %v3711
    %v4080 = vpack.c.b16 %v3720, %v3716
    %v4081 = vpack.c.b16 %v3721, %v3717
    %v4082 = vpack.c.b16 %v3722, %v3718
    %v4083 = vpack.c.b16 %v3723, %v3719
    %v4084 = vpack.c.b16 %v3728, %v3724
    %v4085 = vpack.c.b16 %v3729, %v3725
    %v4086 = vpack.c.b16 %v3730, %v3726
    %v4087 = vpack.c.b16 %v3731, %v3727
    %v4088 = vpack.c.b16 %v3736, %v3732
    %v4089 = vpack.c.b16 %v3737, %v3733
    %v4090 = vpack.c.b16 %v3738, %v3734
    %v4091 = vpack.c.b16 %v3739, %v3735
    %v4092 = vpack.c.b16 %v3744, %v3740
    %v4093 = vpack.c.b16 %v3745, %v3741
    %v4094 = vpack.c.b16 %v3746, %v3742
    %v4095 = vpack.c.b16 %v3747, %v3743
    %v4096 = vpack.c.b16 %v3752, %v3748
    %v4097 = vpack.c.b16 %v3753, %v3749
    %v4098 = vpack.c.b16 %v3754, %v3750
    %v4099 = vpack.c.b16 %v3755, %v3751
    %v4100 = vpack.c.b16 %v3760, %v3756
    %v4101 = vpack.c.b16 %v3761, %v3757
    %v4102 = vpack.c.b16 %v3762, %v3758
    %v4103 = vpack.c.b16 %v3763, %v3759
    %v4104 = vpack.c.b16 %v3768, %v3764
    %v4105 = vpack.c.b16 %v3769, %v3765
    %v4106 = vpack.c.b16 %v3770, %v3766
    %v4107 = vpack.c.b16 %v3771, %v3767
    %v4108 = vpack.c.b16 %v3776, %v3772
    %v4109 = vpack.c.b16 %v3777, %v3773
    %v4110 = vpack.c.b16 %v3778, %v3774
    %v4111 = vpack.c.b16 %v3779, %v3775
    %v4112 = vpack.c.b16 %v3784, %v3780
    %v4113 = vpack.c.b16 %v3785, %v3781
    %v4114 = vpack.c.b16 %v3786, %v3782
    %v4115 = vpack.c.b16 %v3787, %v3783
    %v4116 = vpack.c.b16 %v3792, %v3788
    %v4117 = vpack.c.b16 %v3793, %v3789
    %v4118 = vpack.c.b16 %v3794, %v3790
    %v4119 = vpack.c.b16 %v3795, %v3791
    %v4120 = vpack.c.b16 %v3800, %v3796
    %v4121 = vpack.c.b16 %v3801, %v3797
    %v4122 = vpack.c.b16 %v3802, %v3798
    %v4123 = vpack.c.b16 %v3803, %v3799
    %v4124 = vpack.c.b16 %v3808, %v3804
    %v4125 = vpack.c.b16 %v3809, %v3805
    %v4126 = vpack.c.b16 %v3810, %v3806
    %v4127 = vpack.c.b16 %v3811, %v3807
    %v4128 = vpack.c.b16 %v3816, %v3812
    %v4129 = vpack.c.b16 %v3817, %v3813
    %v4130 = vpack.c.b16 %v3818, %v3814
    %v4131 = vpack.c.b16 %v3819, %v3815
    %v4132 = vpack.c.b16 %v3824, %v3820
    %v4133 = vpack.c.b16 %v3825, %v3821
    %v4134 = vpack.c.b16 %v3826, %v3822
    %v4135 = vpack.c.b16 %v3827, %v3823
    %v4136 = vpack.c.b16 %v3832, %v3828
    %v4137 = vpack.c.b16 %v3833, %v3829
    %v4138 = vpack.c.b16 %v3834, %v3830
    %v4139 = vpack.c.b16 %v3835, %v3831
    %v4140 = vpack.c.b16 %v3840, %v3836
    %v4141 = vpack.c.b16 %v3841, %v3837
    %v4142 = vpack.c.b16 %v3842, %v3838
    %v4143 = vpack.c.b16 %v3843, %v3839
    %v4144 = vpack.c.b16 %v3848, %v3844
    %v4145 = vpack.c.b16 %v3849, %v3845
    %v4146 = vpack.c.b16 %v3850, %v3846
    %v4147 = vpack.c.b16 %v3851, %v3847
    %v4148 = vpack.c.b16 %v3856, %v3852
    %v4149 = vpack.c.b16 %v3857, %v3853
    %v4150 = vpack.c.b16 %v3858, %v3854
    %v4151 = vpack.c.b16 %v3859, %v3855
    %v4152 = vpack.c.b16 %v3864, %v3860
    %v4153 = vpack.c.b16 %v3865, %v3861
    %v4154 = vpack.c.b16 %v3866, %v3862
    %v4155 = vpack.c.b16 %v3867, %v3863
    %v4156 = vpack.c.b16 %v3872, %v3868
    %v4157 = vpack.c.b16 %v3873, %v3869
    %v4158 = vpack.c.b16 %v3874, %v3870
    %v4159 = vpack.c.b16 %v3875, %v3871
    %v4160 = vpack.c.b16 %v3880, %v3876
    %v4161 = vpack.c.b16 %v3881, %v3877
    %v4162 = vpack.c.b16 %v3882, %v3878
    %v4163 = vpack.c.b16 %v3883, %v3879
    %v4164 = vpack.c.b16 %v3888, %v3884
    %v4165 = vpack.c.b16 %v3889, %v3885
    %v4166 = vpack.c.b16 %v3890, %v3886
    %v4167 = vpack.c.b16 %v3891, %v3887
    %v4168 = vpack.c.b16 %v3896, %v3892
    %v4169 = vpack.c.b16 %v3897, %v3893
    %v4170 = vpack.c.b16 %v3898, %v3894
    %v4171 = vpack.c.b16 %v3899, %v3895
    %v4172 = vpack.c.b16 %v3904, %v3900
    %v4173 = vpack.c.b16 %v3905, %v3901
    %v4174 = vpack.c.b16 %v3906, %v3902
    %v4175 = vpack.c.b16 %v3907, %v3903
    %v4176 = vpack.c.b16 %v3912, %v3908
    %v4177 = vpack.c.b16 %v3913, %v3909
    %v4178 = vpack.c.b16 %v3914, %v3910
    %v4179 = vpack.c.b16 %v3915, %v3911
    %v4180 = vpack.c.b16 %v3920, %v3916
    %v4181 = vpack.c.b16 %v3921, %v3917
    %v4182 = vpack.c.b16 %v3922, %v3918
    %v4183 = vpack.c.b16 %v3923, %v3919
    %v4184 = vpack.c.b16 %v3928, %v3924
    %v4185 = vpack.c.b16 %v3929, %v3925
    %v4186 = vpack.c.b16 %v3930, %v3926
    %v4187 = vpack.c.b16 %v3931, %v3927
    %4444 = vmatpush.bf16.msra.mxu0 %v3960
    %4445 = vmatpush.bf16.msra.mxu0 %v3956
    %4446 = vmatpush.bf16.msra.mxu0 %v3952
    %4447 = vmatpush.bf16.msra.mxu0 %v3948
    %4448 = vmatpush.bf16.msra.mxu0 %v3944
    %4449 = vmatpush.bf16.msra.mxu0 %v3940
    %4450 = vmatpush.bf16.msra.mxu0 %v3936
    %4451 = vmatpush.bf16.msra.mxu0 %v3932
    %4452 = vmatmul.bf16.gmra.mxu0 %v2890
    %v4453 = vpop.f32.mrf.mxu0
    %v4454 = vadd.f32 %v3156, %v4453
    %v4455 = vpop.f32.mrf.mxu0
    %v4456 = vadd.f32 %v3156, %v4455
    %4457 = vdwg.mxu0
    %4458 = vmatpush.bf16.msra.mxu0 %v3992
    %4459 = vmatpush.bf16.msra.mxu0 %v3988
    %4460 = vmatpush.bf16.msra.mxu0 %v3984
    %4461 = vmatpush.bf16.msra.mxu0 %v3980
    %4462 = vmatpush.bf16.msra.mxu0 %v3976
    %4463 = vmatpush.bf16.msra.mxu0 %v3972
    %4464 = vmatpush.bf16.msra.mxu0 %v3968
    %4465 = vmatpush.bf16.msra.mxu0 %v3964
    %4466 = vmatmul.bf16.gmra.mxu0 %v2891
    %v4467 = vpop.f32.mrf.mxu0
    %v4468 = vadd.f32 %v4454, %v4467
    %v4469 = vpop.f32.mrf.mxu0
    %v4470 = vadd.f32 %v4456, %v4469
    %4471 = vdwg.mxu0
    %4472 = vmatpush.bf16.msra.mxu0 %v4024
    %4473 = vmatpush.bf16.msra.mxu0 %v4020
    %4474 = vmatpush.bf16.msra.mxu0 %v4016
    %4475 = vmatpush.bf16.msra.mxu0 %v4012
    %4476 = vmatpush.bf16.msra.mxu0 %v4008
    %4477 = vmatpush.bf16.msra.mxu0 %v4004
    %4478 = vmatpush.bf16.msra.mxu0 %v4000
    %4479 = vmatpush.bf16.msra.mxu0 %v3996
    %4480 = vmatmul.bf16.gmra.mxu0 %v2892
    %v4481 = vpop.f32.mrf.mxu0
    %v4482 = vadd.f32 %v4468, %v4481
    %v4483 = vpop.f32.mrf.mxu0
    %v4484 = vadd.f32 %v4470, %v4483
    %4485 = vdwg.mxu0
    %4486 = vmatpush.bf16.msra.mxu0 %v4056
    %4487 = vmatpush.bf16.msra.mxu0 %v4052
    %4488 = vmatpush.bf16.msra.mxu0 %v4048
    %4489 = vmatpush.bf16.msra.mxu0 %v4044
    %4490 = vmatpush.bf16.msra.mxu0 %v4040
    %4491 = vmatpush.bf16.msra.mxu0 %v4036
    %4492 = vmatpush.bf16.msra.mxu0 %v4032
    %4493 = vmatpush.bf16.msra.mxu0 %v4028
    %4494 = vmatmul.bf16.gmra.mxu0 %v2893
    %v4495 = vpop.f32.mrf.mxu0
    %v4496 = vadd.f32 %v4482, %v4495
    %v4497 = vpop.f32.mrf.mxu0
    %v4498 = vadd.f32 %v4484, %v4497
    %4499 = vdwg.mxu0
    %4500 = vmatpush.bf16.msra.mxu0 %v4088
    %4501 = vmatpush.bf16.msra.mxu0 %v4084
    %4502 = vmatpush.bf16.msra.mxu0 %v4080
    %4503 = vmatpush.bf16.msra.mxu0 %v4076
    %4504 = vmatpush.bf16.msra.mxu0 %v4072
    %4505 = vmatpush.bf16.msra.mxu0 %v4068
    %4506 = vmatpush.bf16.msra.mxu0 %v4064
    %4507 = vmatpush.bf16.msra.mxu0 %v4060
    %4508 = vmatmul.bf16.gmra.mxu0 %v2894
    %v4509 = vpop.f32.mrf.mxu0
    %v4510 = vadd.f32 %v4496, %v4509
    %v4511 = vpop.f32.mrf.mxu0
    %v4512 = vadd.f32 %v4498, %v4511
    %4513 = vdwg.mxu0
    %4514 = vmatpush.bf16.msra.mxu0 %v4120
    %4515 = vmatpush.bf16.msra.mxu0 %v4116
    %4516 = vmatpush.bf16.msra.mxu0 %v4112
    %4517 = vmatpush.bf16.msra.mxu0 %v4108
    %4518 = vmatpush.bf16.msra.mxu0 %v4104
    %4519 = vmatpush.bf16.msra.mxu0 %v4100
    %4520 = vmatpush.bf16.msra.mxu0 %v4096
    %4521 = vmatpush.bf16.msra.mxu0 %v4092
    %4522 = vmatmul.bf16.gmra.mxu0 %v2895
    %v4523 = vpop.f32.mrf.mxu0
    %v4524 = vadd.f32 %v4510, %v4523
    %v4525 = vpop.f32.mrf.mxu0
    %v4526 = vadd.f32 %v4512, %v4525
    %4527 = vdwg.mxu0
    %4528 = vmatpush.bf16.msra.mxu0 %v4152
    %4529 = vmatpush.bf16.msra.mxu0 %v4148
    %4530 = vmatpush.bf16.msra.mxu0 %v4144
    %4531 = vmatpush.bf16.msra.mxu0 %v4140
    %4532 = vmatpush.bf16.msra.mxu0 %v4136
    %4533 = vmatpush.bf16.msra.mxu0 %v4132
    %4534 = vmatpush.bf16.msra.mxu0 %v4128
    %4535 = vmatpush.bf16.msra.mxu0 %v4124
    %4536 = vmatmul.bf16.gmra.mxu0 %v2896
    %v4537 = vpop.f32.mrf.mxu0
    %v4538 = vadd.f32 %v4524, %v4537
    %v4539 = vpop.f32.mrf.mxu0
    %v4540 = vadd.f32 %v4526, %v4539
    %4541 = vdwg.mxu0
    %4542 = vmatpush.bf16.msra.mxu0 %v4184
    %4543 = vmatpush.bf16.msra.mxu0 %v4180
    %4544 = vmatpush.bf16.msra.mxu0 %v4176
    %4545 = vmatpush.bf16.msra.mxu0 %v4172
    %4546 = vmatpush.bf16.msra.mxu0 %v4168
    %4547 = vmatpush.bf16.msra.mxu0 %v4164
    %4548 = vmatpush.bf16.msra.mxu0 %v4160
    %4549 = vmatpush.bf16.msra.mxu0 %v4156
    %4550 = vmatmul.bf16.gmra.mxu0 %v2897
    %v4551 = vpop.f32.mrf.mxu0
    %v4552 = vadd.f32 %v4538, %v4551
    %v4553 = vpop.f32.mrf.mxu0
    %v4554 = vadd.f32 %v4540, %v4553
    %4555 = vdwg.mxu0
    %4556 = vmatpush.bf16.msra.mxu0 %v3961
    %4557 = vmatpush.bf16.msra.mxu0 %v3957
    %4558 = vmatpush.bf16.msra.mxu0 %v3953
    %4559 = vmatpush.bf16.msra.mxu0 %v3949
    %4560 = vmatpush.bf16.msra.mxu0 %v3945
    %4561 = vmatpush.bf16.msra.mxu0 %v3941
    %4562 = vmatpush.bf16.msra.mxu0 %v3937
    %4563 = vmatpush.bf16.msra.mxu0 %v3933
    %4564 = vmatmul.bf16.gmra.mxu0 %v2890
    %v4565 = vpop.f32.mrf.mxu0
    %v4566 = vadd.f32 %v3157, %v4565
    %v4567 = vpop.f32.mrf.mxu0
    %v4568 = vadd.f32 %v3157, %v4567
    %4569 = vdwg.mxu0
    %4570 = vmatpush.bf16.msra.mxu0 %v3993
    %4571 = vmatpush.bf16.msra.mxu0 %v3989
    %4572 = vmatpush.bf16.msra.mxu0 %v3985
    %4573 = vmatpush.bf16.msra.mxu0 %v3981
    %4574 = vmatpush.bf16.msra.mxu0 %v3977
    %4575 = vmatpush.bf16.msra.mxu0 %v3973
    %4576 = vmatpush.bf16.msra.mxu0 %v3969
    %4577 = vmatpush.bf16.msra.mxu0 %v3965
    %4578 = vmatmul.bf16.gmra.mxu0 %v2891
    %v4579 = vpop.f32.mrf.mxu0
    %v4580 = vadd.f32 %v4566, %v4579
    %v4581 = vpop.f32.mrf.mxu0
    %v4582 = vadd.f32 %v4568, %v4581
    %4583 = vdwg.mxu0
    %4584 = vmatpush.bf16.msra.mxu0 %v4025
    %4585 = vmatpush.bf16.msra.mxu0 %v4021
    %4586 = vmatpush.bf16.msra.mxu0 %v4017
    %4587 = vmatpush.bf16.msra.mxu0 %v4013
    %4588 = vmatpush.bf16.msra.mxu0 %v4009
    %4589 = vmatpush.bf16.msra.mxu0 %v4005
    %4590 = vmatpush.bf16.msra.mxu0 %v4001
    %4591 = vmatpush.bf16.msra.mxu0 %v3997
    %4592 = vmatmul.bf16.gmra.mxu0 %v2892
    %v4593 = vpop.f32.mrf.mxu0
    %v4594 = vadd.f32 %v4580, %v4593
    %v4595 = vpop.f32.mrf.mxu0
    %v4596 = vadd.f32 %v4582, %v4595
    %4597 = vdwg.mxu0
    %4598 = vmatpush.bf16.msra.mxu0 %v4057
    %4599 = vmatpush.bf16.msra.mxu0 %v4053
    %4600 = vmatpush.bf16.msra.mxu0 %v4049
    %4601 = vmatpush.bf16.msra.mxu0 %v4045
    %4602 = vmatpush.bf16.msra.mxu0 %v4041
    %4603 = vmatpush.bf16.msra.mxu0 %v4037
    %4604 = vmatpush.bf16.msra.mxu0 %v4033
    %4605 = vmatpush.bf16.msra.mxu0 %v4029
    %4606 = vmatmul.bf16.gmra.mxu0 %v2893
    %v4607 = vpop.f32.mrf.mxu0
    %v4608 = vadd.f32 %v4594, %v4607
    %v4609 = vpop.f32.mrf.mxu0
    %v4610 = vadd.f32 %v4596, %v4609
    %4611 = vdwg.mxu0
    %4612 = vmatpush.bf16.msra.mxu0 %v4089
    %4613 = vmatpush.bf16.msra.mxu0 %v4085
    %4614 = vmatpush.bf16.msra.mxu0 %v4081
    %4615 = vmatpush.bf16.msra.mxu0 %v4077
    %4616 = vmatpush.bf16.msra.mxu0 %v4073
    %4617 = vmatpush.bf16.msra.mxu0 %v4069
    %4618 = vmatpush.bf16.msra.mxu0 %v4065
    %4619 = vmatpush.bf16.msra.mxu0 %v4061
    %4620 = vmatmul.bf16.gmra.mxu0 %v2894
    %v4621 = vpop.f32.mrf.mxu0
    %v4622 = vadd.f32 %v4608, %v4621
    %v4623 = vpop.f32.mrf.mxu0
    %v4624 = vadd.f32 %v4610, %v4623
    %4625 = vdwg.mxu0
    %4626 = vmatpush.bf16.msra.mxu0 %v4121
    %4627 = vmatpush.bf16.msra.mxu0 %v4117
    %4628 = vmatpush.bf16.msra.mxu0 %v4113
    %4629 = vmatpush.bf16.msra.mxu0 %v4109
    %4630 = vmatpush.bf16.msra.mxu0 %v4105
    %4631 = vmatpush.bf16.msra.mxu0 %v4101
    %4632 = vmatpush.bf16.msra.mxu0 %v4097
    %4633 = vmatpush.bf16.msra.mxu0 %v4093
    %4634 = vmatmul.bf16.gmra.mxu0 %v2895
    %v4635 = vpop.f32.mrf.mxu0
    %v4636 = vadd.f32 %v4622, %v4635
    %v4637 = vpop.f32.mrf.mxu0
    %v4638 = vadd.f32 %v4624, %v4637
    %4639 = vdwg.mxu0
    %4640 = vmatpush.bf16.msra.mxu0 %v4153
    %4641 = vmatpush.bf16.msra.mxu0 %v4149
    %4642 = vmatpush.bf16.msra.mxu0 %v4145
    %4643 = vmatpush.bf16.msra.mxu0 %v4141
    %4644 = vmatpush.bf16.msra.mxu0 %v4137
    %4645 = vmatpush.bf16.msra.mxu0 %v4133
    %4646 = vmatpush.bf16.msra.mxu0 %v4129
    %4647 = vmatpush.bf16.msra.mxu0 %v4125
    %4648 = vmatmul.bf16.gmra.mxu0 %v2896
    %v4649 = vpop.f32.mrf.mxu0
    %v4650 = vadd.f32 %v4636, %v4649
    %v4651 = vpop.f32.mrf.mxu0
    %v4652 = vadd.f32 %v4638, %v4651
    %4653 = vdwg.mxu0
    %4654 = vmatpush.bf16.msra.mxu0 %v4185
    %4655 = vmatpush.bf16.msra.mxu0 %v4181
    %4656 = vmatpush.bf16.msra.mxu0 %v4177
    %4657 = vmatpush.bf16.msra.mxu0 %v4173
    %4658 = vmatpush.bf16.msra.mxu0 %v4169
    %4659 = vmatpush.bf16.msra.mxu0 %v4165
    %4660 = vmatpush.bf16.msra.mxu0 %v4161
    %4661 = vmatpush.bf16.msra.mxu0 %v4157
    %4662 = vmatmul.bf16.gmra.mxu0 %v2897
    %v4663 = vpop.f32.mrf.mxu0
    %v4664 = vadd.f32 %v4650, %v4663
    %v4665 = vpop.f32.mrf.mxu0
    %v4666 = vadd.f32 %v4652, %v4665
    %4667 = vdwg.mxu0
    %4668 = vmatpush.bf16.msra.mxu0 %v3962
    %4669 = vmatpush.bf16.msra.mxu0 %v3958
    %4670 = vmatpush.bf16.msra.mxu0 %v3954
    %4671 = vmatpush.bf16.msra.mxu0 %v3950
    %4672 = vmatpush.bf16.msra.mxu0 %v3946
    %4673 = vmatpush.bf16.msra.mxu0 %v3942
    %4674 = vmatpush.bf16.msra.mxu0 %v3938
    %4675 = vmatpush.bf16.msra.mxu0 %v3934
    %4676 = vmatmul.bf16.gmra.mxu0 %v2890
    %v4677 = vpop.f32.mrf.mxu0
    %v4678 = vadd.f32 %v3158, %v4677
    %v4679 = vpop.f32.mrf.mxu0
    %v4680 = vadd.f32 %v3158, %v4679
    %4681 = vdwg.mxu0
    %4682 = vmatpush.bf16.msra.mxu0 %v3994
    %4683 = vmatpush.bf16.msra.mxu0 %v3990
    %4684 = vmatpush.bf16.msra.mxu0 %v3986
    %4685 = vmatpush.bf16.msra.mxu0 %v3982
    %4686 = vmatpush.bf16.msra.mxu0 %v3978
    %4687 = vmatpush.bf16.msra.mxu0 %v3974
    %4688 = vmatpush.bf16.msra.mxu0 %v3970
    %4689 = vmatpush.bf16.msra.mxu0 %v3966
    %4690 = vmatmul.bf16.gmra.mxu0 %v2891
    %v4691 = vpop.f32.mrf.mxu0
    %v4692 = vadd.f32 %v4678, %v4691
    %v4693 = vpop.f32.mrf.mxu0
    %v4694 = vadd.f32 %v4680, %v4693
    %4695 = vdwg.mxu0
    %4696 = vmatpush.bf16.msra.mxu0 %v4026
    %4697 = vmatpush.bf16.msra.mxu0 %v4022
    %4698 = vmatpush.bf16.msra.mxu0 %v4018
    %4699 = vmatpush.bf16.msra.mxu0 %v4014
    %4700 = vmatpush.bf16.msra.mxu0 %v4010
    %4701 = vmatpush.bf16.msra.mxu0 %v4006
    %4702 = vmatpush.bf16.msra.mxu0 %v4002
    %4703 = vmatpush.bf16.msra.mxu0 %v3998
    %4704 = vmatmul.bf16.gmra.mxu0 %v2892
    %v4705 = vpop.f32.mrf.mxu0
    %v4706 = vadd.f32 %v4692, %v4705
    %v4707 = vpop.f32.mrf.mxu0
    %v4708 = vadd.f32 %v4694, %v4707
    %4709 = vdwg.mxu0
    %4710 = vmatpush.bf16.msra.mxu0 %v4058
    %4711 = vmatpush.bf16.msra.mxu0 %v4054
    %4712 = vmatpush.bf16.msra.mxu0 %v4050
    %4713 = vmatpush.bf16.msra.mxu0 %v4046
    %4714 = vmatpush.bf16.msra.mxu0 %v4042
    %4715 = vmatpush.bf16.msra.mxu0 %v4038
    %4716 = vmatpush.bf16.msra.mxu0 %v4034
    %4717 = vmatpush.bf16.msra.mxu0 %v4030
    %4718 = vmatmul.bf16.gmra.mxu0 %v2893
    %v4719 = vpop.f32.mrf.mxu0
    %v4720 = vadd.f32 %v4706, %v4719
    %v4721 = vpop.f32.mrf.mxu0
    %v4722 = vadd.f32 %v4708, %v4721
    %4723 = vdwg.mxu0
    %4724 = vmatpush.bf16.msra.mxu0 %v4090
    %4725 = vmatpush.bf16.msra.mxu0 %v4086
    %4726 = vmatpush.bf16.msra.mxu0 %v4082
    %4727 = vmatpush.bf16.msra.mxu0 %v4078
    %4728 = vmatpush.bf16.msra.mxu0 %v4074
    %4729 = vmatpush.bf16.msra.mxu0 %v4070
    %4730 = vmatpush.bf16.msra.mxu0 %v4066
    %4731 = vmatpush.bf16.msra.mxu0 %v4062
    %4732 = vmatmul.bf16.gmra.mxu0 %v2894
    %v4733 = vpop.f32.mrf.mxu0
    %v4734 = vadd.f32 %v4720, %v4733
    %v4735 = vpop.f32.mrf.mxu0
    %v4736 = vadd.f32 %v4722, %v4735
    %4737 = vdwg.mxu0
    %4738 = vmatpush.bf16.msra.mxu0 %v4122
    %4739 = vmatpush.bf16.msra.mxu0 %v4118
    %4740 = vmatpush.bf16.msra.mxu0 %v4114
    %4741 = vmatpush.bf16.msra.mxu0 %v4110
    %4742 = vmatpush.bf16.msra.mxu0 %v4106
    %4743 = vmatpush.bf16.msra.mxu0 %v4102
    %4744 = vmatpush.bf16.msra.mxu0 %v4098
    %4745 = vmatpush.bf16.msra.mxu0 %v4094
    %4746 = vmatmul.bf16.gmra.mxu0 %v2895
    %v4747 = vpop.f32.mrf.mxu0
    %v4748 = vadd.f32 %v4734, %v4747
    %v4749 = vpop.f32.mrf.mxu0
    %v4750 = vadd.f32 %v4736, %v4749
    %4751 = vdwg.mxu0
    %4752 = vmatpush.bf16.msra.mxu0 %v4154
    %4753 = vmatpush.bf16.msra.mxu0 %v4150
    %4754 = vmatpush.bf16.msra.mxu0 %v4146
    %4755 = vmatpush.bf16.msra.mxu0 %v4142
    %4756 = vmatpush.bf16.msra.mxu0 %v4138
    %4757 = vmatpush.bf16.msra.mxu0 %v4134
    %4758 = vmatpush.bf16.msra.mxu0 %v4130
    %4759 = vmatpush.bf16.msra.mxu0 %v4126
    %4760 = vmatmul.bf16.gmra.mxu0 %v2896
    %v4761 = vpop.f32.mrf.mxu0
    %v4762 = vadd.f32 %v4748, %v4761
    %v4763 = vpop.f32.mrf.mxu0
    %v4764 = vadd.f32 %v4750, %v4763
    %4765 = vdwg.mxu0
    %4766 = vmatpush.bf16.msra.mxu0 %v4186
    %4767 = vmatpush.bf16.msra.mxu0 %v4182
    %4768 = vmatpush.bf16.msra.mxu0 %v4178
    %4769 = vmatpush.bf16.msra.mxu0 %v4174
    %4770 = vmatpush.bf16.msra.mxu0 %v4170
    %4771 = vmatpush.bf16.msra.mxu0 %v4166
    %4772 = vmatpush.bf16.msra.mxu0 %v4162
    %4773 = vmatpush.bf16.msra.mxu0 %v4158
    %4774 = vmatmul.bf16.gmra.mxu0 %v2897
    %v4775 = vpop.f32.mrf.mxu0
    %v4776 = vadd.f32 %v4762, %v4775
    %v4777 = vpop.f32.mrf.mxu0
    %v4778 = vadd.f32 %v4764, %v4777
    %4779 = vdwg.mxu0
    %4780 = vmatpush.bf16.msra.mxu0 %v3963
    %4781 = vmatpush.bf16.msra.mxu0 %v3959
    %4782 = vmatpush.bf16.msra.mxu0 %v3955
    %4783 = vmatpush.bf16.msra.mxu0 %v3951
    %4784 = vmatpush.bf16.msra.mxu0 %v3947
    %4785 = vmatpush.bf16.msra.mxu0 %v3943
    %4786 = vmatpush.bf16.msra.mxu0 %v3939
    %4787 = vmatpush.bf16.msra.mxu0 %v3935
    %4788 = vmatmul.bf16.gmra.mxu0 %v2890
    %v4789 = vpop.f32.mrf.mxu0
    %v4790 = vadd.f32 %v3159, %v4789
    %v4791 = vpop.f32.mrf.mxu0
    %v4792 = vadd.f32 %v3159, %v4791
    %4793 = vdwg.mxu0
    %4794 = vmatpush.bf16.msra.mxu0 %v3995
    %4795 = vmatpush.bf16.msra.mxu0 %v3991
    %4796 = vmatpush.bf16.msra.mxu0 %v3987
    %4797 = vmatpush.bf16.msra.mxu0 %v3983
    %4798 = vmatpush.bf16.msra.mxu0 %v3979
    %4799 = vmatpush.bf16.msra.mxu0 %v3975
    %4800 = vmatpush.bf16.msra.mxu0 %v3971
    %4801 = vmatpush.bf16.msra.mxu0 %v3967
    %4802 = vmatmul.bf16.gmra.mxu0 %v2891
    %v4803 = vpop.f32.mrf.mxu0
    %v4804 = vadd.f32 %v4790, %v4803
    %v4805 = vpop.f32.mrf.mxu0
    %v4806 = vadd.f32 %v4792, %v4805
    %4807 = vdwg.mxu0
    %4808 = vmatpush.bf16.msra.mxu0 %v4027
    %4809 = vmatpush.bf16.msra.mxu0 %v4023
    %4810 = vmatpush.bf16.msra.mxu0 %v4019
    %4811 = vmatpush.bf16.msra.mxu0 %v4015
    %4812 = vmatpush.bf16.msra.mxu0 %v4011
    %4813 = vmatpush.bf16.msra.mxu0 %v4007
    %4814 = vmatpush.bf16.msra.mxu0 %v4003
    %4815 = vmatpush.bf16.msra.mxu0 %v3999
    %4816 = vmatmul.bf16.gmra.mxu0 %v2892
    %v4817 = vpop.f32.mrf.mxu0
    %v4818 = vadd.f32 %v4804, %v4817
    %v4819 = vpop.f32.mrf.mxu0
    %v4820 = vadd.f32 %v4806, %v4819
    %4821 = vdwg.mxu0
    %4822 = vmatpush.bf16.msra.mxu0 %v4059
    %4823 = vmatpush.bf16.msra.mxu0 %v4055
    %4824 = vmatpush.bf16.msra.mxu0 %v4051
    %4825 = vmatpush.bf16.msra.mxu0 %v4047
    %4826 = vmatpush.bf16.msra.mxu0 %v4043
    %4827 = vmatpush.bf16.msra.mxu0 %v4039
    %4828 = vmatpush.bf16.msra.mxu0 %v4035
    %4829 = vmatpush.bf16.msra.mxu0 %v4031
    %4830 = vmatmul.bf16.gmra.mxu0 %v2893
    %v4831 = vpop.f32.mrf.mxu0
    %v4832 = vadd.f32 %v4818, %v4831
    %v4833 = vpop.f32.mrf.mxu0
    %v4834 = vadd.f32 %v4820, %v4833
    %4835 = vdwg.mxu0
    %4836 = vmatpush.bf16.msra.mxu0 %v4091
    %4837 = vmatpush.bf16.msra.mxu0 %v4087
    %4838 = vmatpush.bf16.msra.mxu0 %v4083
    %4839 = vmatpush.bf16.msra.mxu0 %v4079
    %4840 = vmatpush.bf16.msra.mxu0 %v4075
    %4841 = vmatpush.bf16.msra.mxu0 %v4071
    %4842 = vmatpush.bf16.msra.mxu0 %v4067
    %4843 = vmatpush.bf16.msra.mxu0 %v4063
    %4844 = vmatmul.bf16.gmra.mxu0 %v2894
    %v4845 = vpop.f32.mrf.mxu0
    %v4846 = vadd.f32 %v4832, %v4845
    %v4847 = vpop.f32.mrf.mxu0
    %v4848 = vadd.f32 %v4834, %v4847
    %4849 = vdwg.mxu0
    %4850 = vmatpush.bf16.msra.mxu0 %v4123
    %4851 = vmatpush.bf16.msra.mxu0 %v4119
    %4852 = vmatpush.bf16.msra.mxu0 %v4115
    %4853 = vmatpush.bf16.msra.mxu0 %v4111
    %4854 = vmatpush.bf16.msra.mxu0 %v4107
    %4855 = vmatpush.bf16.msra.mxu0 %v4103
    %4856 = vmatpush.bf16.msra.mxu0 %v4099
    %4857 = vmatpush.bf16.msra.mxu0 %v4095
    %4858 = vmatmul.bf16.gmra.mxu0 %v2895
    %v4859 = vpop.f32.mrf.mxu0
    %v4860 = vadd.f32 %v4846, %v4859
    %v4861 = vpop.f32.mrf.mxu0
    %v4862 = vadd.f32 %v4848, %v4861
    %4863 = vdwg.mxu0
    %4864 = vmatpush.bf16.msra.mxu0 %v4155
    %4865 = vmatpush.bf16.msra.mxu0 %v4151
    %4866 = vmatpush.bf16.msra.mxu0 %v4147
    %4867 = vmatpush.bf16.msra.mxu0 %v4143
    %4868 = vmatpush.bf16.msra.mxu0 %v4139
    %4869 = vmatpush.bf16.msra.mxu0 %v4135
    %4870 = vmatpush.bf16.msra.mxu0 %v4131
    %4871 = vmatpush.bf16.msra.mxu0 %v4127
    %4872 = vmatmul.bf16.gmra.mxu0 %v2896
    %v4873 = vpop.f32.mrf.mxu0
    %v4874 = vadd.f32 %v4860, %v4873
    %v4875 = vpop.f32.mrf.mxu0
    %v4876 = vadd.f32 %v4862, %v4875
    %4877 = vdwg.mxu0
    %4878 = vmatpush.bf16.msra.mxu0 %v4187
    %4879 = vmatpush.bf16.msra.mxu0 %v4183
    %4880 = vmatpush.bf16.msra.mxu0 %v4179
    %4881 = vmatpush.bf16.msra.mxu0 %v4175
    %4882 = vmatpush.bf16.msra.mxu0 %v4171
    %4883 = vmatpush.bf16.msra.mxu0 %v4167
    %4884 = vmatpush.bf16.msra.mxu0 %v4163
    %4885 = vmatpush.bf16.msra.mxu0 %v4159
    %4886 = vmatmul.bf16.gmra.mxu0 %v2897
    %v4887 = vpop.f32.mrf.mxu0
    %v4888 = vadd.f32 %v4874, %v4887
    %v4889 = vpop.f32.mrf.mxu0
    %v4890 = vadd.f32 %v4876, %v4889
    %4891 = vdwg.mxu0
    %v4892 = vxor.u32 %v4552, 2147483648
    %v4893 = vxor.u32 %v4664, 2147483648
    %v4894 = vxor.u32 %v4776, 2147483648
    %v4895 = vxor.u32 %v4888, 2147483648
    %v4896 = vxor.u32 %v4554, 2147483648
    %v4897 = vxor.u32 %v4666, 2147483648
    %v4898 = vxor.u32 %v4778, 2147483648
    %v4899 = vxor.u32 %v4890, 2147483648
    %v4900 = vmul.f32 %v4892, 1.442695
    %v4901 = vpow.pop %v4900
    %v4902 = vmul.f32 %v4893, 1.442695
    %v4903 = vpow.pop %v4902
    %v4904 = vmul.f32 %v4894, 1.442695
    %v4905 = vpow.pop %v4904
    %v4906 = vmul.f32 %v4895, 1.442695
    %v4907 = vpow.pop %v4906
    %v4908 = vmul.f32 %v4896, 1.442695
    %v4909 = vpow.pop %v4908
    %v4910 = vmul.f32 %v4897, 1.442695
    %v4911 = vpow.pop %v4910
    %v4912 = vmul.f32 %v4898, 1.442695
    %v4913 = vpow.pop %v4912
    %v4914 = vmul.f32 %v4899, 1.442695
    %v4915 = vpow.pop %v4914
    %v4916 = vadd.f32 %v4901, 1.0
    %v4917 = vadd.f32 %v4903, 1.0
    %v4918 = vadd.f32 %v4905, 1.0
    %v4919 = vadd.f32 %v4907, 1.0
    %v4920 = vadd.f32 %v4909, 1.0
    %v4921 = vadd.f32 %v4911, 1.0
    %v4922 = vadd.f32 %v4913, 1.0
    %v4923 = vadd.f32 %v4915, 1.0
    %v4924 = vrcp.pop %v4916
    %v4925 = vmul.f32 %v4916, %v4924
    %v4926 = vsub.f32 1.0, %v4925
    %v4927 = vmul.f32 %v4924, %v4926
    %v4928 = vadd.f32 %v4924, %v4927
    %vm4929 = vweird.f32 %v4916
    %vm4930 = vweird.f32 %v4924
    %vm4931 = vmor %vm4929, %vm4930
    %v4932 = vsel %vm4931, %v4924, %v4928
    %v4933 = vand.u32 2147483647, %v4916
    %vm4934 = vcmp.eq.f32.partialorder %v4933, 8.507059e+37
    %v4935 = vand.u32 %v4916, 2147483648
    %v4936 = vor.u32 1.1754944e-38, %v4935
    %v4937 = vsel %vm4934, %v4936, %v4932
    %v4938 = vmul.f32 1.0, %v4937
    %v4939 = vrcp.pop %v4917
    %v4940 = vmul.f32 %v4917, %v4939
    %v4941 = vsub.f32 1.0, %v4940
    %v4942 = vmul.f32 %v4939, %v4941
    %v4943 = vadd.f32 %v4939, %v4942
    %vm4944 = vweird.f32 %v4917
    %vm4945 = vweird.f32 %v4939
    %vm4946 = vmor %vm4944, %vm4945
    %v4947 = vsel %vm4946, %v4939, %v4943
    %v4948 = vand.u32 2147483647, %v4917
    %vm4949 = vcmp.eq.f32.partialorder %v4948, 8.507059e+37
    %v4950 = vand.u32 %v4917, 2147483648
    %v4951 = vor.u32 1.1754944e-38, %v4950
    %v4952 = vsel %vm4949, %v4951, %v4947
    %v4953 = vmul.f32 1.0, %v4952
    %v4954 = vrcp.pop %v4918
    %v4955 = vmul.f32 %v4918, %v4954
    %v4956 = vsub.f32 1.0, %v4955
    %v4957 = vmul.f32 %v4954, %v4956
    %v4958 = vadd.f32 %v4954, %v4957
    %vm4959 = vweird.f32 %v4918
    %vm4960 = vweird.f32 %v4954
    %vm4961 = vmor %vm4959, %vm4960
    %v4962 = vsel %vm4961, %v4954, %v4958
    %v4963 = vand.u32 2147483647, %v4918
    %vm4964 = vcmp.eq.f32.partialorder %v4963, 8.507059e+37
    %v4965 = vand.u32 %v4918, 2147483648
    %v4966 = vor.u32 1.1754944e-38, %v4965
    %v4967 = vsel %vm4964, %v4966, %v4962
    %v4968 = vmul.f32 1.0, %v4967
    %v4969 = vrcp.pop %v4919
    %v4970 = vmul.f32 %v4919, %v4969
    %v4971 = vsub.f32 1.0, %v4970
    %v4972 = vmul.f32 %v4969, %v4971
    %v4973 = vadd.f32 %v4969, %v4972
    %vm4974 = vweird.f32 %v4919
    %vm4975 = vweird.f32 %v4969
    %vm4976 = vmor %vm4974, %vm4975
    %v4977 = vsel %vm4976, %v4969, %v4973
    %v4978 = vand.u32 2147483647, %v4919
    %vm4979 = vcmp.eq.f32.partialorder %v4978, 8.507059e+37
    %v4980 = vand.u32 %v4919, 2147483648
    %v4981 = vor.u32 1.1754944e-38, %v4980
    %v4982 = vsel %vm4979, %v4981, %v4977
    %v4983 = vmul.f32 1.0, %v4982
    %v4984 = vrcp.pop %v4920
    %v4985 = vmul.f32 %v4920, %v4984
    %v4986 = vsub.f32 1.0, %v4985
    %v4987 = vmul.f32 %v4984, %v4986
    %v4988 = vadd.f32 %v4984, %v4987
    %vm4989 = vweird.f32 %v4920
    %vm4990 = vweird.f32 %v4984
    %vm4991 = vmor %vm4989, %vm4990
    %v4992 = vsel %vm4991, %v4984, %v4988
    %v4993 = vand.u32 2147483647, %v4920
    %vm4994 = vcmp.eq.f32.partialorder %v4993, 8.507059e+37
    %v4995 = vand.u32 %v4920, 2147483648
    %v4996 = vor.u32 1.1754944e-38, %v4995
    %v4997 = vsel %vm4994, %v4996, %v4992
    %v4998 = vmul.f32 1.0, %v4997
    %v4999 = vrcp.pop %v4921
    %v5000 = vmul.f32 %v4921, %v4999
    %v5001 = vsub.f32 1.0, %v5000
    %v5002 = vmul.f32 %v4999, %v5001
    %v5003 = vadd.f32 %v4999, %v5002
    %vm5004 = vweird.f32 %v4921
    %vm5005 = vweird.f32 %v4999
    %vm5006 = vmor %vm5004, %vm5005
    %v5007 = vsel %vm5006, %v4999, %v5003
    %v5008 = vand.u32 2147483647, %v4921
    %vm5009 = vcmp.eq.f32.partialorder %v5008, 8.507059e+37
    %v5010 = vand.u32 %v4921, 2147483648
    %v5011 = vor.u32 1.1754944e-38, %v5010
    %v5012 = vsel %vm5009, %v5011, %v5007
    %v5013 = vmul.f32 1.0, %v5012
    %v5014 = vrcp.pop %v4922
    %v5015 = vmul.f32 %v4922, %v5014
    %v5016 = vsub.f32 1.0, %v5015
    %v5017 = vmul.f32 %v5014, %v5016
    %v5018 = vadd.f32 %v5014, %v5017
    %vm5019 = vweird.f32 %v4922
    %vm5020 = vweird.f32 %v5014
    %vm5021 = vmor %vm5019, %vm5020
    %v5022 = vsel %vm5021, %v5014, %v5018
    %v5023 = vand.u32 2147483647, %v4922
    %vm5024 = vcmp.eq.f32.partialorder %v5023, 8.507059e+37
    %v5025 = vand.u32 %v4922, 2147483648
    %v5026 = vor.u32 1.1754944e-38, %v5025
    %v5027 = vsel %vm5024, %v5026, %v5022
    %v5028 = vmul.f32 1.0, %v5027
    %v5029 = vrcp.pop %v4923
    %v5030 = vmul.f32 %v4923, %v5029
    %v5031 = vsub.f32 1.0, %v5030
    %v5032 = vmul.f32 %v5029, %v5031
    %v5033 = vadd.f32 %v5029, %v5032
    %vm5034 = vweird.f32 %v4923
    %vm5035 = vweird.f32 %v5029
    %vm5036 = vmor %vm5034, %vm5035
    %v5037 = vsel %vm5036, %v5029, %v5033
    %v5038 = vand.u32 2147483647, %v4923
    %vm5039 = vcmp.eq.f32.partialorder %v5038, 8.507059e+37
    %v5040 = vand.u32 %v4923, 2147483648
    %v5041 = vor.u32 1.1754944e-38, %v5040
    %v5042 = vsel %vm5039, %v5041, %v5037
    %v5043 = vmul.f32 1.0, %v5042
    %v5044 = vmul.f32 %v4552, %v4938
    %v5045 = vmul.f32 %v4664, %v4953
    %v5046 = vmul.f32 %v4776, %v4968
    %v5047 = vmul.f32 %v4888, %v4983
    %v5048 = vmul.f32 %v4554, %v4998
    %v5049 = vmul.f32 %v4666, %v5013
    %v5050 = vmul.f32 %v4778, %v5028
    %v5051 = vmul.f32 %v4890, %v5043
    %v5052 = vpack.c.bf16 %v5048, %v5044
    %v5053 = vpack.c.bf16 %v5049, %v5045
    %v5054 = vpack.c.bf16 %v5050, %v5046
    %v5055 = vpack.c.bf16 %v5051, %v5047
    %v5056 = vld [vmem:[#allocation13] sm:$0xf]
    %v5057 = vld [vmem:[#allocation13 + $0x4] sm:$0xf]
    %v5058 = vld [vmem:[#allocation13 + $0x8] sm:$0xf]
    %v5059 = vld [vmem:[#allocation13 + $0xc] sm:$0xf]
    %v5060 = vld [vmem:[#allocation13 + $0x10] sm:$0xf]
    %v5061 = vld [vmem:[#allocation13 + $0x14] sm:$0xf]
    %v5062 = vld [vmem:[#allocation13 + $0x18] sm:$0xf]
    %v5063 = vld [vmem:[#allocation13 + $0x1c] sm:$0xf]
    %v5064 = vld [vmem:[#allocation13 + $0x20] sm:$0xf]
    %v5065 = vld [vmem:[#allocation13 + $0x24] sm:$0xf]
    %v5066 = vld [vmem:[#allocation13 + $0x28] sm:$0xf]
    %v5067 = vld [vmem:[#allocation13 + $0x2c] sm:$0xf]
    %v5068 = vld [vmem:[#allocation13 + $0x30] sm:$0xf]
    %v5069 = vld [vmem:[#allocation13 + $0x34] sm:$0xf]
    %v5070 = vld [vmem:[#allocation13 + $0x38] sm:$0xf]
    %v5071 = vld [vmem:[#allocation13 + $0x3c] sm:$0xf]
    %v5072 = vld [vmem:[#allocation13 + $0x40] sm:$0xf]
    %v5073 = vld [vmem:[#allocation13 + $0x44] sm:$0xf]
    %v5074 = vld [vmem:[#allocation13 + $0x48] sm:$0xf]
    %v5075 = vld [vmem:[#allocation13 + $0x4c] sm:$0xf]
    %v5076 = vld [vmem:[#allocation13 + $0x50] sm:$0xf]
    %v5077 = vld [vmem:[#allocation13 + $0x54] sm:$0xf]
    %v5078 = vld [vmem:[#allocation13 + $0x58] sm:$0xf]
    %v5079 = vld [vmem:[#allocation13 + $0x5c] sm:$0xf]
    %v5080 = vld [vmem:[#allocation13 + $0x60] sm:$0xf]
    %v5081 = vld [vmem:[#allocation13 + $0x64] sm:$0xf]
    %v5082 = vld [vmem:[#allocation13 + $0x68] sm:$0xf]
    %v5083 = vld [vmem:[#allocation13 + $0x6c] sm:$0xf]
    %v5084 = vld [vmem:[#allocation13 + $0x70] sm:$0xf]
    %v5085 = vld [vmem:[#allocation13 + $0x74] sm:$0xf]
    %v5086 = vld [vmem:[#allocation13 + $0x78] sm:$0xf]
    %v5087 = vld [vmem:[#allocation13 + $0x7c] sm:$0xf]
    %v5088 = vld [vmem:[#allocation13 + $0x80] sm:$0xf]
    %v5089 = vld [vmem:[#allocation13 + $0x84] sm:$0xf]
    %v5090 = vld [vmem:[#allocation13 + $0x88] sm:$0xf]
    %v5091 = vld [vmem:[#allocation13 + $0x8c] sm:$0xf]
    %v5092 = vld [vmem:[#allocation13 + $0x90] sm:$0xf]
    %v5093 = vld [vmem:[#allocation13 + $0x94] sm:$0xf]
    %v5094 = vld [vmem:[#allocation13 + $0x98] sm:$0xf]
    %v5095 = vld [vmem:[#allocation13 + $0x9c] sm:$0xf]
    %v5096 = vld [vmem:[#allocation13 + $0xa0] sm:$0xf]
    %v5097 = vld [vmem:[#allocation13 + $0xa4] sm:$0xf]
    %v5098 = vld [vmem:[#allocation13 + $0xa8] sm:$0xf]
    %v5099 = vld [vmem:[#allocation13 + $0xac] sm:$0xf]
    %v5100 = vld [vmem:[#allocation13 + $0xb0] sm:$0xf]
    %v5101 = vld [vmem:[#allocation13 + $0xb4] sm:$0xf]
    %v5102 = vld [vmem:[#allocation13 + $0xb8] sm:$0xf]
    %v5103 = vld [vmem:[#allocation13 + $0xbc] sm:$0xf]
    %v5104 = vld [vmem:[#allocation13 + $0xc0] sm:$0xf]
    %v5105 = vld [vmem:[#allocation13 + $0xc4] sm:$0xf]
    %v5106 = vld [vmem:[#allocation13 + $0xc8] sm:$0xf]
    %v5107 = vld [vmem:[#allocation13 + $0xcc] sm:$0xf]
    %v5108 = vld [vmem:[#allocation13 + $0xd0] sm:$0xf]
    %v5109 = vld [vmem:[#allocation13 + $0xd4] sm:$0xf]
    %v5110 = vld [vmem:[#allocation13 + $0xd8] sm:$0xf]
    %v5111 = vld [vmem:[#allocation13 + $0xdc] sm:$0xf]
    %v5112 = vld [vmem:[#allocation13 + $0xe0] sm:$0xf]
    %v5113 = vld [vmem:[#allocation13 + $0xe4] sm:$0xf]
    %v5114 = vld [vmem:[#allocation13 + $0xe8] sm:$0xf]
    %v5115 = vld [vmem:[#allocation13 + $0xec] sm:$0xf]
    %v5116 = vld [vmem:[#allocation13 + $0xf0] sm:$0xf]
    %v5117 = vld [vmem:[#allocation13 + $0xf4] sm:$0xf]
    %v5118 = vld [vmem:[#allocation13 + $0xf8] sm:$0xf]
    %v5119 = vld [vmem:[#allocation13 + $0xfc] sm:$0xf]
    %v5120 = vld [vmem:[%s8] sm:$0x1]
    %v5122 = vperm.slane %v5120, 0
    %v5188 = vunpack.c.l.b16 %v5056
    %v5189 = vunpack.c.l.b16 %v5057
    %v5190 = vunpack.c.l.b16 %v5058
    %v5191 = vunpack.c.l.b16 %v5059
    %v5192 = vunpack.c.l.b16 %v5060
    %v5193 = vunpack.c.l.b16 %v5061
    %v5194 = vunpack.c.l.b16 %v5062
    %v5195 = vunpack.c.l.b16 %v5063
    %v5196 = vunpack.c.l.b16 %v5064
    %v5197 = vunpack.c.l.b16 %v5065
    %v5198 = vunpack.c.l.b16 %v5066
    %v5199 = vunpack.c.l.b16 %v5067
    %v5200 = vunpack.c.l.b16 %v5068
    %v5201 = vunpack.c.l.b16 %v5069
    %v5202 = vunpack.c.l.b16 %v5070
    %v5203 = vunpack.c.l.b16 %v5071
    %v5204 = vunpack.c.l.b16 %v5072
    %v5205 = vunpack.c.l.b16 %v5073
    %v5206 = vunpack.c.l.b16 %v5074
    %v5207 = vunpack.c.l.b16 %v5075
    %v5208 = vunpack.c.l.b16 %v5076
    %v5209 = vunpack.c.l.b16 %v5077
    %v5210 = vunpack.c.l.b16 %v5078
    %v5211 = vunpack.c.l.b16 %v5079
    %v5212 = vunpack.c.l.b16 %v5080
    %v5213 = vunpack.c.l.b16 %v5081
    %v5214 = vunpack.c.l.b16 %v5082
    %v5215 = vunpack.c.l.b16 %v5083
    %v5216 = vunpack.c.l.b16 %v5084
    %v5217 = vunpack.c.l.b16 %v5085
    %v5218 = vunpack.c.l.b16 %v5086
    %v5219 = vunpack.c.l.b16 %v5087
    %v5220 = vunpack.c.l.b16 %v5088
    %v5221 = vunpack.c.l.b16 %v5089
    %v5222 = vunpack.c.l.b16 %v5090
    %v5223 = vunpack.c.l.b16 %v5091
    %v5224 = vunpack.c.l.b16 %v5092
    %v5225 = vunpack.c.l.b16 %v5093
    %v5226 = vunpack.c.l.b16 %v5094
    %v5227 = vunpack.c.l.b16 %v5095
    %v5228 = vunpack.c.l.b16 %v5096
    %v5229 = vunpack.c.l.b16 %v5097
    %v5230 = vunpack.c.l.b16 %v5098
    %v5231 = vunpack.c.l.b16 %v5099
    %v5232 = vunpack.c.l.b16 %v5100
    %v5233 = vunpack.c.l.b16 %v5101
    %v5234 = vunpack.c.l.b16 %v5102
    %v5235 = vunpack.c.l.b16 %v5103
    %v5236 = vunpack.c.l.b16 %v5104
    %v5237 = vunpack.c.l.b16 %v5105
    %v5238 = vunpack.c.l.b16 %v5106
    %v5239 = vunpack.c.l.b16 %v5107
    %v5240 = vunpack.c.l.b16 %v5108
    %v5241 = vunpack.c.l.b16 %v5109
    %v5242 = vunpack.c.l.b16 %v5110
    %v5243 = vunpack.c.l.b16 %v5111
    %v5244 = vunpack.c.l.b16 %v5112
    %v5245 = vunpack.c.l.b16 %v5113
    %v5246 = vunpack.c.l.b16 %v5114
    %v5247 = vunpack.c.l.b16 %v5115
    %v5248 = vunpack.c.l.b16 %v5116
    %v5249 = vunpack.c.l.b16 %v5117
    %v5250 = vunpack.c.l.b16 %v5118
    %v5251 = vunpack.c.l.b16 %v5119
    %v5252 = vpack.c.b16 %v5189, %v5188
    %v5253 = vpack.c.b16 %v5191, %v5190
    %v5254 = vpack.c.b16 %v5193, %v5192
    %v5255 = vpack.c.b16 %v5195, %v5194
    %v5256 = vpack.c.b16 %v5197, %v5196
    %v5257 = vpack.c.b16 %v5199, %v5198
    %v5258 = vpack.c.b16 %v5201, %v5200
    %v5259 = vpack.c.b16 %v5203, %v5202
    %v5260 = vpack.c.b16 %v5205, %v5204
    %v5261 = vpack.c.b16 %v5207, %v5206
    %v5262 = vpack.c.b16 %v5209, %v5208
    %v5263 = vpack.c.b16 %v5211, %v5210
    %v5264 = vpack.c.b16 %v5213, %v5212
    %v5265 = vpack.c.b16 %v5215, %v5214
    %v5266 = vpack.c.b16 %v5217, %v5216
    %v5267 = vpack.c.b16 %v5219, %v5218
    %v5268 = vpack.c.b16 %v5221, %v5220
    %v5269 = vpack.c.b16 %v5223, %v5222
    %v5270 = vpack.c.b16 %v5225, %v5224
    %v5271 = vpack.c.b16 %v5227, %v5226
    %v5272 = vpack.c.b16 %v5229, %v5228
    %v5273 = vpack.c.b16 %v5231, %v5230
    %v5274 = vpack.c.b16 %v5233, %v5232
    %v5275 = vpack.c.b16 %v5235, %v5234
    %v5276 = vpack.c.b16 %v5237, %v5236
    %v5277 = vpack.c.b16 %v5239, %v5238
    %v5278 = vpack.c.b16 %v5241, %v5240
    %v5279 = vpack.c.b16 %v5243, %v5242
    %v5280 = vpack.c.b16 %v5245, %v5244
    %v5281 = vpack.c.b16 %v5247, %v5246
    %v5282 = vpack.c.b16 %v5249, %v5248
    %v5283 = vpack.c.b16 %v5251, %v5250
    %5316 = vmatpush.bf16.msra.mxu0 %v5259
    %5317 = vmatpush.bf16.msra.mxu0 %v5258
    %5318 = vmatpush.bf16.msra.mxu0 %v5257
    %5319 = vmatpush.bf16.msra.mxu0 %v5256
    %5320 = vmatpush.bf16.msra.mxu0 %v5255
    %5321 = vmatpush.bf16.msra.mxu0 %v5254
    %5322 = vmatpush.bf16.msra.mxu0 %v5253
    %5323 = vmatpush.bf16.msra.mxu0 %v5252
    %5324 = vmatmul.bf16.gmra.mxu0 %v5052
    %v5325 = vpop.f32.mrf.mxu0
    %v5326 = vadd.f32 %v5122, %v5325
    %v5327 = vpop.f32.mrf.mxu0
    %v5328 = vadd.f32 %v5122, %v5327
    %5329 = vdwg.mxu0
    %5330 = vmatpush.bf16.msra.mxu0 %v5267
    %5331 = vmatpush.bf16.msra.mxu0 %v5266
    %5332 = vmatpush.bf16.msra.mxu0 %v5265
    %5333 = vmatpush.bf16.msra.mxu0 %v5264
    %5334 = vmatpush.bf16.msra.mxu0 %v5263
    %5335 = vmatpush.bf16.msra.mxu0 %v5262
    %5336 = vmatpush.bf16.msra.mxu0 %v5261
    %5337 = vmatpush.bf16.msra.mxu0 %v5260
    %5338 = vmatmul.bf16.gmra.mxu0 %v5053
    %v5339 = vpop.f32.mrf.mxu0
    %v5340 = vadd.f32 %v5326, %v5339
    %v5341 = vpop.f32.mrf.mxu0
    %v5342 = vadd.f32 %v5328, %v5341
    %5343 = vdwg.mxu0
    %5344 = vmatpush.bf16.msra.mxu0 %v5275
    %5345 = vmatpush.bf16.msra.mxu0 %v5274
    %5346 = vmatpush.bf16.msra.mxu0 %v5273
    %5347 = vmatpush.bf16.msra.mxu0 %v5272
    %5348 = vmatpush.bf16.msra.mxu0 %v5271
    %5349 = vmatpush.bf16.msra.mxu0 %v5270
    %5350 = vmatpush.bf16.msra.mxu0 %v5269
    %5351 = vmatpush.bf16.msra.mxu0 %v5268
    %5352 = vmatmul.bf16.gmra.mxu0 %v5054
    %v5353 = vpop.f32.mrf.mxu0
    %v5354 = vadd.f32 %v5340, %v5353
    %v5355 = vpop.f32.mrf.mxu0
    %v5356 = vadd.f32 %v5342, %v5355
    %5357 = vdwg.mxu0
    %5358 = vmatpush.bf16.msra.mxu0 %v5283
    %5359 = vmatpush.bf16.msra.mxu0 %v5282
    %5360 = vmatpush.bf16.msra.mxu0 %v5281
    %5361 = vmatpush.bf16.msra.mxu0 %v5280
    %5362 = vmatpush.bf16.msra.mxu0 %v5279
    %5363 = vmatpush.bf16.msra.mxu0 %v5278
    %5364 = vmatpush.bf16.msra.mxu0 %v5277
    %5365 = vmatpush.bf16.msra.mxu0 %v5276
    %5366 = vmatmul.bf16.gmra.mxu0 %v5055
    %v5367 = vpop.f32.mrf.mxu0
    %v5368 = vadd.f32 %v5354, %v5367
    %v5369 = vpop.f32.mrf.mxu0
    %v5370 = vadd.f32 %v5356, %v5369
    %5371 = vdwg.mxu0
    %5372 = vst [vmem:[#allocation14] sm:$0xff] %v5368
    %5373 = vst [vmem:[#allocation14 + $0x8] sm:$0xff] %v5370
    // Predicated region
    $region66: #{tpu_custom_call.1} parent=1 // pred_check
      _
    $region67: #{tpu_custom_call.1} parent=1 // pred_check_branch
      %5375 = sbr.rel (0) target = $region69
    $region68: #{tpu_custom_call.1} parent=1 // pred_region
      %5377 = vsyncadd [#allocation4], 0
      %s5378 = sshll.u32 [#allocation14], 4
      %s5379 = int_to_ptr.vmem [resolvable:$true] %s5378
      %s5380 = sshll.u32 %s9, 4
      %s5381 = int_to_ptr.hbm [resolvable:$true] %s5380
      %5386 = dma.vmem_to_hbm [thread:$0]  %s5379, 256, %s5381, [#allocation4], 128, 128, 8
    $region69: #{tpu_custom_call.1} parent=1 // pred_fallthru
      _
    // Predicated region
    $region70: #{tpu_custom_call.1} parent=1 // pred_check
      _
    $region71: #{tpu_custom_call.1} parent=1 // pred_check_branch
      %5388 = sbr.rel (0) target = $region73
    $region72: #{tpu_custom_call.1} parent=1 // pred_region
      %5390 = dma.done [#allocation4], 256
    $region73: #{tpu_custom_call.1} parent=1 // pred_fallthru
      _
    %5391 = vsyncpa [#allocation3], 1
    %5392 = vsyncpa [#allocation6], 1
    %5393 = vsyncpa [#allocation9], 1
    %5394 = vsyncpa [#allocation12], 1
    %5395 = vsyncpa [#allocation4], 1

// kernel: tpu_custom_call.1
$region0: #{tpu_custom_call.1}
  #allocation0 [shape = 'u32[]', space=smem, size = 0x4, offset = 0x4, fixed_abs, tag = 'smem constant byte address 0x4 - core index']
  #allocation1 [shape = 'u32[72,128]{1,0:T(1,128)}', space=vmem, size = 0x9000, scoped, tag = 'internal scratch']
  %s0 = inlined_call_operand.hbm [shape: bf16[16,128], index: 0, kind: input, shape index: {}]
  %s1 = inlined_call_operand.hbm [shape: bf16[128,512], index: 1, kind: input, shape index: {}]
  %s2 = inlined_call_operand.hbm [shape: f32[1,512], index: 2, kind: input, shape index: {}]
  %s3 = inlined_call_operand.hbm [shape: bf16[512,1024], index: 3, kind: input, shape index: {}]
  %s4 = inlined_call_operand.hbm [shape: f32[1,1024], index: 4, kind: input, shape index: {}]
  %s5 = inlined_call_operand.hbm [shape: bf16[1024,512], index: 5, kind: input, shape index: {}]
  %s6 = inlined_call_operand.vmem [shape: f32[1,512], index: 6, kind: input, shape index: {}]
  %s7 = inlined_call_operand.hbm [shape: bf16[512,128], index: 7, kind: input, shape index: {}]
  %s8 = inlined_call_operand.vmem [shape: f32[1,128], index: 8, kind: input, shape index: {}]
  %s9 = inlined_call_operand.hbm [shape: f32[16,128], index: 9, kind: output, shape index: {}]
  %s10 = sld [smem:[#allocation0]]
  $region74: #{tpu_custom_call.1} parent=0
    _
  %s12 = ssub.s32 1, %s10
  %s13 = scalar_select 0, %s12, %s10
  $region1: #{tpu_custom_call.1} parent=0
    #allocation2 [shape = 'u8[4096]{0}', space=vmem, size = 0x1000, scoped, tag = 'input window, operand 0, single buffered']
    #allocation3 [shape = 's32[1]{0}', space=sflag, size = 0x4, scoped, tag = 'scoped memory for tpu_custom_call.1']
    #allocation4 [shape = 's32[1]{0}', space=sflag, size = 0x4, scoped, tag = 'scoped memory for tpu_custom_call.1']
    #allocation5 [shape = 'u8[131072]{0}', space=vmem, size = 0x20000, scoped, tag = 'input window, operand 1, single buffered']
    #allocation6 [shape = 's32[1]{0}', space=sflag, size = 0x4, scoped, tag = 'scoped memory for tpu_custom_call.1']
    #allocation7 [shape = 'u8[2048]{0}', space=vmem, size = 0x800, scoped, tag = 'input window, operand 2, single buffered']
    #allocation8 [shape = 'u8[1048576]{0}', space=vmem, size = 0x100000, scoped, tag = 'input window, operand 3, single buffered']
    #allocation9 [shape = 's32[1]{0}', space=sflag, size = 0x4, scoped, tag = 'scoped memory for tpu_custom_call.1']
    #allocation10 [shape = 'u8[4096]{0}', space=vmem, size = 0x1000, scoped, tag = 'input window, operand 4, single buffered']
    #allocation11 [shape = 'u8[1048576]{0}', space=vmem, size = 0x100000, scoped, tag = 'input window, operand 5, single buffered']
    #allocation12 [shape = 's32[1]{0}', space=sflag, size = 0x4, scoped, tag = 'scoped memory for tpu_custom_call.1']
    #allocation13 [shape = 'u8[131072]{0}', space=vmem, size = 0x20000, scoped, tag = 'input window, operand 7, single buffered']
    #allocation14 [shape = 'u8[8192]{0}', space=vmem, size = 0x2000, scoped, tag = 'output window, operand 0, single buffered']
    %14 = vsyncpa [#allocation3], 0
    %15 = vsyncpa [#allocation6], 0
    %16 = vsyncpa [#allocation9], 0
    %17 = vsyncpa [#allocation12], 0
    %18 = vsyncpa [#allocation4], 0
    // Predicated region
    $region2: #{tpu_custom_call.1} parent=1 // pred_check
      _
    $region3: #{tpu_custom_call.1} parent=1 // pred_check_branch
      %20 = sbr.rel (0) target = $region5
    $region4: #{tpu_custom_call.1} parent=1 // pred_region
      %22 = vsyncadd [#allocation3], 0
      %s23 = sshll.u32 %s0, 4
      %s24 = int_to_ptr.hbm [resolvable:$true] %s23
      %s25 = sshll.u32 [#allocation2], 4
      %s26 = int_to_ptr.vmem [resolvable:$true] %s25
      %31 = dma.hbm_to_vmem [thread:$0]  %s24, 128, %s26, [#allocation3], 64, 64, 4
    $region5: #{tpu_custom_call.1} parent=1 // pred_fallthru
      _
    // Predicated region
    $region6: #{tpu_custom_call.1} parent=1 // pred_check
      _
    $region7: #{tpu_custom_call.1} parent=1 // pred_check_branch
      %33 = sbr.rel (0) target = $region9
    $region8: #{tpu_custom_call.1} parent=1 // pred_region
      %35 = vsyncadd [#allocation6], 0
      %s36 = sshll.u32 %s1, 4
      %s37 = int_to_ptr.hbm [resolvable:$true] %s36
      %s38 = sshll.u32 [#allocation5], 4
      %s39 = int_to_ptr.vmem [resolvable:$true] %s38
      %44 = dma.hbm_to_vmem [thread:$0]  %s37, 4096, %s39, [#allocation6], 256, 256, 16
    $region9: #{tpu_custom_call.1} parent=1 // pred_fallthru
      _
    // Predicated region
    $region10: #{tpu_custom_call.1} parent=1 // pred_check
      _
    $region11: #{tpu_custom_call.1} parent=1 // pred_check_branch
      %46 = sbr.rel (0) target = $region13
    $region12: #{tpu_custom_call.1} parent=1 // pred_region
      %48 = vsyncadd [#allocation6], 0
      %s50 = sshll.u32 %s2, 4
      %s51 = int_to_ptr.hbm [resolvable:$true] %s50
      %s52 = sshll.u32 [#allocation7], 4
      %s53 = int_to_ptr.vmem [resolvable:$true] %s52
      %55 = dma.hbm_to_vmem [thread:$0]  %s51, 64, %s53, [#allocation6]
    $region13: #{tpu_custom_call.1} parent=1 // pred_fallthru
      _
    // Predicated region
    $region14: #{tpu_custom_call.1} parent=1 // pred_check
      _
    $region15: #{tpu_custom_call.1} parent=1 // pred_check_branch
      %57 = sbr.rel (0) target = $region17
    $region16: #{tpu_custom_call.1} parent=1 // pred_region
      %59 = vsyncadd [#allocation9], 0
      %s60 = sshll.u32 %s3, 4
      %s61 = int_to_ptr.hbm [resolvable:$true] %s60
      %s62 = sshll.u32 [#allocation8], 4
      %s63 = int_to_ptr.vmem [resolvable:$true] %s62
      %68 = dma.hbm_to_vmem [thread:$0]  %s61, 32768, %s63, [#allocation9], 512, 512, 32
    $region17: #{tpu_custom_call.1} parent=1 // pred_fallthru
      _
    // Predicated region
    $region18: #{tpu_custom_call.1} parent=1 // pred_check
      _
    $region19: #{tpu_custom_call.1} parent=1 // pred_check_branch
      %70 = sbr.rel (0) target = $region21
    $region20: #{tpu_custom_call.1} parent=1 // pred_region
      %72 = vsyncadd [#allocation9], 0
      %s74 = sshll.u32 %s4, 4
      %s75 = int_to_ptr.hbm [resolvable:$true] %s74
      %s76 = sshll.u32 [#allocation10], 4
      %s77 = int_to_ptr.vmem [resolvable:$true] %s76
      %79 = dma.hbm_to_vmem [thread:$0]  %s75, 128, %s77, [#allocation9]
    $region21: #{tpu_custom_call.1} parent=1 // pred_fallthru
      _
    // Predicated region
    $region22: #{tpu_custom_call.1} parent=1 // pred_check
      _
    $region23: #{tpu_custom_call.1} parent=1 // pred_check_branch
      %81 = sbr.rel (0) target = $region25
    $region24: #{tpu_custom_call.1} parent=1 // pred_region
      %83 = vsyncadd [#allocation12], 0
      %s84 = sshll.u32 %s5, 4
      %s85 = int_to_ptr.hbm [resolvable:$true] %s84
      %s86 = sshll.u32 [#allocation11], 4
      %s87 = int_to_ptr.vmem [resolvable:$true] %s86
      %92 = dma.hbm_to_vmem [thread:$0]  %s85, 32768, %s87, [#allocation12], 256, 256, 16
    $region25: #{tpu_custom_call.1} parent=1 // pred_fallthru
      _
    // Predicated region
    $region26: #{tpu_custom_call.1} parent=1 // pred_check
      _
    $region27: #{tpu_custom_call.1} parent=1 // pred_check_branch
      %94 = sbr.rel (0) target = $region29
    $region28: #{tpu_custom_call.1} parent=1 // pred_region
      _
    $region29: #{tpu_custom_call.1} parent=1 // pred_fallthru
      _
    // Predicated region
    $region30: #{tpu_custom_call.1} parent=1 // pred_check
      _
    $region31: #{tpu_custom_call.1} parent=1 // pred_check_branch
      %96 = sbr.rel (0) target = $region33
    $region32: #{tpu_custom_call.1} parent=1 // pred_region
      %98 = vsyncadd [#allocation12], 0
      %s99 = sshll.u32 %s7, 4
      %s100 = int_to_ptr.hbm [resolvable:$true] %s99
      %s101 = sshll.u32 [#allocation13], 4
      %s102 = int_to_ptr.vmem [resolvable:$true] %s101
      %107 = dma.hbm_to_vmem [thread:$0]  %s100, 4096, %s102, [#allocation12], 64, 64, 4
    $region33: #{tpu_custom_call.1} parent=1 // pred_fallthru
      _
    // Predicated region
    $region34: #{tpu_custom_call.1} parent=1 // pred_check
      _
    $region35: #{tpu_custom_call.1} parent=1 // pred_check_branch
      %109 = sbr.rel (0) target = $region37
    $region36: #{tpu_custom_call.1} parent=1 // pred_region
      _
    $region37: #{tpu_custom_call.1} parent=1 // pred_fallthru
      _
    // Predicated region
    $region38: #{tpu_custom_call.1} parent=1 // pred_check
      _
    $region39: #{tpu_custom_call.1} parent=1 // pred_check_branch
      %111 = sbr.rel (0) target = $region41
    $region40: #{tpu_custom_call.1} parent=1 // pred_region
      %113 = dma.done [#allocation3], 128
    $region41: #{tpu_custom_call.1} parent=1 // pred_fallthru
      _
    // Predicated region
    $region42: #{tpu_custom_call.1} parent=1 // pred_check
      _
    $region43: #{tpu_custom_call.1} parent=1 // pred_check_branch
      %115 = sbr.rel (0) target = $region45
    $region44: #{tpu_custom_call.1} parent=1 // pred_region
      %117 = dma.done [#allocation6], 4096
    $region45: #{tpu_custom_call.1} parent=1 // pred_fallthru
      _
    // Predicated region
    $region46: #{tpu_custom_call.1} parent=1 // pred_check
      _
    $region47: #{tpu_custom_call.1} parent=1 // pred_check_branch
      %119 = sbr.rel (0) target = $region49
    $region48: #{tpu_custom_call.1} parent=1 // pred_region
      %121 = dma.done [#allocation6], 64
    $region49: #{tpu_custom_call.1} parent=1 // pred_fallthru
      _
    // Predicated region
    $region50: #{tpu_custom_call.1} parent=1 // pred_check
      _
    $region51: #{tpu_custom_call.1} parent=1 // pred_check_branch
      %123 = sbr.rel (0) target = $region53
    $region52: #{tpu_custom_call.1} parent=1 // pred_region
      %125 = dma.done [#allocation9], 32768
    $region53: #{tpu_custom_call.1} parent=1 // pred_fallthru
      _
    // Predicated region
    $region54: #{tpu_custom_call.1} parent=1 // pred_check
      _
    $region55: #{tpu_custom_call.1} parent=1 // pred_check_branch
      %127 = sbr.rel (0) target = $region57
    $region56: #{tpu_custom_call.1} parent=1 // pred_region
      %129 = dma.done [#allocation9], 128
    $region57: #{tpu_custom_call.1} parent=1 // pred_fallthru
      _
    // Predicated region
    $region58: #{tpu_custom_call.1} parent=1 // pred_check
      _
    $region59: #{tpu_custom_call.1} parent=1 // pred_check_branch
      %131 = sbr.rel (0) target = $region61
    $region60: #{tpu_custom_call.1} parent=1 // pred_region
      %133 = dma.done [#allocation12], 32768
    $region61: #{tpu_custom_call.1} parent=1 // pred_fallthru
      _
    // Predicated region
    $region62: #{tpu_custom_call.1} parent=1 // pred_check
      _
    $region63: #{tpu_custom_call.1} parent=1 // pred_check_branch
      %135 = sbr.rel (0) target = $region65
    $region64: #{tpu_custom_call.1} parent=1 // pred_region
      %137 = dma.done [#allocation12], 4096
    $region65: #{tpu_custom_call.1} parent=1 // pred_fallthru
      _
    %v138 = vld [vmem:[#allocation2] sm:$0xf]
    %v139 = vld [vmem:[#allocation2 + $0x4] sm:$0xf]
    %v140 = vld [vmem:[#allocation5] sm:$0xff]
    %v141 = vld [vmem:[#allocation5 + $0x8] sm:$0xff]
    %v142 = vld [vmem:[#allocation5 + $0x10] sm:$0xff]
    %v143 = vld [vmem:[#allocation5 + $0x18] sm:$0xff]
    %v144 = vld [vmem:[#allocation5 + $0x20] sm:$0xff]
    %v145 = vld [vmem:[#allocation5 + $0x28] sm:$0xff]
    %v146 = vld [vmem:[#allocation5 + $0x30] sm:$0xff]
    %v147 = vld [vmem:[#allocation5 + $0x38] sm:$0xff]
    %v148 = vld [vmem:[#allocation5 + $0x40] sm:$0xff]
    %v149 = vld [vmem:[#allocation5 + $0x48] sm:$0xff]
    %v150 = vld [vmem:[#allocation5 + $0x50] sm:$0xff]
    %v151 = vld [vmem:[#allocation5 + $0x58] sm:$0xff]
    %v152 = vld [vmem:[#allocation5 + $0x60] sm:$0xff]
    %v153 = vld [vmem:[#allocation5 + $0x68] sm:$0xff]
    %v154 = vld [vmem:[#allocation5 + $0x70] sm:$0xff]
    %v155 = vld [vmem:[#allocation5 + $0x78] sm:$0xff]
    %v156 = vld [vmem:[#allocation5 + $0x80] sm:$0xff]
    %v157 = vld [vmem:[#allocation5 + $0x88] sm:$0xff]
    %v158 = vld [vmem:[#allocation5 + $0x90] sm:$0xff]
    %v159 = vld [vmem:[#allocation5 + $0x98] sm:$0xff]
    %v160 = vld [vmem:[#allocation5 + $0xa0] sm:$0xff]
    %v161 = vld [vmem:[#allocation5 + $0xa8] sm:$0xff]
    %v162 = vld [vmem:[#allocation5 + $0xb0] sm:$0xff]
    %v163 = vld [vmem:[#allocation5 + $0xb8] sm:$0xff]
    %v164 = vld [vmem:[#allocation5 + $0xc0] sm:$0xff]
    %v165 = vld [vmem:[#allocation5 + $0xc8] sm:$0xff]
    %v166 = vld [vmem:[#allocation5 + $0xd0] sm:$0xff]
    %v167 = vld [vmem:[#allocation5 + $0xd8] sm:$0xff]
    %v168 = vld [vmem:[#allocation5 + $0xe0] sm:$0xff]
    %v169 = vld [vmem:[#allocation5 + $0xe8] sm:$0xff]
    %v170 = vld [vmem:[#allocation5 + $0xf0] sm:$0xff]
    %v171 = vld [vmem:[#allocation5 + $0xf8] sm:$0xff]
    %v172 = vld [vmem:[#allocation7] sm:$0xf]
    %v174 = vperm.slane %v172, 0
    %v175 = vperm.slane %v172, 1
    %v176 = vperm.slane %v172, 2
    %v177 = vperm.slane %v172, 3
    %v184 = vunpack.c.l.b16 %v138
    %v185 = vunpack.c.l.b16 %v139
    %v186 = vpack.c.b16 %v185, %v184
    %v220 = vunpack.c.l.b16 %v140
    %v221 = vunpack.c.h.b16 %v140
    %v222 = vunpack.c.l.b16 %v141
    %v223 = vunpack.c.h.b16 %v141
    %v224 = vunpack.c.l.b16 %v142
    %v225 = vunpack.c.h.b16 %v142
    %v226 = vunpack.c.l.b16 %v143
    %v227 = vunpack.c.h.b16 %v143
    %v228 = vunpack.c.l.b16 %v144
    %v229 = vunpack.c.h.b16 %v144
    %v230 = vunpack.c.l.b16 %v145
    %v231 = vunpack.c.h.b16 %v145
    %v232 = vunpack.c.l.b16 %v146
    %v233 = vunpack.c.h.b16 %v146
    %v234 = vunpack.c.l.b16 %v147
    %v235 = vunpack.c.h.b16 %v147
    %v236 = vunpack.c.l.b16 %v148
    %v237 = vunpack.c.h.b16 %v148
    %v238 = vunpack.c.l.b16 %v149
    %v239 = vunpack.c.h.b16 %v149
    %v240 = vunpack.c.l.b16 %v150
    %v241 = vunpack.c.h.b16 %v150
    %v242 = vunpack.c.l.b16 %v151
    %v243 = vunpack.c.h.b16 %v151
    %v244 = vunpack.c.l.b16 %v152
    %v245 = vunpack.c.h.b16 %v152
    %v246 = vunpack.c.l.b16 %v153
    %v247 = vunpack.c.h.b16 %v153
    %v248 = vunpack.c.l.b16 %v154
    %v249 = vunpack.c.h.b16 %v154
    %v250 = vunpack.c.l.b16 %v155
    %v251 = vunpack.c.h.b16 %v155
    %v252 = vunpack.c.l.b16 %v156
    %v253 = vunpack.c.h.b16 %v156
    %v254 = vunpack.c.l.b16 %v157
    %v255 = vunpack.c.h.b16 %v157
    %v256 = vunpack.c.l.b16 %v158
    %v257 = vunpack.c.h.b16 %v158
    %v258 = vunpack.c.l.b16 %v159
    %v259 = vunpack.c.h.b16 %v159
    %v260 = vunpack.c.l.b16 %v160
    %v261 = vunpack.c.h.b16 %v160
    %v262 = vunpack.c.l.b16 %v161
    %v263 = vunpack.c.h.b16 %v161
    %v264 = vunpack.c.l.b16 %v162
    %v265 = vunpack.c.h.b16 %v162
    %v266 = vunpack.c.l.b16 %v163
    %v267 = vunpack.c.h.b16 %v163
    %v268 = vunpack.c.l.b16 %v164
    %v269 = vunpack.c.h.b16 %v164
    %v270 = vunpack.c.l.b16 %v165
    %v271 = vunpack.c.h.b16 %v165
    %v272 = vunpack.c.l.b16 %v166
    %v273 = vunpack.c.h.b16 %v166
    %v274 = vunpack.c.l.b16 %v167
    %v275 = vunpack.c.h.b16 %v167
    %v276 = vunpack.c.l.b16 %v168
    %v277 = vunpack.c.h.b16 %v168
    %v278 = vunpack.c.l.b16 %v169
    %v279 = vunpack.c.h.b16 %v169
    %v280 = vunpack.c.l.b16 %v170
    %v281 = vunpack.c.h.b16 %v170
    %v282 = vunpack.c.l.b16 %v171
    %v283 = vunpack.c.h.b16 %v171
    %v284 = vpack.c.b16 %v224, %v220
    %v285 = vpack.c.b16 %v225, %v221
    %v286 = vpack.c.b16 %v226, %v222
    %v287 = vpack.c.b16 %v227, %v223
    %v288 = vpack.c.b16 %v232, %v228
    %v289 = vpack.c.b16 %v233, %v229
    %v290 = vpack.c.b16 %v234, %v230
    %v291 = vpack.c.b16 %v235, %v231
    %v292 = vpack.c.b16 %v240, %v236
    %v293 = vpack.c.b16 %v241, %v237
    %v294 = vpack.c.b16 %v242, %v238
    %v295 = vpack.c.b16 %v243, %v239
    %v296 = vpack.c.b16 %v248, %v244
    %v297 = vpack.c.b16 %v249, %v245
    %v298 = vpack.c.b16 %v250, %v246
    %v299 = vpack.c.b16 %v251, %v247
    %v300 = vpack.c.b16 %v256, %v252
    %v301 = vpack.c.b16 %v257, %v253
    %v302 = vpack.c.b16 %v258, %v254
    %v303 = vpack.c.b16 %v259, %v255
    %v304 = vpack.c.b16 %v264, %v260
    %v305 = vpack.c.b16 %v265, %v261
    %v306 = vpack.c.b16 %v266, %v262
    %v307 = vpack.c.b16 %v267, %v263
    %v308 = vpack.c.b16 %v272, %v268
    %v309 = vpack.c.b16 %v273, %v269
    %v310 = vpack.c.b16 %v274, %v270
    %v311 = vpack.c.b16 %v275, %v271
    %v312 = vpack.c.b16 %v280, %v276
    %v313 = vpack.c.b16 %v281, %v277
    %v314 = vpack.c.b16 %v282, %v278
    %v315 = vpack.c.b16 %v283, %v279
    %348 = vmatpush.bf16.msra.mxu0 %v312
    %349 = vmatpush.bf16.msra.mxu0 %v308
    %350 = vmatpush.bf16.msra.mxu0 %v304
    %351 = vmatpush.bf16.msra.mxu0 %v300
    %352 = vmatpush.bf16.msra.mxu0 %v296
    %353 = vmatpush.bf16.msra.mxu0 %v292
    %354 = vmatpush.bf16.msra.mxu0 %v288
    %355 = vmatpush.bf16.msra.mxu0 %v284
    %356 = vmatmul.bf16.gmra.mxu0 %v186
    %v357 = vpop.f32.mrf.mxu0
    %v358 = vadd.f32 %v174, %v357
    %v359 = vpop.f32.mrf.mxu0
    %v360 = vadd.f32 %v174, %v359
    %361 = vdwg.mxu0
    %362 = vmatpush.bf16.msra.mxu0 %v313
    %363 = vmatpush.bf16.msra.mxu0 %v309
    %364 = vmatpush.bf16.msra.mxu0 %v305
    %365 = vmatpush.bf16.msra.mxu0 %v301
    %366 = vmatpush.bf16.msra.mxu0 %v297
    %367 = vmatpush.bf16.msra.mxu0 %v293
    %368 = vmatpush.bf16.msra.mxu0 %v289
    %369 = vmatpush.bf16.msra.mxu0 %v285
    %370 = vmatmul.bf16.gmra.mxu0 %v186
    %v371 = vpop.f32.mrf.mxu0
    %v372 = vadd.f32 %v175, %v371
    %v373 = vpop.f32.mrf.mxu0
    %v374 = vadd.f32 %v175, %v373
    %375 = vdwg.mxu0
    %376 = vmatpush.bf16.msra.mxu0 %v314
    %377 = vmatpush.bf16.msra.mxu0 %v310
    %378 = vmatpush.bf16.msra.mxu0 %v306
    %379 = vmatpush.bf16.msra.mxu0 %v302
    %380 = vmatpush.bf16.msra.mxu0 %v298
    %381 = vmatpush.bf16.msra.mxu0 %v294
    %382 = vmatpush.bf16.msra.mxu0 %v290
    %383 = vmatpush.bf16.msra.mxu0 %v286
    %384 = vmatmul.bf16.gmra.mxu0 %v186
    %v385 = vpop.f32.mrf.mxu0
    %v386 = vadd.f32 %v176, %v385
    %v387 = vpop.f32.mrf.mxu0
    %v388 = vadd.f32 %v176, %v387
    %389 = vdwg.mxu0
    %390 = vmatpush.bf16.msra.mxu0 %v315
    %391 = vmatpush.bf16.msra.mxu0 %v311
    %392 = vmatpush.bf16.msra.mxu0 %v307
    %393 = vmatpush.bf16.msra.mxu0 %v303
    %394 = vmatpush.bf16.msra.mxu0 %v299
    %395 = vmatpush.bf16.msra.mxu0 %v295
    %396 = vmatpush.bf16.msra.mxu0 %v291
    %397 = vmatpush.bf16.msra.mxu0 %v287
    %398 = vmatmul.bf16.gmra.mxu0 %v186
    %v399 = vpop.f32.mrf.mxu0
    %v400 = vadd.f32 %v177, %v399
    %v401 = vpop.f32.mrf.mxu0
    %v402 = vadd.f32 %v177, %v401
    %403 = vdwg.mxu0
    %v404 = vxor.u32 %v358, 2147483648
    %v405 = vxor.u32 %v372, 2147483648
    %v406 = vxor.u32 %v386, 2147483648
    %v407 = vxor.u32 %v400, 2147483648
    %v408 = vxor.u32 %v360, 2147483648
    %v409 = vxor.u32 %v374, 2147483648
    %v410 = vxor.u32 %v388, 2147483648
    %v411 = vxor.u32 %v402, 2147483648
    %v412 = vmul.f32 %v404, 1.442695
    %v413 = vpow.pop %v412
    %v414 = vmul.f32 %v405, 1.442695
    %v415 = vpow.pop %v414
    %v416 = vmul.f32 %v406, 1.442695
    %v417 = vpow.pop %v416
    %v418 = vmul.f32 %v407, 1.442695
    %v419 = vpow.pop %v418
    %v420 = vmul.f32 %v408, 1.442695
    %v421 = vpow.pop %v420
    %v422 = vmul.f32 %v409, 1.442695
    %v423 = vpow.pop %v422
    %v424 = vmul.f32 %v410, 1.442695
    %v425 = vpow.pop %v424
    %v426 = vmul.f32 %v411, 1.442695
    %v427 = vpow.pop %v426
    %v428 = vadd.f32 %v413, 1.0
    %v429 = vadd.f32 %v415, 1.0
    %v430 = vadd.f32 %v417, 1.0
    %v431 = vadd.f32 %v419, 1.0
    %v432 = vadd.f32 %v421, 1.0
    %v433 = vadd.f32 %v423, 1.0
    %v434 = vadd.f32 %v425, 1.0
    %v435 = vadd.f32 %v427, 1.0
    %v436 = vrcp.pop %v428
    %v437 = vmul.f32 %v428, %v436
    %v438 = vsub.f32 1.0, %v437
    %v439 = vmul.f32 %v436, %v438
    %v440 = vadd.f32 %v436, %v439
    %vm441 = vweird.f32 %v428
    %vm442 = vweird.f32 %v436
    %vm443 = vmor %vm441, %vm442
    %v444 = vsel %vm443, %v436, %v440
    %v445 = vand.u32 2147483647, %v428
    %vm446 = vcmp.eq.f32.partialorder %v445, 8.507059e+37
    %v447 = vand.u32 %v428, 2147483648
    %v448 = vor.u32 1.1754944e-38, %v447
    %v449 = vsel %vm446, %v448, %v444
    %v450 = vmul.f32 1.0, %v449
    %v451 = vrcp.pop %v429
    %v452 = vmul.f32 %v429, %v451
    %v453 = vsub.f32 1.0, %v452
    %v454 = vmul.f32 %v451, %v453
    %v455 = vadd.f32 %v451, %v454
    %vm456 = vweird.f32 %v429
    %vm457 = vweird.f32 %v451
    %vm458 = vmor %vm456, %vm457
    %v459 = vsel %vm458, %v451, %v455
    %v460 = vand.u32 2147483647, %v429
    %vm461 = vcmp.eq.f32.partialorder %v460, 8.507059e+37
    %v462 = vand.u32 %v429, 2147483648
    %v463 = vor.u32 1.1754944e-38, %v462
    %v464 = vsel %vm461, %v463, %v459
    %v465 = vmul.f32 1.0, %v464
    %v466 = vrcp.pop %v430
    %v467 = vmul.f32 %v430, %v466
    %v468 = vsub.f32 1.0, %v467
    %v469 = vmul.f32 %v466, %v468
    %v470 = vadd.f32 %v466, %v469
    %vm471 = vweird.f32 %v430
    %vm472 = vweird.f32 %v466
    %vm473 = vmor %vm471, %vm472
    %v474 = vsel %vm473, %v466, %v470
    %v475 = vand.u32 2147483647, %v430
    %vm476 = vcmp.eq.f32.partialorder %v475, 8.507059e+37
    %v477 = vand.u32 %v430, 2147483648
    %v478 = vor.u32 1.1754944e-38, %v477
    %v479 = vsel %vm476, %v478, %v474
    %v480 = vmul.f32 1.0, %v479
    %v481 = vrcp.pop %v431
    %v482 = vmul.f32 %v431, %v481
    %v483 = vsub.f32 1.0, %v482
    %v484 = vmul.f32 %v481, %v483
    %v485 = vadd.f32 %v481, %v484
    %vm486 = vweird.f32 %v431
    %vm487 = vweird.f32 %v481
    %vm488 = vmor %vm486, %vm487
    %v489 = vsel %vm488, %v481, %v485
    %v490 = vand.u32 2147483647, %v431
    %vm491 = vcmp.eq.f32.partialorder %v490, 8.507059e+37
    %v492 = vand.u32 %v431, 2147483648
    %v493 = vor.u32 1.1754944e-38, %v492
    %v494 = vsel %vm491, %v493, %v489
    %v495 = vmul.f32 1.0, %v494
    %v496 = vrcp.pop %v432
    %v497 = vmul.f32 %v432, %v496
    %v498 = vsub.f32 1.0, %v497
    %v499 = vmul.f32 %v496, %v498
    %v500 = vadd.f32 %v496, %v499
    %vm501 = vweird.f32 %v432
    %vm502 = vweird.f32 %v496
    %vm503 = vmor %vm501, %vm502
    %v504 = vsel %vm503, %v496, %v500
    %v505 = vand.u32 2147483647, %v432
    %vm506 = vcmp.eq.f32.partialorder %v505, 8.507059e+37
    %v507 = vand.u32 %v432, 2147483648
    %v508 = vor.u32 1.1754944e-38, %v507
    %v509 = vsel %vm506, %v508, %v504
    %v510 = vmul.f32 1.0, %v509
    %v511 = vrcp.pop %v433
    %v512 = vmul.f32 %v433, %v511
    %v513 = vsub.f32 1.0, %v512
    %v514 = vmul.f32 %v511, %v513
    %v515 = vadd.f32 %v511, %v514
    %vm516 = vweird.f32 %v433
    %vm517 = vweird.f32 %v511
    %vm518 = vmor %vm516, %vm517
    %v519 = vsel %vm518, %v511, %v515
    %v520 = vand.u32 2147483647, %v433
    %vm521 = vcmp.eq.f32.partialorder %v520, 8.507059e+37
    %v522 = vand.u32 %v433, 2147483648
    %v523 = vor.u32 1.1754944e-38, %v522
    %v524 = vsel %vm521, %v523, %v519
    %v525 = vmul.f32 1.0, %v524
    %v526 = vrcp.pop %v434
    %v527 = vmul.f32 %v434, %v526
    %v528 = vsub.f32 1.0, %v527
    %v529 = vmul.f32 %v526, %v528
    %v530 = vadd.f32 %v526, %v529
    %vm531 = vweird.f32 %v434
    %vm532 = vweird.f32 %v526
    %vm533 = vmor %vm531, %vm532
    %v534 = vsel %vm533, %v526, %v530
    %v535 = vand.u32 2147483647, %v434
    %vm536 = vcmp.eq.f32.partialorder %v535, 8.507059e+37
    %v537 = vand.u32 %v434, 2147483648
    %v538 = vor.u32 1.1754944e-38, %v537
    %v539 = vsel %vm536, %v538, %v534
    %v540 = vmul.f32 1.0, %v539
    %v541 = vrcp.pop %v435
    %v542 = vmul.f32 %v435, %v541
    %v543 = vsub.f32 1.0, %v542
    %v544 = vmul.f32 %v541, %v543
    %v545 = vadd.f32 %v541, %v544
    %vm546 = vweird.f32 %v435
    %vm547 = vweird.f32 %v541
    %vm548 = vmor %vm546, %vm547
    %v549 = vsel %vm548, %v541, %v545
    %v550 = vand.u32 2147483647, %v435
    %vm551 = vcmp.eq.f32.partialorder %v550, 8.507059e+37
    %v552 = vand.u32 %v435, 2147483648
    %v553 = vor.u32 1.1754944e-38, %v552
    %v554 = vsel %vm551, %v553, %v549
    %v555 = vmul.f32 1.0, %v554
    %v556 = vmul.f32 %v358, %v450
    %v557 = vmul.f32 %v372, %v465
    %v558 = vmul.f32 %v386, %v480
    %v559 = vmul.f32 %v400, %v495
    %v560 = vmul.f32 %v360, %v510
    %v561 = vmul.f32 %v374, %v525
    %v562 = vmul.f32 %v388, %v540
    %v563 = vmul.f32 %v402, %v555
    %v564 = vpack.c.bf16 %v560, %v556
    %v565 = vpack.c.bf16 %v561, %v557
    %v566 = vpack.c.bf16 %v562, %v558
    %v567 = vpack.c.bf16 %v563, %v559
    %v568 = vld [vmem:[#allocation8] sm:$0xff]
    %v569 = vld [vmem:[#allocation8 + $0x8] sm:$0xff]
    %v570 = vld [vmem:[#allocation8 + $0x10] sm:$0xff]
    %v571 = vld [vmem:[#allocation8 + $0x18] sm:$0xff]
    %v572 = vld [vmem:[#allocation8 + $0x20] sm:$0xff]
    %v573 = vld [vmem:[#allocation8 + $0x28] sm:$0xff]
    %v574 = vld [vmem:[#allocation8 + $0x30] sm:$0xff]
    %v575 = vld [vmem:[#allocation8 + $0x38] sm:$0xff]
    %v576 = vld [vmem:[#allocation8 + $0x40] sm:$0xff]
    %v577 = vld [vmem:[#allocation8 + $0x48] sm:$0xff]
    %v578 = vld [vmem:[#allocation8 + $0x50] sm:$0xff]
    %v579 = vld [vmem:[#allocation8 + $0x58] sm:$0xff]
    %v580 = vld [vmem:[#allocation8 + $0x60] sm:$0xff]
    %v581 = vld [vmem:[#allocation8 + $0x68] sm:$0xff]
    %v582 = vld [vmem:[#allocation8 + $0x70] sm:$0xff]
    %v583 = vld [vmem:[#allocation8 + $0x78] sm:$0xff]
    %v584 = vld [vmem:[#allocation8 + $0x80] sm:$0xff]
    %v585 = vld [vmem:[#allocation8 + $0x88] sm:$0xff]
    %v586 = vld [vmem:[#allocation8 + $0x90] sm:$0xff]
    %v587 = vld [vmem:[#allocation8 + $0x98] sm:$0xff]
    %v588 = vld [vmem:[#allocation8 + $0xa0] sm:$0xff]
    %v589 = vld [vmem:[#allocation8 + $0xa8] sm:$0xff]
    %v590 = vld [vmem:[#allocation8 + $0xb0] sm:$0xff]
    %v591 = vld [vmem:[#allocation8 + $0xb8] sm:$0xff]
    %v592 = vld [vmem:[#allocation8 + $0xc0] sm:$0xff]
    %v593 = vld [vmem:[#allocation8 + $0xc8] sm:$0xff]
    %v594 = vld [vmem:[#allocation8 + $0xd0] sm:$0xff]
    %v595 = vld [vmem:[#allocation8 + $0xd8] sm:$0xff]
    %v596 = vld [vmem:[#allocation8 + $0xe0] sm:$0xff]
    %v597 = vld [vmem:[#allocation8 + $0xe8] sm:$0xff]
    %v598 = vld [vmem:[#allocation8 + $0xf0] sm:$0xff]
    %v599 = vld [vmem:[#allocation8 + $0xf8] sm:$0xff]
    %v600 = vld [vmem:[#allocation8 + $0x100] sm:$0xff]
    %v601 = vld [vmem:[#allocation8 + $0x108] sm:$0xff]
    %v602 = vld [vmem:[#allocation8 + $0x110] sm:$0xff]
    %v603 = vld [vmem:[#allocation8 + $0x118] sm:$0xff]
    %v604 = vld [vmem:[#allocation8 + $0x120] sm:$0xff]
    %v605 = vld [vmem:[#allocation8 + $0x128] sm:$0xff]
    %v606 = vld [vmem:[#allocation8 + $0x130] sm:$0xff]
    %v607 = vld [vmem:[#allocation8 + $0x138] sm:$0xff]
    %v608 = vld [vmem:[#allocation8 + $0x140] sm:$0xff]
    %v609 = vld [vmem:[#allocation8 + $0x148] sm:$0xff]
    %v610 = vld [vmem:[#allocation8 + $0x150] sm:$0xff]
    %v611 = vld [vmem:[#allocation8 + $0x158] sm:$0xff]
    %v612 = vld [vmem:[#allocation8 + $0x160] sm:$0xff]
    %v613 = vld [vmem:[#allocation8 + $0x168] sm:$0xff]
    %v614 = vld [vmem:[#allocation8 + $0x170] sm:$0xff]
    %v615 = vld [vmem:[#allocation8 + $0x178] sm:$0xff]
    %v616 = vld [vmem:[#allocation8 + $0x180] sm:$0xff]
    %v617 = vld [vmem:[#allocation8 + $0x188] sm:$0xff]
    %v618 = vld [vmem:[#allocation8 + $0x190] sm:$0xff]
    %v619 = vld [vmem:[#allocation8 + $0x198] sm:$0xff]
    %v620 = vld [vmem:[#allocation8 + $0x1a0] sm:$0xff]
    %v621 = vld [vmem:[#allocation8 + $0x1a8] sm:$0xff]
    %v622 = vld [vmem:[#allocation8 + $0x1b0] sm:$0xff]
    %v623 = vld [vmem:[#allocation8 + $0x1b8] sm:$0xff]
    %v624 = vld [vmem:[#allocation8 + $0x1c0] sm:$0xff]
    %v625 = vld [vmem:[#allocation8 + $0x1c8] sm:$0xff]
    %v626 = vld [vmem:[#allocation8 + $0x1d0] sm:$0xff]
    %v627 = vld [vmem:[#allocation8 + $0x1d8] sm:$0xff]
    %v628 = vld [vmem:[#allocation8 + $0x1e0] sm:$0xff]
    %v629 = vld [vmem:[#allocation8 + $0x1e8] sm:$0xff]
    %v630 = vld [vmem:[#allocation8 + $0x1f0] sm:$0xff]
    %v631 = vld [vmem:[#allocation8 + $0x1f8] sm:$0xff]
    %v632 = vld [vmem:[#allocation8 + $0x200] sm:$0xff]
    %v633 = vld [vmem:[#allocation8 + $0x208] sm:$0xff]
    %v634 = vld [vmem:[#allocation8 + $0x210] sm:$0xff]
    %v635 = vld [vmem:[#allocation8 + $0x218] sm:$0xff]
    %v636 = vld [vmem:[#allocation8 + $0x220] sm:$0xff]
    %v637 = vld [vmem:[#allocation8 + $0x228] sm:$0xff]
    %v638 = vld [vmem:[#allocation8 + $0x230] sm:$0xff]
    %v639 = vld [vmem:[#allocation8 + $0x238] sm:$0xff]
    %v640 = vld [vmem:[#allocation8 + $0x240] sm:$0xff]
    %v641 = vld [vmem:[#allocation8 + $0x248] sm:$0xff]
    %v642 = vld [vmem:[#allocation8 + $0x250] sm:$0xff]
    %v643 = vld [vmem:[#allocation8 + $0x258] sm:$0xff]
    %v644 = vld [vmem:[#allocation8 + $0x260] sm:$0xff]
    %v645 = vld [vmem:[#allocation8 + $0x268] sm:$0xff]
    %v646 = vld [vmem:[#allocation8 + $0x270] sm:$0xff]
    %v647 = vld [vmem:[#allocation8 + $0x278] sm:$0xff]
    %v648 = vld [vmem:[#allocation8 + $0x280] sm:$0xff]
    %v649 = vld [vmem:[#allocation8 + $0x288] sm:$0xff]
    %v650 = vld [vmem:[#allocation8 + $0x290] sm:$0xff]
    %v651 = vld [vmem:[#allocation8 + $0x298] sm:$0xff]
    %v652 = vld [vmem:[#allocation8 + $0x2a0] sm:$0xff]
    %v653 = vld [vmem:[#allocation8 + $0x2a8] sm:$0xff]
    %v654 = vld [vmem:[#allocation8 + $0x2b0] sm:$0xff]
    %v655 = vld [vmem:[#allocation8 + $0x2b8] sm:$0xff]
    %v656 = vld [vmem:[#allocation8 + $0x2c0] sm:$0xff]
    %v657 = vld [vmem:[#allocation8 + $0x2c8] sm:$0xff]
    %v658 = vld [vmem:[#allocation8 + $0x2d0] sm:$0xff]
    %v659 = vld [vmem:[#allocation8 + $0x2d8] sm:$0xff]
    %v660 = vld [vmem:[#allocation8 + $0x2e0] sm:$0xff]
    %v661 = vld [vmem:[#allocation8 + $0x2e8] sm:$0xff]
    %v662 = vld [vmem:[#allocation8 + $0x2f0] sm:$0xff]
    %v663 = vld [vmem:[#allocation8 + $0x2f8] sm:$0xff]
    %v664 = vld [vmem:[#allocation8 + $0x300] sm:$0xff]
    %v665 = vld [vmem:[#allocation8 + $0x308] sm:$0xff]
    %v666 = vld [vmem:[#allocation8 + $0x310] sm:$0xff]
    %v667 = vld [vmem:[#allocation8 + $0x318] sm:$0xff]
    %v668 = vld [vmem:[#allocation8 + $0x320] sm:$0xff]
    %v669 = vld [vmem:[#allocation8 + $0x328] sm:$0xff]
    %v670 = vld [vmem:[#allocation8 + $0x330] sm:$0xff]
    %v671 = vld [vmem:[#allocation8 + $0x338] sm:$0xff]
    %v672 = vld [vmem:[#allocation8 + $0x340] sm:$0xff]
    %v673 = vld [vmem:[#allocation8 + $0x348] sm:$0xff]
    %v674 = vld [vmem:[#allocation8 + $0x350] sm:$0xff]
    %v675 = vld [vmem:[#allocation8 + $0x358] sm:$0xff]
    %v676 = vld [vmem:[#allocation8 + $0x360] sm:$0xff]
    %v677 = vld [vmem:[#allocation8 + $0x368] sm:$0xff]
    %v678 = vld [vmem:[#allocation8 + $0x370] sm:$0xff]
    %v679 = vld [vmem:[#allocation8 + $0x378] sm:$0xff]
    %v680 = vld [vmem:[#allocation8 + $0x380] sm:$0xff]
    %v681 = vld [vmem:[#allocation8 + $0x388] sm:$0xff]
    %v682 = vld [vmem:[#allocation8 + $0x390] sm:$0xff]
    %v683 = vld [vmem:[#allocation8 + $0x398] sm:$0xff]
    %v684 = vld [vmem:[#allocation8 + $0x3a0] sm:$0xff]
    %v685 = vld [vmem:[#allocation8 + $0x3a8] sm:$0xff]
    %v686 = vld [vmem:[#allocation8 + $0x3b0] sm:$0xff]
    %v687 = vld [vmem:[#allocation8 + $0x3b8] sm:$0xff]
    %v688 = vld [vmem:[#allocation8 + $0x3c0] sm:$0xff]
    %v689 = vld [vmem:[#allocation8 + $0x3c8] sm:$0xff]
    %v690 = vld [vmem:[#allocation8 + $0x3d0] sm:$0xff]
    %v691 = vld [vmem:[#allocation8 + $0x3d8] sm:$0xff]
    %v692 = vld [vmem:[#allocation8 + $0x3e0] sm:$0xff]
    %v693 = vld [vmem:[#allocation8 + $0x3e8] sm:$0xff]
    %v694 = vld [vmem:[#allocation8 + $0x3f0] sm:$0xff]
    %v695 = vld [vmem:[#allocation8 + $0x3f8] sm:$0xff]
    %v696 = vld [vmem:[#allocation8 + $0x400] sm:$0xff]
    %v697 = vld [vmem:[#allocation8 + $0x408] sm:$0xff]
    %v698 = vld [vmem:[#allocation8 + $0x410] sm:$0xff]
    %v699 = vld [vmem:[#allocation8 + $0x418] sm:$0xff]
    %v700 = vld [vmem:[#allocation8 + $0x420] sm:$0xff]
    %v701 = vld [vmem:[#allocation8 + $0x428] sm:$0xff]
    %v702 = vld [vmem:[#allocation8 + $0x430] sm:$0xff]
    %v703 = vld [vmem:[#allocation8 + $0x438] sm:$0xff]
    %v704 = vld [vmem:[#allocation8 + $0x440] sm:$0xff]
    %v705 = vld [vmem:[#allocation8 + $0x448] sm:$0xff]
    %v706 = vld [vmem:[#allocation8 + $0x450] sm:$0xff]
    %v707 = vld [vmem:[#allocation8 + $0x458] sm:$0xff]
    %v708 = vld [vmem:[#allocation8 + $0x460] sm:$0xff]
    %v709 = vld [vmem:[#allocation8 + $0x468] sm:$0xff]
    %v710 = vld [vmem:[#allocation8 + $0x470] sm:$0xff]
    %v711 = vld [vmem:[#allocation8 + $0x478] sm:$0xff]
    %v712 = vld [vmem:[#allocation8 + $0x480] sm:$0xff]
    %v713 = vld [vmem:[#allocation8 + $0x488] sm:$0xff]
    %v714 = vld [vmem:[#allocation8 + $0x490] sm:$0xff]
    %v715 = vld [vmem:[#allocation8 + $0x498] sm:$0xff]
    %v716 = vld [vmem:[#allocation8 + $0x4a0] sm:$0xff]
    %v717 = vld [vmem:[#allocation8 + $0x4a8] sm:$0xff]
    %v718 = vld [vmem:[#allocation8 + $0x4b0] sm:$0xff]
    %v719 = vld [vmem:[#allocation8 + $0x4b8] sm:$0xff]
    %v720 = vld [vmem:[#allocation8 + $0x4c0] sm:$0xff]
    %v721 = vld [vmem:[#allocation8 + $0x4c8] sm:$0xff]
    %v722 = vld [vmem:[#allocation8 + $0x4d0] sm:$0xff]
    %v723 = vld [vmem:[#allocation8 + $0x4d8] sm:$0xff]
    %v724 = vld [vmem:[#allocation8 + $0x4e0] sm:$0xff]
    %v725 = vld [vmem:[#allocation8 + $0x4e8] sm:$0xff]
    %v726 = vld [vmem:[#allocation8 + $0x4f0] sm:$0xff]
    %v727 = vld [vmem:[#allocation8 + $0x4f8] sm:$0xff]
    %v728 = vld [vmem:[#allocation8 + $0x500] sm:$0xff]
    %v729 = vld [vmem:[#allocation8 + $0x508] sm:$0xff]
    %v730 = vld [vmem:[#allocation8 + $0x510] sm:$0xff]
    %v731 = vld [vmem:[#allocation8 + $0x518] sm:$0xff]
    %v732 = vld [vmem:[#allocation8 + $0x520] sm:$0xff]
    %v733 = vld [vmem:[#allocation8 + $0x528] sm:$0xff]
    %v734 = vld [vmem:[#allocation8 + $0x530] sm:$0xff]
    %v735 = vld [vmem:[#allocation8 + $0x538] sm:$0xff]
    %v736 = vld [vmem:[#allocation8 + $0x540] sm:$0xff]
    %v737 = vld [vmem:[#allocation8 + $0x548] sm:$0xff]
    %v738 = vld [vmem:[#allocation8 + $0x550] sm:$0xff]
    %v739 = vld [vmem:[#allocation8 + $0x558] sm:$0xff]
    %v740 = vld [vmem:[#allocation8 + $0x560] sm:$0xff]
    %v741 = vld [vmem:[#allocation8 + $0x568] sm:$0xff]
    %v742 = vld [vmem:[#allocation8 + $0x570] sm:$0xff]
    %v743 = vld [vmem:[#allocation8 + $0x578] sm:$0xff]
    %v744 = vld [vmem:[#allocation8 + $0x580] sm:$0xff]
    %v745 = vld [vmem:[#allocation8 + $0x588] sm:$0xff]
    %v746 = vld [vmem:[#allocation8 + $0x590] sm:$0xff]
    %v747 = vld [vmem:[#allocation8 + $0x598] sm:$0xff]
    %v748 = vld [vmem:[#allocation8 + $0x5a0] sm:$0xff]
    %v749 = vld [vmem:[#allocation8 + $0x5a8] sm:$0xff]
    %v750 = vld [vmem:[#allocation8 + $0x5b0] sm:$0xff]
    %v751 = vld [vmem:[#allocation8 + $0x5b8] sm:$0xff]
    %v752 = vld [vmem:[#allocation8 + $0x5c0] sm:$0xff]
    %v753 = vld [vmem:[#allocation8 + $0x5c8] sm:$0xff]
    %v754 = vld [vmem:[#allocation8 + $0x5d0] sm:$0xff]
    %v755 = vld [vmem:[#allocation8 + $0x5d8] sm:$0xff]
    %v756 = vld [vmem:[#allocation8 + $0x5e0] sm:$0xff]
    %v757 = vld [vmem:[#allocation8 + $0x5e8] sm:$0xff]
    %v758 = vld [vmem:[#allocation8 + $0x5f0] sm:$0xff]
    %v759 = vld [vmem:[#allocation8 + $0x5f8] sm:$0xff]
    %v760 = vld [vmem:[#allocation8 + $0x600] sm:$0xff]
    %v761 = vld [vmem:[#allocation8 + $0x608] sm:$0xff]
    %v762 = vld [vmem:[#allocation8 + $0x610] sm:$0xff]
    %v763 = vld [vmem:[#allocation8 + $0x618] sm:$0xff]
    %v764 = vld [vmem:[#allocation8 + $0x620] sm:$0xff]
    %v765 = vld [vmem:[#allocation8 + $0x628] sm:$0xff]
    %v766 = vld [vmem:[#allocation8 + $0x630] sm:$0xff]
    %v767 = vld [vmem:[#allocation8 + $0x638] sm:$0xff]
    %v768 = vld [vmem:[#allocation8 + $0x640] sm:$0xff]
    %v769 = vld [vmem:[#allocation8 + $0x648] sm:$0xff]
    %v770 = vld [vmem:[#allocation8 + $0x650] sm:$0xff]
    %v771 = vld [vmem:[#allocation8 + $0x658] sm:$0xff]
    %v772 = vld [vmem:[#allocation8 + $0x660] sm:$0xff]
    %v773 = vld [vmem:[#allocation8 + $0x668] sm:$0xff]
    %v774 = vld [vmem:[#allocation8 + $0x670] sm:$0xff]
    %v775 = vld [vmem:[#allocation8 + $0x678] sm:$0xff]
    %v776 = vld [vmem:[#allocation8 + $0x680] sm:$0xff]
    %v777 = vld [vmem:[#allocation8 + $0x688] sm:$0xff]
    %v778 = vld [vmem:[#allocation8 + $0x690] sm:$0xff]
    %v779 = vld [vmem:[#allocation8 + $0x698] sm:$0xff]
    %v780 = vld [vmem:[#allocation8 + $0x6a0] sm:$0xff]
    %v781 = vld [vmem:[#allocation8 + $0x6a8] sm:$0xff]
    %v782 = vld [vmem:[#allocation8 + $0x6b0] sm:$0xff]
    %v783 = vld [vmem:[#allocation8 + $0x6b8] sm:$0xff]
    %v784 = vld [vmem:[#allocation8 + $0x6c0] sm:$0xff]
    %v785 = vld [vmem:[#allocation8 + $0x6c8] sm:$0xff]
    %v786 = vld [vmem:[#allocation8 + $0x6d0] sm:$0xff]
    %v787 = vld [vmem:[#allocation8 + $0x6d8] sm:$0xff]
    %v788 = vld [vmem:[#allocation8 + $0x6e0] sm:$0xff]
    %v789 = vld [vmem:[#allocation8 + $0x6e8] sm:$0xff]
    %v790 = vld [vmem:[#allocation8 + $0x6f0] sm:$0xff]
    %v791 = vld [vmem:[#allocation8 + $0x6f8] sm:$0xff]
    %v792 = vld [vmem:[#allocation8 + $0x700] sm:$0xff]
    %v793 = vld [vmem:[#allocation8 + $0x708] sm:$0xff]
    %v794 = vld [vmem:[#allocation8 + $0x710] sm:$0xff]
    %v795 = vld [vmem:[#allocation8 + $0x718] sm:$0xff]
    %v796 = vld [vmem:[#allocation8 + $0x720] sm:$0xff]
    %v797 = vld [vmem:[#allocation8 + $0x728] sm:$0xff]
    %v798 = vld [vmem:[#allocation8 + $0x730] sm:$0xff]
    %v799 = vld [vmem:[#allocation8 + $0x738] sm:$0xff]
    %v800 = vld [vmem:[#allocation8 + $0x740] sm:$0xff]
    %v801 = vld [vmem:[#allocation8 + $0x748] sm:$0xff]
    %v802 = vld [vmem:[#allocation8 + $0x750] sm:$0xff]
    %v803 = vld [vmem:[#allocation8 + $0x758] sm:$0xff]
    %v804 = vld [vmem:[#allocation8 + $0x760] sm:$0xff]
    %v805 = vld [vmem:[#allocation8 + $0x768] sm:$0xff]
    %v806 = vld [vmem:[#allocation8 + $0x770] sm:$0xff]
    %v807 = vld [vmem:[#allocation8 + $0x778] sm:$0xff]
    %v808 = vld [vmem:[#allocation8 + $0x780] sm:$0xff]
    %v809 = vld [vmem:[#allocation8 + $0x788] sm:$0xff]
    %v810 = vld [vmem:[#allocation8 + $0x790] sm:$0xff]
    %v811 = vld [vmem:[#allocation8 + $0x798] sm:$0xff]
    %v812 = vld [vmem:[#allocation8 + $0x7a0] sm:$0xff]
    %v813 = vld [vmem:[#allocation8 + $0x7a8] sm:$0xff]
    %v814 = vld [vmem:[#allocation8 + $0x7b0] sm:$0xff]
    %v815 = vld [vmem:[#allocation8 + $0x7b8] sm:$0xff]
    %v816 = vld [vmem:[#allocation8 + $0x7c0] sm:$0xff]
    %v817 = vld [vmem:[#allocation8 + $0x7c8] sm:$0xff]
    %v818 = vld [vmem:[#allocation8 + $0x7d0] sm:$0xff]
    %v819 = vld [vmem:[#allocation8 + $0x7d8] sm:$0xff]
    %v820 = vld [vmem:[#allocation8 + $0x7e0] sm:$0xff]
    %v821 = vld [vmem:[#allocation8 + $0x7e8] sm:$0xff]
    %v822 = vld [vmem:[#allocation8 + $0x7f0] sm:$0xff]
    %v823 = vld [vmem:[#allocation8 + $0x7f8] sm:$0xff]
    %v824 = vld [vmem:[#allocation10] sm:$0xff]
    %v826 = vperm.slane %v824, 0
    %v827 = vperm.slane %v824, 1
    %v828 = vperm.slane %v824, 2
    %v829 = vperm.slane %v824, 3
    %v830 = vperm.slane %v824, 4
    %v831 = vperm.slane %v824, 5
    %v832 = vperm.slane %v824, 6
    %v833 = vperm.slane %v824, 7
    %v1098 = vunpack.c.l.b16 %v568
    %v1099 = vunpack.c.h.b16 %v568
    %v1100 = vunpack.c.l.b16 %v569
    %v1101 = vunpack.c.h.b16 %v569
    %v1102 = vunpack.c.l.b16 %v570
    %v1103 = vunpack.c.h.b16 %v570
    %v1104 = vunpack.c.l.b16 %v571
    %v1105 = vunpack.c.h.b16 %v571
    %v1106 = vunpack.c.l.b16 %v572
    %v1107 = vunpack.c.h.b16 %v572
    %v1108 = vunpack.c.l.b16 %v573
    %v1109 = vunpack.c.h.b16 %v573
    %v1110 = vunpack.c.l.b16 %v574
    %v1111 = vunpack.c.h.b16 %v574
    %v1112 = vunpack.c.l.b16 %v575
    %v1113 = vunpack.c.h.b16 %v575
    %v1114 = vunpack.c.l.b16 %v576
    %v1115 = vunpack.c.h.b16 %v576
    %v1116 = vunpack.c.l.b16 %v577
    %v1117 = vunpack.c.h.b16 %v577
    %v1118 = vunpack.c.l.b16 %v578
    %v1119 = vunpack.c.h.b16 %v578
    %v1120 = vunpack.c.l.b16 %v579
    %v1121 = vunpack.c.h.b16 %v579
    %v1122 = vunpack.c.l.b16 %v580
    %v1123 = vunpack.c.h.b16 %v580
    %v1124 = vunpack.c.l.b16 %v581
    %v1125 = vunpack.c.h.b16 %v581
    %v1126 = vunpack.c.l.b16 %v582
    %v1127 = vunpack.c.h.b16 %v582
    %v1128 = vunpack.c.l.b16 %v583
    %v1129 = vunpack.c.h.b16 %v583
    %v1130 = vunpack.c.l.b16 %v584
    %v1131 = vunpack.c.h.b16 %v584
    %v1132 = vunpack.c.l.b16 %v585
    %v1133 = vunpack.c.h.b16 %v585
    %v1134 = vunpack.c.l.b16 %v586
    %v1135 = vunpack.c.h.b16 %v586
    %v1136 = vunpack.c.l.b16 %v587
    %v1137 = vunpack.c.h.b16 %v587
    %v1138 = vunpack.c.l.b16 %v588
    %v1139 = vunpack.c.h.b16 %v588
    %v1140 = vunpack.c.l.b16 %v589
    %v1141 = vunpack.c.h.b16 %v589
    %v1142 = vunpack.c.l.b16 %v590
    %v1143 = vunpack.c.h.b16 %v590
    %v1144 = vunpack.c.l.b16 %v591
    %v1145 = vunpack.c.h.b16 %v591
    %v1146 = vunpack.c.l.b16 %v592
    %v1147 = vunpack.c.h.b16 %v592
    %v1148 = vunpack.c.l.b16 %v593
    %v1149 = vunpack.c.h.b16 %v593
    %v1150 = vunpack.c.l.b16 %v594
    %v1151 = vunpack.c.h.b16 %v594
    %v1152 = vunpack.c.l.b16 %v595
    %v1153 = vunpack.c.h.b16 %v595
    %v1154 = vunpack.c.l.b16 %v596
    %v1155 = vunpack.c.h.b16 %v596
    %v1156 = vunpack.c.l.b16 %v597
    %v1157 = vunpack.c.h.b16 %v597
    %v1158 = vunpack.c.l.b16 %v598
    %v1159 = vunpack.c.h.b16 %v598
    %v1160 = vunpack.c.l.b16 %v599
    %v1161 = vunpack.c.h.b16 %v599
    %v1162 = vunpack.c.l.b16 %v600
    %v1163 = vunpack.c.h.b16 %v600
    %v1164 = vunpack.c.l.b16 %v601
    %v1165 = vunpack.c.h.b16 %v601
    %v1166 = vunpack.c.l.b16 %v602
    %v1167 = vunpack.c.h.b16 %v602
    %v1168 = vunpack.c.l.b16 %v603
    %v1169 = vunpack.c.h.b16 %v603
    %v1170 = vunpack.c.l.b16 %v604
    %v1171 = vunpack.c.h.b16 %v604
    %v1172 = vunpack.c.l.b16 %v605
    %v1173 = vunpack.c.h.b16 %v605
    %v1174 = vunpack.c.l.b16 %v606
    %v1175 = vunpack.c.h.b16 %v606
    %v1176 = vunpack.c.l.b16 %v607
    %v1177 = vunpack.c.h.b16 %v607
    %v1178 = vunpack.c.l.b16 %v608
    %v1179 = vunpack.c.h.b16 %v608
    %v1180 = vunpack.c.l.b16 %v609
    %v1181 = vunpack.c.h.b16 %v609
    %v1182 = vunpack.c.l.b16 %v610
    %v1183 = vunpack.c.h.b16 %v610
    %v1184 = vunpack.c.l.b16 %v611
    %v1185 = vunpack.c.h.b16 %v611
    %v1186 = vunpack.c.l.b16 %v612
    %v1187 = vunpack.c.h.b16 %v612
    %v1188 = vunpack.c.l.b16 %v613
    %v1189 = vunpack.c.h.b16 %v613
    %v1190 = vunpack.c.l.b16 %v614
    %v1191 = vunpack.c.h.b16 %v614
    %v1192 = vunpack.c.l.b16 %v615
    %v1193 = vunpack.c.h.b16 %v615
    %v1194 = vunpack.c.l.b16 %v616
    %v1195 = vunpack.c.h.b16 %v616
    %v1196 = vunpack.c.l.b16 %v617
    %v1197 = vunpack.c.h.b16 %v617
    %v1198 = vunpack.c.l.b16 %v618
    %v1199 = vunpack.c.h.b16 %v618
    %v1200 = vunpack.c.l.b16 %v619
    %v1201 = vunpack.c.h.b16 %v619
    %v1202 = vunpack.c.l.b16 %v620
    %v1203 = vunpack.c.h.b16 %v620
    %v1204 = vunpack.c.l.b16 %v621
    %v1205 = vunpack.c.h.b16 %v621
    %v1206 = vunpack.c.l.b16 %v622
    %v1207 = vunpack.c.h.b16 %v622
    %v1208 = vunpack.c.l.b16 %v623
    %v1209 = vunpack.c.h.b16 %v623
    %v1210 = vunpack.c.l.b16 %v624
    %v1211 = vunpack.c.h.b16 %v624
    %v1212 = vunpack.c.l.b16 %v625
    %v1213 = vunpack.c.h.b16 %v625
    %v1214 = vunpack.c.l.b16 %v626
    %v1215 = vunpack.c.h.b16 %v626
    %v1216 = vunpack.c.l.b16 %v627
    %v1217 = vunpack.c.h.b16 %v627
    %v1218 = vunpack.c.l.b16 %v628
    %v1219 = vunpack.c.h.b16 %v628
    %v1220 = vunpack.c.l.b16 %v629
    %v1221 = vunpack.c.h.b16 %v629
    %v1222 = vunpack.c.l.b16 %v630
    %v1223 = vunpack.c.h.b16 %v630
    %v1224 = vunpack.c.l.b16 %v631
    %v1225 = vunpack.c.h.b16 %v631
    %v1226 = vunpack.c.l.b16 %v632
    %v1227 = vunpack.c.h.b16 %v632
    %v1228 = vunpack.c.l.b16 %v633
    %v1229 = vunpack.c.h.b16 %v633
    %v1230 = vunpack.c.l.b16 %v634
    %v1231 = vunpack.c.h.b16 %v634
    %v1232 = vunpack.c.l.b16 %v635
    %v1233 = vunpack.c.h.b16 %v635
    %v1234 = vunpack.c.l.b16 %v636
    %v1235 = vunpack.c.h.b16 %v636
    %v1236 = vunpack.c.l.b16 %v637
    %v1237 = vunpack.c.h.b16 %v637
    %v1238 = vunpack.c.l.b16 %v638
    %v1239 = vunpack.c.h.b16 %v638
    %v1240 = vunpack.c.l.b16 %v639
    %v1241 = vunpack.c.h.b16 %v639
    %v1242 = vunpack.c.l.b16 %v640
    %v1243 = vunpack.c.h.b16 %v640
    %v1244 = vunpack.c.l.b16 %v641
    %v1245 = vunpack.c.h.b16 %v641
    %v1246 = vunpack.c.l.b16 %v642
    %v1247 = vunpack.c.h.b16 %v642
    %v1248 = vunpack.c.l.b16 %v643
    %v1249 = vunpack.c.h.b16 %v643
    %v1250 = vunpack.c.l.b16 %v644
    %v1251 = vunpack.c.h.b16 %v644
    %v1252 = vunpack.c.l.b16 %v645
    %v1253 = vunpack.c.h.b16 %v645
    %v1254 = vunpack.c.l.b16 %v646
    %v1255 = vunpack.c.h.b16 %v646
    %v1256 = vunpack.c.l.b16 %v647
    %v1257 = vunpack.c.h.b16 %v647
    %v1258 = vunpack.c.l.b16 %v648
    %v1259 = vunpack.c.h.b16 %v648
    %v1260 = vunpack.c.l.b16 %v649
    %v1261 = vunpack.c.h.b16 %v649
    %v1262 = vunpack.c.l.b16 %v650
    %v1263 = vunpack.c.h.b16 %v650
    %v1264 = vunpack.c.l.b16 %v651
    %v1265 = vunpack.c.h.b16 %v651
    %v1266 = vunpack.c.l.b16 %v652
    %v1267 = vunpack.c.h.b16 %v652
    %v1268 = vunpack.c.l.b16 %v653
    %v1269 = vunpack.c.h.b16 %v653
    %v1270 = vunpack.c.l.b16 %v654
    %v1271 = vunpack.c.h.b16 %v654
    %v1272 = vunpack.c.l.b16 %v655
    %v1273 = vunpack.c.h.b16 %v655
    %v1274 = vunpack.c.l.b16 %v656
    %v1275 = vunpack.c.h.b16 %v656
    %v1276 = vunpack.c.l.b16 %v657
    %v1277 = vunpack.c.h.b16 %v657
    %v1278 = vunpack.c.l.b16 %v658
    %v1279 = vunpack.c.h.b16 %v658
    %v1280 = vunpack.c.l.b16 %v659
    %v1281 = vunpack.c.h.b16 %v659
    %v1282 = vunpack.c.l.b16 %v660
    %v1283 = vunpack.c.h.b16 %v660
    %v1284 = vunpack.c.l.b16 %v661
    %v1285 = vunpack.c.h.b16 %v661
    %v1286 = vunpack.c.l.b16 %v662
    %v1287 = vunpack.c.h.b16 %v662
    %v1288 = vunpack.c.l.b16 %v663
    %v1289 = vunpack.c.h.b16 %v663
    %v1290 = vunpack.c.l.b16 %v664
    %v1291 = vunpack.c.h.b16 %v664
    %v1292 = vunpack.c.l.b16 %v665
    %v1293 = vunpack.c.h.b16 %v665
    %v1294 = vunpack.c.l.b16 %v666
    %v1295 = vunpack.c.h.b16 %v666
    %v1296 = vunpack.c.l.b16 %v667
    %v1297 = vunpack.c.h.b16 %v667
    %v1298 = vunpack.c.l.b16 %v668
    %v1299 = vunpack.c.h.b16 %v668
    %v1300 = vunpack.c.l.b16 %v669
    %v1301 = vunpack.c.h.b16 %v669
    %v1302 = vunpack.c.l.b16 %v670
    %v1303 = vunpack.c.h.b16 %v670
    %v1304 = vunpack.c.l.b16 %v671
    %v1305 = vunpack.c.h.b16 %v671
    %v1306 = vunpack.c.l.b16 %v672
    %v1307 = vunpack.c.h.b16 %v672
    %v1308 = vunpack.c.l.b16 %v673
    %v1309 = vunpack.c.h.b16 %v673
    %v1310 = vunpack.c.l.b16 %v674
    %v1311 = vunpack.c.h.b16 %v674
    %v1312 = vunpack.c.l.b16 %v675
    %v1313 = vunpack.c.h.b16 %v675
    %v1314 = vunpack.c.l.b16 %v676
    %v1315 = vunpack.c.h.b16 %v676
    %v1316 = vunpack.c.l.b16 %v677
    %v1317 = vunpack.c.h.b16 %v677
    %v1318 = vunpack.c.l.b16 %v678
    %v1319 = vunpack.c.h.b16 %v678
    %v1320 = vunpack.c.l.b16 %v679
    %v1321 = vunpack.c.h.b16 %v679
    %v1322 = vunpack.c.l.b16 %v680
    %v1323 = vunpack.c.h.b16 %v680
    %v1324 = vunpack.c.l.b16 %v681
    %v1325 = vunpack.c.h.b16 %v681
    %v1326 = vunpack.c.l.b16 %v682
    %v1327 = vunpack.c.h.b16 %v682
    %v1328 = vunpack.c.l.b16 %v683
    %v1329 = vunpack.c.h.b16 %v683
    %v1330 = vunpack.c.l.b16 %v684
    %v1331 = vunpack.c.h.b16 %v684
    %v1332 = vunpack.c.l.b16 %v685
    %v1333 = vunpack.c.h.b16 %v685
    %v1334 = vunpack.c.l.b16 %v686
    %v1335 = vunpack.c.h.b16 %v686
    %v1336 = vunpack.c.l.b16 %v687
    %v1337 = vunpack.c.h.b16 %v687
    %v1338 = vunpack.c.l.b16 %v688
    %v1339 = vunpack.c.h.b16 %v688
    %v1340 = vunpack.c.l.b16 %v689
    %v1341 = vunpack.c.h.b16 %v689
    %v1342 = vunpack.c.l.b16 %v690
    %v1343 = vunpack.c.h.b16 %v690
    %v1344 = vunpack.c.l.b16 %v691
    %v1345 = vunpack.c.h.b16 %v691
    %v1346 = vunpack.c.l.b16 %v692
    %v1347 = vunpack.c.h.b16 %v692
    %v1348 = vunpack.c.l.b16 %v693
    %v1349 = vunpack.c.h.b16 %v693
    %v1350 = vunpack.c.l.b16 %v694
    %v1351 = vunpack.c.h.b16 %v694
    %v1352 = vunpack.c.l.b16 %v695
    %v1353 = vunpack.c.h.b16 %v695
    %v1354 = vunpack.c.l.b16 %v696
    %v1355 = vunpack.c.h.b16 %v696
    %v1356 = vunpack.c.l.b16 %v697
    %v1357 = vunpack.c.h.b16 %v697
    %v1358 = vunpack.c.l.b16 %v698
    %v1359 = vunpack.c.h.b16 %v698
    %v1360 = vunpack.c.l.b16 %v699
    %v1361 = vunpack.c.h.b16 %v699
    %v1362 = vunpack.c.l.b16 %v700
    %v1363 = vunpack.c.h.b16 %v700
    %v1364 = vunpack.c.l.b16 %v701
    %v1365 = vunpack.c.h.b16 %v701
    %v1366 = vunpack.c.l.b16 %v702
    %v1367 = vunpack.c.h.b16 %v702
    %v1368 = vunpack.c.l.b16 %v703
    %v1369 = vunpack.c.h.b16 %v703
    %v1370 = vunpack.c.l.b16 %v704
    %v1371 = vunpack.c.h.b16 %v704
    %v1372 = vunpack.c.l.b16 %v705
    %v1373 = vunpack.c.h.b16 %v705
    %v1374 = vunpack.c.l.b16 %v706
    %v1375 = vunpack.c.h.b16 %v706
    %v1376 = vunpack.c.l.b16 %v707
    %v1377 = vunpack.c.h.b16 %v707
    %v1378 = vunpack.c.l.b16 %v708
    %v1379 = vunpack.c.h.b16 %v708
    %v1380 = vunpack.c.l.b16 %v709
    %v1381 = vunpack.c.h.b16 %v709
    %v1382 = vunpack.c.l.b16 %v710
    %v1383 = vunpack.c.h.b16 %v710
    %v1384 = vunpack.c.l.b16 %v711
    %v1385 = vunpack.c.h.b16 %v711
    %v1386 = vunpack.c.l.b16 %v712
    %v1387 = vunpack.c.h.b16 %v712
    %v1388 = vunpack.c.l.b16 %v713
    %v1389 = vunpack.c.h.b16 %v713
    %v1390 = vunpack.c.l.b16 %v714
    %v1391 = vunpack.c.h.b16 %v714
    %v1392 = vunpack.c.l.b16 %v715
    %v1393 = vunpack.c.h.b16 %v715
    %v1394 = vunpack.c.l.b16 %v716
    %v1395 = vunpack.c.h.b16 %v716
    %v1396 = vunpack.c.l.b16 %v717
    %v1397 = vunpack.c.h.b16 %v717
    %v1398 = vunpack.c.l.b16 %v718
    %v1399 = vunpack.c.h.b16 %v718
    %v1400 = vunpack.c.l.b16 %v719
    %v1401 = vunpack.c.h.b16 %v719
    %v1402 = vunpack.c.l.b16 %v720
    %v1403 = vunpack.c.h.b16 %v720
    %v1404 = vunpack.c.l.b16 %v721
    %v1405 = vunpack.c.h.b16 %v721
    %v1406 = vunpack.c.l.b16 %v722
    %v1407 = vunpack.c.h.b16 %v722
    %v1408 = vunpack.c.l.b16 %v723
    %v1409 = vunpack.c.h.b16 %v723
    %v1410 = vunpack.c.l.b16 %v724
    %v1411 = vunpack.c.h.b16 %v724
    %v1412 = vunpack.c.l.b16 %v725
    %v1413 = vunpack.c.h.b16 %v725
    %v1414 = vunpack.c.l.b16 %v726
    %v1415 = vunpack.c.h.b16 %v726
    %v1416 = vunpack.c.l.b16 %v727
    %v1417 = vunpack.c.h.b16 %v727
    %v1418 = vunpack.c.l.b16 %v728
    %v1419 = vunpack.c.h.b16 %v728
    %v1420 = vunpack.c.l.b16 %v729
    %v1421 = vunpack.c.h.b16 %v729
    %v1422 = vunpack.c.l.b16 %v730
    %v1423 = vunpack.c.h.b16 %v730
    %v1424 = vunpack.c.l.b16 %v731
    %v1425 = vunpack.c.h.b16 %v731
    %v1426 = vunpack.c.l.b16 %v732
    %v1427 = vunpack.c.h.b16 %v732
    %v1428 = vunpack.c.l.b16 %v733
    %v1429 = vunpack.c.h.b16 %v733
    %v1430 = vunpack.c.l.b16 %v734
    %v1431 = vunpack.c.h.b16 %v734
    %v1432 = vunpack.c.l.b16 %v735
    %v1433 = vunpack.c.h.b16 %v735
    %v1434 = vunpack.c.l.b16 %v736
    %v1435 = vunpack.c.h.b16 %v736
    %v1436 = vunpack.c.l.b16 %v737
    %v1437 = vunpack.c.h.b16 %v737
    %v1438 = vunpack.c.l.b16 %v738
    %v1439 = vunpack.c.h.b16 %v738
    %v1440 = vunpack.c.l.b16 %v739
    %v1441 = vunpack.c.h.b16 %v739
    %v1442 = vunpack.c.l.b16 %v740
    %v1443 = vunpack.c.h.b16 %v740
    %v1444 = vunpack.c.l.b16 %v741
    %v1445 = vunpack.c.h.b16 %v741
    %v1446 = vunpack.c.l.b16 %v742
    %v1447 = vunpack.c.h.b16 %v742
    %v1448 = vunpack.c.l.b16 %v743
    %v1449 = vunpack.c.h.b16 %v743
    %v1450 = vunpack.c.l.b16 %v744
    %v1451 = vunpack.c.h.b16 %v744
    %v1452 = vunpack.c.l.b16 %v745
    %v1453 = vunpack.c.h.b16 %v745
    %v1454 = vunpack.c.l.b16 %v746
    %v1455 = vunpack.c.h.b16 %v746
    %v1456 = vunpack.c.l.b16 %v747
    %v1457 = vunpack.c.h.b16 %v747
    %v1458 = vunpack.c.l.b16 %v748
    %v1459 = vunpack.c.h.b16 %v748
    %v1460 = vunpack.c.l.b16 %v749
    %v1461 = vunpack.c.h.b16 %v749
    %v1462 = vunpack.c.l.b16 %v750
    %v1463 = vunpack.c.h.b16 %v750
    %v1464 = vunpack.c.l.b16 %v751
    %v1465 = vunpack.c.h.b16 %v751
    %v1466 = vunpack.c.l.b16 %v752
    %v1467 = vunpack.c.h.b16 %v752
    %v1468 = vunpack.c.l.b16 %v753
    %v1469 = vunpack.c.h.b16 %v753
    %v1470 = vunpack.c.l.b16 %v754
    %v1471 = vunpack.c.h.b16 %v754
    %v1472 = vunpack.c.l.b16 %v755
    %v1473 = vunpack.c.h.b16 %v755
    %v1474 = vunpack.c.l.b16 %v756
    %v1475 = vunpack.c.h.b16 %v756
    %v1476 = vunpack.c.l.b16 %v757
    %v1477 = vunpack.c.h.b16 %v757
    %v1478 = vunpack.c.l.b16 %v758
    %v1479 = vunpack.c.h.b16 %v758
    %v1480 = vunpack.c.l.b16 %v759
    %v1481 = vunpack.c.h.b16 %v759
    %v1482 = vunpack.c.l.b16 %v760
    %v1483 = vunpack.c.h.b16 %v760
    %v1484 = vunpack.c.l.b16 %v761
    %v1485 = vunpack.c.h.b16 %v761
    %v1486 = vunpack.c.l.b16 %v762
    %v1487 = vunpack.c.h.b16 %v762
    %v1488 = vunpack.c.l.b16 %v763
    %v1489 = vunpack.c.h.b16 %v763
    %v1490 = vunpack.c.l.b16 %v764
    %v1491 = vunpack.c.h.b16 %v764
    %v1492 = vunpack.c.l.b16 %v765
    %v1493 = vunpack.c.h.b16 %v765
    %v1494 = vunpack.c.l.b16 %v766
    %v1495 = vunpack.c.h.b16 %v766
    %v1496 = vunpack.c.l.b16 %v767
    %v1497 = vunpack.c.h.b16 %v767
    %v1498 = vunpack.c.l.b16 %v768
    %v1499 = vunpack.c.h.b16 %v768
    %v1500 = vunpack.c.l.b16 %v769
    %v1501 = vunpack.c.h.b16 %v769
    %v1502 = vunpack.c.l.b16 %v770
    %v1503 = vunpack.c.h.b16 %v770
    %v1504 = vunpack.c.l.b16 %v771
    %v1505 = vunpack.c.h.b16 %v771
    %v1506 = vunpack.c.l.b16 %v772
    %v1507 = vunpack.c.h.b16 %v772
    %v1508 = vunpack.c.l.b16 %v773
    %v1509 = vunpack.c.h.b16 %v773
    %v1510 = vunpack.c.l.b16 %v774
    %v1511 = vunpack.c.h.b16 %v774
    %v1512 = vunpack.c.l.b16 %v775
    %v1513 = vunpack.c.h.b16 %v775
    %v1514 = vunpack.c.l.b16 %v776
    %v1515 = vunpack.c.h.b16 %v776
    %v1516 = vunpack.c.l.b16 %v777
    %v1517 = vunpack.c.h.b16 %v777
    %v1518 = vunpack.c.l.b16 %v778
    %v1519 = vunpack.c.h.b16 %v778
    %v1520 = vunpack.c.l.b16 %v779
    %v1521 = vunpack.c.h.b16 %v779
    %v1522 = vunpack.c.l.b16 %v780
    %v1523 = vunpack.c.h.b16 %v780
    %v1524 = vunpack.c.l.b16 %v781
    %v1525 = vunpack.c.h.b16 %v781
    %v1526 = vunpack.c.l.b16 %v782
    %v1527 = vunpack.c.h.b16 %v782
    %v1528 = vunpack.c.l.b16 %v783
    %v1529 = vunpack.c.h.b16 %v783
    %v1530 = vunpack.c.l.b16 %v784
    %v1531 = vunpack.c.h.b16 %v784
    %v1532 = vunpack.c.l.b16 %v785
    %v1533 = vunpack.c.h.b16 %v785
    %v1534 = vunpack.c.l.b16 %v786
    %v1535 = vunpack.c.h.b16 %v786
    %v1536 = vunpack.c.l.b16 %v787
    %v1537 = vunpack.c.h.b16 %v787
    %v1538 = vunpack.c.l.b16 %v788
    %v1539 = vunpack.c.h.b16 %v788
    %v1540 = vunpack.c.l.b16 %v789
    %v1541 = vunpack.c.h.b16 %v789
    %v1542 = vunpack.c.l.b16 %v790
    %v1543 = vunpack.c.h.b16 %v790
    %v1544 = vunpack.c.l.b16 %v791
    %v1545 = vunpack.c.h.b16 %v791
    %v1546 = vunpack.c.l.b16 %v792
    %v1547 = vunpack.c.h.b16 %v792
    %v1548 = vunpack.c.l.b16 %v793
    %v1549 = vunpack.c.h.b16 %v793
    %v1550 = vunpack.c.l.b16 %v794
    %v1551 = vunpack.c.h.b16 %v794
    %v1552 = vunpack.c.l.b16 %v795
    %v1553 = vunpack.c.h.b16 %v795
    %v1554 = vunpack.c.l.b16 %v796
    %v1555 = vunpack.c.h.b16 %v796
    %v1556 = vunpack.c.l.b16 %v797
    %v1557 = vunpack.c.h.b16 %v797
    %v1558 = vunpack.c.l.b16 %v798
    %v1559 = vunpack.c.h.b16 %v798
    %v1560 = vunpack.c.l.b16 %v799
    %v1561 = vunpack.c.h.b16 %v799
    %v1562 = vunpack.c.l.b16 %v800
    %v1563 = vunpack.c.h.b16 %v800
    %v1564 = vunpack.c.l.b16 %v801
    %v1565 = vunpack.c.h.b16 %v801
    %v1566 = vunpack.c.l.b16 %v802
    %v1567 = vunpack.c.h.b16 %v802
    %v1568 = vunpack.c.l.b16 %v803
    %v1569 = vunpack.c.h.b16 %v803
    %v1570 = vunpack.c.l.b16 %v804
    %v1571 = vunpack.c.h.b16 %v804
    %v1572 = vunpack.c.l.b16 %v805
    %v1573 = vunpack.c.h.b16 %v805
    %v1574 = vunpack.c.l.b16 %v806
    %v1575 = vunpack.c.h.b16 %v806
    %v1576 = vunpack.c.l.b16 %v807
    %v1577 = vunpack.c.h.b16 %v807
    %v1578 = vunpack.c.l.b16 %v808
    %v1579 = vunpack.c.h.b16 %v808
    %v1580 = vunpack.c.l.b16 %v809
    %v1581 = vunpack.c.h.b16 %v809
    %v1582 = vunpack.c.l.b16 %v810
    %v1583 = vunpack.c.h.b16 %v810
    %v1584 = vunpack.c.l.b16 %v811
    %v1585 = vunpack.c.h.b16 %v811
    %v1586 = vunpack.c.l.b16 %v812
    %v1587 = vunpack.c.h.b16 %v812
    %v1588 = vunpack.c.l.b16 %v813
    %v1589 = vunpack.c.h.b16 %v813
    %v1590 = vunpack.c.l.b16 %v814
    %v1591 = vunpack.c.h.b16 %v814
    %v1592 = vunpack.c.l.b16 %v815
    %v1593 = vunpack.c.h.b16 %v815
    %v1594 = vunpack.c.l.b16 %v816
    %v1595 = vunpack.c.h.b16 %v816
    %v1596 = vunpack.c.l.b16 %v817
    %v1597 = vunpack.c.h.b16 %v817
    %v1598 = vunpack.c.l.b16 %v818
    %v1599 = vunpack.c.h.b16 %v818
    %v1600 = vunpack.c.l.b16 %v819
    %v1601 = vunpack.c.h.b16 %v819
    %v1602 = vunpack.c.l.b16 %v820
    %v1603 = vunpack.c.h.b16 %v820
    %v1604 = vunpack.c.l.b16 %v821
    %v1605 = vunpack.c.h.b16 %v821
    %v1606 = vunpack.c.l.b16 %v822
    %v1607 = vunpack.c.h.b16 %v822
    %v1608 = vunpack.c.l.b16 %v823
    %v1609 = vunpack.c.h.b16 %v823
    %v1610 = vpack.c.b16 %v1106, %v1098
    %v1611 = vpack.c.b16 %v1107, %v1099
    %v1612 = vpack.c.b16 %v1108, %v1100
    %v1613 = vpack.c.b16 %v1109, %v1101
    %v1614 = vpack.c.b16 %v1110, %v1102
    %v1615 = vpack.c.b16 %v1111, %v1103
    %v1616 = vpack.c.b16 %v1112, %v1104
    %v1617 = vpack.c.b16 %v1113, %v1105
    %v1618 = vpack.c.b16 %v1122, %v1114
    %v1619 = vpack.c.b16 %v1123, %v1115
    %v1620 = vpack.c.b16 %v1124, %v1116
    %v1621 = vpack.c.b16 %v1125, %v1117
    %v1622 = vpack.c.b16 %v1126, %v1118
    %v1623 = vpack.c.b16 %v1127, %v1119
    %v1624 = vpack.c.b16 %v1128, %v1120
    %v1625 = vpack.c.b16 %v1129, %v1121
    %v1626 = vpack.c.b16 %v1138, %v1130
    %v1627 = vpack.c.b16 %v1139, %v1131
    %v1628 = vpack.c.b16 %v1140, %v1132
    %v1629 = vpack.c.b16 %v1141, %v1133
    %v1630 = vpack.c.b16 %v1142, %v1134
    %v1631 = vpack.c.b16 %v1143, %v1135
    %v1632 = vpack.c.b16 %v1144, %v1136
    %v1633 = vpack.c.b16 %v1145, %v1137
    %v1634 = vpack.c.b16 %v1154, %v1146
    %v1635 = vpack.c.b16 %v1155, %v1147
    %v1636 = vpack.c.b16 %v1156, %v1148
    %v1637 = vpack.c.b16 %v1157, %v1149
    %v1638 = vpack.c.b16 %v1158, %v1150
    %v1639 = vpack.c.b16 %v1159, %v1151
    %v1640 = vpack.c.b16 %v1160, %v1152
    %v1641 = vpack.c.b16 %v1161, %v1153
    %v1642 = vpack.c.b16 %v1170, %v1162
    %v1643 = vpack.c.b16 %v1171, %v1163
    %v1644 = vpack.c.b16 %v1172, %v1164
    %v1645 = vpack.c.b16 %v1173, %v1165
    %v1646 = vpack.c.b16 %v1174, %v1166
    %v1647 = vpack.c.b16 %v1175, %v1167
    %v1648 = vpack.c.b16 %v1176, %v1168
    %v1649 = vpack.c.b16 %v1177, %v1169
    %v1650 = vpack.c.b16 %v1186, %v1178
    %v1651 = vpack.c.b16 %v1187, %v1179
    %v1652 = vpack.c.b16 %v1188, %v1180
    %v1653 = vpack.c.b16 %v1189, %v1181
    %v1654 = vpack.c.b16 %v1190, %v1182
    %v1655 = vpack.c.b16 %v1191, %v1183
    %v1656 = vpack.c.b16 %v1192, %v1184
    %v1657 = vpack.c.b16 %v1193, %v1185
    %v1658 = vpack.c.b16 %v1202, %v1194
    %v1659 = vpack.c.b16 %v1203, %v1195
    %v1660 = vpack.c.b16 %v1204, %v1196
    %v1661 = vpack.c.b16 %v1205, %v1197
    %v1662 = vpack.c.b16 %v1206, %v1198
    %v1663 = vpack.c.b16 %v1207, %v1199
    %v1664 = vpack.c.b16 %v1208, %v1200
    %v1665 = vpack.c.b16 %v1209, %v1201
    %v1666 = vpack.c.b16 %v1218, %v1210
    %v1667 = vpack.c.b16 %v1219, %v1211
    %v1668 = vpack.c.b16 %v1220, %v1212
    %v1669 = vpack.c.b16 %v1221, %v1213
    %v1670 = vpack.c.b16 %v1222, %v1214
    %v1671 = vpack.c.b16 %v1223, %v1215
    %v1672 = vpack.c.b16 %v1224, %v1216
    %v1673 = vpack.c.b16 %v1225, %v1217
    %v1674 = vpack.c.b16 %v1234, %v1226
    %v1675 = vpack.c.b16 %v1235, %v1227
    %v1676 = vpack.c.b16 %v1236, %v1228
    %v1677 = vpack.c.b16 %v1237, %v1229
    %v1678 = vpack.c.b16 %v1238, %v1230
    %v1679 = vpack.c.b16 %v1239, %v1231
    %v1680 = vpack.c.b16 %v1240, %v1232
    %v1681 = vpack.c.b16 %v1241, %v1233
    %v1682 = vpack.c.b16 %v1250, %v1242
    %v1683 = vpack.c.b16 %v1251, %v1243
    %v1684 = vpack.c.b16 %v1252, %v1244
    %v1685 = vpack.c.b16 %v1253, %v1245
    %v1686 = vpack.c.b16 %v1254, %v1246
    %v1687 = vpack.c.b16 %v1255, %v1247
    %v1688 = vpack.c.b16 %v1256, %v1248
    %v1689 = vpack.c.b16 %v1257, %v1249
    %v1690 = vpack.c.b16 %v1266, %v1258
    %v1691 = vpack.c.b16 %v1267, %v1259
    %v1692 = vpack.c.b16 %v1268, %v1260
    %v1693 = vpack.c.b16 %v1269, %v1261
    %v1694 = vpack.c.b16 %v1270, %v1262
    %v1695 = vpack.c.b16 %v1271, %v1263
    %v1696 = vpack.c.b16 %v1272, %v1264
    %v1697 = vpack.c.b16 %v1273, %v1265
    %v1698 = vpack.c.b16 %v1282, %v1274
    %v1699 = vpack.c.b16 %v1283, %v1275
    %v1700 = vpack.c.b16 %v1284, %v1276
    %v1701 = vpack.c.b16 %v1285, %v1277
    %v1702 = vpack.c.b16 %v1286, %v1278
    %v1703 = vpack.c.b16 %v1287, %v1279
    %v1704 = vpack.c.b16 %v1288, %v1280
    %v1705 = vpack.c.b16 %v1289, %v1281
    %v1706 = vpack.c.b16 %v1298, %v1290
    %v1707 = vpack.c.b16 %v1299, %v1291
    %v1708 = vpack.c.b16 %v1300, %v1292
    %v1709 = vpack.c.b16 %v1301, %v1293
    %v1710 = vpack.c.b16 %v1302, %v1294
    %v1711 = vpack.c.b16 %v1303, %v1295
    %v1712 = vpack.c.b16 %v1304, %v1296
    %v1713 = vpack.c.b16 %v1305, %v1297
    %v1714 = vpack.c.b16 %v1314, %v1306
    %v1715 = vpack.c.b16 %v1315, %v1307
    %v1716 = vpack.c.b16 %v1316, %v1308
    %v1717 = vpack.c.b16 %v1317, %v1309
    %v1718 = vpack.c.b16 %v1318, %v1310
    %v1719 = vpack.c.b16 %v1319, %v1311
    %v1720 = vpack.c.b16 %v1320, %v1312
    %v1721 = vpack.c.b16 %v1321, %v1313
    %v1722 = vpack.c.b16 %v1330, %v1322
    %v1723 = vpack.c.b16 %v1331, %v1323
    %v1724 = vpack.c.b16 %v1332, %v1324
    %v1725 = vpack.c.b16 %v1333, %v1325
    %v1726 = vpack.c.b16 %v1334, %v1326
    %v1727 = vpack.c.b16 %v1335, %v1327
    %v1728 = vpack.c.b16 %v1336, %v1328
    %v1729 = vpack.c.b16 %v1337, %v1329
    %v1730 = vpack.c.b16 %v1346, %v1338
    %v1731 = vpack.c.b16 %v1347, %v1339
    %v1732 = vpack.c.b16 %v1348, %v1340
    %v1733 = vpack.c.b16 %v1349, %v1341
    %v1734 = vpack.c.b16 %v1350, %v1342
    %v1735 = vpack.c.b16 %v1351, %v1343
    %v1736 = vpack.c.b16 %v1352, %v1344
    %v1737 = vpack.c.b16 %v1353, %v1345
    %v1738 = vpack.c.b16 %v1362, %v1354
    %v1739 = vpack.c.b16 %v1363, %v1355
    %v1740 = vpack.c.b16 %v1364, %v1356
    %v1741 = vpack.c.b16 %v1365, %v1357
    %v1742 = vpack.c.b16 %v1366, %v1358
    %v1743 = vpack.c.b16 %v1367, %v1359
    %v1744 = vpack.c.b16 %v1368, %v1360
    %v1745 = vpack.c.b16 %v1369, %v1361
    %v1746 = vpack.c.b16 %v1378, %v1370
    %v1747 = vpack.c.b16 %v1379, %v1371
    %v1748 = vpack.c.b16 %v1380, %v1372
    %v1749 = vpack.c.b16 %v1381, %v1373
    %v1750 = vpack.c.b16 %v1382, %v1374
    %v1751 = vpack.c.b16 %v1383, %v1375
    %v1752 = vpack.c.b16 %v1384, %v1376
    %v1753 = vpack.c.b16 %v1385, %v1377
    %v1754 = vpack.c.b16 %v1394, %v1386
    %v1755 = vpack.c.b16 %v1395, %v1387
    %v1756 = vpack.c.b16 %v1396, %v1388
    %v1757 = vpack.c.b16 %v1397, %v1389
    %v1758 = vpack.c.b16 %v1398, %v1390
    %v1759 = vpack.c.b16 %v1399, %v1391
    %v1760 = vpack.c.b16 %v1400, %v1392
    %v1761 = vpack.c.b16 %v1401, %v1393
    %v1762 = vpack.c.b16 %v1410, %v1402
    %v1763 = vpack.c.b16 %v1411, %v1403
    %v1764 = vpack.c.b16 %v1412, %v1404
    %v1765 = vpack.c.b16 %v1413, %v1405
    %v1766 = vpack.c.b16 %v1414, %v1406
    %v1767 = vpack.c.b16 %v1415, %v1407
    %v1768 = vpack.c.b16 %v1416, %v1408
    %v1769 = vpack.c.b16 %v1417, %v1409
    %v1770 = vpack.c.b16 %v1426, %v1418
    %v1771 = vpack.c.b16 %v1427, %v1419
    %v1772 = vpack.c.b16 %v1428, %v1420
    %v1773 = vpack.c.b16 %v1429, %v1421
    %v1774 = vpack.c.b16 %v1430, %v1422
    %v1775 = vpack.c.b16 %v1431, %v1423
    %v1776 = vpack.c.b16 %v1432, %v1424
    %v1777 = vpack.c.b16 %v1433, %v1425
    %v1778 = vpack.c.b16 %v1442, %v1434
    %v1779 = vpack.c.b16 %v1443, %v1435
    %v1780 = vpack.c.b16 %v1444, %v1436
    %v1781 = vpack.c.b16 %v1445, %v1437
    %v1782 = vpack.c.b16 %v1446, %v1438
    %v1783 = vpack.c.b16 %v1447, %v1439
    %v1784 = vpack.c.b16 %v1448, %v1440
    %v1785 = vpack.c.b16 %v1449, %v1441
    %v1786 = vpack.c.b16 %v1458, %v1450
    %v1787 = vpack.c.b16 %v1459, %v1451
    %v1788 = vpack.c.b16 %v1460, %v1452
    %v1789 = vpack.c.b16 %v1461, %v1453
    %v1790 = vpack.c.b16 %v1462, %v1454
    %v1791 = vpack.c.b16 %v1463, %v1455
    %v1792 = vpack.c.b16 %v1464, %v1456
    %v1793 = vpack.c.b16 %v1465, %v1457
    %v1794 = vpack.c.b16 %v1474, %v1466
    %v1795 = vpack.c.b16 %v1475, %v1467
    %v1796 = vpack.c.b16 %v1476, %v1468
    %v1797 = vpack.c.b16 %v1477, %v1469
    %v1798 = vpack.c.b16 %v1478, %v1470
    %v1799 = vpack.c.b16 %v1479, %v1471
    %v1800 = vpack.c.b16 %v1480, %v1472
    %v1801 = vpack.c.b16 %v1481, %v1473
    %v1802 = vpack.c.b16 %v1490, %v1482
    %v1803 = vpack.c.b16 %v1491, %v1483
    %v1804 = vpack.c.b16 %v1492, %v1484
    %v1805 = vpack.c.b16 %v1493, %v1485
    %v1806 = vpack.c.b16 %v1494, %v1486
    %v1807 = vpack.c.b16 %v1495, %v1487
    %v1808 = vpack.c.b16 %v1496, %v1488
    %v1809 = vpack.c.b16 %v1497, %v1489
    %v1810 = vpack.c.b16 %v1506, %v1498
    %v1811 = vpack.c.b16 %v1507, %v1499
    %v1812 = vpack.c.b16 %v1508, %v1500
    %v1813 = vpack.c.b16 %v1509, %v1501
    %v1814 = vpack.c.b16 %v1510, %v1502
    %v1815 = vpack.c.b16 %v1511, %v1503
    %v1816 = vpack.c.b16 %v1512, %v1504
    %v1817 = vpack.c.b16 %v1513, %v1505
    %v1818 = vpack.c.b16 %v1522, %v1514
    %v1819 = vpack.c.b16 %v1523, %v1515
    %v1820 = vpack.c.b16 %v1524, %v1516
    %v1821 = vpack.c.b16 %v1525, %v1517
    %v1822 = vpack.c.b16 %v1526, %v1518
    %v1823 = vpack.c.b16 %v1527, %v1519
    %v1824 = vpack.c.b16 %v1528, %v1520
    %v1825 = vpack.c.b16 %v1529, %v1521
    %v1826 = vpack.c.b16 %v1538, %v1530
    %v1827 = vpack.c.b16 %v1539, %v1531
    %v1828 = vpack.c.b16 %v1540, %v1532
    %v1829 = vpack.c.b16 %v1541, %v1533
    %v1830 = vpack.c.b16 %v1542, %v1534
    %v1831 = vpack.c.b16 %v1543, %v1535
    %v1832 = vpack.c.b16 %v1544, %v1536
    %v1833 = vpack.c.b16 %v1545, %v1537
    %v1834 = vpack.c.b16 %v1554, %v1546
    %v1835 = vpack.c.b16 %v1555, %v1547
    %v1836 = vpack.c.b16 %v1556, %v1548
    %v1837 = vpack.c.b16 %v1557, %v1549
    %v1838 = vpack.c.b16 %v1558, %v1550
    %v1839 = vpack.c.b16 %v1559, %v1551
    %v1840 = vpack.c.b16 %v1560, %v1552
    %v1841 = vpack.c.b16 %v1561, %v1553
    %v1842 = vpack.c.b16 %v1570, %v1562
    %v1843 = vpack.c.b16 %v1571, %v1563
    %v1844 = vpack.c.b16 %v1572, %v1564
    %v1845 = vpack.c.b16 %v1573, %v1565
    %v1846 = vpack.c.b16 %v1574, %v1566
    %v1847 = vpack.c.b16 %v1575, %v1567
    %v1848 = vpack.c.b16 %v1576, %v1568
    %v1849 = vpack.c.b16 %v1577, %v1569
    %v1850 = vpack.c.b16 %v1586, %v1578
    %v1851 = vpack.c.b16 %v1587, %v1579
    %v1852 = vpack.c.b16 %v1588, %v1580
    %v1853 = vpack.c.b16 %v1589, %v1581
    %v1854 = vpack.c.b16 %v1590, %v1582
    %v1855 = vpack.c.b16 %v1591, %v1583
    %v1856 = vpack.c.b16 %v1592, %v1584
    %v1857 = vpack.c.b16 %v1593, %v1585
    %v1858 = vpack.c.b16 %v1602, %v1594
    %v1859 = vpack.c.b16 %v1603, %v1595
    %v1860 = vpack.c.b16 %v1604, %v1596
    %v1861 = vpack.c.b16 %v1605, %v1597
    %v1862 = vpack.c.b16 %v1606, %v1598
    %v1863 = vpack.c.b16 %v1607, %v1599
    %v1864 = vpack.c.b16 %v1608, %v1600
    %v1865 = vpack.c.b16 %v1609, %v1601
    %2122 = vmatpush.bf16.msra.mxu0 %v1666
    %2123 = vmatpush.bf16.msra.mxu0 %v1658
    %2124 = vmatpush.bf16.msra.mxu0 %v1650
    %2125 = vmatpush.bf16.msra.mxu0 %v1642
    %2126 = vmatpush.bf16.msra.mxu0 %v1634
    %2127 = vmatpush.bf16.msra.mxu0 %v1626
    %2128 = vmatpush.bf16.msra.mxu0 %v1618
    %2129 = vmatpush.bf16.msra.mxu0 %v1610
    %2130 = vmatmul.bf16.gmra.mxu0 %v564
    %v2131 = vpop.f32.mrf.mxu0
    %v2132 = vadd.f32 %v826, %v2131
    %v2133 = vpop.f32.mrf.mxu0
    %v2134 = vadd.f32 %v826, %v2133
    %2135 = vdwg.mxu0
    %2136 = vmatpush.bf16.msra.mxu0 %v1730
    %2137 = vmatpush.bf16.msra.mxu0 %v1722
    %2138 = vmatpush.bf16.msra.mxu0 %v1714
    %2139 = vmatpush.bf16.msra.mxu0 %v1706
    %2140 = vmatpush.bf16.msra.mxu0 %v1698
    %2141 = vmatpush.bf16.msra.mxu0 %v1690
    %2142 = vmatpush.bf16.msra.mxu0 %v1682
    %2143 = vmatpush.bf16.msra.mxu0 %v1674
    %2144 = vmatmul.bf16.gmra.mxu0 %v565
    %v2145 = vpop.f32.mrf.mxu0
    %v2146 = vadd.f32 %v2132, %v2145
    %v2147 = vpop.f32.mrf.mxu0
    %v2148 = vadd.f32 %v2134, %v2147
    %2149 = vdwg.mxu0
    %2150 = vmatpush.bf16.msra.mxu0 %v1794
    %2151 = vmatpush.bf16.msra.mxu0 %v1786
    %2152 = vmatpush.bf16.msra.mxu0 %v1778
    %2153 = vmatpush.bf16.msra.mxu0 %v1770
    %2154 = vmatpush.bf16.msra.mxu0 %v1762
    %2155 = vmatpush.bf16.msra.mxu0 %v1754
    %2156 = vmatpush.bf16.msra.mxu0 %v1746
    %2157 = vmatpush.bf16.msra.mxu0 %v1738
    %2158 = vmatmul.bf16.gmra.mxu0 %v566
    %v2159 = vpop.f32.mrf.mxu0
    %v2160 = vadd.f32 %v2146, %v2159
    %v2161 = vpop.f32.mrf.mxu0
    %v2162 = vadd.f32 %v2148, %v2161
    %2163 = vdwg.mxu0
    %2164 = vmatpush.bf16.msra.mxu0 %v1858
    %2165 = vmatpush.bf16.msra.mxu0 %v1850
    %2166 = vmatpush.bf16.msra.mxu0 %v1842
    %2167 = vmatpush.bf16.msra.mxu0 %v1834
    %2168 = vmatpush.bf16.msra.mxu0 %v1826
    %2169 = vmatpush.bf16.msra.mxu0 %v1818
    %2170 = vmatpush.bf16.msra.mxu0 %v1810
    %2171 = vmatpush.bf16.msra.mxu0 %v1802
    %2172 = vmatmul.bf16.gmra.mxu0 %v567
    %v2173 = vpop.f32.mrf.mxu0
    %v2174 = vadd.f32 %v2160, %v2173
    %v2175 = vpop.f32.mrf.mxu0
    %v2176 = vadd.f32 %v2162, %v2175
    %2177 = vdwg.mxu0
    %2178 = vmatpush.bf16.msra.mxu0 %v1667
    %2179 = vmatpush.bf16.msra.mxu0 %v1659
    %2180 = vmatpush.bf16.msra.mxu0 %v1651
    %2181 = vmatpush.bf16.msra.mxu0 %v1643
    %2182 = vmatpush.bf16.msra.mxu0 %v1635
    %2183 = vmatpush.bf16.msra.mxu0 %v1627
    %2184 = vmatpush.bf16.msra.mxu0 %v1619
    %2185 = vmatpush.bf16.msra.mxu0 %v1611
    %2186 = vmatmul.bf16.gmra.mxu0 %v564
    %v2187 = vpop.f32.mrf.mxu0
    %v2188 = vadd.f32 %v827, %v2187
    %v2189 = vpop.f32.mrf.mxu0
    %v2190 = vadd.f32 %v827, %v2189
    %2191 = vdwg.mxu0
    %2192 = vmatpush.bf16.msra.mxu0 %v1731
    %2193 = vmatpush.bf16.msra.mxu0 %v1723
    %2194 = vmatpush.bf16.msra.mxu0 %v1715
    %2195 = vmatpush.bf16.msra.mxu0 %v1707
    %2196 = vmatpush.bf16.msra.mxu0 %v1699
    %2197 = vmatpush.bf16.msra.mxu0 %v1691
    %2198 = vmatpush.bf16.msra.mxu0 %v1683
    %2199 = vmatpush.bf16.msra.mxu0 %v1675
    %2200 = vmatmul.bf16.gmra.mxu0 %v565
    %v2201 = vpop.f32.mrf.mxu0
    %v2202 = vadd.f32 %v2188, %v2201
    %v2203 = vpop.f32.mrf.mxu0
    %v2204 = vadd.f32 %v2190, %v2203
    %2205 = vdwg.mxu0
    %2206 = vmatpush.bf16.msra.mxu0 %v1795
    %2207 = vmatpush.bf16.msra.mxu0 %v1787
    %2208 = vmatpush.bf16.msra.mxu0 %v1779
    %2209 = vmatpush.bf16.msra.mxu0 %v1771
    %2210 = vmatpush.bf16.msra.mxu0 %v1763
    %2211 = vmatpush.bf16.msra.mxu0 %v1755
    %2212 = vmatpush.bf16.msra.mxu0 %v1747
    %2213 = vmatpush.bf16.msra.mxu0 %v1739
    %2214 = vmatmul.bf16.gmra.mxu0 %v566
    %v2215 = vpop.f32.mrf.mxu0
    %v2216 = vadd.f32 %v2202, %v2215
    %v2217 = vpop.f32.mrf.mxu0
    %v2218 = vadd.f32 %v2204, %v2217
    %2219 = vdwg.mxu0
    %2220 = vmatpush.bf16.msra.mxu0 %v1859
    %2221 = vmatpush.bf16.msra.mxu0 %v1851
    %2222 = vmatpush.bf16.msra.mxu0 %v1843
    %2223 = vmatpush.bf16.msra.mxu0 %v1835
    %2224 = vmatpush.bf16.msra.mxu0 %v1827
    %2225 = vmatpush.bf16.msra.mxu0 %v1819
    %2226 = vmatpush.bf16.msra.mxu0 %v1811
    %2227 = vmatpush.bf16.msra.mxu0 %v1803
    %2228 = vmatmul.bf16.gmra.mxu0 %v567
    %v2229 = vpop.f32.mrf.mxu0
    %v2230 = vadd.f32 %v2216, %v2229
    %v2231 = vpop.f32.mrf.mxu0
    %v2232 = vadd.f32 %v2218, %v2231
    %2233 = vdwg.mxu0
    %2234 = vmatpush.bf16.msra.mxu0 %v1668
    %2235 = vmatpush.bf16.msra.mxu0 %v1660
    %2236 = vmatpush.bf16.msra.mxu0 %v1652
    %2237 = vmatpush.bf16.msra.mxu0 %v1644
    %2238 = vmatpush.bf16.msra.mxu0 %v1636
    %2239 = vmatpush.bf16.msra.mxu0 %v1628
    %2240 = vmatpush.bf16.msra.mxu0 %v1620
    %2241 = vmatpush.bf16.msra.mxu0 %v1612
    %2242 = vmatmul.bf16.gmra.mxu0 %v564
    %v2243 = vpop.f32.mrf.mxu0
    %v2244 = vadd.f32 %v828, %v2243
    %v2245 = vpop.f32.mrf.mxu0
    %v2246 = vadd.f32 %v828, %v2245
    %2247 = vdwg.mxu0
    %2248 = vmatpush.bf16.msra.mxu0 %v1732
    %2249 = vmatpush.bf16.msra.mxu0 %v1724
    %2250 = vmatpush.bf16.msra.mxu0 %v1716
    %2251 = vmatpush.bf16.msra.mxu0 %v1708
    %2252 = vmatpush.bf16.msra.mxu0 %v1700
    %2253 = vmatpush.bf16.msra.mxu0 %v1692
    %2254 = vmatpush.bf16.msra.mxu0 %v1684
    %2255 = vmatpush.bf16.msra.mxu0 %v1676
    %2256 = vmatmul.bf16.gmra.mxu0 %v565
    %v2257 = vpop.f32.mrf.mxu0
    %v2258 = vadd.f32 %v2244, %v2257
    %v2259 = vpop.f32.mrf.mxu0
    %v2260 = vadd.f32 %v2246, %v2259
    %2261 = vdwg.mxu0
    %2262 = vmatpush.bf16.msra.mxu0 %v1796
    %2263 = vmatpush.bf16.msra.mxu0 %v1788
    %2264 = vmatpush.bf16.msra.mxu0 %v1780
    %2265 = vmatpush.bf16.msra.mxu0 %v1772
    %2266 = vmatpush.bf16.msra.mxu0 %v1764
    %2267 = vmatpush.bf16.msra.mxu0 %v1756
    %2268 = vmatpush.bf16.msra.mxu0 %v1748
    %2269 = vmatpush.bf16.msra.mxu0 %v1740
    %2270 = vmatmul.bf16.gmra.mxu0 %v566
    %v2271 = vpop.f32.mrf.mxu0
    %v2272 = vadd.f32 %v2258, %v2271
    %v2273 = vpop.f32.mrf.mxu0
    %v2274 = vadd.f32 %v2260, %v2273
    %2275 = vdwg.mxu0
    %2276 = vmatpush.bf16.msra.mxu0 %v1860
    %2277 = vmatpush.bf16.msra.mxu0 %v1852
    %2278 = vmatpush.bf16.msra.mxu0 %v1844
    %2279 = vmatpush.bf16.msra.mxu0 %v1836
    %2280 = vmatpush.bf16.msra.mxu0 %v1828
    %2281 = vmatpush.bf16.msra.mxu0 %v1820
    %2282 = vmatpush.bf16.msra.mxu0 %v1812
    %2283 = vmatpush.bf16.msra.mxu0 %v1804
    %2284 = vmatmul.bf16.gmra.mxu0 %v567
    %v2285 = vpop.f32.mrf.mxu0
    %v2286 = vadd.f32 %v2272, %v2285
    %v2287 = vpop.f32.mrf.mxu0
    %v2288 = vadd.f32 %v2274, %v2287
    %2289 = vdwg.mxu0
    %2290 = vmatpush.bf16.msra.mxu0 %v1669
    %2291 = vmatpush.bf16.msra.mxu0 %v1661
    %2292 = vmatpush.bf16.msra.mxu0 %v1653
    %2293 = vmatpush.bf16.msra.mxu0 %v1645
    %2294 = vmatpush.bf16.msra.mxu0 %v1637
    %2295 = vmatpush.bf16.msra.mxu0 %v1629
    %2296 = vmatpush.bf16.msra.mxu0 %v1621
    %2297 = vmatpush.bf16.msra.mxu0 %v1613
    %2298 = vmatmul.bf16.gmra.mxu0 %v564
    %v2299 = vpop.f32.mrf.mxu0
    %v2300 = vadd.f32 %v829, %v2299
    %v2301 = vpop.f32.mrf.mxu0
    %v2302 = vadd.f32 %v829, %v2301
    %2303 = vdwg.mxu0
    %2304 = vmatpush.bf16.msra.mxu0 %v1733
    %2305 = vmatpush.bf16.msra.mxu0 %v1725
    %2306 = vmatpush.bf16.msra.mxu0 %v1717
    %2307 = vmatpush.bf16.msra.mxu0 %v1709
    %2308 = vmatpush.bf16.msra.mxu0 %v1701
    %2309 = vmatpush.bf16.msra.mxu0 %v1693
    %2310 = vmatpush.bf16.msra.mxu0 %v1685
    %2311 = vmatpush.bf16.msra.mxu0 %v1677
    %2312 = vmatmul.bf16.gmra.mxu0 %v565
    %v2313 = vpop.f32.mrf.mxu0
    %v2314 = vadd.f32 %v2300, %v2313
    %v2315 = vpop.f32.mrf.mxu0
    %v2316 = vadd.f32 %v2302, %v2315
    %2317 = vdwg.mxu0
    %2318 = vmatpush.bf16.msra.mxu0 %v1797
    %2319 = vmatpush.bf16.msra.mxu0 %v1789
    %2320 = vmatpush.bf16.msra.mxu0 %v1781
    %2321 = vmatpush.bf16.msra.mxu0 %v1773
    %2322 = vmatpush.bf16.msra.mxu0 %v1765
    %2323 = vmatpush.bf16.msra.mxu0 %v1757
    %2324 = vmatpush.bf16.msra.mxu0 %v1749
    %2325 = vmatpush.bf16.msra.mxu0 %v1741
    %2326 = vmatmul.bf16.gmra.mxu0 %v566
    %v2327 = vpop.f32.mrf.mxu0
    %v2328 = vadd.f32 %v2314, %v2327
    %v2329 = vpop.f32.mrf.mxu0
    %v2330 = vadd.f32 %v2316, %v2329
    %2331 = vdwg.mxu0
    %2332 = vmatpush.bf16.msra.mxu0 %v1861
    %2333 = vmatpush.bf16.msra.mxu0 %v1853
    %2334 = vmatpush.bf16.msra.mxu0 %v1845
    %2335 = vmatpush.bf16.msra.mxu0 %v1837
    %2336 = vmatpush.bf16.msra.mxu0 %v1829
    %2337 = vmatpush.bf16.msra.mxu0 %v1821
    %2338 = vmatpush.bf16.msra.mxu0 %v1813
    %2339 = vmatpush.bf16.msra.mxu0 %v1805
    %2340 = vmatmul.bf16.gmra.mxu0 %v567
    %v2341 = vpop.f32.mrf.mxu0
    %v2342 = vadd.f32 %v2328, %v2341
    %v2343 = vpop.f32.mrf.mxu0
    %v2344 = vadd.f32 %v2330, %v2343
    %2345 = vdwg.mxu0
    %2346 = vmatpush.bf16.msra.mxu0 %v1670
    %2347 = vmatpush.bf16.msra.mxu0 %v1662
    %2348 = vmatpush.bf16.msra.mxu0 %v1654
    %2349 = vmatpush.bf16.msra.mxu0 %v1646
    %2350 = vmatpush.bf16.msra.mxu0 %v1638
    %2351 = vmatpush.bf16.msra.mxu0 %v1630
    %2352 = vmatpush.bf16.msra.mxu0 %v1622
    %2353 = vmatpush.bf16.msra.mxu0 %v1614
    %2354 = vmatmul.bf16.gmra.mxu0 %v564
    %v2355 = vpop.f32.mrf.mxu0
    %v2356 = vadd.f32 %v830, %v2355
    %v2357 = vpop.f32.mrf.mxu0
    %v2358 = vadd.f32 %v830, %v2357
    %2359 = vdwg.mxu0
    %2360 = vmatpush.bf16.msra.mxu0 %v1734
    %2361 = vmatpush.bf16.msra.mxu0 %v1726
    %2362 = vmatpush.bf16.msra.mxu0 %v1718
    %2363 = vmatpush.bf16.msra.mxu0 %v1710
    %2364 = vmatpush.bf16.msra.mxu0 %v1702
    %2365 = vmatpush.bf16.msra.mxu0 %v1694
    %2366 = vmatpush.bf16.msra.mxu0 %v1686
    %2367 = vmatpush.bf16.msra.mxu0 %v1678
    %2368 = vmatmul.bf16.gmra.mxu0 %v565
    %v2369 = vpop.f32.mrf.mxu0
    %v2370 = vadd.f32 %v2356, %v2369
    %v2371 = vpop.f32.mrf.mxu0
    %v2372 = vadd.f32 %v2358, %v2371
    %2373 = vdwg.mxu0
    %2374 = vmatpush.bf16.msra.mxu0 %v1798
    %2375 = vmatpush.bf16.msra.mxu0 %v1790
    %2376 = vmatpush.bf16.msra.mxu0 %v1782
    %2377 = vmatpush.bf16.msra.mxu0 %v1774
    %2378 = vmatpush.bf16.msra.mxu0 %v1766
    %2379 = vmatpush.bf16.msra.mxu0 %v1758
    %2380 = vmatpush.bf16.msra.mxu0 %v1750
    %2381 = vmatpush.bf16.msra.mxu0 %v1742
    %2382 = vmatmul.bf16.gmra.mxu0 %v566
    %v2383 = vpop.f32.mrf.mxu0
    %v2384 = vadd.f32 %v2370, %v2383
    %v2385 = vpop.f32.mrf.mxu0
    %v2386 = vadd.f32 %v2372, %v2385
    %2387 = vdwg.mxu0
    %2388 = vmatpush.bf16.msra.mxu0 %v1862
    %2389 = vmatpush.bf16.msra.mxu0 %v1854
    %2390 = vmatpush.bf16.msra.mxu0 %v1846
    %2391 = vmatpush.bf16.msra.mxu0 %v1838
    %2392 = vmatpush.bf16.msra.mxu0 %v1830
    %2393 = vmatpush.bf16.msra.mxu0 %v1822
    %2394 = vmatpush.bf16.msra.mxu0 %v1814
    %2395 = vmatpush.bf16.msra.mxu0 %v1806
    %2396 = vmatmul.bf16.gmra.mxu0 %v567
    %v2397 = vpop.f32.mrf.mxu0
    %v2398 = vadd.f32 %v2384, %v2397
    %v2399 = vpop.f32.mrf.mxu0
    %v2400 = vadd.f32 %v2386, %v2399
    %2401 = vdwg.mxu0
    %2402 = vmatpush.bf16.msra.mxu0 %v1671
    %2403 = vmatpush.bf16.msra.mxu0 %v1663
    %2404 = vmatpush.bf16.msra.mxu0 %v1655
    %2405 = vmatpush.bf16.msra.mxu0 %v1647
    %2406 = vmatpush.bf16.msra.mxu0 %v1639
    %2407 = vmatpush.bf16.msra.mxu0 %v1631
    %2408 = vmatpush.bf16.msra.mxu0 %v1623
    %2409 = vmatpush.bf16.msra.mxu0 %v1615
    %2410 = vmatmul.bf16.gmra.mxu0 %v564
    %v2411 = vpop.f32.mrf.mxu0
    %v2412 = vadd.f32 %v831, %v2411
    %v2413 = vpop.f32.mrf.mxu0
    %v2414 = vadd.f32 %v831, %v2413
    %2415 = vdwg.mxu0
    %2416 = vmatpush.bf16.msra.mxu0 %v1735
    %2417 = vmatpush.bf16.msra.mxu0 %v1727
    %2418 = vmatpush.bf16.msra.mxu0 %v1719
    %2419 = vmatpush.bf16.msra.mxu0 %v1711
    %2420 = vmatpush.bf16.msra.mxu0 %v1703
    %2421 = vmatpush.bf16.msra.mxu0 %v1695
    %2422 = vmatpush.bf16.msra.mxu0 %v1687
    %2423 = vmatpush.bf16.msra.mxu0 %v1679
    %2424 = vmatmul.bf16.gmra.mxu0 %v565
    %v2425 = vpop.f32.mrf.mxu0
    %v2426 = vadd.f32 %v2412, %v2425
    %v2427 = vpop.f32.mrf.mxu0
    %v2428 = vadd.f32 %v2414, %v2427
    %2429 = vdwg.mxu0
    %2430 = vmatpush.bf16.msra.mxu0 %v1799
    %2431 = vmatpush.bf16.msra.mxu0 %v1791
    %2432 = vmatpush.bf16.msra.mxu0 %v1783
    %2433 = vmatpush.bf16.msra.mxu0 %v1775
    %2434 = vmatpush.bf16.msra.mxu0 %v1767
    %2435 = vmatpush.bf16.msra.mxu0 %v1759
    %2436 = vmatpush.bf16.msra.mxu0 %v1751
    %2437 = vmatpush.bf16.msra.mxu0 %v1743
    %2438 = vmatmul.bf16.gmra.mxu0 %v566
    %v2439 = vpop.f32.mrf.mxu0
    %v2440 = vadd.f32 %v2426, %v2439
    %v2441 = vpop.f32.mrf.mxu0
    %v2442 = vadd.f32 %v2428, %v2441
    %2443 = vdwg.mxu0
    %2444 = vmatpush.bf16.msra.mxu0 %v1863
    %2445 = vmatpush.bf16.msra.mxu0 %v1855
    %2446 = vmatpush.bf16.msra.mxu0 %v1847
    %2447 = vmatpush.bf16.msra.mxu0 %v1839
    %2448 = vmatpush.bf16.msra.mxu0 %v1831
    %2449 = vmatpush.bf16.msra.mxu0 %v1823
    %2450 = vmatpush.bf16.msra.mxu0 %v1815
    %2451 = vmatpush.bf16.msra.mxu0 %v1807
    %2452 = vmatmul.bf16.gmra.mxu0 %v567
    %v2453 = vpop.f32.mrf.mxu0
    %v2454 = vadd.f32 %v2440, %v2453
    %v2455 = vpop.f32.mrf.mxu0
    %v2456 = vadd.f32 %v2442, %v2455
    %2457 = vdwg.mxu0
    %2458 = vmatpush.bf16.msra.mxu0 %v1672
    %2459 = vmatpush.bf16.msra.mxu0 %v1664
    %2460 = vmatpush.bf16.msra.mxu0 %v1656
    %2461 = vmatpush.bf16.msra.mxu0 %v1648
    %2462 = vmatpush.bf16.msra.mxu0 %v1640
    %2463 = vmatpush.bf16.msra.mxu0 %v1632
    %2464 = vmatpush.bf16.msra.mxu0 %v1624
    %2465 = vmatpush.bf16.msra.mxu0 %v1616
    %2466 = vmatmul.bf16.gmra.mxu0 %v564
    %v2467 = vpop.f32.mrf.mxu0
    %v2468 = vadd.f32 %v832, %v2467
    %v2469 = vpop.f32.mrf.mxu0
    %v2470 = vadd.f32 %v832, %v2469
    %2471 = vdwg.mxu0
    %2472 = vmatpush.bf16.msra.mxu0 %v1736
    %2473 = vmatpush.bf16.msra.mxu0 %v1728
    %2474 = vmatpush.bf16.msra.mxu0 %v1720
    %2475 = vmatpush.bf16.msra.mxu0 %v1712
    %2476 = vmatpush.bf16.msra.mxu0 %v1704
    %2477 = vmatpush.bf16.msra.mxu0 %v1696
    %2478 = vmatpush.bf16.msra.mxu0 %v1688
    %2479 = vmatpush.bf16.msra.mxu0 %v1680
    %2480 = vmatmul.bf16.gmra.mxu0 %v565
    %v2481 = vpop.f32.mrf.mxu0
    %v2482 = vadd.f32 %v2468, %v2481
    %v2483 = vpop.f32.mrf.mxu0
    %v2484 = vadd.f32 %v2470, %v2483
    %2485 = vdwg.mxu0
    %2486 = vmatpush.bf16.msra.mxu0 %v1800
    %2487 = vmatpush.bf16.msra.mxu0 %v1792
    %2488 = vmatpush.bf16.msra.mxu0 %v1784
    %2489 = vmatpush.bf16.msra.mxu0 %v1776
    %2490 = vmatpush.bf16.msra.mxu0 %v1768
    %2491 = vmatpush.bf16.msra.mxu0 %v1760
    %2492 = vmatpush.bf16.msra.mxu0 %v1752
    %2493 = vmatpush.bf16.msra.mxu0 %v1744
    %2494 = vmatmul.bf16.gmra.mxu0 %v566
    %v2495 = vpop.f32.mrf.mxu0
    %v2496 = vadd.f32 %v2482, %v2495
    %v2497 = vpop.f32.mrf.mxu0
    %v2498 = vadd.f32 %v2484, %v2497
    %2499 = vdwg.mxu0
    %2500 = vmatpush.bf16.msra.mxu0 %v1864
    %2501 = vmatpush.bf16.msra.mxu0 %v1856
    %2502 = vmatpush.bf16.msra.mxu0 %v1848
    %2503 = vmatpush.bf16.msra.mxu0 %v1840
    %2504 = vmatpush.bf16.msra.mxu0 %v1832
    %2505 = vmatpush.bf16.msra.mxu0 %v1824
    %2506 = vmatpush.bf16.msra.mxu0 %v1816
    %2507 = vmatpush.bf16.msra.mxu0 %v1808
    %2508 = vmatmul.bf16.gmra.mxu0 %v567
    %v2509 = vpop.f32.mrf.mxu0
    %v2510 = vadd.f32 %v2496, %v2509
    %v2511 = vpop.f32.mrf.mxu0
    %v2512 = vadd.f32 %v2498, %v2511
    %2513 = vdwg.mxu0
    %2514 = vmatpush.bf16.msra.mxu0 %v1673
    %2515 = vmatpush.bf16.msra.mxu0 %v1665
    %2516 = vmatpush.bf16.msra.mxu0 %v1657
    %2517 = vmatpush.bf16.msra.mxu0 %v1649
    %2518 = vmatpush.bf16.msra.mxu0 %v1641
    %2519 = vmatpush.bf16.msra.mxu0 %v1633
    %2520 = vmatpush.bf16.msra.mxu0 %v1625
    %2521 = vmatpush.bf16.msra.mxu0 %v1617
    %2522 = vmatmul.bf16.gmra.mxu0 %v564
    %v2523 = vpop.f32.mrf.mxu0
    %v2524 = vadd.f32 %v833, %v2523
    %v2525 = vpop.f32.mrf.mxu0
    %v2526 = vadd.f32 %v833, %v2525
    %2527 = vdwg.mxu0
    %2528 = vmatpush.bf16.msra.mxu0 %v1737
    %2529 = vmatpush.bf16.msra.mxu0 %v1729
    %2530 = vmatpush.bf16.msra.mxu0 %v1721
    %2531 = vmatpush.bf16.msra.mxu0 %v1713
    %2532 = vmatpush.bf16.msra.mxu0 %v1705
    %2533 = vmatpush.bf16.msra.mxu0 %v1697
    %2534 = vmatpush.bf16.msra.mxu0 %v1689
    %2535 = vmatpush.bf16.msra.mxu0 %v1681
    %2536 = vmatmul.bf16.gmra.mxu0 %v565
    %v2537 = vpop.f32.mrf.mxu0
    %v2538 = vadd.f32 %v2524, %v2537
    %v2539 = vpop.f32.mrf.mxu0
    %v2540 = vadd.f32 %v2526, %v2539
    %2541 = vdwg.mxu0
    %2542 = vmatpush.bf16.msra.mxu0 %v1801
    %2543 = vmatpush.bf16.msra.mxu0 %v1793
    %2544 = vmatpush.bf16.msra.mxu0 %v1785
    %2545 = vmatpush.bf16.msra.mxu0 %v1777
    %2546 = vmatpush.bf16.msra.mxu0 %v1769
    %2547 = vmatpush.bf16.msra.mxu0 %v1761
    %2548 = vmatpush.bf16.msra.mxu0 %v1753
    %2549 = vmatpush.bf16.msra.mxu0 %v1745
    %2550 = vmatmul.bf16.gmra.mxu0 %v566
    %v2551 = vpop.f32.mrf.mxu0
    %v2552 = vadd.f32 %v2538, %v2551
    %v2553 = vpop.f32.mrf.mxu0
    %v2554 = vadd.f32 %v2540, %v2553
    %2555 = vdwg.mxu0
    %2556 = vmatpush.bf16.msra.mxu0 %v1865
    %2557 = vmatpush.bf16.msra.mxu0 %v1857
    %2558 = vmatpush.bf16.msra.mxu0 %v1849
    %2559 = vmatpush.bf16.msra.mxu0 %v1841
    %2560 = vmatpush.bf16.msra.mxu0 %v1833
    %2561 = vmatpush.bf16.msra.mxu0 %v1825
    %2562 = vmatpush.bf16.msra.mxu0 %v1817
    %2563 = vmatpush.bf16.msra.mxu0 %v1809
    %2564 = vmatmul.bf16.gmra.mxu0 %v567
    %v2565 = vpop.f32.mrf.mxu0
    %v2566 = vadd.f32 %v2552, %v2565
    %v2567 = vpop.f32.mrf.mxu0
    %v2568 = vadd.f32 %v2554, %v2567
    %2569 = vdwg.mxu0
    %v2570 = vxor.u32 %v2174, 2147483648
    %v2571 = vxor.u32 %v2230, 2147483648
    %v2572 = vxor.u32 %v2286, 2147483648
    %v2573 = vxor.u32 %v2342, 2147483648
    %v2574 = vxor.u32 %v2398, 2147483648
    %v2575 = vxor.u32 %v2454, 2147483648
    %v2576 = vxor.u32 %v2510, 2147483648
    %v2577 = vxor.u32 %v2566, 2147483648
    %v2578 = vxor.u32 %v2176, 2147483648
    %v2579 = vxor.u32 %v2232, 2147483648
    %v2580 = vxor.u32 %v2288, 2147483648
    %v2581 = vxor.u32 %v2344, 2147483648
    %v2582 = vxor.u32 %v2400, 2147483648
    %v2583 = vxor.u32 %v2456, 2147483648
    %v2584 = vxor.u32 %v2512, 2147483648
    %v2585 = vxor.u32 %v2568, 2147483648
    %v2586 = vmul.f32 %v2570, 1.442695
    %v2587 = vpow.pop %v2586
    %v2588 = vmul.f32 %v2571, 1.442695
    %v2589 = vpow.pop %v2588
    %v2590 = vmul.f32 %v2572, 1.442695
    %v2591 = vpow.pop %v2590
    %v2592 = vmul.f32 %v2573, 1.442695
    %v2593 = vpow.pop %v2592
    %v2594 = vmul.f32 %v2574, 1.442695
    %v2595 = vpow.pop %v2594
    %v2596 = vmul.f32 %v2575, 1.442695
    %v2597 = vpow.pop %v2596
    %v2598 = vmul.f32 %v2576, 1.442695
    %v2599 = vpow.pop %v2598
    %v2600 = vmul.f32 %v2577, 1.442695
    %v2601 = vpow.pop %v2600
    %v2602 = vmul.f32 %v2578, 1.442695
    %v2603 = vpow.pop %v2602
    %v2604 = vmul.f32 %v2579, 1.442695
    %v2605 = vpow.pop %v2604
    %v2606 = vmul.f32 %v2580, 1.442695
    %v2607 = vpow.pop %v2606
    %v2608 = vmul.f32 %v2581, 1.442695
    %v2609 = vpow.pop %v2608
    %v2610 = vmul.f32 %v2582, 1.442695
    %v2611 = vpow.pop %v2610
    %v2612 = vmul.f32 %v2583, 1.442695
    %v2613 = vpow.pop %v2612
    %v2614 = vmul.f32 %v2584, 1.442695
    %v2615 = vpow.pop %v2614
    %v2616 = vmul.f32 %v2585, 1.442695
    %v2617 = vpow.pop %v2616
    %v2618 = vadd.f32 %v2587, 1.0
    %v2619 = vadd.f32 %v2589, 1.0
    %v2620 = vadd.f32 %v2591, 1.0
    %v2621 = vadd.f32 %v2593, 1.0
    %v2622 = vadd.f32 %v2595, 1.0
    %v2623 = vadd.f32 %v2597, 1.0
    %v2624 = vadd.f32 %v2599, 1.0
    %v2625 = vadd.f32 %v2601, 1.0
    %v2626 = vadd.f32 %v2603, 1.0
    %v2627 = vadd.f32 %v2605, 1.0
    %v2628 = vadd.f32 %v2607, 1.0
    %v2629 = vadd.f32 %v2609, 1.0
    %v2630 = vadd.f32 %v2611, 1.0
    %v2631 = vadd.f32 %v2613, 1.0
    %v2632 = vadd.f32 %v2615, 1.0
    %v2633 = vadd.f32 %v2617, 1.0
    %v2634 = vrcp.pop %v2618
    %v2635 = vmul.f32 %v2618, %v2634
    %v2636 = vsub.f32 1.0, %v2635
    %v2637 = vmul.f32 %v2634, %v2636
    %v2638 = vadd.f32 %v2634, %v2637
    %vm2639 = vweird.f32 %v2618
    %vm2640 = vweird.f32 %v2634
    %vm2641 = vmor %vm2639, %vm2640
    %v2642 = vsel %vm2641, %v2634, %v2638
    %v2643 = vand.u32 2147483647, %v2618
    %vm2644 = vcmp.eq.f32.partialorder %v2643, 8.507059e+37
    %v2645 = vand.u32 %v2618, 2147483648
    %v2646 = vor.u32 1.1754944e-38, %v2645
    %v2647 = vsel %vm2644, %v2646, %v2642
    %v2648 = vmul.f32 1.0, %v2647
    %v2649 = vrcp.pop %v2619
    %v2650 = vmul.f32 %v2619, %v2649
    %v2651 = vsub.f32 1.0, %v2650
    %v2652 = vmul.f32 %v2649, %v2651
    %v2653 = vadd.f32 %v2649, %v2652
    %vm2654 = vweird.f32 %v2619
    %vm2655 = vweird.f32 %v2649
    %vm2656 = vmor %vm2654, %vm2655
    %v2657 = vsel %vm2656, %v2649, %v2653
    %v2658 = vand.u32 2147483647, %v2619
    %vm2659 = vcmp.eq.f32.partialorder %v2658, 8.507059e+37
    %v2660 = vand.u32 %v2619, 2147483648
    %v2661 = vor.u32 1.1754944e-38, %v2660
    %v2662 = vsel %vm2659, %v2661, %v2657
    %v2663 = vmul.f32 1.0, %v2662
    %v2664 = vrcp.pop %v2620
    %v2665 = vmul.f32 %v2620, %v2664
    %v2666 = vsub.f32 1.0, %v2665
    %v2667 = vmul.f32 %v2664, %v2666
    %v2668 = vadd.f32 %v2664, %v2667
    %vm2669 = vweird.f32 %v2620
    %vm2670 = vweird.f32 %v2664
    %vm2671 = vmor %vm2669, %vm2670
    %v2672 = vsel %vm2671, %v2664, %v2668
    %v2673 = vand.u32 2147483647, %v2620
    %vm2674 = vcmp.eq.f32.partialorder %v2673, 8.507059e+37
    %v2675 = vand.u32 %v2620, 2147483648
    %v2676 = vor.u32 1.1754944e-38, %v2675
    %v2677 = vsel %vm2674, %v2676, %v2672
    %v2678 = vmul.f32 1.0, %v2677
    %v2679 = vrcp.pop %v2621
    %v2680 = vmul.f32 %v2621, %v2679
    %v2681 = vsub.f32 1.0, %v2680
    %v2682 = vmul.f32 %v2679, %v2681
    %v2683 = vadd.f32 %v2679, %v2682
    %vm2684 = vweird.f32 %v2621
    %vm2685 = vweird.f32 %v2679
    %vm2686 = vmor %vm2684, %vm2685
    %v2687 = vsel %vm2686, %v2679, %v2683
    %v2688 = vand.u32 2147483647, %v2621
    %vm2689 = vcmp.eq.f32.partialorder %v2688, 8.507059e+37
    %v2690 = vand.u32 %v2621, 2147483648
    %v2691 = vor.u32 1.1754944e-38, %v2690
    %v2692 = vsel %vm2689, %v2691, %v2687
    %v2693 = vmul.f32 1.0, %v2692
    %v2694 = vrcp.pop %v2622
    %v2695 = vmul.f32 %v2622, %v2694
    %v2696 = vsub.f32 1.0, %v2695
    %v2697 = vmul.f32 %v2694, %v2696
    %v2698 = vadd.f32 %v2694, %v2697
    %vm2699 = vweird.f32 %v2622
    %vm2700 = vweird.f32 %v2694
    %vm2701 = vmor %vm2699, %vm2700
    %v2702 = vsel %vm2701, %v2694, %v2698
    %v2703 = vand.u32 2147483647, %v2622
    %vm2704 = vcmp.eq.f32.partialorder %v2703, 8.507059e+37
    %v2705 = vand.u32 %v2622, 2147483648
    %v2706 = vor.u32 1.1754944e-38, %v2705
    %v2707 = vsel %vm2704, %v2706, %v2702
    %v2708 = vmul.f32 1.0, %v2707
    %v2709 = vrcp.pop %v2623
    %v2710 = vmul.f32 %v2623, %v2709
    %v2711 = vsub.f32 1.0, %v2710
    %v2712 = vmul.f32 %v2709, %v2711
    %v2713 = vadd.f32 %v2709, %v2712
    %vm2714 = vweird.f32 %v2623
    %vm2715 = vweird.f32 %v2709
    %vm2716 = vmor %vm2714, %vm2715
    %v2717 = vsel %vm2716, %v2709, %v2713
    %v2718 = vand.u32 2147483647, %v2623
    %vm2719 = vcmp.eq.f32.partialorder %v2718, 8.507059e+37
    %v2720 = vand.u32 %v2623, 2147483648
    %v2721 = vor.u32 1.1754944e-38, %v2720
    %v2722 = vsel %vm2719, %v2721, %v2717
    %v2723 = vmul.f32 1.0, %v2722
    %v2724 = vrcp.pop %v2624
    %v2725 = vmul.f32 %v2624, %v2724
    %v2726 = vsub.f32 1.0, %v2725
    %v2727 = vmul.f32 %v2724, %v2726
    %v2728 = vadd.f32 %v2724, %v2727
    %vm2729 = vweird.f32 %v2624
    %vm2730 = vweird.f32 %v2724
    %vm2731 = vmor %vm2729, %vm2730
    %v2732 = vsel %vm2731, %v2724, %v2728
    %v2733 = vand.u32 2147483647, %v2624
    %vm2734 = vcmp.eq.f32.partialorder %v2733, 8.507059e+37
    %v2735 = vand.u32 %v2624, 2147483648
    %v2736 = vor.u32 1.1754944e-38, %v2735
    %v2737 = vsel %vm2734, %v2736, %v2732
    %v2738 = vmul.f32 1.0, %v2737
    %v2739 = vrcp.pop %v2625
    %v2740 = vmul.f32 %v2625, %v2739
    %v2741 = vsub.f32 1.0, %v2740
    %v2742 = vmul.f32 %v2739, %v2741
    %v2743 = vadd.f32 %v2739, %v2742
    %vm2744 = vweird.f32 %v2625
    %vm2745 = vweird.f32 %v2739
    %vm2746 = vmor %vm2744, %vm2745
    %v2747 = vsel %vm2746, %v2739, %v2743
    %v2748 = vand.u32 2147483647, %v2625
    %vm2749 = vcmp.eq.f32.partialorder %v2748, 8.507059e+37
    %v2750 = vand.u32 %v2625, 2147483648
    %v2751 = vor.u32 1.1754944e-38, %v2750
    %v2752 = vsel %vm2749, %v2751, %v2747
    %v2753 = vmul.f32 1.0, %v2752
    %v2754 = vrcp.pop %v2626
    %v2755 = vmul.f32 %v2626, %v2754
    %v2756 = vsub.f32 1.0, %v2755
    %v2757 = vmul.f32 %v2754, %v2756
    %v2758 = vadd.f32 %v2754, %v2757
    %vm2759 = vweird.f32 %v2626
    %vm2760 = vweird.f32 %v2754
    %vm2761 = vmor %vm2759, %vm2760
    %v2762 = vsel %vm2761, %v2754, %v2758
    %v2763 = vand.u32 2147483647, %v2626
    %vm2764 = vcmp.eq.f32.partialorder %v2763, 8.507059e+37
    %v2765 = vand.u32 %v2626, 2147483648
    %v2766 = vor.u32 1.1754944e-38, %v2765
    %v2767 = vsel %vm2764, %v2766, %v2762
    %v2768 = vmul.f32 1.0, %v2767
    %v2769 = vrcp.pop %v2627
    %v2770 = vmul.f32 %v2627, %v2769
    %v2771 = vsub.f32 1.0, %v2770
    %v2772 = vmul.f32 %v2769, %v2771
    %v2773 = vadd.f32 %v2769, %v2772
    %vm2774 = vweird.f32 %v2627
    %vm2775 = vweird.f32 %v2769
    %vm2776 = vmor %vm2774, %vm2775
    %v2777 = vsel %vm2776, %v2769, %v2773
    %v2778 = vand.u32 2147483647, %v2627
    %vm2779 = vcmp.eq.f32.partialorder %v2778, 8.507059e+37
    %v2780 = vand.u32 %v2627, 2147483648
    %v2781 = vor.u32 1.1754944e-38, %v2780
    %v2782 = vsel %vm2779, %v2781, %v2777
    %v2783 = vmul.f32 1.0, %v2782
    %v2784 = vrcp.pop %v2628
    %v2785 = vmul.f32 %v2628, %v2784
    %v2786 = vsub.f32 1.0, %v2785
    %v2787 = vmul.f32 %v2784, %v2786
    %v2788 = vadd.f32 %v2784, %v2787
    %vm2789 = vweird.f32 %v2628
    %vm2790 = vweird.f32 %v2784
    %vm2791 = vmor %vm2789, %vm2790
    %v2792 = vsel %vm2791, %v2784, %v2788
    %v2793 = vand.u32 2147483647, %v2628
    %vm2794 = vcmp.eq.f32.partialorder %v2793, 8.507059e+37
    %v2795 = vand.u32 %v2628, 2147483648
    %v2796 = vor.u32 1.1754944e-38, %v2795
    %v2797 = vsel %vm2794, %v2796, %v2792
    %v2798 = vmul.f32 1.0, %v2797
    %v2799 = vrcp.pop %v2629
    %v2800 = vmul.f32 %v2629, %v2799
    %v2801 = vsub.f32 1.0, %v2800
    %v2802 = vmul.f32 %v2799, %v2801
    %v2803 = vadd.f32 %v2799, %v2802
    %vm2804 = vweird.f32 %v2629
    %vm2805 = vweird.f32 %v2799
    %vm2806 = vmor %vm2804, %vm2805
    %v2807 = vsel %vm2806, %v2799, %v2803
    %v2808 = vand.u32 2147483647, %v2629
    %vm2809 = vcmp.eq.f32.partialorder %v2808, 8.507059e+37
    %v2810 = vand.u32 %v2629, 2147483648
    %v2811 = vor.u32 1.1754944e-38, %v2810
    %v2812 = vsel %vm2809, %v2811, %v2807
    %v2813 = vmul.f32 1.0, %v2812
    %v2814 = vrcp.pop %v2630
    %v2815 = vmul.f32 %v2630, %v2814
    %v2816 = vsub.f32 1.0, %v2815
    %v2817 = vmul.f32 %v2814, %v2816
    %v2818 = vadd.f32 %v2814, %v2817
    %vm2819 = vweird.f32 %v2630
    %vm2820 = vweird.f32 %v2814
    %vm2821 = vmor %vm2819, %vm2820
    %v2822 = vsel %vm2821, %v2814, %v2818
    %v2823 = vand.u32 2147483647, %v2630
    %vm2824 = vcmp.eq.f32.partialorder %v2823, 8.507059e+37
    %v2825 = vand.u32 %v2630, 2147483648
    %v2826 = vor.u32 1.1754944e-38, %v2825
    %v2827 = vsel %vm2824, %v2826, %v2822
    %v2828 = vmul.f32 1.0, %v2827
    %v2829 = vrcp.pop %v2631
    %v2830 = vmul.f32 %v2631, %v2829
    %v2831 = vsub.f32 1.0, %v2830
    %v2832 = vmul.f32 %v2829, %v2831
    %v2833 = vadd.f32 %v2829, %v2832
    %vm2834 = vweird.f32 %v2631
    %vm2835 = vweird.f32 %v2829
    %vm2836 = vmor %vm2834, %vm2835
    %v2837 = vsel %vm2836, %v2829, %v2833
    %v2838 = vand.u32 2147483647, %v2631
    %vm2839 = vcmp.eq.f32.partialorder %v2838, 8.507059e+37
    %v2840 = vand.u32 %v2631, 2147483648
    %v2841 = vor.u32 1.1754944e-38, %v2840
    %v2842 = vsel %vm2839, %v2841, %v2837
    %v2843 = vmul.f32 1.0, %v2842
    %v2844 = vrcp.pop %v2632
    %v2845 = vmul.f32 %v2632, %v2844
    %v2846 = vsub.f32 1.0, %v2845
    %v2847 = vmul.f32 %v2844, %v2846
    %v2848 = vadd.f32 %v2844, %v2847
    %vm2849 = vweird.f32 %v2632
    %vm2850 = vweird.f32 %v2844
    %vm2851 = vmor %vm2849, %vm2850
    %v2852 = vsel %vm2851, %v2844, %v2848
    %v2853 = vand.u32 2147483647, %v2632
    %vm2854 = vcmp.eq.f32.partialorder %v2853, 8.507059e+37
    %v2855 = vand.u32 %v2632, 2147483648
    %v2856 = vor.u32 1.1754944e-38, %v2855
    %v2857 = vsel %vm2854, %v2856, %v2852
    %v2858 = vmul.f32 1.0, %v2857
    %v2859 = vrcp.pop %v2633
    %v2860 = vmul.f32 %v2633, %v2859
    %v2861 = vsub.f32 1.0, %v2860
    %v2862 = vmul.f32 %v2859, %v2861
    %v2863 = vadd.f32 %v2859, %v2862
    %vm2864 = vweird.f32 %v2633
    %vm2865 = vweird.f32 %v2859
    %vm2866 = vmor %vm2864, %vm2865
    %v2867 = vsel %vm2866, %v2859, %v2863
    %v2868 = vand.u32 2147483647, %v2633
    %vm2869 = vcmp.eq.f32.partialorder %v2868, 8.507059e+37
    %v2870 = vand.u32 %v2633, 2147483648
    %v2871 = vor.u32 1.1754944e-38, %v2870
    %v2872 = vsel %vm2869, %v2871, %v2867
    %v2873 = vmul.f32 1.0, %v2872
    %v2874 = vmul.f32 %v2174, %v2648
    %v2875 = vmul.f32 %v2230, %v2663
    %v2876 = vmul.f32 %v2286, %v2678
    %v2877 = vmul.f32 %v2342, %v2693
    %v2878 = vmul.f32 %v2398, %v2708
    %v2879 = vmul.f32 %v2454, %v2723
    %v2880 = vmul.f32 %v2510, %v2738
    %v2881 = vmul.f32 %v2566, %v2753
    %v2882 = vmul.f32 %v2176, %v2768
    %v2883 = vmul.f32 %v2232, %v2783
    %v2884 = vmul.f32 %v2288, %v2798
    %v2885 = vmul.f32 %v2344, %v2813
    %v2886 = vmul.f32 %v2400, %v2828
    %v2887 = vmul.f32 %v2456, %v2843
    %v2888 = vmul.f32 %v2512, %v2858
    %v2889 = vmul.f32 %v2568, %v2873
    %v2890 = vpack.c.bf16 %v2882, %v2874
    %v2891 = vpack.c.bf16 %v2883, %v2875
    %v2892 = vpack.c.bf16 %v2884, %v2876
    %v2893 = vpack.c.bf16 %v2885, %v2877
    %v2894 = vpack.c.bf16 %v2886, %v2878
    %v2895 = vpack.c.bf16 %v2887, %v2879
    %v2896 = vpack.c.bf16 %v2888, %v2880
    %v2897 = vpack.c.bf16 %v2889, %v2881
    %v2898 = vld [vmem:[#allocation11] sm:$0xff]
    %v2899 = vld [vmem:[#allocation11 + $0x8] sm:$0xff]
    %v2900 = vld [vmem:[#allocation11 + $0x10] sm:$0xff]
    %v2901 = vld [vmem:[#allocation11 + $0x18] sm:$0xff]
    %v2902 = vld [vmem:[#allocation11 + $0x20] sm:$0xff]
    %v2903 = vld [vmem:[#allocation11 + $0x28] sm:$0xff]
    %v2904 = vld [vmem:[#allocation11 + $0x30] sm:$0xff]
    %v2905 = vld [vmem:[#allocation11 + $0x38] sm:$0xff]
    %v2906 = vld [vmem:[#allocation11 + $0x40] sm:$0xff]
    %v2907 = vld [vmem:[#allocation11 + $0x48] sm:$0xff]
    %v2908 = vld [vmem:[#allocation11 + $0x50] sm:$0xff]
    %v2909 = vld [vmem:[#allocation11 + $0x58] sm:$0xff]
    %v2910 = vld [vmem:[#allocation11 + $0x60] sm:$0xff]
    %v2911 = vld [vmem:[#allocation11 + $0x68] sm:$0xff]
    %v2912 = vld [vmem:[#allocation11 + $0x70] sm:$0xff]
    %v2913 = vld [vmem:[#allocation11 + $0x78] sm:$0xff]
    %v2914 = vld [vmem:[#allocation11 + $0x80] sm:$0xff]
    %v2915 = vld [vmem:[#allocation11 + $0x88] sm:$0xff]
    %v2916 = vld [vmem:[#allocation11 + $0x90] sm:$0xff]
    %v2917 = vld [vmem:[#allocation11 + $0x98] sm:$0xff]
    %v2918 = vld [vmem:[#allocation11 + $0xa0] sm:$0xff]
    %v2919 = vld [vmem:[#allocation11 + $0xa8] sm:$0xff]
    %v2920 = vld [vmem:[#allocation11 + $0xb0] sm:$0xff]
    %v2921 = vld [vmem:[#allocation11 + $0xb8] sm:$0xff]
    %v2922 = vld [vmem:[#allocation11 + $0xc0] sm:$0xff]
    %v2923 = vld [vmem:[#allocation11 + $0xc8] sm:$0xff]
    %v2924 = vld [vmem:[#allocation11 + $0xd0] sm:$0xff]
    %v2925 = vld [vmem:[#allocation11 + $0xd8] sm:$0xff]
    %v2926 = vld [vmem:[#allocation11 + $0xe0] sm:$0xff]
    %v2927 = vld [vmem:[#allocation11 + $0xe8] sm:$0xff]
    %v2928 = vld [vmem:[#allocation11 + $0xf0] sm:$0xff]
    %v2929 = vld [vmem:[#allocation11 + $0xf8] sm:$0xff]
    %v2930 = vld [vmem:[#allocation11 + $0x100] sm:$0xff]
    %v2931 = vld [vmem:[#allocation11 + $0x108] sm:$0xff]
    %v2932 = vld [vmem:[#allocation11 + $0x110] sm:$0xff]
    %v2933 = vld [vmem:[#allocation11 + $0x118] sm:$0xff]
    %v2934 = vld [vmem:[#allocation11 + $0x120] sm:$0xff]
    %v2935 = vld [vmem:[#allocation11 + $0x128] sm:$0xff]
    %v2936 = vld [vmem:[#allocation11 + $0x130] sm:$0xff]
    %v2937 = vld [vmem:[#allocation11 + $0x138] sm:$0xff]
    %v2938 = vld [vmem:[#allocation11 + $0x140] sm:$0xff]
    %v2939 = vld [vmem:[#allocation11 + $0x148] sm:$0xff]
    %v2940 = vld [vmem:[#allocation11 + $0x150] sm:$0xff]
    %v2941 = vld [vmem:[#allocation11 + $0x158] sm:$0xff]
    %v2942 = vld [vmem:[#allocation11 + $0x160] sm:$0xff]
    %v2943 = vld [vmem:[#allocation11 + $0x168] sm:$0xff]
    %v2944 = vld [vmem:[#allocation11 + $0x170] sm:$0xff]
    %v2945 = vld [vmem:[#allocation11 + $0x178] sm:$0xff]
    %v2946 = vld [vmem:[#allocation11 + $0x180] sm:$0xff]
    %v2947 = vld [vmem:[#allocation11 + $0x188] sm:$0xff]
    %v2948 = vld [vmem:[#allocation11 + $0x190] sm:$0xff]
    %v2949 = vld [vmem:[#allocation11 + $0x198] sm:$0xff]
    %v2950 = vld [vmem:[#allocation11 + $0x1a0] sm:$0xff]
    %v2951 = vld [vmem:[#allocation11 + $0x1a8] sm:$0xff]
    %v2952 = vld [vmem:[#allocation11 + $0x1b0] sm:$0xff]
    %v2953 = vld [vmem:[#allocation11 + $0x1b8] sm:$0xff]
    %v2954 = vld [vmem:[#allocation11 + $0x1c0] sm:$0xff]
    %v2955 = vld [vmem:[#allocation11 + $0x1c8] sm:$0xff]
    %v2956 = vld [vmem:[#allocation11 + $0x1d0] sm:$0xff]
    %v2957 = vld [vmem:[#allocation11 + $0x1d8] sm:$0xff]
    %v2958 = vld [vmem:[#allocation11 + $0x1e0] sm:$0xff]
    %v2959 = vld [vmem:[#allocation11 + $0x1e8] sm:$0xff]
    %v2960 = vld [vmem:[#allocation11 + $0x1f0] sm:$0xff]
    %v2961 = vld [vmem:[#allocation11 + $0x1f8] sm:$0xff]
    %v2962 = vld [vmem:[#allocation11 + $0x200] sm:$0xff]
    %v2963 = vld [vmem:[#allocation11 + $0x208] sm:$0xff]
    %v2964 = vld [vmem:[#allocation11 + $0x210] sm:$0xff]
    %v2965 = vld [vmem:[#allocation11 + $0x218] sm:$0xff]
    %v2966 = vld [vmem:[#allocation11 + $0x220] sm:$0xff]
    %v2967 = vld [vmem:[#allocation11 + $0x228] sm:$0xff]
    %v2968 = vld [vmem:[#allocation11 + $0x230] sm:$0xff]
    %v2969 = vld [vmem:[#allocation11 + $0x238] sm:$0xff]
    %v2970 = vld [vmem:[#allocation11 + $0x240] sm:$0xff]
    %v2971 = vld [vmem:[#allocation11 + $0x248] sm:$0xff]
    %v2972 = vld [vmem:[#allocation11 + $0x250] sm:$0xff]
    %v2973 = vld [vmem:[#allocation11 + $0x258] sm:$0xff]
    %v2974 = vld [vmem:[#allocation11 + $0x260] sm:$0xff]
    %v2975 = vld [vmem:[#allocation11 + $0x268] sm:$0xff]
    %v2976 = vld [vmem:[#allocation11 + $0x270] sm:$0xff]
    %v2977 = vld [vmem:[#allocation11 + $0x278] sm:$0xff]
    %v2978 = vld [vmem:[#allocation11 + $0x280] sm:$0xff]
    %v2979 = vld [vmem:[#allocation11 + $0x288] sm:$0xff]
    %v2980 = vld [vmem:[#allocation11 + $0x290] sm:$0xff]
    %v2981 = vld [vmem:[#allocation11 + $0x298] sm:$0xff]
    %v2982 = vld [vmem:[#allocation11 + $0x2a0] sm:$0xff]
    %v2983 = vld [vmem:[#allocation11 + $0x2a8] sm:$0xff]
    %v2984 = vld [vmem:[#allocation11 + $0x2b0] sm:$0xff]
    %v2985 = vld [vmem:[#allocation11 + $0x2b8] sm:$0xff]
    %v2986 = vld [vmem:[#allocation11 + $0x2c0] sm:$0xff]
    %v2987 = vld [vmem:[#allocation11 + $0x2c8] sm:$0xff]
    %v2988 = vld [vmem:[#allocation11 + $0x2d0] sm:$0xff]
    %v2989 = vld [vmem:[#allocation11 + $0x2d8] sm:$0xff]
    %v2990 = vld [vmem:[#allocation11 + $0x2e0] sm:$0xff]
    %v2991 = vld [vmem:[#allocation11 + $0x2e8] sm:$0xff]
    %v2992 = vld [vmem:[#allocation11 + $0x2f0] sm:$0xff]
    %v2993 = vld [vmem:[#allocation11 + $0x2f8] sm:$0xff]
    %v2994 = vld [vmem:[#allocation11 + $0x300] sm:$0xff]
    %v2995 = vld [vmem:[#allocation11 + $0x308] sm:$0xff]
    %v2996 = vld [vmem:[#allocation11 + $0x310] sm:$0xff]
    %v2997 = vld [vmem:[#allocation11 + $0x318] sm:$0xff]
    %v2998 = vld [vmem:[#allocation11 + $0x320] sm:$0xff]
    %v2999 = vld [vmem:[#allocation11 + $0x328] sm:$0xff]
    %v3000 = vld [vmem:[#allocation11 + $0x330] sm:$0xff]
    %v3001 = vld [vmem:[#allocation11 + $0x338] sm:$0xff]
    %v3002 = vld [vmem:[#allocation11 + $0x340] sm:$0xff]
    %v3003 = vld [vmem:[#allocation11 + $0x348] sm:$0xff]
    %v3004 = vld [vmem:[#allocation11 + $0x350] sm:$0xff]
    %v3005 = vld [vmem:[#allocation11 + $0x358] sm:$0xff]
    %v3006 = vld [vmem:[#allocation11 + $0x360] sm:$0xff]
    %v3007 = vld [vmem:[#allocation11 + $0x368] sm:$0xff]
    %v3008 = vld [vmem:[#allocation11 + $0x370] sm:$0xff]
    %v3009 = vld [vmem:[#allocation11 + $0x378] sm:$0xff]
    %v3010 = vld [vmem:[#allocation11 + $0x380] sm:$0xff]
    %v3011 = vld [vmem:[#allocation11 + $0x388] sm:$0xff]
    %v3012 = vld [vmem:[#allocation11 + $0x390] sm:$0xff]
    %v3013 = vld [vmem:[#allocation11 + $0x398] sm:$0xff]
    %v3014 = vld [vmem:[#allocation11 + $0x3a0] sm:$0xff]
    %v3015 = vld [vmem:[#allocation11 + $0x3a8] sm:$0xff]
    %v3016 = vld [vmem:[#allocation11 + $0x3b0] sm:$0xff]
    %v3017 = vld [vmem:[#allocation11 + $0x3b8] sm:$0xff]
    %v3018 = vld [vmem:[#allocation11 + $0x3c0] sm:$0xff]
    %v3019 = vld [vmem:[#allocation11 + $0x3c8] sm:$0xff]
    %v3020 = vld [vmem:[#allocation11 + $0x3d0] sm:$0xff]
    %v3021 = vld [vmem:[#allocation11 + $0x3d8] sm:$0xff]
    %v3022 = vld [vmem:[#allocation11 + $0x3e0] sm:$0xff]
    %v3023 = vld [vmem:[#allocation11 + $0x3e8] sm:$0xff]
    %v3024 = vld [vmem:[#allocation11 + $0x3f0] sm:$0xff]
    %v3025 = vld [vmem:[#allocation11 + $0x3f8] sm:$0xff]
    %v3026 = vld [vmem:[#allocation11 + $0x400] sm:$0xff]
    %v3027 = vld [vmem:[#allocation11 + $0x408] sm:$0xff]
    %v3028 = vld [vmem:[#allocation11 + $0x410] sm:$0xff]
    %v3029 = vld [vmem:[#allocation11 + $0x418] sm:$0xff]
    %v3030 = vld [vmem:[#allocation11 + $0x420] sm:$0xff]
    %v3031 = vld [vmem:[#allocation11 + $0x428] sm:$0xff]
    %v3032 = vld [vmem:[#allocation11 + $0x430] sm:$0xff]
    %v3033 = vld [vmem:[#allocation11 + $0x438] sm:$0xff]
    %v3034 = vld [vmem:[#allocation11 + $0x440] sm:$0xff]
    %v3035 = vld [vmem:[#allocation11 + $0x448] sm:$0xff]
    %v3036 = vld [vmem:[#allocation11 + $0x450] sm:$0xff]
    %v3037 = vld [vmem:[#allocation11 + $0x458] sm:$0xff]
    %v3038 = vld [vmem:[#allocation11 + $0x460] sm:$0xff]
    %v3039 = vld [vmem:[#allocation11 + $0x468] sm:$0xff]
    %v3040 = vld [vmem:[#allocation11 + $0x470] sm:$0xff]
    %v3041 = vld [vmem:[#allocation11 + $0x478] sm:$0xff]
    %v3042 = vld [vmem:[#allocation11 + $0x480] sm:$0xff]
    %v3043 = vld [vmem:[#allocation11 + $0x488] sm:$0xff]
    %v3044 = vld [vmem:[#allocation11 + $0x490] sm:$0xff]
    %v3045 = vld [vmem:[#allocation11 + $0x498] sm:$0xff]
    %v3046 = vld [vmem:[#allocation11 + $0x4a0] sm:$0xff]
    %v3047 = vld [vmem:[#allocation11 + $0x4a8] sm:$0xff]
    %v3048 = vld [vmem:[#allocation11 + $0x4b0] sm:$0xff]
    %v3049 = vld [vmem:[#allocation11 + $0x4b8] sm:$0xff]
    %v3050 = vld [vmem:[#allocation11 + $0x4c0] sm:$0xff]
    %v3051 = vld [vmem:[#allocation11 + $0x4c8] sm:$0xff]
    %v3052 = vld [vmem:[#allocation11 + $0x4d0] sm:$0xff]
    %v3053 = vld [vmem:[#allocation11 + $0x4d8] sm:$0xff]
    %v3054 = vld [vmem:[#allocation11 + $0x4e0] sm:$0xff]
    %v3055 = vld [vmem:[#allocation11 + $0x4e8] sm:$0xff]
    %v3056 = vld [vmem:[#allocation11 + $0x4f0] sm:$0xff]
    %v3057 = vld [vmem:[#allocation11 + $0x4f8] sm:$0xff]
    %v3058 = vld [vmem:[#allocation11 + $0x500] sm:$0xff]
    %v3059 = vld [vmem:[#allocation11 + $0x508] sm:$0xff]
    %v3060 = vld [vmem:[#allocation11 + $0x510] sm:$0xff]
    %v3061 = vld [vmem:[#allocation11 + $0x518] sm:$0xff]
    %v3062 = vld [vmem:[#allocation11 + $0x520] sm:$0xff]
    %v3063 = vld [vmem:[#allocation11 + $0x528] sm:$0xff]
    %v3064 = vld [vmem:[#allocation11 + $0x530] sm:$0xff]
    %v3065 = vld [vmem:[#allocation11 + $0x538] sm:$0xff]
    %v3066 = vld [vmem:[#allocation11 + $0x540] sm:$0xff]
    %v3067 = vld [vmem:[#allocation11 + $0x548] sm:$0xff]
    %v3068 = vld [vmem:[#allocation11 + $0x550] sm:$0xff]
    %v3069 = vld [vmem:[#allocation11 + $0x558] sm:$0xff]
    %v3070 = vld [vmem:[#allocation11 + $0x560] sm:$0xff]
    %v3071 = vld [vmem:[#allocation11 + $0x568] sm:$0xff]
    %v3072 = vld [vmem:[#allocation11 + $0x570] sm:$0xff]
    %v3073 = vld [vmem:[#allocation11 + $0x578] sm:$0xff]
    %v3074 = vld [vmem:[#allocation11 + $0x580] sm:$0xff]
    %v3075 = vld [vmem:[#allocation11 + $0x588] sm:$0xff]
    %v3076 = vld [vmem:[#allocation11 + $0x590] sm:$0xff]
    %v3077 = vld [vmem:[#allocation11 + $0x598] sm:$0xff]
    %v3078 = vld [vmem:[#allocation11 + $0x5a0] sm:$0xff]
    %v3079 = vld [vmem:[#allocation11 + $0x5a8] sm:$0xff]
    %v3080 = vld [vmem:[#allocation11 + $0x5b0] sm:$0xff]
    %v3081 = vld [vmem:[#allocation11 + $0x5b8] sm:$0xff]
    %v3082 = vld [vmem:[#allocation11 + $0x5c0] sm:$0xff]
    %v3083 = vld [vmem:[#allocation11 + $0x5c8] sm:$0xff]
    %v3084 = vld [vmem:[#allocation11 + $0x5d0] sm:$0xff]
    %v3085 = vld [vmem:[#allocation11 + $0x5d8] sm:$0xff]
    %v3086 = vld [vmem:[#allocation11 + $0x5e0] sm:$0xff]
    %v3087 = vld [vmem:[#allocation11 + $0x5e8] sm:$0xff]
    %v3088 = vld [vmem:[#allocation11 + $0x5f0] sm:$0xff]
    %v3089 = vld [vmem:[#allocation11 + $0x5f8] sm:$0xff]
    %v3090 = vld [vmem:[#allocation11 + $0x600] sm:$0xff]
    %v3091 = vld [vmem:[#allocation11 + $0x608] sm:$0xff]
    %v3092 = vld [vmem:[#allocation11 + $0x610] sm:$0xff]
    %v3093 = vld [vmem:[#allocation11 + $0x618] sm:$0xff]
    %v3094 = vld [vmem:[#allocation11 + $0x620] sm:$0xff]
    %v3095 = vld [vmem:[#allocation11 + $0x628] sm:$0xff]
    %v3096 = vld [vmem:[#allocation11 + $0x630] sm:$0xff]
    %v3097 = vld [vmem:[#allocation11 + $0x638] sm:$0xff]
    %v3098 = vld [vmem:[#allocation11 + $0x640] sm:$0xff]
    %v3099 = vld [vmem:[#allocation11 + $0x648] sm:$0xff]
    %v3100 = vld [vmem:[#allocation11 + $0x650] sm:$0xff]
    %v3101 = vld [vmem:[#allocation11 + $0x658] sm:$0xff]
    %v3102 = vld [vmem:[#allocation11 + $0x660] sm:$0xff]
    %v3103 = vld [vmem:[#allocation11 + $0x668] sm:$0xff]
    %v3104 = vld [vmem:[#allocation11 + $0x670] sm:$0xff]
    %v3105 = vld [vmem:[#allocation11 + $0x678] sm:$0xff]
    %v3106 = vld [vmem:[#allocation11 + $0x680] sm:$0xff]
    %v3107 = vld [vmem:[#allocation11 + $0x688] sm:$0xff]
    %v3108 = vld [vmem:[#allocation11 + $0x690] sm:$0xff]
    %v3109 = vld [vmem:[#allocation11 + $0x698] sm:$0xff]
    %v3110 = vld [vmem:[#allocation11 + $0x6a0] sm:$0xff]
    %v3111 = vld [vmem:[#allocation11 + $0x6a8] sm:$0xff]
    %v3112 = vld [vmem:[#allocation11 + $0x6b0] sm:$0xff]
    %v3113 = vld [vmem:[#allocation11 + $0x6b8] sm:$0xff]
    %v3114 = vld [vmem:[#allocation11 + $0x6c0] sm:$0xff]
    %v3115 = vld [vmem:[#allocation11 + $0x6c8] sm:$0xff]
    %v3116 = vld [vmem:[#allocation11 + $0x6d0] sm:$0xff]
    %v3117 = vld [vmem:[#allocation11 + $0x6d8] sm:$0xff]
    %v3118 = vld [vmem:[#allocation11 + $0x6e0] sm:$0xff]
    %v3119 = vld [vmem:[#allocation11 + $0x6e8] sm:$0xff]
    %v3120 = vld [vmem:[#allocation11 + $0x6f0] sm:$0xff]
    %v3121 = vld [vmem:[#allocation11 + $0x6f8] sm:$0xff]
    %v3122 = vld [vmem:[#allocation11 + $0x700] sm:$0xff]
    %v3123 = vld [vmem:[#allocation11 + $0x708] sm:$0xff]
    %v3124 = vld [vmem:[#allocation11 + $0x710] sm:$0xff]
    %v3125 = vld [vmem:[#allocation11 + $0x718] sm:$0xff]
    %v3126 = vld [vmem:[#allocation11 + $0x720] sm:$0xff]
    %v3127 = vld [vmem:[#allocation11 + $0x728] sm:$0xff]
    %v3128 = vld [vmem:[#allocation11 + $0x730] sm:$0xff]
    %v3129 = vld [vmem:[#allocation11 + $0x738] sm:$0xff]
    %v3130 = vld [vmem:[#allocation11 + $0x740] sm:$0xff]
    %v3131 = vld [vmem:[#allocation11 + $0x748] sm:$0xff]
    %v3132 = vld [vmem:[#allocation11 + $0x750] sm:$0xff]
    %v3133 = vld [vmem:[#allocation11 + $0x758] sm:$0xff]
    %v3134 = vld [vmem:[#allocation11 + $0x760] sm:$0xff]
    %v3135 = vld [vmem:[#allocation11 + $0x768] sm:$0xff]
    %v3136 = vld [vmem:[#allocation11 + $0x770] sm:$0xff]
    %v3137 = vld [vmem:[#allocation11 + $0x778] sm:$0xff]
    %v3138 = vld [vmem:[#allocation11 + $0x780] sm:$0xff]
    %v3139 = vld [vmem:[#allocation11 + $0x788] sm:$0xff]
    %v3140 = vld [vmem:[#allocation11 + $0x790] sm:$0xff]
    %v3141 = vld [vmem:[#allocation11 + $0x798] sm:$0xff]
    %v3142 = vld [vmem:[#allocation11 + $0x7a0] sm:$0xff]
    %v3143 = vld [vmem:[#allocation11 + $0x7a8] sm:$0xff]
    %v3144 = vld [vmem:[#allocation11 + $0x7b0] sm:$0xff]
    %v3145 = vld [vmem:[#allocation11 + $0x7b8] sm:$0xff]
    %v3146 = vld [vmem:[#allocation11 + $0x7c0] sm:$0xff]
    %v3147 = vld [vmem:[#allocation11 + $0x7c8] sm:$0xff]
    %v3148 = vld [vmem:[#allocation11 + $0x7d0] sm:$0xff]
    %v3149 = vld [vmem:[#allocation11 + $0x7d8] sm:$0xff]
    %v3150 = vld [vmem:[#allocation11 + $0x7e0] sm:$0xff]
    %v3151 = vld [vmem:[#allocation11 + $0x7e8] sm:$0xff]
    %v3152 = vld [vmem:[#allocation11 + $0x7f0] sm:$0xff]
    %v3153 = vld [vmem:[#allocation11 + $0x7f8] sm:$0xff]
    %v3154 = vld [vmem:[%s6] sm:$0xf]
    %v3156 = vperm.slane %v3154, 0
    %v3157 = vperm.slane %v3154, 1
    %v3158 = vperm.slane %v3154, 2
    %v3159 = vperm.slane %v3154, 3
    %v3420 = vunpack.c.l.b16 %v2898
    %v3421 = vunpack.c.h.b16 %v2898
    %v3422 = vunpack.c.l.b16 %v2899
    %v3423 = vunpack.c.h.b16 %v2899
    %v3424 = vunpack.c.l.b16 %v2900
    %v3425 = vunpack.c.h.b16 %v2900
    %v3426 = vunpack.c.l.b16 %v2901
    %v3427 = vunpack.c.h.b16 %v2901
    %v3428 = vunpack.c.l.b16 %v2902
    %v3429 = vunpack.c.h.b16 %v2902
    %v3430 = vunpack.c.l.b16 %v2903
    %v3431 = vunpack.c.h.b16 %v2903
    %v3432 = vunpack.c.l.b16 %v2904
    %v3433 = vunpack.c.h.b16 %v2904
    %v3434 = vunpack.c.l.b16 %v2905
    %v3435 = vunpack.c.h.b16 %v2905
    %v3436 = vunpack.c.l.b16 %v2906
    %v3437 = vunpack.c.h.b16 %v2906
    %v3438 = vunpack.c.l.b16 %v2907
    %v3439 = vunpack.c.h.b16 %v2907
    %v3440 = vunpack.c.l.b16 %v2908
    %v3441 = vunpack.c.h.b16 %v2908
    %v3442 = vunpack.c.l.b16 %v2909
    %v3443 = vunpack.c.h.b16 %v2909
    %v3444 = vunpack.c.l.b16 %v2910
    %v3445 = vunpack.c.h.b16 %v2910
    %v3446 = vunpack.c.l.b16 %v2911
    %v3447 = vunpack.c.h.b16 %v2911
    %v3448 = vunpack.c.l.b16 %v2912
    %v3449 = vunpack.c.h.b16 %v2912
    %v3450 = vunpack.c.l.b16 %v2913
    %v3451 = vunpack.c.h.b16 %v2913
    %v3452 = vunpack.c.l.b16 %v2914
    %v3453 = vunpack.c.h.b16 %v2914
    %v3454 = vunpack.c.l.b16 %v2915
    %v3455 = vunpack.c.h.b16 %v2915
    %v3456 = vunpack.c.l.b16 %v2916
    %v3457 = vunpack.c.h.b16 %v2916
    %v3458 = vunpack.c.l.b16 %v2917
    %v3459 = vunpack.c.h.b16 %v2917
    %v3460 = vunpack.c.l.b16 %v2918
    %v3461 = vunpack.c.h.b16 %v2918
    %v3462 = vunpack.c.l.b16 %v2919
    %v3463 = vunpack.c.h.b16 %v2919
    %v3464 = vunpack.c.l.b16 %v2920
    %v3465 = vunpack.c.h.b16 %v2920
    %v3466 = vunpack.c.l.b16 %v2921
    %v3467 = vunpack.c.h.b16 %v2921
    %v3468 = vunpack.c.l.b16 %v2922
    %v3469 = vunpack.c.h.b16 %v2922
    %v3470 = vunpack.c.l.b16 %v2923
    %v3471 = vunpack.c.h.b16 %v2923
    %v3472 = vunpack.c.l.b16 %v2924
    %v3473 = vunpack.c.h.b16 %v2924
    %v3474 = vunpack.c.l.b16 %v2925
    %v3475 = vunpack.c.h.b16 %v2925
    %v3476 = vunpack.c.l.b16 %v2926
    %v3477 = vunpack.c.h.b16 %v2926
    %v3478 = vunpack.c.l.b16 %v2927
    %v3479 = vunpack.c.h.b16 %v2927
    %v3480 = vunpack.c.l.b16 %v2928
    %v3481 = vunpack.c.h.b16 %v2928
    %v3482 = vunpack.c.l.b16 %v2929
    %v3483 = vunpack.c.h.b16 %v2929
    %v3484 = vunpack.c.l.b16 %v2930
    %v3485 = vunpack.c.h.b16 %v2930
    %v3486 = vunpack.c.l.b16 %v2931
    %v3487 = vunpack.c.h.b16 %v2931
    %v3488 = vunpack.c.l.b16 %v2932
    %v3489 = vunpack.c.h.b16 %v2932
    %v3490 = vunpack.c.l.b16 %v2933
    %v3491 = vunpack.c.h.b16 %v2933
    %v3492 = vunpack.c.l.b16 %v2934
    %v3493 = vunpack.c.h.b16 %v2934
    %v3494 = vunpack.c.l.b16 %v2935
    %v3495 = vunpack.c.h.b16 %v2935
    %v3496 = vunpack.c.l.b16 %v2936
    %v3497 = vunpack.c.h.b16 %v2936
    %v3498 = vunpack.c.l.b16 %v2937
    %v3499 = vunpack.c.h.b16 %v2937
    %v3500 = vunpack.c.l.b16 %v2938
    %v3501 = vunpack.c.h.b16 %v2938
    %v3502 = vunpack.c.l.b16 %v2939
    %v3503 = vunpack.c.h.b16 %v2939
    %v3504 = vunpack.c.l.b16 %v2940
    %v3505 = vunpack.c.h.b16 %v2940
    %v3506 = vunpack.c.l.b16 %v2941
    %v3507 = vunpack.c.h.b16 %v2941
    %v3508 = vunpack.c.l.b16 %v2942
    %v3509 = vunpack.c.h.b16 %v2942
    %v3510 = vunpack.c.l.b16 %v2943
    %v3511 = vunpack.c.h.b16 %v2943
    %v3512 = vunpack.c.l.b16 %v2944
    %v3513 = vunpack.c.h.b16 %v2944
    %v3514 = vunpack.c.l.b16 %v2945
    %v3515 = vunpack.c.h.b16 %v2945
    %v3516 = vunpack.c.l.b16 %v2946
    %v3517 = vunpack.c.h.b16 %v2946
    %v3518 = vunpack.c.l.b16 %v2947
    %v3519 = vunpack.c.h.b16 %v2947
    %v3520 = vunpack.c.l.b16 %v2948
    %v3521 = vunpack.c.h.b16 %v2948
    %v3522 = vunpack.c.l.b16 %v2949
    %v3523 = vunpack.c.h.b16 %v2949
    %v3524 = vunpack.c.l.b16 %v2950
    %v3525 = vunpack.c.h.b16 %v2950
    %v3526 = vunpack.c.l.b16 %v2951
    %v3527 = vunpack.c.h.b16 %v2951
    %v3528 = vunpack.c.l.b16 %v2952
    %v3529 = vunpack.c.h.b16 %v2952
    %v3530 = vunpack.c.l.b16 %v2953
    %v3531 = vunpack.c.h.b16 %v2953
    %v3532 = vunpack.c.l.b16 %v2954
    %v3533 = vunpack.c.h.b16 %v2954
    %v3534 = vunpack.c.l.b16 %v2955
    %v3535 = vunpack.c.h.b16 %v2955
    %v3536 = vunpack.c.l.b16 %v2956
    %v3537 = vunpack.c.h.b16 %v2956
    %v3538 = vunpack.c.l.b16 %v2957
    %v3539 = vunpack.c.h.b16 %v2957
    %v3540 = vunpack.c.l.b16 %v2958
    %v3541 = vunpack.c.h.b16 %v2958
    %v3542 = vunpack.c.l.b16 %v2959
    %v3543 = vunpack.c.h.b16 %v2959
    %v3544 = vunpack.c.l.b16 %v2960
    %v3545 = vunpack.c.h.b16 %v2960
    %v3546 = vunpack.c.l.b16 %v2961
    %v3547 = vunpack.c.h.b16 %v2961
    %v3548 = vunpack.c.l.b16 %v2962
    %v3549 = vunpack.c.h.b16 %v2962
    %v3550 = vunpack.c.l.b16 %v2963
    %v3551 = vunpack.c.h.b16 %v2963
    %v3552 = vunpack.c.l.b16 %v2964
    %v3553 = vunpack.c.h.b16 %v2964
    %v3554 = vunpack.c.l.b16 %v2965
    %v3555 = vunpack.c.h.b16 %v2965
    %v3556 = vunpack.c.l.b16 %v2966
    %v3557 = vunpack.c.h.b16 %v2966
    %v3558 = vunpack.c.l.b16 %v2967
    %v3559 = vunpack.c.h.b16 %v2967
    %v3560 = vunpack.c.l.b16 %v2968
    %v3561 = vunpack.c.h.b16 %v2968
    %v3562 = vunpack.c.l.b16 %v2969
    %v3563 = vunpack.c.h.b16 %v2969
    %v3564 = vunpack.c.l.b16 %v2970
    %v3565 = vunpack.c.h.b16 %v2970
    %v3566 = vunpack.c.l.b16 %v2971
    %v3567 = vunpack.c.h.b16 %v2971
    %v3568 = vunpack.c.l.b16 %v2972
    %v3569 = vunpack.c.h.b16 %v2972
    %v3570 = vunpack.c.l.b16 %v2973
    %v3571 = vunpack.c.h.b16 %v2973
    %v3572 = vunpack.c.l.b16 %v2974
    %v3573 = vunpack.c.h.b16 %v2974
    %v3574 = vunpack.c.l.b16 %v2975
    %v3575 = vunpack.c.h.b16 %v2975
    %v3576 = vunpack.c.l.b16 %v2976
    %v3577 = vunpack.c.h.b16 %v2976
    %v3578 = vunpack.c.l.b16 %v2977
    %v3579 = vunpack.c.h.b16 %v2977
    %v3580 = vunpack.c.l.b16 %v2978
    %v3581 = vunpack.c.h.b16 %v2978
    %v3582 = vunpack.c.l.b16 %v2979
    %v3583 = vunpack.c.h.b16 %v2979
    %v3584 = vunpack.c.l.b16 %v2980
    %v3585 = vunpack.c.h.b16 %v2980
    %v3586 = vunpack.c.l.b16 %v2981
    %v3587 = vunpack.c.h.b16 %v2981
    %v3588 = vunpack.c.l.b16 %v2982
    %v3589 = vunpack.c.h.b16 %v2982
    %v3590 = vunpack.c.l.b16 %v2983
    %v3591 = vunpack.c.h.b16 %v2983
    %v3592 = vunpack.c.l.b16 %v2984
    %v3593 = vunpack.c.h.b16 %v2984
    %v3594 = vunpack.c.l.b16 %v2985
    %v3595 = vunpack.c.h.b16 %v2985
    %v3596 = vunpack.c.l.b16 %v2986
    %v3597 = vunpack.c.h.b16 %v2986
    %v3598 = vunpack.c.l.b16 %v2987
    %v3599 = vunpack.c.h.b16 %v2987
    %v3600 = vunpack.c.l.b16 %v2988
    %v3601 = vunpack.c.h.b16 %v2988
    %v3602 = vunpack.c.l.b16 %v2989
    %v3603 = vunpack.c.h.b16 %v2989
    %v3604 = vunpack.c.l.b16 %v2990
    %v3605 = vunpack.c.h.b16 %v2990
    %v3606 = vunpack.c.l.b16 %v2991
    %v3607 = vunpack.c.h.b16 %v2991
    %v3608 = vunpack.c.l.b16 %v2992
    %v3609 = vunpack.c.h.b16 %v2992
    %v3610 = vunpack.c.l.b16 %v2993
    %v3611 = vunpack.c.h.b16 %v2993
    %v3612 = vunpack.c.l.b16 %v2994
    %v3613 = vunpack.c.h.b16 %v2994
    %v3614 = vunpack.c.l.b16 %v2995
    %v3615 = vunpack.c.h.b16 %v2995
    %v3616 = vunpack.c.l.b16 %v2996
    %v3617 = vunpack.c.h.b16 %v2996
    %v3618 = vunpack.c.l.b16 %v2997
    %v3619 = vunpack.c.h.b16 %v2997
    %v3620 = vunpack.c.l.b16 %v2998
    %v3621 = vunpack.c.h.b16 %v2998
    %v3622 = vunpack.c.l.b16 %v2999
    %v3623 = vunpack.c.h.b16 %v2999
    %v3624 = vunpack.c.l.b16 %v3000
    %v3625 = vunpack.c.h.b16 %v3000
    %v3626 = vunpack.c.l.b16 %v3001
    %v3627 = vunpack.c.h.b16 %v3001
    %v3628 = vunpack.c.l.b16 %v3002
    %v3629 = vunpack.c.h.b16 %v3002
    %v3630 = vunpack.c.l.b16 %v3003
    %v3631 = vunpack.c.h.b16 %v3003
    %v3632 = vunpack.c.l.b16 %v3004
    %v3633 = vunpack.c.h.b16 %v3004
    %v3634 = vunpack.c.l.b16 %v3005
    %v3635 = vunpack.c.h.b16 %v3005
    %v3636 = vunpack.c.l.b16 %v3006
    %v3637 = vunpack.c.h.b16 %v3006
    %v3638 = vunpack.c.l.b16 %v3007
    %v3639 = vunpack.c.h.b16 %v3007
    %v3640 = vunpack.c.l.b16 %v3008
    %v3641 = vunpack.c.h.b16 %v3008
    %v3642 = vunpack.c.l.b16 %v3009
    %v3643 = vunpack.c.h.b16 %v3009
    %v3644 = vunpack.c.l.b16 %v3010
    %v3645 = vunpack.c.h.b16 %v3010
    %v3646 = vunpack.c.l.b16 %v3011
    %v3647 = vunpack.c.h.b16 %v3011
    %v3648 = vunpack.c.l.b16 %v3012
    %v3649 = vunpack.c.h.b16 %v3012
    %v3650 = vunpack.c.l.b16 %v3013
    %v3651 = vunpack.c.h.b16 %v3013
    %v3652 = vunpack.c.l.b16 %v3014
    %v3653 = vunpack.c.h.b16 %v3014
    %v3654 = vunpack.c.l.b16 %v3015
    %v3655 = vunpack.c.h.b16 %v3015
    %v3656 = vunpack.c.l.b16 %v3016
    %v3657 = vunpack.c.h.b16 %v3016
    %v3658 = vunpack.c.l.b16 %v3017
    %v3659 = vunpack.c.h.b16 %v3017
    %v3660 = vunpack.c.l.b16 %v3018
    %v3661 = vunpack.c.h.b16 %v3018
    %v3662 = vunpack.c.l.b16 %v3019
    %v3663 = vunpack.c.h.b16 %v3019
    %v3664 = vunpack.c.l.b16 %v3020
    %v3665 = vunpack.c.h.b16 %v3020
    %v3666 = vunpack.c.l.b16 %v3021
    %v3667 = vunpack.c.h.b16 %v3021
    %v3668 = vunpack.c.l.b16 %v3022
    %v3669 = vunpack.c.h.b16 %v3022
    %v3670 = vunpack.c.l.b16 %v3023
    %v3671 = vunpack.c.h.b16 %v3023
    %v3672 = vunpack.c.l.b16 %v3024
    %v3673 = vunpack.c.h.b16 %v3024
    %v3674 = vunpack.c.l.b16 %v3025
    %v3675 = vunpack.c.h.b16 %v3025
    %v3676 = vunpack.c.l.b16 %v3026
    %v3677 = vunpack.c.h.b16 %v3026
    %v3678 = vunpack.c.l.b16 %v3027
    %v3679 = vunpack.c.h.b16 %v3027
    %v3680 = vunpack.c.l.b16 %v3028
    %v3681 = vunpack.c.h.b16 %v3028
    %v3682 = vunpack.c.l.b16 %v3029
    %v3683 = vunpack.c.h.b16 %v3029
    %v3684 = vunpack.c.l.b16 %v3030
    %v3685 = vunpack.c.h.b16 %v3030
    %v3686 = vunpack.c.l.b16 %v3031
    %v3687 = vunpack.c.h.b16 %v3031
    %v3688 = vunpack.c.l.b16 %v3032
    %v3689 = vunpack.c.h.b16 %v3032
    %v3690 = vunpack.c.l.b16 %v3033
    %v3691 = vunpack.c.h.b16 %v3033
    %v3692 = vunpack.c.l.b16 %v3034
    %v3693 = vunpack.c.h.b16 %v3034
    %v3694 = vunpack.c.l.b16 %v3035
    %v3695 = vunpack.c.h.b16 %v3035
    %v3696 = vunpack.c.l.b16 %v3036
    %v3697 = vunpack.c.h.b16 %v3036
    %v3698 = vunpack.c.l.b16 %v3037
    %v3699 = vunpack.c.h.b16 %v3037
    %v3700 = vunpack.c.l.b16 %v3038
    %v3701 = vunpack.c.h.b16 %v3038
    %v3702 = vunpack.c.l.b16 %v3039
    %v3703 = vunpack.c.h.b16 %v3039
    %v3704 = vunpack.c.l.b16 %v3040
    %v3705 = vunpack.c.h.b16 %v3040
    %v3706 = vunpack.c.l.b16 %v3041
    %v3707 = vunpack.c.h.b16 %v3041
    %v3708 = vunpack.c.l.b16 %v3042
    %v3709 = vunpack.c.h.b16 %v3042
    %v3710 = vunpack.c.l.b16 %v3043
    %v3711 = vunpack.c.h.b16 %v3043
    %v3712 = vunpack.c.l.b16 %v3044
    %v3713 = vunpack.c.h.b16 %v3044
    %v3714 = vunpack.c.l.b16 %v3045
    %v3715 = vunpack.c.h.b16 %v3045
    %v3716 = vunpack.c.l.b16 %v3046
    %v3717 = vunpack.c.h.b16 %v3046
    %v3718 = vunpack.c.l.b16 %v3047
    %v3719 = vunpack.c.h.b16 %v3047
    %v3720 = vunpack.c.l.b16 %v3048
    %v3721 = vunpack.c.h.b16 %v3048
    %v3722 = vunpack.c.l.b16 %v3049
    %v3723 = vunpack.c.h.b16 %v3049
    %v3724 = vunpack.c.l.b16 %v3050
    %v3725 = vunpack.c.h.b16 %v3050
    %v3726 = vunpack.c.l.b16 %v3051
    %v3727 = vunpack.c.h.b16 %v3051
    %v3728 = vunpack.c.l.b16 %v3052
    %v3729 = vunpack.c.h.b16 %v3052
    %v3730 = vunpack.c.l.b16 %v3053
    %v3731 = vunpack.c.h.b16 %v3053
    %v3732 = vunpack.c.l.b16 %v3054
    %v3733 = vunpack.c.h.b16 %v3054
    %v3734 = vunpack.c.l.b16 %v3055
    %v3735 = vunpack.c.h.b16 %v3055
    %v3736 = vunpack.c.l.b16 %v3056
    %v3737 = vunpack.c.h.b16 %v3056
    %v3738 = vunpack.c.l.b16 %v3057
    %v3739 = vunpack.c.h.b16 %v3057
    %v3740 = vunpack.c.l.b16 %v3058
    %v3741 = vunpack.c.h.b16 %v3058
    %v3742 = vunpack.c.l.b16 %v3059
    %v3743 = vunpack.c.h.b16 %v3059
    %v3744 = vunpack.c.l.b16 %v3060
    %v3745 = vunpack.c.h.b16 %v3060
    %v3746 = vunpack.c.l.b16 %v3061
    %v3747 = vunpack.c.h.b16 %v3061
    %v3748 = vunpack.c.l.b16 %v3062
    %v3749 = vunpack.c.h.b16 %v3062
    %v3750 = vunpack.c.l.b16 %v3063
    %v3751 = vunpack.c.h.b16 %v3063
    %v3752 = vunpack.c.l.b16 %v3064
    %v3753 = vunpack.c.h.b16 %v3064
    %v3754 = vunpack.c.l.b16 %v3065
    %v3755 = vunpack.c.h.b16 %v3065
    %v3756 = vunpack.c.l.b16 %v3066
    %v3757 = vunpack.c.h.b16 %v3066
    %v3758 = vunpack.c.l.b16 %v3067
    %v3759 = vunpack.c.h.b16 %v3067
    %v3760 = vunpack.c.l.b16 %v3068
    %v3761 = vunpack.c.h.b16 %v3068
    %v3762 = vunpack.c.l.b16 %v3069
    %v3763 = vunpack.c.h.b16 %v3069
    %v3764 = vunpack.c.l.b16 %v3070
    %v3765 = vunpack.c.h.b16 %v3070
    %v3766 = vunpack.c.l.b16 %v3071
    %v3767 = vunpack.c.h.b16 %v3071
    %v3768 = vunpack.c.l.b16 %v3072
    %v3769 = vunpack.c.h.b16 %v3072
    %v3770 = vunpack.c.l.b16 %v3073
    %v3771 = vunpack.c.h.b16 %v3073
    %v3772 = vunpack.c.l.b16 %v3074
    %v3773 = vunpack.c.h.b16 %v3074
    %v3774 = vunpack.c.l.b16 %v3075
    %v3775 = vunpack.c.h.b16 %v3075
    %v3776 = vunpack.c.l.b16 %v3076
    %v3777 = vunpack.c.h.b16 %v3076
    %v3778 = vunpack.c.l.b16 %v3077
    %v3779 = vunpack.c.h.b16 %v3077
    %v3780 = vunpack.c.l.b16 %v3078
    %v3781 = vunpack.c.h.b16 %v3078
    %v3782 = vunpack.c.l.b16 %v3079
    %v3783 = vunpack.c.h.b16 %v3079
    %v3784 = vunpack.c.l.b16 %v3080
    %v3785 = vunpack.c.h.b16 %v3080
    %v3786 = vunpack.c.l.b16 %v3081
    %v3787 = vunpack.c.h.b16 %v3081
    %v3788 = vunpack.c.l.b16 %v3082
    %v3789 = vunpack.c.h.b16 %v3082
    %v3790 = vunpack.c.l.b16 %v3083
    %v3791 = vunpack.c.h.b16 %v3083
    %v3792 = vunpack.c.l.b16 %v3084
    %v3793 = vunpack.c.h.b16 %v3084
    %v3794 = vunpack.c.l.b16 %v3085
    %v3795 = vunpack.c.h.b16 %v3085
    %v3796 = vunpack.c.l.b16 %v3086
    %v3797 = vunpack.c.h.b16 %v3086
    %v3798 = vunpack.c.l.b16 %v3087
    %v3799 = vunpack.c.h.b16 %v3087
    %v3800 = vunpack.c.l.b16 %v3088
    %v3801 = vunpack.c.h.b16 %v3088
    %v3802 = vunpack.c.l.b16 %v3089
    %v3803 = vunpack.c.h.b16 %v3089
    %v3804 = vunpack.c.l.b16 %v3090
    %v3805 = vunpack.c.h.b16 %v3090
    %v3806 = vunpack.c.l.b16 %v3091
    %v3807 = vunpack.c.h.b16 %v3091
    %v3808 = vunpack.c.l.b16 %v3092
    %v3809 = vunpack.c.h.b16 %v3092
    %v3810 = vunpack.c.l.b16 %v3093
    %v3811 = vunpack.c.h.b16 %v3093
    %v3812 = vunpack.c.l.b16 %v3094
    %v3813 = vunpack.c.h.b16 %v3094
    %v3814 = vunpack.c.l.b16 %v3095
    %v3815 = vunpack.c.h.b16 %v3095
    %v3816 = vunpack.c.l.b16 %v3096
    %v3817 = vunpack.c.h.b16 %v3096
    %v3818 = vunpack.c.l.b16 %v3097
    %v3819 = vunpack.c.h.b16 %v3097
    %v3820 = vunpack.c.l.b16 %v3098
    %v3821 = vunpack.c.h.b16 %v3098
    %v3822 = vunpack.c.l.b16 %v3099
    %v3823 = vunpack.c.h.b16 %v3099
    %v3824 = vunpack.c.l.b16 %v3100
    %v3825 = vunpack.c.h.b16 %v3100
    %v3826 = vunpack.c.l.b16 %v3101
    %v3827 = vunpack.c.h.b16 %v3101
    %v3828 = vunpack.c.l.b16 %v3102
    %v3829 = vunpack.c.h.b16 %v3102
    %v3830 = vunpack.c.l.b16 %v3103
    %v3831 = vunpack.c.h.b16 %v3103
    %v3832 = vunpack.c.l.b16 %v3104
    %v3833 = vunpack.c.h.b16 %v3104
    %v3834 = vunpack.c.l.b16 %v3105
    %v3835 = vunpack.c.h.b16 %v3105
    %v3836 = vunpack.c.l.b16 %v3106
    %v3837 = vunpack.c.h.b16 %v3106
    %v3838 = vunpack.c.l.b16 %v3107
    %v3839 = vunpack.c.h.b16 %v3107
    %v3840 = vunpack.c.l.b16 %v3108
    %v3841 = vunpack.c.h.b16 %v3108
    %v3842 = vunpack.c.l.b16 %v3109
    %v3843 = vunpack.c.h.b16 %v3109
    %v3844 = vunpack.c.l.b16 %v3110
    %v3845 = vunpack.c.h.b16 %v3110
    %v3846 = vunpack.c.l.b16 %v3111
    %v3847 = vunpack.c.h.b16 %v3111
    %v3848 = vunpack.c.l.b16 %v3112
    %v3849 = vunpack.c.h.b16 %v3112
    %v3850 = vunpack.c.l.b16 %v3113
    %v3851 = vunpack.c.h.b16 %v3113
    %v3852 = vunpack.c.l.b16 %v3114
    %v3853 = vunpack.c.h.b16 %v3114
    %v3854 = vunpack.c.l.b16 %v3115
    %v3855 = vunpack.c.h.b16 %v3115
    %v3856 = vunpack.c.l.b16 %v3116
    %v3857 = vunpack.c.h.b16 %v3116
    %v3858 = vunpack.c.l.b16 %v3117
    %v3859 = vunpack.c.h.b16 %v3117
    %v3860 = vunpack.c.l.b16 %v3118
    %v3861 = vunpack.c.h.b16 %v3118
    %v3862 = vunpack.c.l.b16 %v3119
    %v3863 = vunpack.c.h.b16 %v3119
    %v3864 = vunpack.c.l.b16 %v3120
    %v3865 = vunpack.c.h.b16 %v3120
    %v3866 = vunpack.c.l.b16 %v3121
    %v3867 = vunpack.c.h.b16 %v3121
    %v3868 = vunpack.c.l.b16 %v3122
    %v3869 = vunpack.c.h.b16 %v3122
    %v3870 = vunpack.c.l.b16 %v3123
    %v3871 = vunpack.c.h.b16 %v3123
    %v3872 = vunpack.c.l.b16 %v3124
    %v3873 = vunpack.c.h.b16 %v3124
    %v3874 = vunpack.c.l.b16 %v3125
    %v3875 = vunpack.c.h.b16 %v3125
    %v3876 = vunpack.c.l.b16 %v3126
    %v3877 = vunpack.c.h.b16 %v3126
    %v3878 = vunpack.c.l.b16 %v3127
    %v3879 = vunpack.c.h.b16 %v3127
    %v3880 = vunpack.c.l.b16 %v3128
    %v3881 = vunpack.c.h.b16 %v3128
    %v3882 = vunpack.c.l.b16 %v3129
    %v3883 = vunpack.c.h.b16 %v3129
    %v3884 = vunpack.c.l.b16 %v3130
    %v3885 = vunpack.c.h.b16 %v3130
    %v3886 = vunpack.c.l.b16 %v3131
    %v3887 = vunpack.c.h.b16 %v3131
    %v3888 = vunpack.c.l.b16 %v3132
    %v3889 = vunpack.c.h.b16 %v3132
    %v3890 = vunpack.c.l.b16 %v3133
    %v3891 = vunpack.c.h.b16 %v3133
    %v3892 = vunpack.c.l.b16 %v3134
    %v3893 = vunpack.c.h.b16 %v3134
    %v3894 = vunpack.c.l.b16 %v3135
    %v3895 = vunpack.c.h.b16 %v3135
    %v3896 = vunpack.c.l.b16 %v3136
    %v3897 = vunpack.c.h.b16 %v3136
    %v3898 = vunpack.c.l.b16 %v3137
    %v3899 = vunpack.c.h.b16 %v3137
    %v3900 = vunpack.c.l.b16 %v3138
    %v3901 = vunpack.c.h.b16 %v3138
    %v3902 = vunpack.c.l.b16 %v3139
    %v3903 = vunpack.c.h.b16 %v3139
    %v3904 = vunpack.c.l.b16 %v3140
    %v3905 = vunpack.c.h.b16 %v3140
    %v3906 = vunpack.c.l.b16 %v3141
    %v3907 = vunpack.c.h.b16 %v3141
    %v3908 = vunpack.c.l.b16 %v3142
    %v3909 = vunpack.c.h.b16 %v3142
    %v3910 = vunpack.c.l.b16 %v3143
    %v3911 = vunpack.c.h.b16 %v3143
    %v3912 = vunpack.c.l.b16 %v3144
    %v3913 = vunpack.c.h.b16 %v3144
    %v3914 = vunpack.c.l.b16 %v3145
    %v3915 = vunpack.c.h.b16 %v3145
    %v3916 = vunpack.c.l.b16 %v3146
    %v3917 = vunpack.c.h.b16 %v3146
    %v3918 = vunpack.c.l.b16 %v3147
    %v3919 = vunpack.c.h.b16 %v3147
    %v3920 = vunpack.c.l.b16 %v3148
    %v3921 = vunpack.c.h.b16 %v3148
    %v3922 = vunpack.c.l.b16 %v3149
    %v3923 = vunpack.c.h.b16 %v3149
    %v3924 = vunpack.c.l.b16 %v3150
    %v3925 = vunpack.c.h.b16 %v3150
    %v3926 = vunpack.c.l.b16 %v3151
    %v3927 = vunpack.c.h.b16 %v3151
    %v3928 = vunpack.c.l.b16 %v3152
    %v3929 = vunpack.c.h.b16 %v3152
    %v3930 = vunpack.c.l.b16 %v3153
    %v3931 = vunpack.c.h.b16 %v3153
    %v3932 = vpack.c.b16 %v3424, %v3420
    %v3933 = vpack.c.b16 %v3425, %v3421
    %v3934 = vpack.c.b16 %v3426, %v3422
    %v3935 = vpack.c.b16 %v3427, %v3423
    %v3936 = vpack.c.b16 %v3432, %v3428
    %v3937 = vpack.c.b16 %v3433, %v3429
    %v3938 = vpack.c.b16 %v3434, %v3430
    %v3939 = vpack.c.b16 %v3435, %v3431
    %v3940 = vpack.c.b16 %v3440, %v3436
    %v3941 = vpack.c.b16 %v3441, %v3437
    %v3942 = vpack.c.b16 %v3442, %v3438
    %v3943 = vpack.c.b16 %v3443, %v3439
    %v3944 = vpack.c.b16 %v3448, %v3444
    %v3945 = vpack.c.b16 %v3449, %v3445
    %v3946 = vpack.c.b16 %v3450, %v3446
    %v3947 = vpack.c.b16 %v3451, %v3447
    %v3948 = vpack.c.b16 %v3456, %v3452
    %v3949 = vpack.c.b16 %v3457, %v3453
    %v3950 = vpack.c.b16 %v3458, %v3454
    %v3951 = vpack.c.b16 %v3459, %v3455
    %v3952 = vpack.c.b16 %v3464, %v3460
    %v3953 = vpack.c.b16 %v3465, %v3461
    %v3954 = vpack.c.b16 %v3466, %v3462
    %v3955 = vpack.c.b16 %v3467, %v3463
    %v3956 = vpack.c.b16 %v3472, %v3468
    %v3957 = vpack.c.b16 %v3473, %v3469
    %v3958 = vpack.c.b16 %v3474, %v3470
    %v3959 = vpack.c.b16 %v3475, %v3471
    %v3960 = vpack.c.b16 %v3480, %v3476
    %v3961 = vpack.c.b16 %v3481, %v3477
    %v3962 = vpack.c.b16 %v3482, %v3478
    %v3963 = vpack.c.b16 %v3483, %v3479
    %v3964 = vpack.c.b16 %v3488, %v3484
    %v3965 = vpack.c.b16 %v3489, %v3485
    %v3966 = vpack.c.b16 %v3490, %v3486
    %v3967 = vpack.c.b16 %v3491, %v3487
    %v3968 = vpack.c.b16 %v3496, %v3492
    %v3969 = vpack.c.b16 %v3497, %v3493
    %v3970 = vpack.c.b16 %v3498, %v3494
    %v3971 = vpack.c.b16 %v3499, %v3495
    %v3972 = vpack.c.b16 %v3504, %v3500
    %v3973 = vpack.c.b16 %v3505, %v3501
    %v3974 = vpack.c.b16 %v3506, %v3502
    %v3975 = vpack.c.b16 %v3507, %v3503
    %v3976 = vpack.c.b16 %v3512, %v3508
    %v3977 = vpack.c.b16 %v3513, %v3509
    %v3978 = vpack.c.b16 %v3514, %v3510
    %v3979 = vpack.c.b16 %v3515, %v3511
    %v3980 = vpack.c.b16 %v3520, %v3516
    %v3981 = vpack.c.b16 %v3521, %v3517
    %v3982 = vpack.c.b16 %v3522, %v3518
    %v3983 = vpack.c.b16 %v3523, %v3519
    %v3984 = vpack.c.b16 %v3528, %v3524
    %v3985 = vpack.c.b16 %v3529, %v3525
    %v3986 = vpack.c.b16 %v3530, %v3526
    %v3987 = vpack.c.b16 %v3531, %v3527
    %v3988 = vpack.c.b16 %v3536, %v3532
    %v3989 = vpack.c.b16 %v3537, %v3533
    %v3990 = vpack.c.b16 %v3538, %v3534
    %v3991 = vpack.c.b16 %v3539, %v3535
    %v3992 = vpack.c.b16 %v3544, %v3540
    %v3993 = vpack.c.b16 %v3545, %v3541
    %v3994 = vpack.c.b16 %v3546, %v3542
    %v3995 = vpack.c.b16 %v3547, %v3543
    %v3996 = vpack.c.b16 %v3552, %v3548
    %v3997 = vpack.c.b16 %v3553, %v3549
    %v3998 = vpack.c.b16 %v3554, %v3550
    %v3999 = vpack.c.b16 %v3555, %v3551
    %v4000 = vpack.c.b16 %v3560, %v3556
    %v4001 = vpack.c.b16 %v3561, %v3557
    %v4002 = vpack.c.b16 %v3562, %v3558
    %v4003 = vpack.c.b16 %v3563, %v3559
    %v4004 = vpack.c.b16 %v3568, %v3564
    %v4005 = vpack.c.b16 %v3569, %v3565
    %v4006 = vpack.c.b16 %v3570, %v3566
    %v4007 = vpack.c.b16 %v3571, %v3567
    %v4008 = vpack.c.b16 %v3576, %v3572
    %v4009 = vpack.c.b16 %v3577, %v3573
    %v4010 = vpack.c.b16 %v3578, %v3574
    %v4011 = vpack.c.b16 %v3579, %v3575
    %v4012 = vpack.c.b16 %v3584, %v3580
    %v4013 = vpack.c.b16 %v3585, %v3581
    %v4014 = vpack.c.b16 %v3586, %v3582
    %v4015 = vpack.c.b16 %v3587, %v3583
    %v4016 = vpack.c.b16 %v3592, %v3588
    %v4017 = vpack.c.b16 %v3593, %v3589
    %v4018 = vpack.c.b16 %v3594, %v3590
    %v4019 = vpack.c.b16 %v3595, %v3591
    %v4020 = vpack.c.b16 %v3600, %v3596
    %v4021 = vpack.c.b16 %v3601, %v3597
    %v4022 = vpack.c.b16 %v3602, %v3598
    %v4023 = vpack.c.b16 %v3603, %v3599
    %v4024 = vpack.c.b16 %v3608, %v3604
    %v4025 = vpack.c.b16 %v3609, %v3605
    %v4026 = vpack.c.b16 %v3610, %v3606
    %v4027 = vpack.c.b16 %v3611, %v3607
    %v4028 = vpack.c.b16 %v3616, %v3612
    %v4029 = vpack.c.b16 %v3617, %v3613
    %v4030 = vpack.c.b16 %v3618, %v3614
    %v4031 = vpack.c.b16 %v3619, %v3615
    %v4032 = vpack.c.b16 %v3624, %v3620
    %v4033 = vpack.c.b16 %v3625, %v3621
    %v4034 = vpack.c.b16 %v3626, %v3622
    %v4035 = vpack.c.b16 %v3627, %v3623
    %v4036 = vpack.c.b16 %v3632, %v3628
    %v4037 = vpack.c.b16 %v3633, %v3629
    %v4038 = vpack.c.b16 %v3634, %v3630
    %v4039 = vpack.c.b16 %v3635, %v3631
    %v4040 = vpack.c.b16 %v3640, %v3636
    %v4041 = vpack.c.b16 %v3641, %v3637
    %v4042 = vpack.c.b16 %v3642, %v3638
    %v4043 = vpack.c.b16 %v3643, %v3639
    %v4044 = vpack.c.b16 %v3648, %v3644
    %v4045 = vpack.c.b16 %v3649, %v3645
    %v4046 = vpack.c.b16 %v3650, %v3646
    %v4047 = vpack.c.b16 %v3651, %v3647
    %v4048 = vpack.c.b16 %v3656, %v3652
    %v4049 = vpack.c.b16 %v3657, %v3653
    %v4050 = vpack.c.b16 %v3658, %v3654
    %v4051 = vpack.c.b16 %v3659, %v3655
    %v4052 = vpack.c.b16 %v3664, %v3660
    %v4053 = vpack.c.b16 %v3665, %v3661
    %v4054 = vpack.c.b16 %v3666, %v3662
    %v4055 = vpack.c.b16 %v3667, %v3663
    %v4056 = vpack.c.b16 %v3672, %v3668
    %v4057 = vpack.c.b16 %v3673, %v3669
    %v4058 = vpack.c.b16 %v3674, %v3670
    %v4059 = vpack.c.b16 %v3675, %v3671
    %v4060 = vpack.c.b16 %v3680, %v3676
    %v4061 = vpack.c.b16 %v3681, %v3677
    %v4062 = vpack.c.b16 %v3682, %v3678
    %v4063 = vpack.c.b16 %v3683, %v3679
    %v4064 = vpack.c.b16 %v3688, %v3684
    %v4065 = vpack.c.b16 %v3689, %v3685
    %v4066 = vpack.c.b16 %v3690, %v3686
    %v4067 = vpack.c.b16 %v3691, %v3687
    %v4068 = vpack.c.b16 %v3696, %v3692
    %v4069 = vpack.c.b16 %v3697, %v3693
    %v4070 = vpack.c.b16 %v3698, %v3694
    %v4071 = vpack.c.b16 %v3699, %v3695
    %v4072 = vpack.c.b16 %v3704, %v3700
    %v4073 = vpack.c.b16 %v3705, %v3701
    %v4074 = vpack.c.b16 %v3706, %v3702
    %v4075 = vpack.c.b16 %v3707, %v3703
    %v4076 = vpack.c.b16 %v3712, %v3708
    %v4077 = vpack.c.b16 %v3713, %v3709
    %v4078 = vpack.c.b16 %v3714, %v3710
    %v4079 = vpack.c.b16 %v3715, %v3711
    %v4080 = vpack.c.b16 %v3720, %v3716
    %v4081 = vpack.c.b16 %v3721, %v3717
    %v4082 = vpack.c.b16 %v3722, %v3718
    %v4083 = vpack.c.b16 %v3723, %v3719
    %v4084 = vpack.c.b16 %v3728, %v3724
    %v4085 = vpack.c.b16 %v3729, %v3725
    %v4086 = vpack.c.b16 %v3730, %v3726
    %v4087 = vpack.c.b16 %v3731, %v3727
    %v4088 = vpack.c.b16 %v3736, %v3732
    %v4089 = vpack.c.b16 %v3737, %v3733
    %v4090 = vpack.c.b16 %v3738, %v3734
    %v4091 = vpack.c.b16 %v3739, %v3735
    %v4092 = vpack.c.b16 %v3744, %v3740
    %v4093 = vpack.c.b16 %v3745, %v3741
    %v4094 = vpack.c.b16 %v3746, %v3742
    %v4095 = vpack.c.b16 %v3747, %v3743
    %v4096 = vpack.c.b16 %v3752, %v3748
    %v4097 = vpack.c.b16 %v3753, %v3749
    %v4098 = vpack.c.b16 %v3754, %v3750
    %v4099 = vpack.c.b16 %v3755, %v3751
    %v4100 = vpack.c.b16 %v3760, %v3756
    %v4101 = vpack.c.b16 %v3761, %v3757
    %v4102 = vpack.c.b16 %v3762, %v3758
    %v4103 = vpack.c.b16 %v3763, %v3759
    %v4104 = vpack.c.b16 %v3768, %v3764
    %v4105 = vpack.c.b16 %v3769, %v3765
    %v4106 = vpack.c.b16 %v3770, %v3766
    %v4107 = vpack.c.b16 %v3771, %v3767
    %v4108 = vpack.c.b16 %v3776, %v3772
    %v4109 = vpack.c.b16 %v3777, %v3773
    %v4110 = vpack.c.b16 %v3778, %v3774
    %v4111 = vpack.c.b16 %v3779, %v3775
    %v4112 = vpack.c.b16 %v3784, %v3780
    %v4113 = vpack.c.b16 %v3785, %v3781
    %v4114 = vpack.c.b16 %v3786, %v3782
    %v4115 = vpack.c.b16 %v3787, %v3783
    %v4116 = vpack.c.b16 %v3792, %v3788
    %v4117 = vpack.c.b16 %v3793, %v3789
    %v4118 = vpack.c.b16 %v3794, %v3790
    %v4119 = vpack.c.b16 %v3795, %v3791
    %v4120 = vpack.c.b16 %v3800, %v3796
    %v4121 = vpack.c.b16 %v3801, %v3797
    %v4122 = vpack.c.b16 %v3802, %v3798
    %v4123 = vpack.c.b16 %v3803, %v3799
    %v4124 = vpack.c.b16 %v3808, %v3804
    %v4125 = vpack.c.b16 %v3809, %v3805
    %v4126 = vpack.c.b16 %v3810, %v3806
    %v4127 = vpack.c.b16 %v3811, %v3807
    %v4128 = vpack.c.b16 %v3816, %v3812
    %v4129 = vpack.c.b16 %v3817, %v3813
    %v4130 = vpack.c.b16 %v3818, %v3814
    %v4131 = vpack.c.b16 %v3819, %v3815
    %v4132 = vpack.c.b16 %v3824, %v3820
    %v4133 = vpack.c.b16 %v3825, %v3821
    %v4134 = vpack.c.b16 %v3826, %v3822
    %v4135 = vpack.c.b16 %v3827, %v3823
    %v4136 = vpack.c.b16 %v3832, %v3828
    %v4137 = vpack.c.b16 %v3833, %v3829
    %v4138 = vpack.c.b16 %v3834, %v3830
    %v4139 = vpack.c.b16 %v3835, %v3831
    %v4140 = vpack.c.b16 %v3840, %v3836
    %v4141 = vpack.c.b16 %v3841, %v3837
    %v4142 = vpack.c.b16 %v3842, %v3838
    %v4143 = vpack.c.b16 %v3843, %v3839
    %v4144 = vpack.c.b16 %v3848, %v3844
    %v4145 = vpack.c.b16 %v3849, %v3845
    %v4146 = vpack.c.b16 %v3850, %v3846
    %v4147 = vpack.c.b16 %v3851, %v3847
    %v4148 = vpack.c.b16 %v3856, %v3852
    %v4149 = vpack.c.b16 %v3857, %v3853
    %v4150 = vpack.c.b16 %v3858, %v3854
    %v4151 = vpack.c.b16 %v3859, %v3855
    %v4152 = vpack.c.b16 %v3864, %v3860
    %v4153 = vpack.c.b16 %v3865, %v3861
    %v4154 = vpack.c.b16 %v3866, %v3862
    %v4155 = vpack.c.b16 %v3867, %v3863
    %v4156 = vpack.c.b16 %v3872, %v3868
    %v4157 = vpack.c.b16 %v3873, %v3869
    %v4158 = vpack.c.b16 %v3874, %v3870
    %v4159 = vpack.c.b16 %v3875, %v3871
    %v4160 = vpack.c.b16 %v3880, %v3876
    %v4161 = vpack.c.b16 %v3881, %v3877
    %v4162 = vpack.c.b16 %v3882, %v3878
    %v4163 = vpack.c.b16 %v3883, %v3879
    %v4164 = vpack.c.b16 %v3888, %v3884
    %v4165 = vpack.c.b16 %v3889, %v3885
    %v4166 = vpack.c.b16 %v3890, %v3886
    %v4167 = vpack.c.b16 %v3891, %v3887
    %v4168 = vpack.c.b16 %v3896, %v3892
    %v4169 = vpack.c.b16 %v3897, %v3893
    %v4170 = vpack.c.b16 %v3898, %v3894
    %v4171 = vpack.c.b16 %v3899, %v3895
    %v4172 = vpack.c.b16 %v3904, %v3900
    %v4173 = vpack.c.b16 %v3905, %v3901
    %v4174 = vpack.c.b16 %v3906, %v3902
    %v4175 = vpack.c.b16 %v3907, %v3903
    %v4176 = vpack.c.b16 %v3912, %v3908
    %v4177 = vpack.c.b16 %v3913, %v3909
    %v4178 = vpack.c.b16 %v3914, %v3910
    %v4179 = vpack.c.b16 %v3915, %v3911
    %v4180 = vpack.c.b16 %v3920, %v3916
    %v4181 = vpack.c.b16 %v3921, %v3917
    %v4182 = vpack.c.b16 %v3922, %v3918
    %v4183 = vpack.c.b16 %v3923, %v3919
    %v4184 = vpack.c.b16 %v3928, %v3924
    %v4185 = vpack.c.b16 %v3929, %v3925
    %v4186 = vpack.c.b16 %v3930, %v3926
    %v4187 = vpack.c.b16 %v3931, %v3927
    %4444 = vmatpush.bf16.msra.mxu0 %v3960
    %4445 = vmatpush.bf16.msra.mxu0 %v3956
    %4446 = vmatpush.bf16.msra.mxu0 %v3952
    %4447 = vmatpush.bf16.msra.mxu0 %v3948
    %4448 = vmatpush.bf16.msra.mxu0 %v3944
    %4449 = vmatpush.bf16.msra.mxu0 %v3940
    %4450 = vmatpush.bf16.msra.mxu0 %v3936
    %4451 = vmatpush.bf16.msra.mxu0 %v3932
    %4452 = vmatmul.bf16.gmra.mxu0 %v2890
    %v4453 = vpop.f32.mrf.mxu0
    %v4454 = vadd.f32 %v3156, %v4453
    %v4455 = vpop.f32.mrf.mxu0
    %v4456 = vadd.f32 %v3156, %v4455
    %4457 = vdwg.mxu0
    %4458 = vmatpush.bf16.msra.mxu0 %v3992
    %4459 = vmatpush.bf16.msra.mxu0 %v3988
    %4460 = vmatpush.bf16.msra.mxu0 %v3984
    %4461 = vmatpush.bf16.msra.mxu0 %v3980
    %4462 = vmatpush.bf16.msra.mxu0 %v3976
    %4463 = vmatpush.bf16.msra.mxu0 %v3972
    %4464 = vmatpush.bf16.msra.mxu0 %v3968
    %4465 = vmatpush.bf16.msra.mxu0 %v3964
    %4466 = vmatmul.bf16.gmra.mxu0 %v2891
    %v4467 = vpop.f32.mrf.mxu0
    %v4468 = vadd.f32 %v4454, %v4467
    %v4469 = vpop.f32.mrf.mxu0
    %v4470 = vadd.f32 %v4456, %v4469
    %4471 = vdwg.mxu0
    %4472 = vmatpush.bf16.msra.mxu0 %v4024
    %4473 = vmatpush.bf16.msra.mxu0 %v4020
    %4474 = vmatpush.bf16.msra.mxu0 %v4016
    %4475 = vmatpush.bf16.msra.mxu0 %v4012
    %4476 = vmatpush.bf16.msra.mxu0 %v4008
    %4477 = vmatpush.bf16.msra.mxu0 %v4004
    %4478 = vmatpush.bf16.msra.mxu0 %v4000
    %4479 = vmatpush.bf16.msra.mxu0 %v3996
    %4480 = vmatmul.bf16.gmra.mxu0 %v2892
    %v4481 = vpop.f32.mrf.mxu0
    %v4482 = vadd.f32 %v4468, %v4481
    %v4483 = vpop.f32.mrf.mxu0
    %v4484 = vadd.f32 %v4470, %v4483
    %4485 = vdwg.mxu0
    %4486 = vmatpush.bf16.msra.mxu0 %v4056
    %4487 = vmatpush.bf16.msra.mxu0 %v4052
    %4488 = vmatpush.bf16.msra.mxu0 %v4048
    %4489 = vmatpush.bf16.msra.mxu0 %v4044
    %4490 = vmatpush.bf16.msra.mxu0 %v4040
    %4491 = vmatpush.bf16.msra.mxu0 %v4036
    %4492 = vmatpush.bf16.msra.mxu0 %v4032
    %4493 = vmatpush.bf16.msra.mxu0 %v4028
    %4494 = vmatmul.bf16.gmra.mxu0 %v2893
    %v4495 = vpop.f32.mrf.mxu0
    %v4496 = vadd.f32 %v4482, %v4495
    %v4497 = vpop.f32.mrf.mxu0
    %v4498 = vadd.f32 %v4484, %v4497
    %4499 = vdwg.mxu0
    %4500 = vmatpush.bf16.msra.mxu0 %v4088
    %4501 = vmatpush.bf16.msra.mxu0 %v4084
    %4502 = vmatpush.bf16.msra.mxu0 %v4080
    %4503 = vmatpush.bf16.msra.mxu0 %v4076
    %4504 = vmatpush.bf16.msra.mxu0 %v4072
    %4505 = vmatpush.bf16.msra.mxu0 %v4068
    %4506 = vmatpush.bf16.msra.mxu0 %v4064
    %4507 = vmatpush.bf16.msra.mxu0 %v4060
    %4508 = vmatmul.bf16.gmra.mxu0 %v2894
    %v4509 = vpop.f32.mrf.mxu0
    %v4510 = vadd.f32 %v4496, %v4509
    %v4511 = vpop.f32.mrf.mxu0
    %v4512 = vadd.f32 %v4498, %v4511
    %4513 = vdwg.mxu0
    %4514 = vmatpush.bf16.msra.mxu0 %v4120
    %4515 = vmatpush.bf16.msra.mxu0 %v4116
    %4516 = vmatpush.bf16.msra.mxu0 %v4112
    %4517 = vmatpush.bf16.msra.mxu0 %v4108
    %4518 = vmatpush.bf16.msra.mxu0 %v4104
    %4519 = vmatpush.bf16.msra.mxu0 %v4100
    %4520 = vmatpush.bf16.msra.mxu0 %v4096
    %4521 = vmatpush.bf16.msra.mxu0 %v4092
    %4522 = vmatmul.bf16.gmra.mxu0 %v2895
    %v4523 = vpop.f32.mrf.mxu0
    %v4524 = vadd.f32 %v4510, %v4523
    %v4525 = vpop.f32.mrf.mxu0
    %v4526 = vadd.f32 %v4512, %v4525
    %4527 = vdwg.mxu0
    %4528 = vmatpush.bf16.msra.mxu0 %v4152
    %4529 = vmatpush.bf16.msra.mxu0 %v4148
    %4530 = vmatpush.bf16.msra.mxu0 %v4144
    %4531 = vmatpush.bf16.msra.mxu0 %v4140
    %4532 = vmatpush.bf16.msra.mxu0 %v4136
    %4533 = vmatpush.bf16.msra.mxu0 %v4132
    %4534 = vmatpush.bf16.msra.mxu0 %v4128
    %4535 = vmatpush.bf16.msra.mxu0 %v4124
    %4536 = vmatmul.bf16.gmra.mxu0 %v2896
    %v4537 = vpop.f32.mrf.mxu0
    %v4538 = vadd.f32 %v4524, %v4537
    %v4539 = vpop.f32.mrf.mxu0
    %v4540 = vadd.f32 %v4526, %v4539
    %4541 = vdwg.mxu0
    %4542 = vmatpush.bf16.msra.mxu0 %v4184
    %4543 = vmatpush.bf16.msra.mxu0 %v4180
    %4544 = vmatpush.bf16.msra.mxu0 %v4176
    %4545 = vmatpush.bf16.msra.mxu0 %v4172
    %4546 = vmatpush.bf16.msra.mxu0 %v4168
    %4547 = vmatpush.bf16.msra.mxu0 %v4164
    %4548 = vmatpush.bf16.msra.mxu0 %v4160
    %4549 = vmatpush.bf16.msra.mxu0 %v4156
    %4550 = vmatmul.bf16.gmra.mxu0 %v2897
    %v4551 = vpop.f32.mrf.mxu0
    %v4552 = vadd.f32 %v4538, %v4551
    %v4553 = vpop.f32.mrf.mxu0
    %v4554 = vadd.f32 %v4540, %v4553
    %4555 = vdwg.mxu0
    %4556 = vmatpush.bf16.msra.mxu0 %v3961
    %4557 = vmatpush.bf16.msra.mxu0 %v3957
    %4558 = vmatpush.bf16.msra.mxu0 %v3953
    %4559 = vmatpush.bf16.msra.mxu0 %v3949
    %4560 = vmatpush.bf16.msra.mxu0 %v3945
    %4561 = vmatpush.bf16.msra.mxu0 %v3941
    %4562 = vmatpush.bf16.msra.mxu0 %v3937
    %4563 = vmatpush.bf16.msra.mxu0 %v3933
    %4564 = vmatmul.bf16.gmra.mxu0 %v2890
    %v4565 = vpop.f32.mrf.mxu0
    %v4566 = vadd.f32 %v3157, %v4565
    %v4567 = vpop.f32.mrf.mxu0
    %v4568 = vadd.f32 %v3157, %v4567
    %4569 = vdwg.mxu0
    %4570 = vmatpush.bf16.msra.mxu0 %v3993
    %4571 = vmatpush.bf16.msra.mxu0 %v3989
    %4572 = vmatpush.bf16.msra.mxu0 %v3985
    %4573 = vmatpush.bf16.msra.mxu0 %v3981
    %4574 = vmatpush.bf16.msra.mxu0 %v3977
    %4575 = vmatpush.bf16.msra.mxu0 %v3973
    %4576 = vmatpush.bf16.msra.mxu0 %v3969
    %4577 = vmatpush.bf16.msra.mxu0 %v3965
    %4578 = vmatmul.bf16.gmra.mxu0 %v2891
    %v4579 = vpop.f32.mrf.mxu0
    %v4580 = vadd.f32 %v4566, %v4579
    %v4581 = vpop.f32.mrf.mxu0
    %v4582 = vadd.f32 %v4568, %v4581
    %4583 = vdwg.mxu0
    %4584 = vmatpush.bf16.msra.mxu0 %v4025
    %4585 = vmatpush.bf16.msra.mxu0 %v4021
    %4586 = vmatpush.bf16.msra.mxu0 %v4017
    %4587 = vmatpush.bf16.msra.mxu0 %v4013
    %4588 = vmatpush.bf16.msra.mxu0 %v4009
    %4589 = vmatpush.bf16.msra.mxu0 %v4005
    %4590 = vmatpush.bf16.msra.mxu0 %v4001
    %4591 = vmatpush.bf16.msra.mxu0 %v3997
    %4592 = vmatmul.bf16.gmra.mxu0 %v2892
    %v4593 = vpop.f32.mrf.mxu0
    %v4594 = vadd.f32 %v4580, %v4593
    %v4595 = vpop.f32.mrf.mxu0
    %v4596 = vadd.f32 %v4582, %v4595
    %4597 = vdwg.mxu0
    %4598 = vmatpush.bf16.msra.mxu0 %v4057
    %4599 = vmatpush.bf16.msra.mxu0 %v4053
    %4600 = vmatpush.bf16.msra.mxu0 %v4049
    %4601 = vmatpush.bf16.msra.mxu0 %v4045
    %4602 = vmatpush.bf16.msra.mxu0 %v4041
    %4603 = vmatpush.bf16.msra.mxu0 %v4037
    %4604 = vmatpush.bf16.msra.mxu0 %v4033
    %4605 = vmatpush.bf16.msra.mxu0 %v4029
    %4606 = vmatmul.bf16.gmra.mxu0 %v2893
    %v4607 = vpop.f32.mrf.mxu0
    %v4608 = vadd.f32 %v4594, %v4607
    %v4609 = vpop.f32.mrf.mxu0
    %v4610 = vadd.f32 %v4596, %v4609
    %4611 = vdwg.mxu0
    %4612 = vmatpush.bf16.msra.mxu0 %v4089
    %4613 = vmatpush.bf16.msra.mxu0 %v4085
    %4614 = vmatpush.bf16.msra.mxu0 %v4081
    %4615 = vmatpush.bf16.msra.mxu0 %v4077
    %4616 = vmatpush.bf16.msra.mxu0 %v4073
    %4617 = vmatpush.bf16.msra.mxu0 %v4069
    %4618 = vmatpush.bf16.msra.mxu0 %v4065
    %4619 = vmatpush.bf16.msra.mxu0 %v4061
    %4620 = vmatmul.bf16.gmra.mxu0 %v2894
    %v4621 = vpop.f32.mrf.mxu0
    %v4622 = vadd.f32 %v4608, %v4621
    %v4623 = vpop.f32.mrf.mxu0
    %v4624 = vadd.f32 %v4610, %v4623
    %4625 = vdwg.mxu0
    %4626 = vmatpush.bf16.msra.mxu0 %v4121
    %4627 = vmatpush.bf16.msra.mxu0 %v4117
    %4628 = vmatpush.bf16.msra.mxu0 %v4113
    %4629 = vmatpush.bf16.msra.mxu0 %v4109
    %4630 = vmatpush.bf16.msra.mxu0 %v4105
    %4631 = vmatpush.bf16.msra.mxu0 %v4101
    %4632 = vmatpush.bf16.msra.mxu0 %v4097
    %4633 = vmatpush.bf16.msra.mxu0 %v4093
    %4634 = vmatmul.bf16.gmra.mxu0 %v2895
    %v4635 = vpop.f32.mrf.mxu0
    %v4636 = vadd.f32 %v4622, %v4635
    %v4637 = vpop.f32.mrf.mxu0
    %v4638 = vadd.f32 %v4624, %v4637
    %4639 = vdwg.mxu0
    %4640 = vmatpush.bf16.msra.mxu0 %v4153
    %4641 = vmatpush.bf16.msra.mxu0 %v4149
    %4642 = vmatpush.bf16.msra.mxu0 %v4145
    %4643 = vmatpush.bf16.msra.mxu0 %v4141
    %4644 = vmatpush.bf16.msra.mxu0 %v4137
    %4645 = vmatpush.bf16.msra.mxu0 %v4133
    %4646 = vmatpush.bf16.msra.mxu0 %v4129
    %4647 = vmatpush.bf16.msra.mxu0 %v4125
    %4648 = vmatmul.bf16.gmra.mxu0 %v2896
    %v4649 = vpop.f32.mrf.mxu0
    %v4650 = vadd.f32 %v4636, %v4649
    %v4651 = vpop.f32.mrf.mxu0
    %v4652 = vadd.f32 %v4638, %v4651
    %4653 = vdwg.mxu0
    %4654 = vmatpush.bf16.msra.mxu0 %v4185
    %4655 = vmatpush.bf16.msra.mxu0 %v4181
    %4656 = vmatpush.bf16.msra.mxu0 %v4177
    %4657 = vmatpush.bf16.msra.mxu0 %v4173
    %4658 = vmatpush.bf16.msra.mxu0 %v4169
    %4659 = vmatpush.bf16.msra.mxu0 %v4165
    %4660 = vmatpush.bf16.msra.mxu0 %v4161
    %4661 = vmatpush.bf16.msra.mxu0 %v4157
    %4662 = vmatmul.bf16.gmra.mxu0 %v2897
    %v4663 = vpop.f32.mrf.mxu0
    %v4664 = vadd.f32 %v4650, %v4663
    %v4665 = vpop.f32.mrf.mxu0
    %v4666 = vadd.f32 %v4652, %v4665
    %4667 = vdwg.mxu0
    %4668 = vmatpush.bf16.msra.mxu0 %v3962
    %4669 = vmatpush.bf16.msra.mxu0 %v3958
    %4670 = vmatpush.bf16.msra.mxu0 %v3954
    %4671 = vmatpush.bf16.msra.mxu0 %v3950
    %4672 = vmatpush.bf16.msra.mxu0 %v3946
    %4673 = vmatpush.bf16.msra.mxu0 %v3942
    %4674 = vmatpush.bf16.msra.mxu0 %v3938
    %4675 = vmatpush.bf16.msra.mxu0 %v3934
    %4676 = vmatmul.bf16.gmra.mxu0 %v2890
    %v4677 = vpop.f32.mrf.mxu0
    %v4678 = vadd.f32 %v3158, %v4677
    %v4679 = vpop.f32.mrf.mxu0
    %v4680 = vadd.f32 %v3158, %v4679
    %4681 = vdwg.mxu0
    %4682 = vmatpush.bf16.msra.mxu0 %v3994
    %4683 = vmatpush.bf16.msra.mxu0 %v3990
    %4684 = vmatpush.bf16.msra.mxu0 %v3986
    %4685 = vmatpush.bf16.msra.mxu0 %v3982
    %4686 = vmatpush.bf16.msra.mxu0 %v3978
    %4687 = vmatpush.bf16.msra.mxu0 %v3974
    %4688 = vmatpush.bf16.msra.mxu0 %v3970
    %4689 = vmatpush.bf16.msra.mxu0 %v3966
    %4690 = vmatmul.bf16.gmra.mxu0 %v2891
    %v4691 = vpop.f32.mrf.mxu0
    %v4692 = vadd.f32 %v4678, %v4691
    %v4693 = vpop.f32.mrf.mxu0
    %v4694 = vadd.f32 %v4680, %v4693
    %4695 = vdwg.mxu0
    %4696 = vmatpush.bf16.msra.mxu0 %v4026
    %4697 = vmatpush.bf16.msra.mxu0 %v4022
    %4698 = vmatpush.bf16.msra.mxu0 %v4018
    %4699 = vmatpush.bf16.msra.mxu0 %v4014
    %4700 = vmatpush.bf16.msra.mxu0 %v4010
    %4701 = vmatpush.bf16.msra.mxu0 %v4006
    %4702 = vmatpush.bf16.msra.mxu0 %v4002
    %4703 = vmatpush.bf16.msra.mxu0 %v3998
    %4704 = vmatmul.bf16.gmra.mxu0 %v2892
    %v4705 = vpop.f32.mrf.mxu0
    %v4706 = vadd.f32 %v4692, %v4705
    %v4707 = vpop.f32.mrf.mxu0
    %v4708 = vadd.f32 %v4694, %v4707
    %4709 = vdwg.mxu0
    %4710 = vmatpush.bf16.msra.mxu0 %v4058
    %4711 = vmatpush.bf16.msra.mxu0 %v4054
    %4712 = vmatpush.bf16.msra.mxu0 %v4050
    %4713 = vmatpush.bf16.msra.mxu0 %v4046
    %4714 = vmatpush.bf16.msra.mxu0 %v4042
    %4715 = vmatpush.bf16.msra.mxu0 %v4038
    %4716 = vmatpush.bf16.msra.mxu0 %v4034
    %4717 = vmatpush.bf16.msra.mxu0 %v4030
    %4718 = vmatmul.bf16.gmra.mxu0 %v2893
    %v4719 = vpop.f32.mrf.mxu0
    %v4720 = vadd.f32 %v4706, %v4719
    %v4721 = vpop.f32.mrf.mxu0
    %v4722 = vadd.f32 %v4708, %v4721
    %4723 = vdwg.mxu0
    %4724 = vmatpush.bf16.msra.mxu0 %v4090
    %4725 = vmatpush.bf16.msra.mxu0 %v4086
    %4726 = vmatpush.bf16.msra.mxu0 %v4082
    %4727 = vmatpush.bf16.msra.mxu0 %v4078
    %4728 = vmatpush.bf16.msra.mxu0 %v4074
    %4729 = vmatpush.bf16.msra.mxu0 %v4070
    %4730 = vmatpush.bf16.msra.mxu0 %v4066
    %4731 = vmatpush.bf16.msra.mxu0 %v4062
    %4732 = vmatmul.bf16.gmra.mxu0 %v2894
    %v4733 = vpop.f32.mrf.mxu0
    %v4734 = vadd.f32 %v4720, %v4733
    %v4735 = vpop.f32.mrf.mxu0
    %v4736 = vadd.f32 %v4722, %v4735
    %4737 = vdwg.mxu0
    %4738 = vmatpush.bf16.msra.mxu0 %v4122
    %4739 = vmatpush.bf16.msra.mxu0 %v4118
    %4740 = vmatpush.bf16.msra.mxu0 %v4114
    %4741 = vmatpush.bf16.msra.mxu0 %v4110
    %4742 = vmatpush.bf16.msra.mxu0 %v4106
    %4743 = vmatpush.bf16.msra.mxu0 %v4102
    %4744 = vmatpush.bf16.msra.mxu0 %v4098
    %4745 = vmatpush.bf16.msra.mxu0 %v4094
    %4746 = vmatmul.bf16.gmra.mxu0 %v2895
    %v4747 = vpop.f32.mrf.mxu0
    %v4748 = vadd.f32 %v4734, %v4747
    %v4749 = vpop.f32.mrf.mxu0
    %v4750 = vadd.f32 %v4736, %v4749
    %4751 = vdwg.mxu0
    %4752 = vmatpush.bf16.msra.mxu0 %v4154
    %4753 = vmatpush.bf16.msra.mxu0 %v4150
    %4754 = vmatpush.bf16.msra.mxu0 %v4146
    %4755 = vmatpush.bf16.msra.mxu0 %v4142
    %4756 = vmatpush.bf16.msra.mxu0 %v4138
    %4757 = vmatpush.bf16.msra.mxu0 %v4134
    %4758 = vmatpush.bf16.msra.mxu0 %v4130
    %4759 = vmatpush.bf16.msra.mxu0 %v4126
    %4760 = vmatmul.bf16.gmra.mxu0 %v2896
    %v4761 = vpop.f32.mrf.mxu0
    %v4762 = vadd.f32 %v4748, %v4761
    %v4763 = vpop.f32.mrf.mxu0
    %v4764 = vadd.f32 %v4750, %v4763
    %4765 = vdwg.mxu0
    %4766 = vmatpush.bf16.msra.mxu0 %v4186
    %4767 = vmatpush.bf16.msra.mxu0 %v4182
    %4768 = vmatpush.bf16.msra.mxu0 %v4178
    %4769 = vmatpush.bf16.msra.mxu0 %v4174
    %4770 = vmatpush.bf16.msra.mxu0 %v4170
    %4771 = vmatpush.bf16.msra.mxu0 %v4166
    %4772 = vmatpush.bf16.msra.mxu0 %v4162
    %4773 = vmatpush.bf16.msra.mxu0 %v4158
    %4774 = vmatmul.bf16.gmra.mxu0 %v2897
    %v4775 = vpop.f32.mrf.mxu0
    %v4776 = vadd.f32 %v4762, %v4775
    %v4777 = vpop.f32.mrf.mxu0
    %v4778 = vadd.f32 %v4764, %v4777
    %4779 = vdwg.mxu0
    %4780 = vmatpush.bf16.msra.mxu0 %v3963
    %4781 = vmatpush.bf16.msra.mxu0 %v3959
    %4782 = vmatpush.bf16.msra.mxu0 %v3955
    %4783 = vmatpush.bf16.msra.mxu0 %v3951
    %4784 = vmatpush.bf16.msra.mxu0 %v3947
    %4785 = vmatpush.bf16.msra.mxu0 %v3943
    %4786 = vmatpush.bf16.msra.mxu0 %v3939
    %4787 = vmatpush.bf16.msra.mxu0 %v3935
    %4788 = vmatmul.bf16.gmra.mxu0 %v2890
    %v4789 = vpop.f32.mrf.mxu0
    %v4790 = vadd.f32 %v3159, %v4789
    %v4791 = vpop.f32.mrf.mxu0
    %v4792 = vadd.f32 %v3159, %v4791
    %4793 = vdwg.mxu0
    %4794 = vmatpush.bf16.msra.mxu0 %v3995
    %4795 = vmatpush.bf16.msra.mxu0 %v3991
    %4796 = vmatpush.bf16.msra.mxu0 %v3987
    %4797 = vmatpush.bf16.msra.mxu0 %v3983
    %4798 = vmatpush.bf16.msra.mxu0 %v3979
    %4799 = vmatpush.bf16.msra.mxu0 %v3975
    %4800 = vmatpush.bf16.msra.mxu0 %v3971
    %4801 = vmatpush.bf16.msra.mxu0 %v3967
    %4802 = vmatmul.bf16.gmra.mxu0 %v2891
    %v4803 = vpop.f32.mrf.mxu0
    %v4804 = vadd.f32 %v4790, %v4803
    %v4805 = vpop.f32.mrf.mxu0
    %v4806 = vadd.f32 %v4792, %v4805
    %4807 = vdwg.mxu0
    %4808 = vmatpush.bf16.msra.mxu0 %v4027
    %4809 = vmatpush.bf16.msra.mxu0 %v4023
    %4810 = vmatpush.bf16.msra.mxu0 %v4019
    %4811 = vmatpush.bf16.msra.mxu0 %v4015
    %4812 = vmatpush.bf16.msra.mxu0 %v4011
    %4813 = vmatpush.bf16.msra.mxu0 %v4007
    %4814 = vmatpush.bf16.msra.mxu0 %v4003
    %4815 = vmatpush.bf16.msra.mxu0 %v3999
    %4816 = vmatmul.bf16.gmra.mxu0 %v2892
    %v4817 = vpop.f32.mrf.mxu0
    %v4818 = vadd.f32 %v4804, %v4817
    %v4819 = vpop.f32.mrf.mxu0
    %v4820 = vadd.f32 %v4806, %v4819
    %4821 = vdwg.mxu0
    %4822 = vmatpush.bf16.msra.mxu0 %v4059
    %4823 = vmatpush.bf16.msra.mxu0 %v4055
    %4824 = vmatpush.bf16.msra.mxu0 %v4051
    %4825 = vmatpush.bf16.msra.mxu0 %v4047
    %4826 = vmatpush.bf16.msra.mxu0 %v4043
    %4827 = vmatpush.bf16.msra.mxu0 %v4039
    %4828 = vmatpush.bf16.msra.mxu0 %v4035
    %4829 = vmatpush.bf16.msra.mxu0 %v4031
    %4830 = vmatmul.bf16.gmra.mxu0 %v2893
    %v4831 = vpop.f32.mrf.mxu0
    %v4832 = vadd.f32 %v4818, %v4831
    %v4833 = vpop.f32.mrf.mxu0
    %v4834 = vadd.f32 %v4820, %v4833
    %4835 = vdwg.mxu0
    %4836 = vmatpush.bf16.msra.mxu0 %v4091
    %4837 = vmatpush.bf16.msra.mxu0 %v4087
    %4838 = vmatpush.bf16.msra.mxu0 %v4083
    %4839 = vmatpush.bf16.msra.mxu0 %v4079
    %4840 = vmatpush.bf16.msra.mxu0 %v4075
    %4841 = vmatpush.bf16.msra.mxu0 %v4071
    %4842 = vmatpush.bf16.msra.mxu0 %v4067
    %4843 = vmatpush.bf16.msra.mxu0 %v4063
    %4844 = vmatmul.bf16.gmra.mxu0 %v2894
    %v4845 = vpop.f32.mrf.mxu0
    %v4846 = vadd.f32 %v4832, %v4845
    %v4847 = vpop.f32.mrf.mxu0
    %v4848 = vadd.f32 %v4834, %v4847
    %4849 = vdwg.mxu0
    %4850 = vmatpush.bf16.msra.mxu0 %v4123
    %4851 = vmatpush.bf16.msra.mxu0 %v4119
    %4852 = vmatpush.bf16.msra.mxu0 %v4115
    %4853 = vmatpush.bf16.msra.mxu0 %v4111
    %4854 = vmatpush.bf16.msra.mxu0 %v4107
    %4855 = vmatpush.bf16.msra.mxu0 %v4103
    %4856 = vmatpush.bf16.msra.mxu0 %v4099
    %4857 = vmatpush.bf16.msra.mxu0 %v4095
    %4858 = vmatmul.bf16.gmra.mxu0 %v2895
    %v4859 = vpop.f32.mrf.mxu0
    %v4860 = vadd.f32 %v4846, %v4859
    %v4861 = vpop.f32.mrf.mxu0
    %v4862 = vadd.f32 %v4848, %v4861
    %4863 = vdwg.mxu0
    %4864 = vmatpush.bf16.msra.mxu0 %v4155
    %4865 = vmatpush.bf16.msra.mxu0 %v4151
    %4866 = vmatpush.bf16.msra.mxu0 %v4147
    %4867 = vmatpush.bf16.msra.mxu0 %v4143
    %4868 = vmatpush.bf16.msra.mxu0 %v4139
    %4869 = vmatpush.bf16.msra.mxu0 %v4135
    %4870 = vmatpush.bf16.msra.mxu0 %v4131
    %4871 = vmatpush.bf16.msra.mxu0 %v4127
    %4872 = vmatmul.bf16.gmra.mxu0 %v2896
    %v4873 = vpop.f32.mrf.mxu0
    %v4874 = vadd.f32 %v4860, %v4873
    %v4875 = vpop.f32.mrf.mxu0
    %v4876 = vadd.f32 %v4862, %v4875
    %4877 = vdwg.mxu0
    %4878 = vmatpush.bf16.msra.mxu0 %v4187
    %4879 = vmatpush.bf16.msra.mxu0 %v4183
    %4880 = vmatpush.bf16.msra.mxu0 %v4179
    %4881 = vmatpush.bf16.msra.mxu0 %v4175
    %4882 = vmatpush.bf16.msra.mxu0 %v4171
    %4883 = vmatpush.bf16.msra.mxu0 %v4167
    %4884 = vmatpush.bf16.msra.mxu0 %v4163
    %4885 = vmatpush.bf16.msra.mxu0 %v4159
    %4886 = vmatmul.bf16.gmra.mxu0 %v2897
    %v4887 = vpop.f32.mrf.mxu0
    %v4888 = vadd.f32 %v4874, %v4887
    %v4889 = vpop.f32.mrf.mxu0
    %v4890 = vadd.f32 %v4876, %v4889
    %4891 = vdwg.mxu0
    %v4892 = vxor.u32 %v4552, 2147483648
    %v4893 = vxor.u32 %v4664, 2147483648
    %v4894 = vxor.u32 %v4776, 2147483648
    %v4895 = vxor.u32 %v4888, 2147483648
    %v4896 = vxor.u32 %v4554, 2147483648
    %v4897 = vxor.u32 %v4666, 2147483648
    %v4898 = vxor.u32 %v4778, 2147483648
    %v4899 = vxor.u32 %v4890, 2147483648
    %v4900 = vmul.f32 %v4892, 1.442695
    %v4901 = vpow.pop %v4900
    %v4902 = vmul.f32 %v4893, 1.442695
    %v4903 = vpow.pop %v4902
    %v4904 = vmul.f32 %v4894, 1.442695
    %v4905 = vpow.pop %v4904
    %v4906 = vmul.f32 %v4895, 1.442695
    %v4907 = vpow.pop %v4906
    %v4908 = vmul.f32 %v4896, 1.442695
    %v4909 = vpow.pop %v4908
    %v4910 = vmul.f32 %v4897, 1.442695
    %v4911 = vpow.pop %v4910
    %v4912 = vmul.f32 %v4898, 1.442695
    %v4913 = vpow.pop %v4912
    %v4914 = vmul.f32 %v4899, 1.442695
    %v4915 = vpow.pop %v4914
    %v4916 = vadd.f32 %v4901, 1.0
    %v4917 = vadd.f32 %v4903, 1.0
    %v4918 = vadd.f32 %v4905, 1.0
    %v4919 = vadd.f32 %v4907, 1.0
    %v4920 = vadd.f32 %v4909, 1.0
    %v4921 = vadd.f32 %v4911, 1.0
    %v4922 = vadd.f32 %v4913, 1.0
    %v4923 = vadd.f32 %v4915, 1.0
    %v4924 = vrcp.pop %v4916
    %v4925 = vmul.f32 %v4916, %v4924
    %v4926 = vsub.f32 1.0, %v4925
    %v4927 = vmul.f32 %v4924, %v4926
    %v4928 = vadd.f32 %v4924, %v4927
    %vm4929 = vweird.f32 %v4916
    %vm4930 = vweird.f32 %v4924
    %vm4931 = vmor %vm4929, %vm4930
    %v4932 = vsel %vm4931, %v4924, %v4928
    %v4933 = vand.u32 2147483647, %v4916
    %vm4934 = vcmp.eq.f32.partialorder %v4933, 8.507059e+37
    %v4935 = vand.u32 %v4916, 2147483648
    %v4936 = vor.u32 1.1754944e-38, %v4935
    %v4937 = vsel %vm4934, %v4936, %v4932
    %v4938 = vmul.f32 1.0, %v4937
    %v4939 = vrcp.pop %v4917
    %v4940 = vmul.f32 %v4917, %v4939
    %v4941 = vsub.f32 1.0, %v4940
    %v4942 = vmul.f32 %v4939, %v4941
    %v4943 = vadd.f32 %v4939, %v4942
    %vm4944 = vweird.f32 %v4917
    %vm4945 = vweird.f32 %v4939
    %vm4946 = vmor %vm4944, %vm4945
    %v4947 = vsel %vm4946, %v4939, %v4943
    %v4948 = vand.u32 2147483647, %v4917
    %vm4949 = vcmp.eq.f32.partialorder %v4948, 8.507059e+37
    %v4950 = vand.u32 %v4917, 2147483648
    %v4951 = vor.u32 1.1754944e-38, %v4950
    %v4952 = vsel %vm4949, %v4951, %v4947
    %v4953 = vmul.f32 1.0, %v4952
    %v4954 = vrcp.pop %v4918
    %v4955 = vmul.f32 %v4918, %v4954
    %v4956 = vsub.f32 1.0, %v4955
    %v4957 = vmul.f32 %v4954, %v4956
    %v4958 = vadd.f32 %v4954, %v4957
    %vm4959 = vweird.f32 %v4918
    %vm4960 = vweird.f32 %v4954
    %vm4961 = vmor %vm4959, %vm4960
    %v4962 = vsel %vm4961, %v4954, %v4958
    %v4963 = vand.u32 2147483647, %v4918
    %vm4964 = vcmp.eq.f32.partialorder %v4963, 8.507059e+37
    %v4965 = vand.u32 %v4918, 2147483648
    %v4966 = vor.u32 1.1754944e-38, %v4965
    %v4967 = vsel %vm4964, %v4966, %v4962
    %v4968 = vmul.f32 1.0, %v4967
    %v4969 = vrcp.pop %v4919
    %v4970 = vmul.f32 %v4919, %v4969
    %v4971 = vsub.f32 1.0, %v4970
    %v4972 = vmul.f32 %v4969, %v4971
    %v4973 = vadd.f32 %v4969, %v4972
    %vm4974 = vweird.f32 %v4919
    %vm4975 = vweird.f32 %v4969
    %vm4976 = vmor %vm4974, %vm4975
    %v4977 = vsel %vm4976, %v4969, %v4973
    %v4978 = vand.u32 2147483647, %v4919
    %vm4979 = vcmp.eq.f32.partialorder %v4978, 8.507059e+37
    %v4980 = vand.u32 %v4919, 2147483648
    %v4981 = vor.u32 1.1754944e-38, %v4980
    %v4982 = vsel %vm4979, %v4981, %v4977
    %v4983 = vmul.f32 1.0, %v4982
    %v4984 = vrcp.pop %v4920
    %v4985 = vmul.f32 %v4920, %v4984
    %v4986 = vsub.f32 1.0, %v4985
    %v4987 = vmul.f32 %v4984, %v4986
    %v4988 = vadd.f32 %v4984, %v4987
    %vm4989 = vweird.f32 %v4920
    %vm4990 = vweird.f32 %v4984
    %vm4991 = vmor %vm4989, %vm4990
    %v4992 = vsel %vm4991, %v4984, %v4988
    %v4993 = vand.u32 2147483647, %v4920
    %vm4994 = vcmp.eq.f32.partialorder %v4993, 8.507059e+37
    %v4995 = vand.u32 %v4920, 2147483648
    %v4996 = vor.u32 1.1754944e-38, %v4995
    %v4997 = vsel %vm4994, %v4996, %v4992
    %v4998 = vmul.f32 1.0, %v4997
    %v4999 = vrcp.pop %v4921
    %v5000 = vmul.f32 %v4921, %v4999
    %v5001 = vsub.f32 1.0, %v5000
    %v5002 = vmul.f32 %v4999, %v5001
    %v5003 = vadd.f32 %v4999, %v5002
    %vm5004 = vweird.f32 %v4921
    %vm5005 = vweird.f32 %v4999
    %vm5006 = vmor %vm5004, %vm5005
    %v5007 = vsel %vm5006, %v4999, %v5003
    %v5008 = vand.u32 2147483647, %v4921
    %vm5009 = vcmp.eq.f32.partialorder %v5008, 8.507059e+37
    %v5010 = vand.u32 %v4921, 2147483648
    %v5011 = vor.u32 1.1754944e-38, %v5010
    %v5012 = vsel %vm5009, %v5011, %v5007
    %v5013 = vmul.f32 1.0, %v5012
    %v5014 = vrcp.pop %v4922
    %v5015 = vmul.f32 %v4922, %v5014
    %v5016 = vsub.f32 1.0, %v5015
    %v5017 = vmul.f32 %v5014, %v5016
    %v5018 = vadd.f32 %v5014, %v5017
    %vm5019 = vweird.f32 %v4922
    %vm5020 = vweird.f32 %v5014
    %vm5021 = vmor %vm5019, %vm5020
    %v5022 = vsel %vm5021, %v5014, %v5018
    %v5023 = vand.u32 2147483647, %v4922
    %vm5024 = vcmp.eq.f32.partialorder %v5023, 8.507059e+37
    %v5025 = vand.u32 %v4922, 2147483648
    %v5026 = vor.u32 1.1754944e-38, %v5025
    %v5027 = vsel %vm5024, %v5026, %v5022
    %v5028 = vmul.f32 1.0, %v5027
    %v5029 = vrcp.pop %v4923
    %v5030 = vmul.f32 %v4923, %v5029
    %v5031 = vsub.f32 1.0, %v5030
    %v5032 = vmul.f32 %v5029, %v5031
    %v5033 = vadd.f32 %v5029, %v5032
    %vm5034 = vweird.f32 %v4923
    %vm5035 = vweird.f32 %v5029
    %vm5036 = vmor %vm5034, %vm5035
    %v5037 = vsel %vm5036, %v5029, %v5033
    %v5038 = vand.u32 2147483647, %v4923
    %vm5039 = vcmp.eq.f32.partialorder %v5038, 8.507059e+37
    %v5040 = vand.u32 %v4923, 2147483648
    %v5041 = vor.u32 1.1754944e-38, %v5040
    %v5042 = vsel %vm5039, %v5041, %v5037
    %v5043 = vmul.f32 1.0, %v5042
    %v5044 = vmul.f32 %v4552, %v4938
    %v5045 = vmul.f32 %v4664, %v4953
    %v5046 = vmul.f32 %v4776, %v4968
    %v5047 = vmul.f32 %v4888, %v4983
    %v5048 = vmul.f32 %v4554, %v4998
    %v5049 = vmul.f32 %v4666, %v5013
    %v5050 = vmul.f32 %v4778, %v5028
    %v5051 = vmul.f32 %v4890, %v5043
    %v5052 = vpack.c.bf16 %v5048, %v5044
    %v5053 = vpack.c.bf16 %v5049, %v5045
    %v5054 = vpack.c.bf16 %v5050, %v5046
    %v5055 = vpack.c.bf16 %v5051, %v5047
    %v5056 = vld [vmem:[#allocation13] sm:$0xf]
    %v5057 = vld [vmem:[#allocation13 + $0x4] sm:$0xf]
    %v5058 = vld [vmem:[#allocation13 + $0x8] sm:$0xf]
    %v5059 = vld [vmem:[#allocation13 + $0xc] sm:$0xf]
    %v5060 = vld [vmem:[#allocation13 + $0x10] sm:$0xf]
    %v5061 = vld [vmem:[#allocation13 + $0x14] sm:$0xf]
    %v5062 = vld [vmem:[#allocation13 + $0x18] sm:$0xf]
    %v5063 = vld [vmem:[#allocation13 + $0x1c] sm:$0xf]
    %v5064 = vld [vmem:[#allocation13 + $0x20] sm:$0xf]
    %v5065 = vld [vmem:[#allocation13 + $0x24] sm:$0xf]
    %v5066 = vld [vmem:[#allocation13 + $0x28] sm:$0xf]
    %v5067 = vld [vmem:[#allocation13 + $0x2c] sm:$0xf]
    %v5068 = vld [vmem:[#allocation13 + $0x30] sm:$0xf]
    %v5069 = vld [vmem:[#allocation13 + $0x34] sm:$0xf]
    %v5070 = vld [vmem:[#allocation13 + $0x38] sm:$0xf]
    %v5071 = vld [vmem:[#allocation13 + $0x3c] sm:$0xf]
    %v5072 = vld [vmem:[#allocation13 + $0x40] sm:$0xf]
    %v5073 = vld [vmem:[#allocation13 + $0x44] sm:$0xf]
    %v5074 = vld [vmem:[#allocation13 + $0x48] sm:$0xf]
    %v5075 = vld [vmem:[#allocation13 + $0x4c] sm:$0xf]
    %v5076 = vld [vmem:[#allocation13 + $0x50] sm:$0xf]
    %v5077 = vld [vmem:[#allocation13 + $0x54] sm:$0xf]
    %v5078 = vld [vmem:[#allocation13 + $0x58] sm:$0xf]
    %v5079 = vld [vmem:[#allocation13 + $0x5c] sm:$0xf]
    %v5080 = vld [vmem:[#allocation13 + $0x60] sm:$0xf]
    %v5081 = vld [vmem:[#allocation13 + $0x64] sm:$0xf]
    %v5082 = vld [vmem:[#allocation13 + $0x68] sm:$0xf]
    %v5083 = vld [vmem:[#allocation13 + $0x6c] sm:$0xf]
    %v5084 = vld [vmem:[#allocation13 + $0x70] sm:$0xf]
    %v5085 = vld [vmem:[#allocation13 + $0x74] sm:$0xf]
    %v5086 = vld [vmem:[#allocation13 + $0x78] sm:$0xf]
    %v5087 = vld [vmem:[#allocation13 + $0x7c] sm:$0xf]
    %v5088 = vld [vmem:[#allocation13 + $0x80] sm:$0xf]
    %v5089 = vld [vmem:[#allocation13 + $0x84] sm:$0xf]
    %v5090 = vld [vmem:[#allocation13 + $0x88] sm:$0xf]
    %v5091 = vld [vmem:[#allocation13 + $0x8c] sm:$0xf]
    %v5092 = vld [vmem:[#allocation13 + $0x90] sm:$0xf]
    %v5093 = vld [vmem:[#allocation13 + $0x94] sm:$0xf]
    %v5094 = vld [vmem:[#allocation13 + $0x98] sm:$0xf]
    %v5095 = vld [vmem:[#allocation13 + $0x9c] sm:$0xf]
    %v5096 = vld [vmem:[#allocation13 + $0xa0] sm:$0xf]
    %v5097 = vld [vmem:[#allocation13 + $0xa4] sm:$0xf]
    %v5098 = vld [vmem:[#allocation13 + $0xa8] sm:$0xf]
    %v5099 = vld [vmem:[#allocation13 + $0xac] sm:$0xf]
    %v5100 = vld [vmem:[#allocation13 + $0xb0] sm:$0xf]
    %v5101 = vld [vmem:[#allocation13 + $0xb4] sm:$0xf]
    %v5102 = vld [vmem:[#allocation13 + $0xb8] sm:$0xf]
    %v5103 = vld [vmem:[#allocation13 + $0xbc] sm:$0xf]
    %v5104 = vld [vmem:[#allocation13 + $0xc0] sm:$0xf]
    %v5105 = vld [vmem:[#allocation13 + $0xc4] sm:$0xf]
    %v5106 = vld [vmem:[#allocation13 + $0xc8] sm:$0xf]
    %v5107 = vld [vmem:[#allocation13 + $0xcc] sm:$0xf]
    %v5108 = vld [vmem:[#allocation13 + $0xd0] sm:$0xf]
    %v5109 = vld [vmem:[#allocation13 + $0xd4] sm:$0xf]
    %v5110 = vld [vmem:[#allocation13 + $0xd8] sm:$0xf]
    %v5111 = vld [vmem:[#allocation13 + $0xdc] sm:$0xf]
    %v5112 = vld [vmem:[#allocation13 + $0xe0] sm:$0xf]
    %v5113 = vld [vmem:[#allocation13 + $0xe4] sm:$0xf]
    %v5114 = vld [vmem:[#allocation13 + $0xe8] sm:$0xf]
    %v5115 = vld [vmem:[#allocation13 + $0xec] sm:$0xf]
    %v5116 = vld [vmem:[#allocation13 + $0xf0] sm:$0xf]
    %v5117 = vld [vmem:[#allocation13 + $0xf4] sm:$0xf]
    %v5118 = vld [vmem:[#allocation13 + $0xf8] sm:$0xf]
    %v5119 = vld [vmem:[#allocation13 + $0xfc] sm:$0xf]
    %v5120 = vld [vmem:[%s8] sm:$0x1]
    %v5122 = vperm.slane %v5120, 0
    %v5188 = vunpack.c.l.b16 %v5056
    %v5189 = vunpack.c.l.b16 %v5057
    %v5190 = vunpack.c.l.b16 %v5058
    %v5191 = vunpack.c.l.b16 %v5059
    %v5192 = vunpack.c.l.b16 %v5060
    %v5193 = vunpack.c.l.b16 %v5061
    %v5194 = vunpack.c.l.b16 %v5062
    %v5195 = vunpack.c.l.b16 %v5063
    %v5196 = vunpack.c.l.b16 %v5064
    %v5197 = vunpack.c.l.b16 %v5065
    %v5198 = vunpack.c.l.b16 %v5066
    %v5199 = vunpack.c.l.b16 %v5067
    %v5200 = vunpack.c.l.b16 %v5068
    %v5201 = vunpack.c.l.b16 %v5069
    %v5202 = vunpack.c.l.b16 %v5070
    %v5203 = vunpack.c.l.b16 %v5071
    %v5204 = vunpack.c.l.b16 %v5072
    %v5205 = vunpack.c.l.b16 %v5073
    %v5206 = vunpack.c.l.b16 %v5074
    %v5207 = vunpack.c.l.b16 %v5075
    %v5208 = vunpack.c.l.b16 %v5076
    %v5209 = vunpack.c.l.b16 %v5077
    %v5210 = vunpack.c.l.b16 %v5078
    %v5211 = vunpack.c.l.b16 %v5079
    %v5212 = vunpack.c.l.b16 %v5080
    %v5213 = vunpack.c.l.b16 %v5081
    %v5214 = vunpack.c.l.b16 %v5082
    %v5215 = vunpack.c.l.b16 %v5083
    %v5216 = vunpack.c.l.b16 %v5084
    %v5217 = vunpack.c.l.b16 %v5085
    %v5218 = vunpack.c.l.b16 %v5086
    %v5219 = vunpack.c.l.b16 %v5087
    %v5220 = vunpack.c.l.b16 %v5088
    %v5221 = vunpack.c.l.b16 %v5089
    %v5222 = vunpack.c.l.b16 %v5090
    %v5223 = vunpack.c.l.b16 %v5091
    %v5224 = vunpack.c.l.b16 %v5092
    %v5225 = vunpack.c.l.b16 %v5093
    %v5226 = vunpack.c.l.b16 %v5094
    %v5227 = vunpack.c.l.b16 %v5095
    %v5228 = vunpack.c.l.b16 %v5096
    %v5229 = vunpack.c.l.b16 %v5097
    %v5230 = vunpack.c.l.b16 %v5098
    %v5231 = vunpack.c.l.b16 %v5099
    %v5232 = vunpack.c.l.b16 %v5100
    %v5233 = vunpack.c.l.b16 %v5101
    %v5234 = vunpack.c.l.b16 %v5102
    %v5235 = vunpack.c.l.b16 %v5103
    %v5236 = vunpack.c.l.b16 %v5104
    %v5237 = vunpack.c.l.b16 %v5105
    %v5238 = vunpack.c.l.b16 %v5106
    %v5239 = vunpack.c.l.b16 %v5107
    %v5240 = vunpack.c.l.b16 %v5108
    %v5241 = vunpack.c.l.b16 %v5109
    %v5242 = vunpack.c.l.b16 %v5110
    %v5243 = vunpack.c.l.b16 %v5111
    %v5244 = vunpack.c.l.b16 %v5112
    %v5245 = vunpack.c.l.b16 %v5113
    %v5246 = vunpack.c.l.b16 %v5114
    %v5247 = vunpack.c.l.b16 %v5115
    %v5248 = vunpack.c.l.b16 %v5116
    %v5249 = vunpack.c.l.b16 %v5117
    %v5250 = vunpack.c.l.b16 %v5118
    %v5251 = vunpack.c.l.b16 %v5119
    %v5252 = vpack.c.b16 %v5189, %v5188
    %v5253 = vpack.c.b16 %v5191, %v5190
    %v5254 = vpack.c.b16 %v5193, %v5192
    %v5255 = vpack.c.b16 %v5195, %v5194
    %v5256 = vpack.c.b16 %v5197, %v5196
    %v5257 = vpack.c.b16 %v5199, %v5198
    %v5258 = vpack.c.b16 %v5201, %v5200
    %v5259 = vpack.c.b16 %v5203, %v5202
    %v5260 = vpack.c.b16 %v5205, %v5204
    %v5261 = vpack.c.b16 %v5207, %v5206
    %v5262 = vpack.c.b16 %v5209, %v5208
    %v5263 = vpack.c.b16 %v5211, %v5210
    %v5264 = vpack.c.b16 %v5213, %v5212
    %v5265 = vpack.c.b16 %v5215, %v5214
    %v5266 = vpack.c.b16 %v5217, %v5216
    %v5267 = vpack.c.b16 %v5219, %v5218
    %v5268 = vpack.c.b16 %v5221, %v5220
    %v5269 = vpack.c.b16 %v5223, %v5222
    %v5270 = vpack.c.b16 %v5225, %v5224
    %v5271 = vpack.c.b16 %v5227, %v5226
    %v5272 = vpack.c.b16 %v5229, %v5228
    %v5273 = vpack.c.b16 %v5231, %v5230
    %v5274 = vpack.c.b16 %v5233, %v5232
    %v5275 = vpack.c.b16 %v5235, %v5234
    %v5276 = vpack.c.b16 %v5237, %v5236
    %v5277 = vpack.c.b16 %v5239, %v5238
    %v5278 = vpack.c.b16 %v5241, %v5240
    %v5279 = vpack.c.b16 %v5243, %v5242
    %v5280 = vpack.c.b16 %v5245, %v5244
    %v5281 = vpack.c.b16 %v5247, %v5246
    %v5282 = vpack.c.b16 %v5249, %v5248
    %v5283 = vpack.c.b16 %v5251, %v5250
    %5316 = vmatpush.bf16.msra.mxu0 %v5259
    %5317 = vmatpush.bf16.msra.mxu0 %v5258
    %5318 = vmatpush.bf16.msra.mxu0 %v5257
    %5319 = vmatpush.bf16.msra.mxu0 %v5256
    %5320 = vmatpush.bf16.msra.mxu0 %v5255
    %5321 = vmatpush.bf16.msra.mxu0 %v5254
    %5322 = vmatpush.bf16.msra.mxu0 %v5253
    %5323 = vmatpush.bf16.msra.mxu0 %v5252
    %5324 = vmatmul.bf16.gmra.mxu0 %v5052
    %v5325 = vpop.f32.mrf.mxu0
    %v5326 = vadd.f32 %v5122, %v5325
    %v5327 = vpop.f32.mrf.mxu0
    %v5328 = vadd.f32 %v5122, %v5327
    %5329 = vdwg.mxu0
    %5330 = vmatpush.bf16.msra.mxu0 %v5267
    %5331 = vmatpush.bf16.msra.mxu0 %v5266
    %5332 = vmatpush.bf16.msra.mxu0 %v5265
    %5333 = vmatpush.bf16.msra.mxu0 %v5264
    %5334 = vmatpush.bf16.msra.mxu0 %v5263
    %5335 = vmatpush.bf16.msra.mxu0 %v5262
    %5336 = vmatpush.bf16.msra.mxu0 %v5261
    %5337 = vmatpush.bf16.msra.mxu0 %v5260
    %5338 = vmatmul.bf16.gmra.mxu0 %v5053
    %v5339 = vpop.f32.mrf.mxu0
    %v5340 = vadd.f32 %v5326, %v5339
    %v5341 = vpop.f32.mrf.mxu0
    %v5342 = vadd.f32 %v5328, %v5341
    %5343 = vdwg.mxu0
    %5344 = vmatpush.bf16.msra.mxu0 %v5275
    %5345 = vmatpush.bf16.msra.mxu0 %v5274
    %5346 = vmatpush.bf16.msra.mxu0 %v5273
    %5347 = vmatpush.bf16.msra.mxu0 %v5272
    %5348 = vmatpush.bf16.msra.mxu0 %v5271
    %5349 = vmatpush.bf16.msra.mxu0 %v5270
    %5350 = vmatpush.bf16.msra.mxu0 %v5269
    %5351 = vmatpush.bf16.msra.mxu0 %v5268
    %5352 = vmatmul.bf16.gmra.mxu0 %v5054
    %v5353 = vpop.f32.mrf.mxu0
    %v5354 = vadd.f32 %v5340, %v5353
    %v5355 = vpop.f32.mrf.mxu0
    %v5356 = vadd.f32 %v5342, %v5355
    %5357 = vdwg.mxu0
    %5358 = vmatpush.bf16.msra.mxu0 %v5283
    %5359 = vmatpush.bf16.msra.mxu0 %v5282
    %5360 = vmatpush.bf16.msra.mxu0 %v5281
    %5361 = vmatpush.bf16.msra.mxu0 %v5280
    %5362 = vmatpush.bf16.msra.mxu0 %v5279
    %5363 = vmatpush.bf16.msra.mxu0 %v5278
    %5364 = vmatpush.bf16.msra.mxu0 %v5277
    %5365 = vmatpush.bf16.msra.mxu0 %v5276
    %5366 = vmatmul.bf16.gmra.mxu0 %v5055
    %v5367 = vpop.f32.mrf.mxu0
    %v5368 = vadd.f32 %v5354, %v5367
    %v5369 = vpop.f32.mrf.mxu0
    %v5370 = vadd.f32 %v5356, %v5369
    %5371 = vdwg.mxu0
    %5372 = vst [vmem:[#allocation14] sm:$0xff] %v5368
    %5373 = vst [vmem:[#allocation14 + $0x8] sm:$0xff] %v5370
    // Predicated region
    $region66: #{tpu_custom_call.1} parent=1 // pred_check
      _
    $region67: #{tpu_custom_call.1} parent=1 // pred_check_branch
      %5375 = sbr.rel (0) target = $region69
    $region68: #{tpu_custom_call.1} parent=1 // pred_region
      %5377 = vsyncadd [#allocation4], 0
      %s5378 = sshll.u32 [#allocation14], 4
      %s5379 = int_to_ptr.vmem [resolvable:$true] %s5378
      %s5380 = sshll.u32 %s9, 4
      %s5381 = int_to_ptr.hbm [resolvable:$true] %s5380
      %5386 = dma.vmem_to_hbm [thread:$0]  %s5379, 256, %s5381, [#allocation4], 128, 128, 8
    $region69: #{tpu_custom_call.1} parent=1 // pred_fallthru
      _
    // Predicated region
    $region70: #{tpu_custom_call.1} parent=1 // pred_check
      _
    $region71: #{tpu_custom_call.1} parent=1 // pred_check_branch
      %5388 = sbr.rel (0) target = $region73
    $region72: #{tpu_custom_call.1} parent=1 // pred_region
      %5390 = dma.done [#allocation4], 256
    $region73: #{tpu_custom_call.1} parent=1 // pred_fallthru
      _
    %5391 = vsyncpa [#allocation3], 1
    %5392 = vsyncpa [#allocation6], 1
    %5393 = vsyncpa [#allocation9], 1
    %5394 = vsyncpa [#allocation12], 1
    %5395 = vsyncpa [#allocation4], 1

</llo_original>
